<compile_context>
chip_gen: v7x
topology: tpu7x:2x2x1
jax: 0.10.0
libtpu: 0.0.40
codegen_flags: <defaults>
</compile_context>

<pallas_src>
import numpy as np
import jax
import jax.numpy as jnp
from jax import lax
from jax.experimental import pallas as pl
from jax.experimental.pallas import tpu as pltpu

# Small test shapes consistent with the module (module hardcodes b=128, d=128,
# head_num=8; batch/seq reduced for a quick test, d/H kept structural).
B = 8            # batch
S = 8            # sequence length (inferred from view(b, -1, H, HD))
D = 128          # model dim
H = 8            # head_num
HD = D // H      # head dim = 16
SCALE = float(np.sqrt(D / H))    # d_h = 4.0
INV_SCALE = 1.0 / SCALE          # 0.25, folded into Q (exact power of two)


# ---------------------------------------------------------------------------
# Fused kernel: QKV projection + all-head attention + batch-axis softmax
# ---------------------------------------------------------------------------
def mha_kernel(x_ref, w_ref, b_ref, o_ref):
    # x: (B*S, D) bf16;  w: (D, 3D) = [Wq | Wk | Wv] bf16;  b: (1, 3D) f32;
    # o: (B*S, D) f32.
    # One lane-dense MXU matmul for all three projections (bf16 in, f32 acc).
    qkv = jnp.dot(x_ref[...], w_ref[...],
                  preferred_element_type=jnp.float32) + b_ref[...]
    q = (qkv[:, 0 * D:1 * D] * INV_SCALE).reshape(B, S, D)   # scale folded in
    k = qkv[:, 1 * D:2 * D].reshape(B, S, D)
    v = qkv[:, 2 * D:3 * D].reshape(B, S, D)

    # Head split: stack the H per-head (B, S, HD) lane slices along a leading
    # "head-major batch" axis -> (H*B, S, HD).  Everything downstream is a
    # single batched op (no per-head matmul/softmax unroll).
    def stack_heads(t):
        return jnp.concatenate(
            [t[:, :, h * HD:(h + 1) * HD] for h in range(H)], axis=0)

    qs = stack_heads(q).astype(jnp.bfloat16)   # (H*B, S, HD)
    ks = stack_heads(k).astype(jnp.bfloat16)
    vs = stack_heads(v).astype(jnp.bfloat16)

    # ONE batched MXU matmul for all heads: scores[hb, i, j].
    s = lax.dot_general(qs, ks, (((2,), (2,)), ((0,), (0,))),
                        preferred_element_type=jnp.float32)       # (H*B, S, S)

    # nn.Softmax(dim=0): normalize over the BATCH axis per head.  All softmax
    # math stays in f32 (exact division, no approximate reciprocal).
    s4 = s.reshape(H, B, S, S)
    m = jnp.max(s4, axis=1, keepdims=True)
    e = jnp.exp(s4 - m)
    attn = (e / jnp.sum(e, axis=1, keepdims=True)).reshape(H * B, S, S)

    # Dropout == identity (inference).  ONE batched matmul: attn @ V.
    out = lax.dot_general(attn.astype(jnp.bfloat16), vs,
                          (((2,), (1,)), ((0,), (0,))),
                          preferred_element_type=jnp.float32)     # (H*B, S, HD)

    # Heads re-concatenated along the lane axis -> one dense (B*S, 128) store.
    o_ref[...] = jnp.concatenate(
        [out[h * B:(h + 1) * B] for h in range(H)], axis=-1).reshape(B * S, D)


def fuse_qkv_params(wq, wk, wv, bq, bk, bv):
    # Hoisted out of the jitted forward: done ONCE at init (review item 6).
    w_qkv = jnp.concatenate([wq, wk, wv], axis=1).astype(jnp.bfloat16)   # (D, 3D)
    b_qkv = jnp.concatenate([bq, bk, bv]).reshape(1, 3 * D).astype(jnp.float32)
    return w_qkv, b_qkv


@jax.jit
def multihead_attention(x, w_qkv, b_qkv):
    # Leading-dim merge only (no relayout); activations fed to the MXU in bf16.
    x2d = x.reshape(B * S, D).astype(jnp.bfloat16)
    vmem = pl.BlockSpec(memory_space=pltpu.MemorySpace.VMEM)
    cost = pl.CostEstimate(
        flops=2 * (B * S) * D * (3 * D)            # QKV projection
              + 2 * 2 * (H * B) * S * S * HD,      # scores + attn @ V
        transcendentals=H * B * S * S,             # exp in the softmax
        bytes_accessed=(B * S * D) * 2 + D * (3 * D) * 2
                       + (3 * D) * 4 + (B * S * D) * 4,
    )
    out = pl.pallas_call(
        mha_kernel,
        out_shape=jax.ShapeDtypeStruct((B * S, D), jnp.float32),
        in_specs=[vmem, vmem, vmem],
        out_specs=vmem,
        cost_estimate=cost,
    )(x2d, w_qkv, b_qkv)
    return out.reshape(B, S, D)                    # leading-dim split, free


# ---------------------------------------------------------------------------
# Pure-JAX reference: mirrors the PyTorch forward op-for-op, under the SAME
# mixed-precision policy as the kernel (bf16 MXU inputs / f32 accumulation,
# f32 softmax), so the comparison checks the kernel, not the precision policy.
# ---------------------------------------------------------------------------
def ref_forward(x, wq, wk, wv, bq, bk, bv):
    xb = x.astype(jnp.bfloat16)
    q = jnp.dot(xb, wq.astype(jnp.bfloat16), preferred_element_type=jnp.float32) + bq
    k = jnp.dot(xb, wk.astype(jnp.bfloat16), preferred_element_type=jnp.float32) + bk
    v = jnp.dot(xb, wv.astype(jnp.bfloat16), preferred_element_type=jnp.float32) + bv
    q = q.reshape(B, S, H, HD).transpose(0, 2, 1, 3)      # (B, H, S, HD)
    k = k.reshape(B, S, H, HD).transpose(0, 2, 3, 1)      # (B, H, HD, S)
    v = v.reshape(B, S, H, HD).transpose(0, 2, 1, 3)      # (B, H, S, HD)
    s = jnp.matmul(q.astype(jnp.bfloat16), k.astype(jnp.bfloat16),
                   preferred_element_type=jnp.float32) / SCALE        # (B,H,S,S)
    attn = jax.nn.softmax(s, axis=0)                      # softmax over batch
    out = jnp.matmul(attn.astype(jnp.bfloat16), v.astype(jnp.bfloat16),
                     preferred_element_type=jnp.float32)  # (B, H, S, HD)
    return out.transpose(0, 2, 1, 3).reshape(B, S, D)


if __name__ == "__main__":
    key = jax.random.PRNGKey(0)
    kx, k1, k2, k3, k4, k5, k6 = jax.random.split(key, 7)

    x = jax.random.normal(kx, (B, S, D), jnp.float32)
    bound = 1.0 / np.sqrt(D)   # PyTorch nn.Linear default init bound
    # Weights stored pre-transposed, i.e. (D_in, D_out): y = x @ W + b
    # (== PyTorch's x @ weight.T + bias with weight of shape (out, in)).
    wq = jax.random.uniform(k1, (D, D), jnp.float32, -bound, bound)
    wk = jax.random.uniform(k2, (D, D), jnp.float32, -bound, bound)
    wv = jax.random.uniform(k3, (D, D), jnp.float32, -bound, bound)
    bq = jax.random.uniform(k4, (D,), jnp.float32, -bound, bound)
    bk = jax.random.uniform(k5, (D,), jnp.float32, -bound, bound)
    bv = jax.random.uniform(k6, (D,), jnp.float32, -bound, bound)

    w_qkv, b_qkv = fuse_qkv_params(wq, wk, wv, bq, bk, bv)   # once, outside jit

    out = jax.block_until_ready(multihead_attention(x, w_qkv, b_qkv))
    ref = jax.block_until_ready(ref_forward(x, wq, wk, wv, bq, bk, bv))

    # Kernel and reference share the same bf16-in / f32-accumulate MXU policy
    # and f32 softmax, so they agree to ~1e-6 in the typical case; the atol is
    # the bf16-policy bound (one bf16 ulp on a single attention weight / value
    # element), not an avoidable approximation.  rtol tightened 2x vs. before.
    np.testing.assert_allclose(np.asarray(out), np.asarray(ref),
                               rtol=1e-3, atol=2e-3)
    print("KERNEL_OK")
</pallas_src>

<mosaic_0001>
module attributes {stable_mosaic.version = 11 : i64} {
  func.func @mha_kernel(%arg0: memref<64x128xbf16, #tpu.memory_space<vmem>>, %arg1: memref<128x384xbf16, #tpu.memory_space<vmem>>, %arg2: memref<1x384xf32, #tpu.memory_space<vmem>>, %arg3: memref<64x128xf32, #tpu.memory_space<vmem>>) attributes {dimension_semantics = [], scalar_prefetch = 0 : i64, scratch_operands = 0 : i64, tpu.core_type = #tpu.core_type<tc>} {
    %c0 = arith.constant 0 : index
    %c0_0 = arith.constant 0 : index
    %0 = vector.load %arg0[%c0, %c0_0] : memref<64x128xbf16, #tpu.memory_space<vmem>>, vector<64x128xbf16>
    %c0_1 = arith.constant 0 : index
    %c0_2 = arith.constant 0 : index
    %1 = vector.load %arg1[%c0_1, %c0_2] : memref<128x384xbf16, #tpu.memory_space<vmem>>, vector<128x384xbf16>
    %cst = arith.constant dense<0.000000e+00> : vector<64x384xf32>
    %2 = tpu.matmul %0, %1, %cst {dimension_numbers = #tpu.dot_dimension_numbers<[1], [0], [0], [1], [0, 0, 1, 1], [], []>} : vector<64x128xbf16>, vector<128x384xbf16>, vector<64x384xf32> -> vector<64x384xf32>
    %c0_3 = arith.constant 0 : index
    %c0_4 = arith.constant 0 : index
    %3 = vector.load %arg2[%c0_3, %c0_4] : memref<1x384xf32, #tpu.memory_space<vmem>>, vector<1x384xf32>
    %4 = vector.broadcast %3 : vector<1x384xf32> to vector<64x384xf32>
    %5 = arith.addf %2, %4 : vector<64x384xf32>
    %6 = vector.extract_strided_slice %5 {offsets = [0, 0], sizes = [64, 128], strides = [1, 1]} : vector<64x384xf32> to vector<64x128xf32>
    %cst_5 = arith.constant 2.500000e-01 : f32
    %7 = vector.broadcast %cst_5 : f32 to vector<64x128xf32>
    %8 = arith.mulf %6, %7 : vector<64x128xf32>
    %9 = vector.shape_cast %8 : vector<64x128xf32> to vector<8x8x128xf32>
    %10 = vector.extract_strided_slice %5 {offsets = [0, 128], sizes = [64, 128], strides = [1, 1]} : vector<64x384xf32> to vector<64x128xf32>
    %11 = vector.shape_cast %10 : vector<64x128xf32> to vector<8x8x128xf32>
    %12 = vector.extract_strided_slice %5 {offsets = [0, 256], sizes = [64, 128], strides = [1, 1]} : vector<64x384xf32> to vector<64x128xf32>
    %13 = vector.shape_cast %12 : vector<64x128xf32> to vector<8x8x128xf32>
    %14 = vector.extract_strided_slice %9 {offsets = [0, 0, 0], sizes = [8, 8, 16], strides = [1, 1, 1]} : vector<8x8x128xf32> to vector<8x8x16xf32>
    %15 = vector.extract_strided_slice %9 {offsets = [0, 0, 16], sizes = [8, 8, 16], strides = [1, 1, 1]} : vector<8x8x128xf32> to vector<8x8x16xf32>
    %16 = vector.extract_strided_slice %9 {offsets = [0, 0, 32], sizes = [8, 8, 16], strides = [1, 1, 1]} : vector<8x8x128xf32> to vector<8x8x16xf32>
    %17 = vector.extract_strided_slice %9 {offsets = [0, 0, 48], sizes = [8, 8, 16], strides = [1, 1, 1]} : vector<8x8x128xf32> to vector<8x8x16xf32>
    %18 = vector.extract_strided_slice %9 {offsets = [0, 0, 64], sizes = [8, 8, 16], strides = [1, 1, 1]} : vector<8x8x128xf32> to vector<8x8x16xf32>
    %19 = vector.extract_strided_slice %9 {offsets = [0, 0, 80], sizes = [8, 8, 16], strides = [1, 1, 1]} : vector<8x8x128xf32> to vector<8x8x16xf32>
    %20 = vector.extract_strided_slice %9 {offsets = [0, 0, 96], sizes = [8, 8, 16], strides = [1, 1, 1]} : vector<8x8x128xf32> to vector<8x8x16xf32>
    %21 = vector.extract_strided_slice %9 {offsets = [0, 0, 112], sizes = [8, 8, 16], strides = [1, 1, 1]} : vector<8x8x128xf32> to vector<8x8x16xf32>
    %22 = tpu.concatenate %14, %15, %16, %17, %18, %19, %20, %21 in 0 : vector<8x8x16xf32>, vector<8x8x16xf32>, vector<8x8x16xf32>, vector<8x8x16xf32>, vector<8x8x16xf32>, vector<8x8x16xf32>, vector<8x8x16xf32>, vector<8x8x16xf32> -> vector<64x8x16xf32>
    %23 = arith.truncf %22 : vector<64x8x16xf32> to vector<64x8x16xbf16>
    %24 = vector.extract_strided_slice %11 {offsets = [0, 0, 0], sizes = [8, 8, 16], strides = [1, 1, 1]} : vector<8x8x128xf32> to vector<8x8x16xf32>
    %25 = vector.extract_strided_slice %11 {offsets = [0, 0, 16], sizes = [8, 8, 16], strides = [1, 1, 1]} : vector<8x8x128xf32> to vector<8x8x16xf32>
    %26 = vector.extract_strided_slice %11 {offsets = [0, 0, 32], sizes = [8, 8, 16], strides = [1, 1, 1]} : vector<8x8x128xf32> to vector<8x8x16xf32>
    %27 = vector.extract_strided_slice %11 {offsets = [0, 0, 48], sizes = [8, 8, 16], strides = [1, 1, 1]} : vector<8x8x128xf32> to vector<8x8x16xf32>
    %28 = vector.extract_strided_slice %11 {offsets = [0, 0, 64], sizes = [8, 8, 16], strides = [1, 1, 1]} : vector<8x8x128xf32> to vector<8x8x16xf32>
    %29 = vector.extract_strided_slice %11 {offsets = [0, 0, 80], sizes = [8, 8, 16], strides = [1, 1, 1]} : vector<8x8x128xf32> to vector<8x8x16xf32>
    %30 = vector.extract_strided_slice %11 {offsets = [0, 0, 96], sizes = [8, 8, 16], strides = [1, 1, 1]} : vector<8x8x128xf32> to vector<8x8x16xf32>
    %31 = vector.extract_strided_slice %11 {offsets = [0, 0, 112], sizes = [8, 8, 16], strides = [1, 1, 1]} : vector<8x8x128xf32> to vector<8x8x16xf32>
    %32 = tpu.concatenate %24, %25, %26, %27, %28, %29, %30, %31 in 0 : vector<8x8x16xf32>, vector<8x8x16xf32>, vector<8x8x16xf32>, vector<8x8x16xf32>, vector<8x8x16xf32>, vector<8x8x16xf32>, vector<8x8x16xf32>, vector<8x8x16xf32> -> vector<64x8x16xf32>
    %33 = arith.truncf %32 : vector<64x8x16xf32> to vector<64x8x16xbf16>
    %34 = vector.extract_strided_slice %13 {offsets = [0, 0, 0], sizes = [8, 8, 16], strides = [1, 1, 1]} : vector<8x8x128xf32> to vector<8x8x16xf32>
    %35 = vector.extract_strided_slice %13 {offsets = [0, 0, 16], sizes = [8, 8, 16], strides = [1, 1, 1]} : vector<8x8x128xf32> to vector<8x8x16xf32>
    %36 = vector.extract_strided_slice %13 {offsets = [0, 0, 32], sizes = [8, 8, 16], strides = [1, 1, 1]} : vector<8x8x128xf32> to vector<8x8x16xf32>
    %37 = vector.extract_strided_slice %13 {offsets = [0, 0, 48], sizes = [8, 8, 16], strides = [1, 1, 1]} : vector<8x8x128xf32> to vector<8x8x16xf32>
    %38 = vector.extract_strided_slice %13 {offsets = [0, 0, 64], sizes = [8, 8, 16], strides = [1, 1, 1]} : vector<8x8x128xf32> to vector<8x8x16xf32>
    %39 = vector.extract_strided_slice %13 {offsets = [0, 0, 80], sizes = [8, 8, 16], strides = [1, 1, 1]} : vector<8x8x128xf32> to vector<8x8x16xf32>
    %40 = vector.extract_strided_slice %13 {offsets = [0, 0, 96], sizes = [8, 8, 16], strides = [1, 1, 1]} : vector<8x8x128xf32> to vector<8x8x16xf32>
    %41 = vector.extract_strided_slice %13 {offsets = [0, 0, 112], sizes = [8, 8, 16], strides = [1, 1, 1]} : vector<8x8x128xf32> to vector<8x8x16xf32>
    %42 = tpu.concatenate %34, %35, %36, %37, %38, %39, %40, %41 in 0 : vector<8x8x16xf32>, vector<8x8x16xf32>, vector<8x8x16xf32>, vector<8x8x16xf32>, vector<8x8x16xf32>, vector<8x8x16xf32>, vector<8x8x16xf32>, vector<8x8x16xf32> -> vector<64x8x16xf32>
    %43 = arith.truncf %42 : vector<64x8x16xf32> to vector<64x8x16xbf16>
    %cst_6 = arith.constant dense<0.000000e+00> : vector<64x8x8xf32>
    %44 = tpu.matmul %23, %33, %cst_6 {dimension_numbers = #tpu.dot_dimension_numbers<[2], [2], [1], [1], [0, 0, 0, 1, 1, 1], [0], [0]>} : vector<64x8x16xbf16>, vector<64x8x16xbf16>, vector<64x8x8xf32> -> vector<64x8x8xf32>
    %45 = vector.shape_cast %44 : vector<64x8x8xf32> to vector<8x8x8x8xf32>
    %cst_7 = arith.constant dense<0xFF800000> : vector<8x8x8xf32>
    %46 = vector.multi_reduction <maximumf>, %45, %cst_7 [1] : vector<8x8x8x8xf32> to vector<8x8x8xf32>
    %47 = vector.shape_cast %46 : vector<8x8x8xf32> to vector<8x1x8x8xf32>
    %48 = vector.broadcast %47 : vector<8x1x8x8xf32> to vector<8x8x8x8xf32>
    %49 = arith.subf %45, %48 : vector<8x8x8x8xf32>
    %50 = math.exp %49 : vector<8x8x8x8xf32>
    %cst_8 = arith.constant dense<0.000000e+00> : vector<8x8x8xf32>
    %51 = vector.multi_reduction <add>, %50, %cst_8 [1] : vector<8x8x8x8xf32> to vector<8x8x8xf32>
    %52 = vector.shape_cast %51 : vector<8x8x8xf32> to vector<8x1x8x8xf32>
    %53 = vector.broadcast %52 : vector<8x1x8x8xf32> to vector<8x8x8x8xf32>
    %54 = arith.divf %50, %53 : vector<8x8x8x8xf32>
    %55 = vector.shape_cast %54 : vector<8x8x8x8xf32> to vector<64x8x8xf32>
    %56 = arith.truncf %55 : vector<64x8x8xf32> to vector<64x8x8xbf16>
    %cst_9 = arith.constant dense<0.000000e+00> : vector<64x8x16xf32>
    %57 = tpu.matmul %56, %43, %cst_9 {dimension_numbers = #tpu.dot_dimension_numbers<[2], [1], [1], [2], [0, 0, 0, 1, 1, 2], [0], [0]>} : vector<64x8x8xbf16>, vector<64x8x16xbf16>, vector<64x8x16xf32> -> vector<64x8x16xf32>
    %58 = vector.extract_strided_slice %57 {offsets = [0, 0, 0], sizes = [8, 8, 16], strides = [1, 1, 1]} : vector<64x8x16xf32> to vector<8x8x16xf32>
    %59 = vector.extract_strided_slice %57 {offsets = [8, 0, 0], sizes = [8, 8, 16], strides = [1, 1, 1]} : vector<64x8x16xf32> to vector<8x8x16xf32>
    %60 = vector.extract_strided_slice %57 {offsets = [16, 0, 0], sizes = [8, 8, 16], strides = [1, 1, 1]} : vector<64x8x16xf32> to vector<8x8x16xf32>
    %61 = vector.extract_strided_slice %57 {offsets = [24, 0, 0], sizes = [8, 8, 16], strides = [1, 1, 1]} : vector<64x8x16xf32> to vector<8x8x16xf32>
    %62 = vector.extract_strided_slice %57 {offsets = [32, 0, 0], sizes = [8, 8, 16], strides = [1, 1, 1]} : vector<64x8x16xf32> to vector<8x8x16xf32>
    %63 = vector.extract_strided_slice %57 {offsets = [40, 0, 0], sizes = [8, 8, 16], strides = [1, 1, 1]} : vector<64x8x16xf32> to vector<8x8x16xf32>
    %64 = vector.extract_strided_slice %57 {offsets = [48, 0, 0], sizes = [8, 8, 16], strides = [1, 1, 1]} : vector<64x8x16xf32> to vector<8x8x16xf32>
    %65 = vector.extract_strided_slice %57 {offsets = [56, 0, 0], sizes = [8, 8, 16], strides = [1, 1, 1]} : vector<64x8x16xf32> to vector<8x8x16xf32>
    %66 = tpu.concatenate %58, %59, %60, %61, %62, %63, %64, %65 in 2 : vector<8x8x16xf32>, vector<8x8x16xf32>, vector<8x8x16xf32>, vector<8x8x16xf32>, vector<8x8x16xf32>, vector<8x8x16xf32>, vector<8x8x16xf32>, vector<8x8x16xf32> -> vector<8x8x128xf32>
    %67 = vector.shape_cast %66 : vector<8x8x128xf32> to vector<64x128xf32>
    %c0_10 = arith.constant 0 : index
    %c0_11 = arith.constant 0 : index
    %68 = vector.load %arg3[%c0_10, %c0_11] : memref<64x128xf32, #tpu.memory_space<vmem>>, vector<64x128xf32>
    tpu.vector_store %arg3[%c0_10, %c0_11], %67 {strides = array<i32>} : memref<64x128xf32, #tpu.memory_space<vmem>>, vector<64x128xf32>,
    return
  }
}

</mosaic_0001>

<llo_original>
// kernel: multihead_attention.1
$region0: #{multihead_attention.1}
  #allocation0 [shape = 'u32[]', space=smem, size = 0x4, offset = 0x4, fixed_abs, tag = 'smem constant byte address 0x4 - core index']
  #allocation1 [shape = 'u32[144,128]{1,0:T(1,128)}', space=vmem, size = 0x12000, scoped, tag = 'internal scratch']
  %s0 = inlined_call_operand.vmem [shape: bf16[64,128], index: 0, kind: input, shape index: {}]
  %s1 = inlined_call_operand.hbm [shape: bf16[128,384], index: 1, kind: input, shape index: {}]
  %s2 = inlined_call_operand.vmem [shape: f32[1,384], index: 2, kind: input, shape index: {}]
  %s3 = inlined_call_operand.hbm [shape: f32[64,128], index: 3, kind: output, shape index: {}]
  %s4 = sld [smem:[#allocation0]]
  $region26: #{multihead_attention.1} parent=0
    _
  %s6 = ssub.s32 1, %s4
  %s7 = scalar_select 0, %s6, %s4
  $region1: #{multihead_attention.1} parent=0
    #allocation2 [shape = 'u8[98304]{0}', space=vmem, size = 0x18000, scoped, tag = 'input window, operand 1, single buffered']
    #allocation3 [shape = 's32[1]{0}', space=sflag, size = 0x4, scoped, tag = 'scoped memory for multihead_attention.1']
    #allocation4 [shape = 's32[1]{0}', space=sflag, size = 0x4, scoped, tag = 'scoped memory for multihead_attention.1']
    #allocation5 [shape = 'u8[32768]{0}', space=vmem, size = 0x8000, scoped, tag = 'output window, operand 0, single buffered']
    %8 = vsyncpa [#allocation3], 0
    %9 = vsyncpa [#allocation4], 0
    // Predicated region
    $region2: #{multihead_attention.1} parent=1 // pred_check
      _
    $region3: #{multihead_attention.1} parent=1 // pred_check_branch
      %11 = sbr.rel (0) target = $region5
    $region4: #{multihead_attention.1} parent=1 // pred_region
      _
    $region5: #{multihead_attention.1} parent=1 // pred_fallthru
      _
    // Predicated region
    $region6: #{multihead_attention.1} parent=1 // pred_check
      _
    $region7: #{multihead_attention.1} parent=1 // pred_check_branch
      %13 = sbr.rel (0) target = $region9
    $region8: #{multihead_attention.1} parent=1 // pred_region
      %s15 = ssub.s32 3072, 3072
      %16 = vsyncadd [#allocation3], %s15
      %s17 = sshll.u32 [#allocation2], 4
      %s18 = int_to_ptr.vmem [resolvable:$true] %s17
      %23 = dma.hbm_to_vmem [thread:$0]  %s1, 3072, %s18, [#allocation3], 192, 192, 12
    $region9: #{multihead_attention.1} parent=1 // pred_fallthru
      _
    // Predicated region
    $region10: #{multihead_attention.1} parent=1 // pred_check
      _
    $region11: #{multihead_attention.1} parent=1 // pred_check_branch
      %25 = sbr.rel (0) target = $region13
    $region12: #{multihead_attention.1} parent=1 // pred_region
      _
    $region13: #{multihead_attention.1} parent=1 // pred_fallthru
      _
    // Predicated region
    $region14: #{multihead_attention.1} parent=1 // pred_check
      _
    $region15: #{multihead_attention.1} parent=1 // pred_check_branch
      %27 = sbr.rel (0) target = $region17
    $region16: #{multihead_attention.1} parent=1 // pred_region
      %28 = dma.done [#allocation3], 3072
    $region17: #{multihead_attention.1} parent=1 // pred_fallthru
      _
    %v30 = vld [vmem:[%s0] sm:$0xf]
    %v31 = vld [vmem:[%s0 + $0x4] sm:$0xf]
    %v32 = vld [vmem:[%s0 + $0x8] sm:$0xf]
    %v33 = vld [vmem:[%s0 + $0xc] sm:$0xf]
    %v34 = vld [vmem:[%s0 + $0x10] sm:$0xf]
    %v35 = vld [vmem:[%s0 + $0x14] sm:$0xf]
    %v36 = vld [vmem:[%s0 + $0x18] sm:$0xf]
    %v37 = vld [vmem:[%s0 + $0x1c] sm:$0xf]
    %v38 = vld [vmem:[#allocation2] sm:$0xff]
    %v39 = vld [vmem:[#allocation2 + $0x8] sm:$0xf]
    %v40 = vld [vmem:[#allocation2 + $0xc] sm:$0xff]
    %v41 = vld [vmem:[#allocation2 + $0x14] sm:$0xf]
    %v42 = vld [vmem:[#allocation2 + $0x18] sm:$0xff]
    %v43 = vld [vmem:[#allocation2 + $0x20] sm:$0xf]
    %v44 = vld [vmem:[#allocation2 + $0x24] sm:$0xff]
    %v45 = vld [vmem:[#allocation2 + $0x2c] sm:$0xf]
    %v46 = vld [vmem:[#allocation2 + $0x30] sm:$0xff]
    %v47 = vld [vmem:[#allocation2 + $0x38] sm:$0xf]
    %v48 = vld [vmem:[#allocation2 + $0x3c] sm:$0xff]
    %v49 = vld [vmem:[#allocation2 + $0x44] sm:$0xf]
    %v50 = vld [vmem:[#allocation2 + $0x48] sm:$0xff]
    %v51 = vld [vmem:[#allocation2 + $0x50] sm:$0xf]
    %v52 = vld [vmem:[#allocation2 + $0x54] sm:$0xff]
    %v53 = vld [vmem:[#allocation2 + $0x5c] sm:$0xf]
    %v54 = vld [vmem:[#allocation2 + $0x60] sm:$0xff]
    %v55 = vld [vmem:[#allocation2 + $0x68] sm:$0xf]
    %v56 = vld [vmem:[#allocation2 + $0x6c] sm:$0xff]
    %v57 = vld [vmem:[#allocation2 + $0x74] sm:$0xf]
    %v58 = vld [vmem:[#allocation2 + $0x78] sm:$0xff]
    %v59 = vld [vmem:[#allocation2 + $0x80] sm:$0xf]
    %v60 = vld [vmem:[#allocation2 + $0x84] sm:$0xff]
    %v61 = vld [vmem:[#allocation2 + $0x8c] sm:$0xf]
    %v62 = vld [vmem:[#allocation2 + $0x90] sm:$0xff]
    %v63 = vld [vmem:[#allocation2 + $0x98] sm:$0xf]
    %v64 = vld [vmem:[#allocation2 + $0x9c] sm:$0xff]
    %v65 = vld [vmem:[#allocation2 + $0xa4] sm:$0xf]
    %v66 = vld [vmem:[#allocation2 + $0xa8] sm:$0xff]
    %v67 = vld [vmem:[#allocation2 + $0xb0] sm:$0xf]
    %v68 = vld [vmem:[#allocation2 + $0xb4] sm:$0xff]
    %v69 = vld [vmem:[#allocation2 + $0xbc] sm:$0xf]
    %v70 = vld [vmem:[%s2] sm:$0x7]
    %v72 = vlaneseq
    %v73 = vshrl.u32 %v72, 7
    %v74 = vsub.s32 0, %v73
    %v75 = vrot.slane %v70, %v74
    %v76 = vlaneseq
    %v77 = vshrl.u32 %v76, 7
    %v78 = vsub.s32 1, %v77
    %v79 = vrot.slane %v70, %v78
    %v80 = vlaneseq
    %v81 = vshrl.u32 %v80, 7
    %v82 = vsub.s32 2, %v81
    %v83 = vrot.slane %v70, %v82
    %v95 = vunpack.c.l.b16 %v30
    %v96 = vunpack.c.l.b16 %v31
    %v97 = vunpack.c.l.b16 %v32
    %v98 = vunpack.c.l.b16 %v33
    %v99 = vunpack.c.l.b16 %v34
    %v100 = vunpack.c.l.b16 %v35
    %v101 = vunpack.c.l.b16 %v36
    %v102 = vunpack.c.l.b16 %v37
    %v103 = vpack.c.b16 %v96, %v95
    %v104 = vpack.c.b16 %v98, %v97
    %v105 = vpack.c.b16 %v100, %v99
    %v106 = vpack.c.b16 %v102, %v101
    %v143 = vunpack.c.l.b16 %v38
    %v144 = vunpack.c.h.b16 %v38
    %v145 = vunpack.c.l.b16 %v39
    %v146 = vunpack.c.l.b16 %v40
    %v147 = vunpack.c.h.b16 %v40
    %v148 = vunpack.c.l.b16 %v41
    %v149 = vunpack.c.l.b16 %v42
    %v150 = vunpack.c.h.b16 %v42
    %v151 = vunpack.c.l.b16 %v43
    %v152 = vunpack.c.l.b16 %v44
    %v153 = vunpack.c.h.b16 %v44
    %v154 = vunpack.c.l.b16 %v45
    %v155 = vunpack.c.l.b16 %v46
    %v156 = vunpack.c.h.b16 %v46
    %v157 = vunpack.c.l.b16 %v47
    %v158 = vunpack.c.l.b16 %v48
    %v159 = vunpack.c.h.b16 %v48
    %v160 = vunpack.c.l.b16 %v49
    %v161 = vunpack.c.l.b16 %v50
    %v162 = vunpack.c.h.b16 %v50
    %v163 = vunpack.c.l.b16 %v51
    %v164 = vunpack.c.l.b16 %v52
    %v165 = vunpack.c.h.b16 %v52
    %v166 = vunpack.c.l.b16 %v53
    %v167 = vunpack.c.l.b16 %v54
    %v168 = vunpack.c.h.b16 %v54
    %v169 = vunpack.c.l.b16 %v55
    %v170 = vunpack.c.l.b16 %v56
    %v171 = vunpack.c.h.b16 %v56
    %v172 = vunpack.c.l.b16 %v57
    %v173 = vunpack.c.l.b16 %v58
    %v174 = vunpack.c.h.b16 %v58
    %v175 = vunpack.c.l.b16 %v59
    %v176 = vunpack.c.l.b16 %v60
    %v177 = vunpack.c.h.b16 %v60
    %v178 = vunpack.c.l.b16 %v61
    %v179 = vunpack.c.l.b16 %v62
    %v180 = vunpack.c.h.b16 %v62
    %v181 = vunpack.c.l.b16 %v63
    %v182 = vunpack.c.l.b16 %v64
    %v183 = vunpack.c.h.b16 %v64
    %v184 = vunpack.c.l.b16 %v65
    %v185 = vunpack.c.l.b16 %v66
    %v186 = vunpack.c.h.b16 %v66
    %v187 = vunpack.c.l.b16 %v67
    %v188 = vunpack.c.l.b16 %v68
    %v189 = vunpack.c.h.b16 %v68
    %v190 = vunpack.c.l.b16 %v69
    %v191 = vpack.c.b16 %v146, %v143
    %v192 = vpack.c.b16 %v147, %v144
    %v193 = vpack.c.b16 %v148, %v145
    %v194 = vpack.c.b16 %v152, %v149
    %v195 = vpack.c.b16 %v153, %v150
    %v196 = vpack.c.b16 %v154, %v151
    %v197 = vpack.c.b16 %v158, %v155
    %v198 = vpack.c.b16 %v159, %v156
    %v199 = vpack.c.b16 %v160, %v157
    %v200 = vpack.c.b16 %v164, %v161
    %v201 = vpack.c.b16 %v165, %v162
    %v202 = vpack.c.b16 %v166, %v163
    %v203 = vpack.c.b16 %v170, %v167
    %v204 = vpack.c.b16 %v171, %v168
    %v205 = vpack.c.b16 %v172, %v169
    %v206 = vpack.c.b16 %v176, %v173
    %v207 = vpack.c.b16 %v177, %v174
    %v208 = vpack.c.b16 %v178, %v175
    %v209 = vpack.c.b16 %v182, %v179
    %v210 = vpack.c.b16 %v183, %v180
    %v211 = vpack.c.b16 %v184, %v181
    %v212 = vpack.c.b16 %v188, %v185
    %v213 = vpack.c.b16 %v189, %v186
    %v214 = vpack.c.b16 %v190, %v187
    %239 = vmatprep.subr.bf16.mxu0 %v192
    %240 = vmatpush1.bf16.msra.mxu0 %v191
    %241 = vmatprep.subr.bf16.mxu0 %v195
    %242 = vmatpush1.bf16.msra.mxu0 %v194
    %243 = vmatprep.subr.bf16.mxu0 %v198
    %244 = vmatpush1.bf16.msra.mxu0 %v197
    %245 = vmatprep.subr.bf16.mxu0 %v201
    %246 = vmatpush1.bf16.msra.mxu0 %v200
    %247 = vmatprep.subr.bf16.mxu0 %v204
    %248 = vmatpush1.bf16.msra.mxu0 %v203
    %249 = vmatprep.subr.bf16.mxu0 %v207
    %250 = vmatpush1.bf16.msra.mxu0 %v206
    %251 = vmatprep.subr.bf16.mxu0 %v210
    %252 = vmatpush1.bf16.msra.mxu0 %v209
    %253 = vmatprep.subr.bf16.mxu0 %v213
    %254 = vmatpush1.bf16.msra.mxu0 %v212
    %255 = vmatprep.subr.bf16.mxu0 0
    %256 = vmatpush1.bf16.msra.mxu0 0
    %257 = vmatprep.subr.bf16.mxu0 0
    %258 = vmatpush1.bf16.msra.mxu0 0
    %259 = vmatprep.subr.bf16.mxu0 0
    %260 = vmatpush1.bf16.msra.mxu0 0
    %261 = vmatprep.subr.bf16.mxu0 0
    %262 = vmatpush1.bf16.msra.mxu0 0
    %263 = vmatprep.subr.bf16.mxu0 0
    %264 = vmatpush1.bf16.msra.mxu0 0
    %265 = vmatprep.subr.bf16.mxu0 0
    %266 = vmatpush1.bf16.msra.mxu0 0
    %267 = vmatprep.subr.bf16.mxu0 0
    %268 = vmatpush1.bf16.msra.mxu0 0
    %269 = vmatprep.subr.bf16.mxu0 0
    %270 = vmatpush1.bf16.msra.mxu0 0
    %271 = vmatprep.mubr.bf16.mxu0 0
    %272 = vmatmul.mubr.bf16.gmra.mrb[0].mxu0 %v103
    %v273 = vpop.f32.mrb[0].mxu0
    %v274 = vadd.f32 %v75, %v273
    %v275 = vpop.f32.mrb[0].mxu0
    %v276 = vadd.f32 %v79, %v275
    %v277 = vpop.f32.mrb[0].mxu0
    %v278 = vadd.f32 %v75, %v277
    %v279 = vpop.f32.mrb[0].mxu0
    %v280 = vadd.f32 %v79, %v279
    %281 = vmatprep.mubr.bf16.mxu0 0
    %282 = vmatmul.mubr.bf16.gmra.mrb[0].mxu0 %v104
    %v283 = vpop.f32.mrb[0].mxu0
    %v284 = vadd.f32 %v75, %v283
    %v285 = vpop.f32.mrb[0].mxu0
    %v286 = vadd.f32 %v79, %v285
    %v287 = vpop.f32.mrb[0].mxu0
    %v288 = vadd.f32 %v75, %v287
    %v289 = vpop.f32.mrb[0].mxu0
    %v290 = vadd.f32 %v79, %v289
    %291 = vmatprep.mubr.bf16.mxu0 0
    %292 = vmatmul.mubr.bf16.gmra.mrb[0].mxu0 %v105
    %v293 = vpop.f32.mrb[0].mxu0
    %v294 = vadd.f32 %v75, %v293
    %v295 = vpop.f32.mrb[0].mxu0
    %v296 = vadd.f32 %v79, %v295
    %v297 = vpop.f32.mrb[0].mxu0
    %v298 = vadd.f32 %v75, %v297
    %v299 = vpop.f32.mrb[0].mxu0
    %v300 = vadd.f32 %v79, %v299
    %301 = vmatprep.mubr.bf16.mxu0 0
    %302 = vmatmul.mubr.bf16.gmra.mrb[0].mxu0 %v106
    %v303 = vpop.f32.mrb[0].mxu0
    %v304 = vadd.f32 %v75, %v303
    %v305 = vpop.f32.mrb[0].mxu0
    %v306 = vadd.f32 %v79, %v305
    %v307 = vpop.f32.mrb[0].mxu0
    %v308 = vadd.f32 %v75, %v307
    %v309 = vpop.f32.mrb[0].mxu0
    %v310 = vadd.f32 %v79, %v309
    %311 = vdwg.mxu0
    %312 = vmatprep.subr.bf16.mxu0 0
    %313 = vmatpush1.bf16.msra.mxu0 %v193
    %314 = vmatprep.subr.bf16.mxu0 0
    %315 = vmatpush1.bf16.msra.mxu0 %v196
    %316 = vmatprep.subr.bf16.mxu0 0
    %317 = vmatpush1.bf16.msra.mxu0 %v199
    %318 = vmatprep.subr.bf16.mxu0 0
    %319 = vmatpush1.bf16.msra.mxu0 %v202
    %320 = vmatprep.subr.bf16.mxu0 0
    %321 = vmatpush1.bf16.msra.mxu0 %v205
    %322 = vmatprep.subr.bf16.mxu0 0
    %323 = vmatpush1.bf16.msra.mxu0 %v208
    %324 = vmatprep.subr.bf16.mxu0 0
    %325 = vmatpush1.bf16.msra.mxu0 %v211
    %326 = vmatprep.subr.bf16.mxu0 0
    %327 = vmatpush1.bf16.msra.mxu0 %v214
    %328 = vmatprep.subr.bf16.mxu0 0
    %329 = vmatpush1.bf16.msra.mxu0 0
    %330 = vmatprep.subr.bf16.mxu0 0
    %331 = vmatpush1.bf16.msra.mxu0 0
    %332 = vmatprep.subr.bf16.mxu0 0
    %333 = vmatpush1.bf16.msra.mxu0 0
    %334 = vmatprep.subr.bf16.mxu0 0
    %335 = vmatpush1.bf16.msra.mxu0 0
    %336 = vmatprep.subr.bf16.mxu0 0
    %337 = vmatpush1.bf16.msra.mxu0 0
    %338 = vmatprep.subr.bf16.mxu0 0
    %339 = vmatpush1.bf16.msra.mxu0 0
    %340 = vmatprep.subr.bf16.mxu0 0
    %341 = vmatpush1.bf16.msra.mxu0 0
    %342 = vmatprep.subr.bf16.mxu0 0
    %343 = vmatpush1.bf16.msra.mxu0 0
    %344 = vmatprep.mubr.bf16.mxu0 0
    %345 = vmatmul.mubr.bf16.gmra.mrb[0].mxu0 %v103
    %v346 = vpop.f32.mrb[0].mxu0
    %v347 = vadd.f32 %v83, %v346
    %v348 = vpop.f32.mrb[0].mxu0
    %v349 = vpop.f32.mrb[0].mxu0
    %v350 = vadd.f32 %v83, %v349
    %v351 = vpop.f32.mrb[0].mxu0
    %352 = vmatprep.mubr.bf16.mxu0 0
    %353 = vmatmul.mubr.bf16.gmra.mrb[0].mxu0 %v104
    %v354 = vpop.f32.mrb[0].mxu0
    %v355 = vadd.f32 %v83, %v354
    %v356 = vpop.f32.mrb[0].mxu0
    %v357 = vpop.f32.mrb[0].mxu0
    %v358 = vadd.f32 %v83, %v357
    %v359 = vpop.f32.mrb[0].mxu0
    %360 = vmatprep.mubr.bf16.mxu0 0
    %361 = vmatmul.mubr.bf16.gmra.mrb[0].mxu0 %v105
    %v362 = vpop.f32.mrb[0].mxu0
    %v363 = vadd.f32 %v83, %v362
    %v364 = vpop.f32.mrb[0].mxu0
    %v365 = vpop.f32.mrb[0].mxu0
    %v366 = vadd.f32 %v83, %v365
    %v367 = vpop.f32.mrb[0].mxu0
    %368 = vmatprep.mubr.bf16.mxu0 0
    %369 = vmatmul.mubr.bf16.gmra.mrb[0].mxu0 %v106
    %v370 = vpop.f32.mrb[0].mxu0
    %v371 = vadd.f32 %v83, %v370
    %v372 = vpop.f32.mrb[0].mxu0
    %v373 = vpop.f32.mrb[0].mxu0
    %v374 = vadd.f32 %v83, %v373
    %v375 = vpop.f32.mrb[0].mxu0
    %376 = vdwg.mxu0
    %v377 = vmul.f32 %v274, 0.25
    %v378 = vmul.f32 %v278, 0.25
    %v379 = vmul.f32 %v284, 0.25
    %v380 = vmul.f32 %v288, 0.25
    %v381 = vmul.f32 %v294, 0.25
    %v382 = vmul.f32 %v298, 0.25
    %v383 = vmul.f32 %v304, 0.25
    %v384 = vmul.f32 %v308, 0.25
    %393 = vrot.lane.b32.xlu0 %v377, 112
    %v394 = vpop.permute.xlu0 %393
    %395 = vrot.lane.b32.xlu0 %v378, 112
    %v396 = vpop.permute.xlu0 %395
    %397 = vrot.lane.b32.xlu0 %v379, 112
    %v398 = vpop.permute.xlu0 %397
    %399 = vrot.lane.b32.xlu0 %v380, 112
    %v400 = vpop.permute.xlu0 %399
    %401 = vrot.lane.b32.xlu0 %v381, 112
    %v402 = vpop.permute.xlu0 %401
    %403 = vrot.lane.b32.xlu0 %v382, 112
    %v404 = vpop.permute.xlu0 %403
    %405 = vrot.lane.b32.xlu0 %v383, 112
    %v406 = vpop.permute.xlu0 %405
    %407 = vrot.lane.b32.xlu0 %v384, 112
    %v408 = vpop.permute.xlu0 %407
    %417 = vrot.lane.b32.xlu0 %v377, 96
    %v418 = vpop.permute.xlu0 %417
    %419 = vrot.lane.b32.xlu0 %v378, 96
    %v420 = vpop.permute.xlu0 %419
    %421 = vrot.lane.b32.xlu0 %v379, 96
    %v422 = vpop.permute.xlu0 %421
    %423 = vrot.lane.b32.xlu0 %v380, 96
    %v424 = vpop.permute.xlu0 %423
    %425 = vrot.lane.b32.xlu0 %v381, 96
    %v426 = vpop.permute.xlu0 %425
    %427 = vrot.lane.b32.xlu0 %v382, 96
    %v428 = vpop.permute.xlu0 %427
    %429 = vrot.lane.b32.xlu0 %v383, 96
    %v430 = vpop.permute.xlu0 %429
    %431 = vrot.lane.b32.xlu0 %v384, 96
    %v432 = vpop.permute.xlu0 %431
    %441 = vrot.lane.b32.xlu0 %v377, 80
    %v442 = vpop.permute.xlu0 %441
    %443 = vrot.lane.b32.xlu0 %v378, 80
    %v444 = vpop.permute.xlu0 %443
    %445 = vrot.lane.b32.xlu0 %v379, 80
    %v446 = vpop.permute.xlu0 %445
    %447 = vrot.lane.b32.xlu0 %v380, 80
    %v448 = vpop.permute.xlu0 %447
    %449 = vrot.lane.b32.xlu0 %v381, 80
    %v450 = vpop.permute.xlu0 %449
    %451 = vrot.lane.b32.xlu0 %v382, 80
    %v452 = vpop.permute.xlu0 %451
    %453 = vrot.lane.b32.xlu0 %v383, 80
    %v454 = vpop.permute.xlu0 %453
    %455 = vrot.lane.b32.xlu0 %v384, 80
    %v456 = vpop.permute.xlu0 %455
    %465 = vrot.lane.b32.xlu0 %v377, 64
    %v466 = vpop.permute.xlu0 %465
    %467 = vrot.lane.b32.xlu0 %v378, 64
    %v468 = vpop.permute.xlu0 %467
    %469 = vrot.lane.b32.xlu0 %v379, 64
    %v470 = vpop.permute.xlu0 %469
    %471 = vrot.lane.b32.xlu0 %v380, 64
    %v472 = vpop.permute.xlu0 %471
    %473 = vrot.lane.b32.xlu0 %v381, 64
    %v474 = vpop.permute.xlu0 %473
    %475 = vrot.lane.b32.xlu0 %v382, 64
    %v476 = vpop.permute.xlu0 %475
    %477 = vrot.lane.b32.xlu0 %v383, 64
    %v478 = vpop.permute.xlu0 %477
    %479 = vrot.lane.b32.xlu0 %v384, 64
    %v480 = vpop.permute.xlu0 %479
    %489 = vrot.lane.b32.xlu0 %v377, 48
    %v490 = vpop.permute.xlu0 %489
    %491 = vrot.lane.b32.xlu0 %v378, 48
    %v492 = vpop.permute.xlu0 %491
    %493 = vrot.lane.b32.xlu0 %v379, 48
    %v494 = vpop.permute.xlu0 %493
    %495 = vrot.lane.b32.xlu0 %v380, 48
    %v496 = vpop.permute.xlu0 %495
    %497 = vrot.lane.b32.xlu0 %v381, 48
    %v498 = vpop.permute.xlu0 %497
    %499 = vrot.lane.b32.xlu0 %v382, 48
    %v500 = vpop.permute.xlu0 %499
    %501 = vrot.lane.b32.xlu0 %v383, 48
    %v502 = vpop.permute.xlu0 %501
    %503 = vrot.lane.b32.xlu0 %v384, 48
    %v504 = vpop.permute.xlu0 %503
    %513 = vrot.lane.b32.xlu0 %v377, 32
    %v514 = vpop.permute.xlu0 %513
    %515 = vrot.lane.b32.xlu0 %v378, 32
    %v516 = vpop.permute.xlu0 %515
    %517 = vrot.lane.b32.xlu0 %v379, 32
    %v518 = vpop.permute.xlu0 %517
    %519 = vrot.lane.b32.xlu0 %v380, 32
    %v520 = vpop.permute.xlu0 %519
    %521 = vrot.lane.b32.xlu0 %v381, 32
    %v522 = vpop.permute.xlu0 %521
    %523 = vrot.lane.b32.xlu0 %v382, 32
    %v524 = vpop.permute.xlu0 %523
    %525 = vrot.lane.b32.xlu0 %v383, 32
    %v526 = vpop.permute.xlu0 %525
    %527 = vrot.lane.b32.xlu0 %v384, 32
    %v528 = vpop.permute.xlu0 %527
    %537 = vrot.lane.b32.xlu0 %v377, 16
    %v538 = vpop.permute.xlu0 %537
    %539 = vrot.lane.b32.xlu0 %v378, 16
    %v540 = vpop.permute.xlu0 %539
    %541 = vrot.lane.b32.xlu0 %v379, 16
    %v542 = vpop.permute.xlu0 %541
    %543 = vrot.lane.b32.xlu0 %v380, 16
    %v544 = vpop.permute.xlu0 %543
    %545 = vrot.lane.b32.xlu0 %v381, 16
    %v546 = vpop.permute.xlu0 %545
    %547 = vrot.lane.b32.xlu0 %v382, 16
    %v548 = vpop.permute.xlu0 %547
    %549 = vrot.lane.b32.xlu0 %v383, 16
    %v550 = vpop.permute.xlu0 %549
    %551 = vrot.lane.b32.xlu0 %v384, 16
    %v552 = vpop.permute.xlu0 %551
    %v561 = vpack.c.bf16 %v377, %v377
    %v562 = vpack.c.bf16 %v378, %v378
    %v563 = vpack.c.bf16 %v379, %v379
    %v564 = vpack.c.bf16 %v380, %v380
    %v565 = vpack.c.bf16 %v381, %v381
    %v566 = vpack.c.bf16 %v382, %v382
    %v567 = vpack.c.bf16 %v383, %v383
    %v568 = vpack.c.bf16 %v384, %v384
    %v569 = vpack.c.bf16 %v394, %v394
    %v570 = vpack.c.bf16 %v396, %v396
    %v571 = vpack.c.bf16 %v398, %v398
    %v572 = vpack.c.bf16 %v400, %v400
    %v573 = vpack.c.bf16 %v402, %v402
    %v574 = vpack.c.bf16 %v404, %v404
    %v575 = vpack.c.bf16 %v406, %v406
    %v576 = vpack.c.bf16 %v408, %v408
    %v577 = vpack.c.bf16 %v418, %v418
    %v578 = vpack.c.bf16 %v420, %v420
    %v579 = vpack.c.bf16 %v422, %v422
    %v580 = vpack.c.bf16 %v424, %v424
    %v581 = vpack.c.bf16 %v426, %v426
    %v582 = vpack.c.bf16 %v428, %v428
    %v583 = vpack.c.bf16 %v430, %v430
    %v584 = vpack.c.bf16 %v432, %v432
    %v585 = vpack.c.bf16 %v442, %v442
    %v586 = vpack.c.bf16 %v444, %v444
    %v587 = vpack.c.bf16 %v446, %v446
    %v588 = vpack.c.bf16 %v448, %v448
    %v589 = vpack.c.bf16 %v450, %v450
    %v590 = vpack.c.bf16 %v452, %v452
    %v591 = vpack.c.bf16 %v454, %v454
    %v592 = vpack.c.bf16 %v456, %v456
    %v593 = vpack.c.bf16 %v466, %v466
    %v594 = vpack.c.bf16 %v468, %v468
    %v595 = vpack.c.bf16 %v470, %v470
    %v596 = vpack.c.bf16 %v472, %v472
    %v597 = vpack.c.bf16 %v474, %v474
    %v598 = vpack.c.bf16 %v476, %v476
    %v599 = vpack.c.bf16 %v478, %v478
    %v600 = vpack.c.bf16 %v480, %v480
    %v601 = vpack.c.bf16 %v490, %v490
    %v602 = vpack.c.bf16 %v492, %v492
    %v603 = vpack.c.bf16 %v494, %v494
    %v604 = vpack.c.bf16 %v496, %v496
    %v605 = vpack.c.bf16 %v498, %v498
    %v606 = vpack.c.bf16 %v500, %v500
    %v607 = vpack.c.bf16 %v502, %v502
    %v608 = vpack.c.bf16 %v504, %v504
    %v609 = vpack.c.bf16 %v514, %v514
    %v610 = vpack.c.bf16 %v516, %v516
    %v611 = vpack.c.bf16 %v518, %v518
    %v612 = vpack.c.bf16 %v520, %v520
    %v613 = vpack.c.bf16 %v522, %v522
    %v614 = vpack.c.bf16 %v524, %v524
    %v615 = vpack.c.bf16 %v526, %v526
    %v616 = vpack.c.bf16 %v528, %v528
    %v617 = vpack.c.bf16 %v538, %v538
    %v618 = vpack.c.bf16 %v540, %v540
    %v619 = vpack.c.bf16 %v542, %v542
    %v620 = vpack.c.bf16 %v544, %v544
    %v621 = vpack.c.bf16 %v546, %v546
    %v622 = vpack.c.bf16 %v548, %v548
    %v623 = vpack.c.bf16 %v550, %v550
    %v624 = vpack.c.bf16 %v552, %v552
    %633 = vrot.lane.b32.xlu0 %v276, 112
    %v634 = vpop.permute.xlu0 %633
    %635 = vrot.lane.b32.xlu0 %v280, 112
    %v636 = vpop.permute.xlu0 %635
    %637 = vrot.lane.b32.xlu0 %v286, 112
    %v638 = vpop.permute.xlu0 %637
    %639 = vrot.lane.b32.xlu0 %v290, 112
    %v640 = vpop.permute.xlu0 %639
    %641 = vrot.lane.b32.xlu0 %v296, 112
    %v642 = vpop.permute.xlu0 %641
    %643 = vrot.lane.b32.xlu0 %v300, 112
    %v644 = vpop.permute.xlu0 %643
    %645 = vrot.lane.b32.xlu0 %v306, 112
    %v646 = vpop.permute.xlu0 %645
    %647 = vrot.lane.b32.xlu0 %v310, 112
    %v648 = vpop.permute.xlu0 %647
    %657 = vrot.lane.b32.xlu0 %v276, 96
    %v658 = vpop.permute.xlu0 %657
    %659 = vrot.lane.b32.xlu0 %v280, 96
    %v660 = vpop.permute.xlu0 %659
    %661 = vrot.lane.b32.xlu0 %v286, 96
    %v662 = vpop.permute.xlu0 %661
    %663 = vrot.lane.b32.xlu0 %v290, 96
    %v664 = vpop.permute.xlu0 %663
    %665 = vrot.lane.b32.xlu0 %v296, 96
    %v666 = vpop.permute.xlu0 %665
    %667 = vrot.lane.b32.xlu0 %v300, 96
    %v668 = vpop.permute.xlu0 %667
    %669 = vrot.lane.b32.xlu0 %v306, 96
    %v670 = vpop.permute.xlu0 %669
    %671 = vrot.lane.b32.xlu0 %v310, 96
    %v672 = vpop.permute.xlu0 %671
    %681 = vrot.lane.b32.xlu0 %v276, 80
    %v682 = vpop.permute.xlu0 %681
    %683 = vrot.lane.b32.xlu0 %v280, 80
    %v684 = vpop.permute.xlu0 %683
    %685 = vrot.lane.b32.xlu0 %v286, 80
    %v686 = vpop.permute.xlu0 %685
    %687 = vrot.lane.b32.xlu0 %v290, 80
    %v688 = vpop.permute.xlu0 %687
    %689 = vrot.lane.b32.xlu0 %v296, 80
    %v690 = vpop.permute.xlu0 %689
    %691 = vrot.lane.b32.xlu0 %v300, 80
    %v692 = vpop.permute.xlu0 %691
    %693 = vrot.lane.b32.xlu0 %v306, 80
    %v694 = vpop.permute.xlu0 %693
    %695 = vrot.lane.b32.xlu0 %v310, 80
    %v696 = vpop.permute.xlu0 %695
    %705 = vrot.lane.b32.xlu0 %v276, 64
    %v706 = vpop.permute.xlu0 %705
    %707 = vrot.lane.b32.xlu0 %v280, 64
    %v708 = vpop.permute.xlu0 %707
    %709 = vrot.lane.b32.xlu0 %v286, 64
    %v710 = vpop.permute.xlu0 %709
    %711 = vrot.lane.b32.xlu0 %v290, 64
    %v712 = vpop.permute.xlu0 %711
    %713 = vrot.lane.b32.xlu0 %v296, 64
    %v714 = vpop.permute.xlu0 %713
    %715 = vrot.lane.b32.xlu0 %v300, 64
    %v716 = vpop.permute.xlu0 %715
    %717 = vrot.lane.b32.xlu0 %v306, 64
    %v718 = vpop.permute.xlu0 %717
    %719 = vrot.lane.b32.xlu0 %v310, 64
    %v720 = vpop.permute.xlu0 %719
    %729 = vrot.lane.b32.xlu0 %v276, 48
    %v730 = vpop.permute.xlu0 %729
    %731 = vrot.lane.b32.xlu0 %v280, 48
    %v732 = vpop.permute.xlu0 %731
    %733 = vrot.lane.b32.xlu0 %v286, 48
    %v734 = vpop.permute.xlu0 %733
    %735 = vrot.lane.b32.xlu0 %v290, 48
    %v736 = vpop.permute.xlu0 %735
    %737 = vrot.lane.b32.xlu0 %v296, 48
    %v738 = vpop.permute.xlu0 %737
    %739 = vrot.lane.b32.xlu0 %v300, 48
    %v740 = vpop.permute.xlu0 %739
    %741 = vrot.lane.b32.xlu0 %v306, 48
    %v742 = vpop.permute.xlu0 %741
    %743 = vrot.lane.b32.xlu0 %v310, 48
    %v744 = vpop.permute.xlu0 %743
    %753 = vrot.lane.b32.xlu0 %v276, 32
    %v754 = vpop.permute.xlu0 %753
    %755 = vrot.lane.b32.xlu0 %v280, 32
    %v756 = vpop.permute.xlu0 %755
    %757 = vrot.lane.b32.xlu0 %v286, 32
    %v758 = vpop.permute.xlu0 %757
    %759 = vrot.lane.b32.xlu0 %v290, 32
    %v760 = vpop.permute.xlu0 %759
    %761 = vrot.lane.b32.xlu0 %v296, 32
    %v762 = vpop.permute.xlu0 %761
    %763 = vrot.lane.b32.xlu0 %v300, 32
    %v764 = vpop.permute.xlu0 %763
    %765 = vrot.lane.b32.xlu0 %v306, 32
    %v766 = vpop.permute.xlu0 %765
    %767 = vrot.lane.b32.xlu0 %v310, 32
    %v768 = vpop.permute.xlu0 %767
    %777 = vrot.lane.b32.xlu0 %v276, 16
    %v778 = vpop.permute.xlu0 %777
    %779 = vrot.lane.b32.xlu0 %v280, 16
    %v780 = vpop.permute.xlu0 %779
    %781 = vrot.lane.b32.xlu0 %v286, 16
    %v782 = vpop.permute.xlu0 %781
    %783 = vrot.lane.b32.xlu0 %v290, 16
    %v784 = vpop.permute.xlu0 %783
    %785 = vrot.lane.b32.xlu0 %v296, 16
    %v786 = vpop.permute.xlu0 %785
    %787 = vrot.lane.b32.xlu0 %v300, 16
    %v788 = vpop.permute.xlu0 %787
    %789 = vrot.lane.b32.xlu0 %v306, 16
    %v790 = vpop.permute.xlu0 %789
    %791 = vrot.lane.b32.xlu0 %v310, 16
    %v792 = vpop.permute.xlu0 %791
    %v801 = vpack.c.bf16 %v276, %v276
    %v802 = vpack.c.bf16 %v280, %v280
    %v803 = vpack.c.bf16 %v286, %v286
    %v804 = vpack.c.bf16 %v290, %v290
    %v805 = vpack.c.bf16 %v296, %v296
    %v806 = vpack.c.bf16 %v300, %v300
    %v807 = vpack.c.bf16 %v306, %v306
    %v808 = vpack.c.bf16 %v310, %v310
    %v809 = vpack.c.bf16 %v634, %v634
    %v810 = vpack.c.bf16 %v636, %v636
    %v811 = vpack.c.bf16 %v638, %v638
    %v812 = vpack.c.bf16 %v640, %v640
    %v813 = vpack.c.bf16 %v642, %v642
    %v814 = vpack.c.bf16 %v644, %v644
    %v815 = vpack.c.bf16 %v646, %v646
    %v816 = vpack.c.bf16 %v648, %v648
    %v817 = vpack.c.bf16 %v658, %v658
    %v818 = vpack.c.bf16 %v660, %v660
    %v819 = vpack.c.bf16 %v662, %v662
    %v820 = vpack.c.bf16 %v664, %v664
    %v821 = vpack.c.bf16 %v666, %v666
    %v822 = vpack.c.bf16 %v668, %v668
    %v823 = vpack.c.bf16 %v670, %v670
    %v824 = vpack.c.bf16 %v672, %v672
    %v825 = vpack.c.bf16 %v682, %v682
    %v826 = vpack.c.bf16 %v684, %v684
    %v827 = vpack.c.bf16 %v686, %v686
    %v828 = vpack.c.bf16 %v688, %v688
    %v829 = vpack.c.bf16 %v690, %v690
    %v830 = vpack.c.bf16 %v692, %v692
    %v831 = vpack.c.bf16 %v694, %v694
    %v832 = vpack.c.bf16 %v696, %v696
    %v833 = vpack.c.bf16 %v706, %v706
    %v834 = vpack.c.bf16 %v708, %v708
    %v835 = vpack.c.bf16 %v710, %v710
    %v836 = vpack.c.bf16 %v712, %v712
    %v837 = vpack.c.bf16 %v714, %v714
    %v838 = vpack.c.bf16 %v716, %v716
    %v839 = vpack.c.bf16 %v718, %v718
    %v840 = vpack.c.bf16 %v720, %v720
    %v841 = vpack.c.bf16 %v730, %v730
    %v842 = vpack.c.bf16 %v732, %v732
    %v843 = vpack.c.bf16 %v734, %v734
    %v844 = vpack.c.bf16 %v736, %v736
    %v845 = vpack.c.bf16 %v738, %v738
    %v846 = vpack.c.bf16 %v740, %v740
    %v847 = vpack.c.bf16 %v742, %v742
    %v848 = vpack.c.bf16 %v744, %v744
    %v849 = vpack.c.bf16 %v754, %v754
    %v850 = vpack.c.bf16 %v756, %v756
    %v851 = vpack.c.bf16 %v758, %v758
    %v852 = vpack.c.bf16 %v760, %v760
    %v853 = vpack.c.bf16 %v762, %v762
    %v854 = vpack.c.bf16 %v764, %v764
    %v855 = vpack.c.bf16 %v766, %v766
    %v856 = vpack.c.bf16 %v768, %v768
    %v857 = vpack.c.bf16 %v778, %v778
    %v858 = vpack.c.bf16 %v780, %v780
    %v859 = vpack.c.bf16 %v782, %v782
    %v860 = vpack.c.bf16 %v784, %v784
    %v861 = vpack.c.bf16 %v786, %v786
    %v862 = vpack.c.bf16 %v788, %v788
    %v863 = vpack.c.bf16 %v790, %v790
    %v864 = vpack.c.bf16 %v792, %v792
    %873 = vrot.lane.b32.xlu0 %v347, 112
    %v874 = vpop.permute.xlu0 %873
    %875 = vrot.lane.b32.xlu0 %v350, 112
    %v876 = vpop.permute.xlu0 %875
    %877 = vrot.lane.b32.xlu0 %v355, 112
    %v878 = vpop.permute.xlu0 %877
    %879 = vrot.lane.b32.xlu0 %v358, 112
    %v880 = vpop.permute.xlu0 %879
    %881 = vrot.lane.b32.xlu0 %v363, 112
    %v882 = vpop.permute.xlu0 %881
    %883 = vrot.lane.b32.xlu0 %v366, 112
    %v884 = vpop.permute.xlu0 %883
    %885 = vrot.lane.b32.xlu0 %v371, 112
    %v886 = vpop.permute.xlu0 %885
    %887 = vrot.lane.b32.xlu0 %v374, 112
    %v888 = vpop.permute.xlu0 %887
    %897 = vrot.lane.b32.xlu0 %v347, 96
    %v898 = vpop.permute.xlu0 %897
    %899 = vrot.lane.b32.xlu0 %v350, 96
    %v900 = vpop.permute.xlu0 %899
    %901 = vrot.lane.b32.xlu0 %v355, 96
    %v902 = vpop.permute.xlu0 %901
    %903 = vrot.lane.b32.xlu0 %v358, 96
    %v904 = vpop.permute.xlu0 %903
    %905 = vrot.lane.b32.xlu0 %v363, 96
    %v906 = vpop.permute.xlu0 %905
    %907 = vrot.lane.b32.xlu0 %v366, 96
    %v908 = vpop.permute.xlu0 %907
    %909 = vrot.lane.b32.xlu0 %v371, 96
    %v910 = vpop.permute.xlu0 %909
    %911 = vrot.lane.b32.xlu0 %v374, 96
    %v912 = vpop.permute.xlu0 %911
    %921 = vrot.lane.b32.xlu0 %v347, 80
    %v922 = vpop.permute.xlu0 %921
    %923 = vrot.lane.b32.xlu0 %v350, 80
    %v924 = vpop.permute.xlu0 %923
    %925 = vrot.lane.b32.xlu0 %v355, 80
    %v926 = vpop.permute.xlu0 %925
    %927 = vrot.lane.b32.xlu0 %v358, 80
    %v928 = vpop.permute.xlu0 %927
    %929 = vrot.lane.b32.xlu0 %v363, 80
    %v930 = vpop.permute.xlu0 %929
    %931 = vrot.lane.b32.xlu0 %v366, 80
    %v932 = vpop.permute.xlu0 %931
    %933 = vrot.lane.b32.xlu0 %v371, 80
    %v934 = vpop.permute.xlu0 %933
    %935 = vrot.lane.b32.xlu0 %v374, 80
    %v936 = vpop.permute.xlu0 %935
    %945 = vrot.lane.b32.xlu0 %v347, 64
    %v946 = vpop.permute.xlu0 %945
    %947 = vrot.lane.b32.xlu0 %v350, 64
    %v948 = vpop.permute.xlu0 %947
    %949 = vrot.lane.b32.xlu0 %v355, 64
    %v950 = vpop.permute.xlu0 %949
    %951 = vrot.lane.b32.xlu0 %v358, 64
    %v952 = vpop.permute.xlu0 %951
    %953 = vrot.lane.b32.xlu0 %v363, 64
    %v954 = vpop.permute.xlu0 %953
    %955 = vrot.lane.b32.xlu0 %v366, 64
    %v956 = vpop.permute.xlu0 %955
    %957 = vrot.lane.b32.xlu0 %v371, 64
    %v958 = vpop.permute.xlu0 %957
    %959 = vrot.lane.b32.xlu0 %v374, 64
    %v960 = vpop.permute.xlu0 %959
    %969 = vrot.lane.b32.xlu0 %v347, 48
    %v970 = vpop.permute.xlu0 %969
    %971 = vrot.lane.b32.xlu0 %v350, 48
    %v972 = vpop.permute.xlu0 %971
    %973 = vrot.lane.b32.xlu0 %v355, 48
    %v974 = vpop.permute.xlu0 %973
    %975 = vrot.lane.b32.xlu0 %v358, 48
    %v976 = vpop.permute.xlu0 %975
    %977 = vrot.lane.b32.xlu0 %v363, 48
    %v978 = vpop.permute.xlu0 %977
    %979 = vrot.lane.b32.xlu0 %v366, 48
    %v980 = vpop.permute.xlu0 %979
    %981 = vrot.lane.b32.xlu0 %v371, 48
    %v982 = vpop.permute.xlu0 %981
    %983 = vrot.lane.b32.xlu0 %v374, 48
    %v984 = vpop.permute.xlu0 %983
    %993 = vrot.lane.b32.xlu0 %v347, 32
    %v994 = vpop.permute.xlu0 %993
    %995 = vrot.lane.b32.xlu0 %v350, 32
    %v996 = vpop.permute.xlu0 %995
    %997 = vrot.lane.b32.xlu0 %v355, 32
    %v998 = vpop.permute.xlu0 %997
    %999 = vrot.lane.b32.xlu0 %v358, 32
    %v1000 = vpop.permute.xlu0 %999
    %1001 = vrot.lane.b32.xlu0 %v363, 32
    %v1002 = vpop.permute.xlu0 %1001
    %1003 = vrot.lane.b32.xlu0 %v366, 32
    %v1004 = vpop.permute.xlu0 %1003
    %1005 = vrot.lane.b32.xlu0 %v371, 32
    %v1006 = vpop.permute.xlu0 %1005
    %1007 = vrot.lane.b32.xlu0 %v374, 32
    %v1008 = vpop.permute.xlu0 %1007
    %1017 = vrot.lane.b32.xlu0 %v347, 16
    %v1018 = vpop.permute.xlu0 %1017
    %1019 = vrot.lane.b32.xlu0 %v350, 16
    %v1020 = vpop.permute.xlu0 %1019
    %1021 = vrot.lane.b32.xlu0 %v355, 16
    %v1022 = vpop.permute.xlu0 %1021
    %1023 = vrot.lane.b32.xlu0 %v358, 16
    %v1024 = vpop.permute.xlu0 %1023
    %1025 = vrot.lane.b32.xlu0 %v363, 16
    %v1026 = vpop.permute.xlu0 %1025
    %1027 = vrot.lane.b32.xlu0 %v366, 16
    %v1028 = vpop.permute.xlu0 %1027
    %1029 = vrot.lane.b32.xlu0 %v371, 16
    %v1030 = vpop.permute.xlu0 %1029
    %1031 = vrot.lane.b32.xlu0 %v374, 16
    %v1032 = vpop.permute.xlu0 %1031
    %v1041 = vpack.c.bf16 %v347, %v347
    %v1042 = vpack.c.bf16 %v350, %v350
    %v1043 = vpack.c.bf16 %v355, %v355
    %v1044 = vpack.c.bf16 %v358, %v358
    %v1045 = vpack.c.bf16 %v363, %v363
    %v1046 = vpack.c.bf16 %v366, %v366
    %v1047 = vpack.c.bf16 %v371, %v371
    %v1048 = vpack.c.bf16 %v374, %v374
    %v1049 = vpack.c.bf16 %v874, %v874
    %v1050 = vpack.c.bf16 %v876, %v876
    %v1051 = vpack.c.bf16 %v878, %v878
    %v1052 = vpack.c.bf16 %v880, %v880
    %v1053 = vpack.c.bf16 %v882, %v882
    %v1054 = vpack.c.bf16 %v884, %v884
    %v1055 = vpack.c.bf16 %v886, %v886
    %v1056 = vpack.c.bf16 %v888, %v888
    %v1057 = vpack.c.bf16 %v898, %v898
    %v1058 = vpack.c.bf16 %v900, %v900
    %v1059 = vpack.c.bf16 %v902, %v902
    %v1060 = vpack.c.bf16 %v904, %v904
    %v1061 = vpack.c.bf16 %v906, %v906
    %v1062 = vpack.c.bf16 %v908, %v908
    %v1063 = vpack.c.bf16 %v910, %v910
    %v1064 = vpack.c.bf16 %v912, %v912
    %v1065 = vpack.c.bf16 %v922, %v922
    %v1066 = vpack.c.bf16 %v924, %v924
    %v1067 = vpack.c.bf16 %v926, %v926
    %v1068 = vpack.c.bf16 %v928, %v928
    %v1069 = vpack.c.bf16 %v930, %v930
    %v1070 = vpack.c.bf16 %v932, %v932
    %v1071 = vpack.c.bf16 %v934, %v934
    %v1072 = vpack.c.bf16 %v936, %v936
    %v1073 = vpack.c.bf16 %v946, %v946
    %v1074 = vpack.c.bf16 %v948, %v948
    %v1075 = vpack.c.bf16 %v950, %v950
    %v1076 = vpack.c.bf16 %v952, %v952
    %v1077 = vpack.c.bf16 %v954, %v954
    %v1078 = vpack.c.bf16 %v956, %v956
    %v1079 = vpack.c.bf16 %v958, %v958
    %v1080 = vpack.c.bf16 %v960, %v960
    %v1081 = vpack.c.bf16 %v970, %v970
    %v1082 = vpack.c.bf16 %v972, %v972
    %v1083 = vpack.c.bf16 %v974, %v974
    %v1084 = vpack.c.bf16 %v976, %v976
    %v1085 = vpack.c.bf16 %v978, %v978
    %v1086 = vpack.c.bf16 %v980, %v980
    %v1087 = vpack.c.bf16 %v982, %v982
    %v1088 = vpack.c.bf16 %v984, %v984
    %v1089 = vpack.c.bf16 %v994, %v994
    %v1090 = vpack.c.bf16 %v996, %v996
    %v1091 = vpack.c.bf16 %v998, %v998
    %v1092 = vpack.c.bf16 %v1000, %v1000
    %v1093 = vpack.c.bf16 %v1002, %v1002
    %v1094 = vpack.c.bf16 %v1004, %v1004
    %v1095 = vpack.c.bf16 %v1006, %v1006
    %v1096 = vpack.c.bf16 %v1008, %v1008
    %v1097 = vpack.c.bf16 %v1018, %v1018
    %v1098 = vpack.c.bf16 %v1020, %v1020
    %v1099 = vpack.c.bf16 %v1022, %v1022
    %v1100 = vpack.c.bf16 %v1024, %v1024
    %v1101 = vpack.c.bf16 %v1026, %v1026
    %v1102 = vpack.c.bf16 %v1028, %v1028
    %v1103 = vpack.c.bf16 %v1030, %v1030
    %v1104 = vpack.c.bf16 %v1032, %v1032
    %vm1105 = vcmask 130048
    %v1107 = vsel %vm1105, %v561, 0
    %v1110 = vsel %vm1105, %v801, 0
    %1112 = vmatprep.subr.bf16.mxu0 0
    %1113 = vmatpush1.bf16.xpose.msra.mxu0 %v1110
    %1114 = vmatprep.subr.bf16.mxu0 0
    %1115 = vmatpush1.bf16.xpose.msra.mxu0 0
    %1116 = vmatprep.subr.bf16.mxu0 0
    %1117 = vmatpush1.bf16.xpose.msra.mxu0 0
    %1118 = vmatprep.subr.bf16.mxu0 0
    %1119 = vmatpush1.bf16.xpose.msra.mxu0 0
    %1120 = vmatprep.subr.bf16.mxu0 0
    %1121 = vmatpush1.bf16.xpose.msra.mxu0 0
    %1122 = vmatprep.subr.bf16.mxu0 0
    %1123 = vmatpush1.bf16.xpose.msra.mxu0 0
    %1124 = vmatprep.subr.bf16.mxu0 0
    %1125 = vmatpush1.bf16.xpose.msra.mxu0 0
    %1126 = vmatprep.subr.bf16.mxu0 0
    %1127 = vmatpush1.bf16.xpose.msra.mxu0 0
    %1128 = vmatprep.subr.bf16.mxu0 0
    %1129 = vmatpush1.bf16.xpose.msra.mxu0 0
    %1130 = vmatprep.subr.bf16.mxu0 0
    %1131 = vmatpush1.bf16.xpose.msra.mxu0 0
    %1132 = vmatprep.subr.bf16.mxu0 0
    %1133 = vmatpush1.bf16.xpose.msra.mxu0 0
    %1134 = vmatprep.subr.bf16.mxu0 0
    %1135 = vmatpush1.bf16.xpose.msra.mxu0 0
    %1136 = vmatprep.subr.bf16.mxu0 0
    %1137 = vmatpush1.bf16.xpose.msra.mxu0 0
    %1138 = vmatprep.subr.bf16.mxu0 0
    %1139 = vmatpush1.bf16.xpose.msra.mxu0 0
    %1140 = vmatprep.subr.bf16.mxu0 0
    %1141 = vmatpush1.bf16.xpose.msra.mxu0 0
    %1142 = vmatprep.subr.bf16.mxu0 0
    %1143 = vmatpush1.bf16.xpose.msra.mxu0 0
    %1144 = vmatprep.mubr.bf16.mxu0 0
    %1145 = vmatmul.mubr.bf16.gmra.mrb[0].mxu0 %v1107
    %v1146 = vpop.f32.mrb[0].mxu0
    %v1147 = vadd.f32 0.0, %v1146
    %v1148 = vpop.f32.mrb[0].mxu0
    %v1149 = vpop.f32.mrb[0].mxu0
    %v1150 = vpop.f32.mrb[0].mxu0
    %1151 = vdwg.mxu0
    %v1153 = vsel %vm1105, %v562, 0
    %v1156 = vsel %vm1105, %v802, 0
    %1158 = vmatprep.subr.bf16.mxu0 0
    %1159 = vmatpush1.bf16.xpose.msra.mxu0 %v1156
    %1160 = vmatprep.subr.bf16.mxu0 0
    %1161 = vmatpush1.bf16.xpose.msra.mxu0 0
    %1162 = vmatprep.subr.bf16.mxu0 0
    %1163 = vmatpush1.bf16.xpose.msra.mxu0 0
    %1164 = vmatprep.subr.bf16.mxu0 0
    %1165 = vmatpush1.bf16.xpose.msra.mxu0 0
    %1166 = vmatprep.subr.bf16.mxu0 0
    %1167 = vmatpush1.bf16.xpose.msra.mxu0 0
    %1168 = vmatprep.subr.bf16.mxu0 0
    %1169 = vmatpush1.bf16.xpose.msra.mxu0 0
    %1170 = vmatprep.subr.bf16.mxu0 0
    %1171 = vmatpush1.bf16.xpose.msra.mxu0 0
    %1172 = vmatprep.subr.bf16.mxu0 0
    %1173 = vmatpush1.bf16.xpose.msra.mxu0 0
    %1174 = vmatprep.subr.bf16.mxu0 0
    %1175 = vmatpush1.bf16.xpose.msra.mxu0 0
    %1176 = vmatprep.subr.bf16.mxu0 0
    %1177 = vmatpush1.bf16.xpose.msra.mxu0 0
    %1178 = vmatprep.subr.bf16.mxu0 0
    %1179 = vmatpush1.bf16.xpose.msra.mxu0 0
    %1180 = vmatprep.subr.bf16.mxu0 0
    %1181 = vmatpush1.bf16.xpose.msra.mxu0 0
    %1182 = vmatprep.subr.bf16.mxu0 0
    %1183 = vmatpush1.bf16.xpose.msra.mxu0 0
    %1184 = vmatprep.subr.bf16.mxu0 0
    %1185 = vmatpush1.bf16.xpose.msra.mxu0 0
    %1186 = vmatprep.subr.bf16.mxu0 0
    %1187 = vmatpush1.bf16.xpose.msra.mxu0 0
    %1188 = vmatprep.subr.bf16.mxu0 0
    %1189 = vmatpush1.bf16.xpose.msra.mxu0 0
    %1190 = vmatprep.mubr.bf16.mxu0 0
    %1191 = vmatmul.mubr.bf16.gmra.mrb[0].mxu0 %v1153
    %v1192 = vpop.f32.mrb[0].mxu0
    %v1193 = vadd.f32 0.0, %v1192
    %v1194 = vpop.f32.mrb[0].mxu0
    %v1195 = vpop.f32.mrb[0].mxu0
    %v1196 = vpop.f32.mrb[0].mxu0
    %1197 = vdwg.mxu0
    %v1199 = vsel %vm1105, %v563, 0
    %v1202 = vsel %vm1105, %v803, 0
    %1204 = vmatprep.subr.bf16.mxu0 0
    %1205 = vmatpush1.bf16.xpose.msra.mxu0 %v1202
    %1206 = vmatprep.subr.bf16.mxu0 0
    %1207 = vmatpush1.bf16.xpose.msra.mxu0 0
    %1208 = vmatprep.subr.bf16.mxu0 0
    %1209 = vmatpush1.bf16.xpose.msra.mxu0 0
    %1210 = vmatprep.subr.bf16.mxu0 0
    %1211 = vmatpush1.bf16.xpose.msra.mxu0 0
    %1212 = vmatprep.subr.bf16.mxu0 0
    %1213 = vmatpush1.bf16.xpose.msra.mxu0 0
    %1214 = vmatprep.subr.bf16.mxu0 0
    %1215 = vmatpush1.bf16.xpose.msra.mxu0 0
    %1216 = vmatprep.subr.bf16.mxu0 0
    %1217 = vmatpush1.bf16.xpose.msra.mxu0 0
    %1218 = vmatprep.subr.bf16.mxu0 0
    %1219 = vmatpush1.bf16.xpose.msra.mxu0 0
    %1220 = vmatprep.subr.bf16.mxu0 0
    %1221 = vmatpush1.bf16.xpose.msra.mxu0 0
    %1222 = vmatprep.subr.bf16.mxu0 0
    %1223 = vmatpush1.bf16.xpose.msra.mxu0 0
    %1224 = vmatprep.subr.bf16.mxu0 0
    %1225 = vmatpush1.bf16.xpose.msra.mxu0 0
    %1226 = vmatprep.subr.bf16.mxu0 0
    %1227 = vmatpush1.bf16.xpose.msra.mxu0 0
    %1228 = vmatprep.subr.bf16.mxu0 0
    %1229 = vmatpush1.bf16.xpose.msra.mxu0 0
    %1230 = vmatprep.subr.bf16.mxu0 0
    %1231 = vmatpush1.bf16.xpose.msra.mxu0 0
    %1232 = vmatprep.subr.bf16.mxu0 0
    %1233 = vmatpush1.bf16.xpose.msra.mxu0 0
    %1234 = vmatprep.subr.bf16.mxu0 0
    %1235 = vmatpush1.bf16.xpose.msra.mxu0 0
    %1236 = vmatprep.mubr.bf16.mxu0 0
    %1237 = vmatmul.mubr.bf16.gmra.mrb[0].mxu0 %v1199
    %v1238 = vpop.f32.mrb[0].mxu0
    %v1239 = vadd.f32 0.0, %v1238
    %v1240 = vpop.f32.mrb[0].mxu0
    %v1241 = vpop.f32.mrb[0].mxu0
    %v1242 = vpop.f32.mrb[0].mxu0
    %1243 = vdwg.mxu0
    %v1245 = vsel %vm1105, %v564, 0
    %v1248 = vsel %vm1105, %v804, 0
    %1250 = vmatprep.subr.bf16.mxu0 0
    %1251 = vmatpush1.bf16.xpose.msra.mxu0 %v1248
    %1252 = vmatprep.subr.bf16.mxu0 0
    %1253 = vmatpush1.bf16.xpose.msra.mxu0 0
    %1254 = vmatprep.subr.bf16.mxu0 0
    %1255 = vmatpush1.bf16.xpose.msra.mxu0 0
    %1256 = vmatprep.subr.bf16.mxu0 0
    %1257 = vmatpush1.bf16.xpose.msra.mxu0 0
    %1258 = vmatprep.subr.bf16.mxu0 0
    %1259 = vmatpush1.bf16.xpose.msra.mxu0 0
    %1260 = vmatprep.subr.bf16.mxu0 0
    %1261 = vmatpush1.bf16.xpose.msra.mxu0 0
    %1262 = vmatprep.subr.bf16.mxu0 0
    %1263 = vmatpush1.bf16.xpose.msra.mxu0 0
    %1264 = vmatprep.subr.bf16.mxu0 0
    %1265 = vmatpush1.bf16.xpose.msra.mxu0 0
    %1266 = vmatprep.subr.bf16.mxu0 0
    %1267 = vmatpush1.bf16.xpose.msra.mxu0 0
    %1268 = vmatprep.subr.bf16.mxu0 0
    %1269 = vmatpush1.bf16.xpose.msra.mxu0 0
    %1270 = vmatprep.subr.bf16.mxu0 0
    %1271 = vmatpush1.bf16.xpose.msra.mxu0 0
    %1272 = vmatprep.subr.bf16.mxu0 0
    %1273 = vmatpush1.bf16.xpose.msra.mxu0 0
    %1274 = vmatprep.subr.bf16.mxu0 0
    %1275 = vmatpush1.bf16.xpose.msra.mxu0 0
    %1276 = vmatprep.subr.bf16.mxu0 0
    %1277 = vmatpush1.bf16.xpose.msra.mxu0 0
    %1278 = vmatprep.subr.bf16.mxu0 0
    %1279 = vmatpush1.bf16.xpose.msra.mxu0 0
    %1280 = vmatprep.subr.bf16.mxu0 0
    %1281 = vmatpush1.bf16.xpose.msra.mxu0 0
    %1282 = vmatprep.mubr.bf16.mxu0 0
    %1283 = vmatmul.mubr.bf16.gmra.mrb[0].mxu0 %v1245
    %v1284 = vpop.f32.mrb[0].mxu0
    %v1285 = vadd.f32 0.0, %v1284
    %v1286 = vpop.f32.mrb[0].mxu0
    %v1287 = vpop.f32.mrb[0].mxu0
    %v1288 = vpop.f32.mrb[0].mxu0
    %1289 = vdwg.mxu0
    %v1291 = vsel %vm1105, %v565, 0
    %v1294 = vsel %vm1105, %v805, 0
    %1296 = vmatprep.subr.bf16.mxu0 0
    %1297 = vmatpush1.bf16.xpose.msra.mxu0 %v1294
    %1298 = vmatprep.subr.bf16.mxu0 0
    %1299 = vmatpush1.bf16.xpose.msra.mxu0 0
    %1300 = vmatprep.subr.bf16.mxu0 0
    %1301 = vmatpush1.bf16.xpose.msra.mxu0 0
    %1302 = vmatprep.subr.bf16.mxu0 0
    %1303 = vmatpush1.bf16.xpose.msra.mxu0 0
    %1304 = vmatprep.subr.bf16.mxu0 0
    %1305 = vmatpush1.bf16.xpose.msra.mxu0 0
    %1306 = vmatprep.subr.bf16.mxu0 0
    %1307 = vmatpush1.bf16.xpose.msra.mxu0 0
    %1308 = vmatprep.subr.bf16.mxu0 0
    %1309 = vmatpush1.bf16.xpose.msra.mxu0 0
    %1310 = vmatprep.subr.bf16.mxu0 0
    %1311 = vmatpush1.bf16.xpose.msra.mxu0 0
    %1312 = vmatprep.subr.bf16.mxu0 0
    %1313 = vmatpush1.bf16.xpose.msra.mxu0 0
    %1314 = vmatprep.subr.bf16.mxu0 0
    %1315 = vmatpush1.bf16.xpose.msra.mxu0 0
    %1316 = vmatprep.subr.bf16.mxu0 0
    %1317 = vmatpush1.bf16.xpose.msra.mxu0 0
    %1318 = vmatprep.subr.bf16.mxu0 0
    %1319 = vmatpush1.bf16.xpose.msra.mxu0 0
    %1320 = vmatprep.subr.bf16.mxu0 0
    %1321 = vmatpush1.bf16.xpose.msra.mxu0 0
    %1322 = vmatprep.subr.bf16.mxu0 0
    %1323 = vmatpush1.bf16.xpose.msra.mxu0 0
    %1324 = vmatprep.subr.bf16.mxu0 0
    %1325 = vmatpush1.bf16.xpose.msra.mxu0 0
    %1326 = vmatprep.subr.bf16.mxu0 0
    %1327 = vmatpush1.bf16.xpose.msra.mxu0 0
    %1328 = vmatprep.mubr.bf16.mxu0 0
    %1329 = vmatmul.mubr.bf16.gmra.mrb[0].mxu0 %v1291
    %v1330 = vpop.f32.mrb[0].mxu0
    %v1331 = vadd.f32 0.0, %v1330
    %v1332 = vpop.f32.mrb[0].mxu0
    %v1333 = vpop.f32.mrb[0].mxu0
    %v1334 = vpop.f32.mrb[0].mxu0
    %1335 = vdwg.mxu0
    %v1337 = vsel %vm1105, %v566, 0
    %v1340 = vsel %vm1105, %v806, 0
    %1342 = vmatprep.subr.bf16.mxu0 0
    %1343 = vmatpush1.bf16.xpose.msra.mxu0 %v1340
    %1344 = vmatprep.subr.bf16.mxu0 0
    %1345 = vmatpush1.bf16.xpose.msra.mxu0 0
    %1346 = vmatprep.subr.bf16.mxu0 0
    %1347 = vmatpush1.bf16.xpose.msra.mxu0 0
    %1348 = vmatprep.subr.bf16.mxu0 0
    %1349 = vmatpush1.bf16.xpose.msra.mxu0 0
    %1350 = vmatprep.subr.bf16.mxu0 0
    %1351 = vmatpush1.bf16.xpose.msra.mxu0 0
    %1352 = vmatprep.subr.bf16.mxu0 0
    %1353 = vmatpush1.bf16.xpose.msra.mxu0 0
    %1354 = vmatprep.subr.bf16.mxu0 0
    %1355 = vmatpush1.bf16.xpose.msra.mxu0 0
    %1356 = vmatprep.subr.bf16.mxu0 0
    %1357 = vmatpush1.bf16.xpose.msra.mxu0 0
    %1358 = vmatprep.subr.bf16.mxu0 0
    %1359 = vmatpush1.bf16.xpose.msra.mxu0 0
    %1360 = vmatprep.subr.bf16.mxu0 0
    %1361 = vmatpush1.bf16.xpose.msra.mxu0 0
    %1362 = vmatprep.subr.bf16.mxu0 0
    %1363 = vmatpush1.bf16.xpose.msra.mxu0 0
    %1364 = vmatprep.subr.bf16.mxu0 0
    %1365 = vmatpush1.bf16.xpose.msra.mxu0 0
    %1366 = vmatprep.subr.bf16.mxu0 0
    %1367 = vmatpush1.bf16.xpose.msra.mxu0 0
    %1368 = vmatprep.subr.bf16.mxu0 0
    %1369 = vmatpush1.bf16.xpose.msra.mxu0 0
    %1370 = vmatprep.subr.bf16.mxu0 0
    %1371 = vmatpush1.bf16.xpose.msra.mxu0 0
    %1372 = vmatprep.subr.bf16.mxu0 0
    %1373 = vmatpush1.bf16.xpose.msra.mxu0 0
    %1374 = vmatprep.mubr.bf16.mxu0 0
    %1375 = vmatmul.mubr.bf16.gmra.mrb[0].mxu0 %v1337
    %v1376 = vpop.f32.mrb[0].mxu0
    %v1377 = vadd.f32 0.0, %v1376
    %v1378 = vpop.f32.mrb[0].mxu0
    %v1379 = vpop.f32.mrb[0].mxu0
    %v1380 = vpop.f32.mrb[0].mxu0
    %1381 = vdwg.mxu0
    %v1383 = vsel %vm1105, %v567, 0
    %v1386 = vsel %vm1105, %v807, 0
    %1388 = vmatprep.subr.bf16.mxu0 0
    %1389 = vmatpush1.bf16.xpose.msra.mxu0 %v1386
    %1390 = vmatprep.subr.bf16.mxu0 0
    %1391 = vmatpush1.bf16.xpose.msra.mxu0 0
    %1392 = vmatprep.subr.bf16.mxu0 0
    %1393 = vmatpush1.bf16.xpose.msra.mxu0 0
    %1394 = vmatprep.subr.bf16.mxu0 0
    %1395 = vmatpush1.bf16.xpose.msra.mxu0 0
    %1396 = vmatprep.subr.bf16.mxu0 0
    %1397 = vmatpush1.bf16.xpose.msra.mxu0 0
    %1398 = vmatprep.subr.bf16.mxu0 0
    %1399 = vmatpush1.bf16.xpose.msra.mxu0 0
    %1400 = vmatprep.subr.bf16.mxu0 0
    %1401 = vmatpush1.bf16.xpose.msra.mxu0 0
    %1402 = vmatprep.subr.bf16.mxu0 0
    %1403 = vmatpush1.bf16.xpose.msra.mxu0 0
    %1404 = vmatprep.subr.bf16.mxu0 0
    %1405 = vmatpush1.bf16.xpose.msra.mxu0 0
    %1406 = vmatprep.subr.bf16.mxu0 0
    %1407 = vmatpush1.bf16.xpose.msra.mxu0 0
    %1408 = vmatprep.subr.bf16.mxu0 0
    %1409 = vmatpush1.bf16.xpose.msra.mxu0 0
    %1410 = vmatprep.subr.bf16.mxu0 0
    %1411 = vmatpush1.bf16.xpose.msra.mxu0 0
    %1412 = vmatprep.subr.bf16.mxu0 0
    %1413 = vmatpush1.bf16.xpose.msra.mxu0 0
    %1414 = vmatprep.subr.bf16.mxu0 0
    %1415 = vmatpush1.bf16.xpose.msra.mxu0 0
    %1416 = vmatprep.subr.bf16.mxu0 0
    %1417 = vmatpush1.bf16.xpose.msra.mxu0 0
    %1418 = vmatprep.subr.bf16.mxu0 0
    %1419 = vmatpush1.bf16.xpose.msra.mxu0 0
    %1420 = vmatprep.mubr.bf16.mxu0 0
    %1421 = vmatmul.mubr.bf16.gmra.mrb[0].mxu0 %v1383
    %v1422 = vpop.f32.mrb[0].mxu0
    %v1423 = vadd.f32 0.0, %v1422
    %v1424 = vpop.f32.mrb[0].mxu0
    %v1425 = vpop.f32.mrb[0].mxu0
    %v1426 = vpop.f32.mrb[0].mxu0
    %1427 = vdwg.mxu0
    %v1429 = vsel %vm1105, %v568, 0
    %v1432 = vsel %vm1105, %v808, 0
    %1434 = vmatprep.subr.bf16.mxu0 0
    %1435 = vmatpush1.bf16.xpose.msra.mxu0 %v1432
    %1436 = vmatprep.subr.bf16.mxu0 0
    %1437 = vmatpush1.bf16.xpose.msra.mxu0 0
    %1438 = vmatprep.subr.bf16.mxu0 0
    %1439 = vmatpush1.bf16.xpose.msra.mxu0 0
    %1440 = vmatprep.subr.bf16.mxu0 0
    %1441 = vmatpush1.bf16.xpose.msra.mxu0 0
    %1442 = vmatprep.subr.bf16.mxu0 0
    %1443 = vmatpush1.bf16.xpose.msra.mxu0 0
    %1444 = vmatprep.subr.bf16.mxu0 0
    %1445 = vmatpush1.bf16.xpose.msra.mxu0 0
    %1446 = vmatprep.subr.bf16.mxu0 0
    %1447 = vmatpush1.bf16.xpose.msra.mxu0 0
    %1448 = vmatprep.subr.bf16.mxu0 0
    %1449 = vmatpush1.bf16.xpose.msra.mxu0 0
    %1450 = vmatprep.subr.bf16.mxu0 0
    %1451 = vmatpush1.bf16.xpose.msra.mxu0 0
    %1452 = vmatprep.subr.bf16.mxu0 0
    %1453 = vmatpush1.bf16.xpose.msra.mxu0 0
    %1454 = vmatprep.subr.bf16.mxu0 0
    %1455 = vmatpush1.bf16.xpose.msra.mxu0 0
    %1456 = vmatprep.subr.bf16.mxu0 0
    %1457 = vmatpush1.bf16.xpose.msra.mxu0 0
    %1458 = vmatprep.subr.bf16.mxu0 0
    %1459 = vmatpush1.bf16.xpose.msra.mxu0 0
    %1460 = vmatprep.subr.bf16.mxu0 0
    %1461 = vmatpush1.bf16.xpose.msra.mxu0 0
    %1462 = vmatprep.subr.bf16.mxu0 0
    %1463 = vmatpush1.bf16.xpose.msra.mxu0 0
    %1464 = vmatprep.subr.bf16.mxu0 0
    %1465 = vmatpush1.bf16.xpose.msra.mxu0 0
    %1466 = vmatprep.mubr.bf16.mxu0 0
    %1467 = vmatmul.mubr.bf16.gmra.mrb[0].mxu0 %v1429
    %v1468 = vpop.f32.mrb[0].mxu0
    %v1469 = vadd.f32 0.0, %v1468
    %v1470 = vpop.f32.mrb[0].mxu0
    %v1471 = vpop.f32.mrb[0].mxu0
    %v1472 = vpop.f32.mrb[0].mxu0
    %1473 = vdwg.mxu0
    %v1475 = vsel %vm1105, %v569, 0
    %v1478 = vsel %vm1105, %v809, 0
    %1480 = vmatprep.subr.bf16.mxu0 0
    %1481 = vmatpush1.bf16.xpose.msra.mxu0 %v1478
    %1482 = vmatprep.subr.bf16.mxu0 0
    %1483 = vmatpush1.bf16.xpose.msra.mxu0 0
    %1484 = vmatprep.subr.bf16.mxu0 0
    %1485 = vmatpush1.bf16.xpose.msra.mxu0 0
    %1486 = vmatprep.subr.bf16.mxu0 0
    %1487 = vmatpush1.bf16.xpose.msra.mxu0 0
    %1488 = vmatprep.subr.bf16.mxu0 0
    %1489 = vmatpush1.bf16.xpose.msra.mxu0 0
    %1490 = vmatprep.subr.bf16.mxu0 0
    %1491 = vmatpush1.bf16.xpose.msra.mxu0 0
    %1492 = vmatprep.subr.bf16.mxu0 0
    %1493 = vmatpush1.bf16.xpose.msra.mxu0 0
    %1494 = vmatprep.subr.bf16.mxu0 0
    %1495 = vmatpush1.bf16.xpose.msra.mxu0 0
    %1496 = vmatprep.subr.bf16.mxu0 0
    %1497 = vmatpush1.bf16.xpose.msra.mxu0 0
    %1498 = vmatprep.subr.bf16.mxu0 0
    %1499 = vmatpush1.bf16.xpose.msra.mxu0 0
    %1500 = vmatprep.subr.bf16.mxu0 0
    %1501 = vmatpush1.bf16.xpose.msra.mxu0 0
    %1502 = vmatprep.subr.bf16.mxu0 0
    %1503 = vmatpush1.bf16.xpose.msra.mxu0 0
    %1504 = vmatprep.subr.bf16.mxu0 0
    %1505 = vmatpush1.bf16.xpose.msra.mxu0 0
    %1506 = vmatprep.subr.bf16.mxu0 0
    %1507 = vmatpush1.bf16.xpose.msra.mxu0 0
    %1508 = vmatprep.subr.bf16.mxu0 0
    %1509 = vmatpush1.bf16.xpose.msra.mxu0 0
    %1510 = vmatprep.subr.bf16.mxu0 0
    %1511 = vmatpush1.bf16.xpose.msra.mxu0 0
    %1512 = vmatprep.mubr.bf16.mxu0 0
    %1513 = vmatmul.mubr.bf16.gmra.mrb[0].mxu0 %v1475
    %v1514 = vpop.f32.mrb[0].mxu0
    %v1515 = vadd.f32 0.0, %v1514
    %v1516 = vpop.f32.mrb[0].mxu0
    %v1517 = vpop.f32.mrb[0].mxu0
    %v1518 = vpop.f32.mrb[0].mxu0
    %1519 = vdwg.mxu0
    %v1521 = vsel %vm1105, %v570, 0
    %v1524 = vsel %vm1105, %v810, 0
    %1526 = vmatprep.subr.bf16.mxu0 0
    %1527 = vmatpush1.bf16.xpose.msra.mxu0 %v1524
    %1528 = vmatprep.subr.bf16.mxu0 0
    %1529 = vmatpush1.bf16.xpose.msra.mxu0 0
    %1530 = vmatprep.subr.bf16.mxu0 0
    %1531 = vmatpush1.bf16.xpose.msra.mxu0 0
    %1532 = vmatprep.subr.bf16.mxu0 0
    %1533 = vmatpush1.bf16.xpose.msra.mxu0 0
    %1534 = vmatprep.subr.bf16.mxu0 0
    %1535 = vmatpush1.bf16.xpose.msra.mxu0 0
    %1536 = vmatprep.subr.bf16.mxu0 0
    %1537 = vmatpush1.bf16.xpose.msra.mxu0 0
    %1538 = vmatprep.subr.bf16.mxu0 0
    %1539 = vmatpush1.bf16.xpose.msra.mxu0 0
    %1540 = vmatprep.subr.bf16.mxu0 0
    %1541 = vmatpush1.bf16.xpose.msra.mxu0 0
    %1542 = vmatprep.subr.bf16.mxu0 0
    %1543 = vmatpush1.bf16.xpose.msra.mxu0 0
    %1544 = vmatprep.subr.bf16.mxu0 0
    %1545 = vmatpush1.bf16.xpose.msra.mxu0 0
    %1546 = vmatprep.subr.bf16.mxu0 0
    %1547 = vmatpush1.bf16.xpose.msra.mxu0 0
    %1548 = vmatprep.subr.bf16.mxu0 0
    %1549 = vmatpush1.bf16.xpose.msra.mxu0 0
    %1550 = vmatprep.subr.bf16.mxu0 0
    %1551 = vmatpush1.bf16.xpose.msra.mxu0 0
    %1552 = vmatprep.subr.bf16.mxu0 0
    %1553 = vmatpush1.bf16.xpose.msra.mxu0 0
    %1554 = vmatprep.subr.bf16.mxu0 0
    %1555 = vmatpush1.bf16.xpose.msra.mxu0 0
    %1556 = vmatprep.subr.bf16.mxu0 0
    %1557 = vmatpush1.bf16.xpose.msra.mxu0 0
    %1558 = vmatprep.mubr.bf16.mxu0 0
    %1559 = vmatmul.mubr.bf16.gmra.mrb[0].mxu0 %v1521
    %v1560 = vpop.f32.mrb[0].mxu0
    %v1561 = vadd.f32 0.0, %v1560
    %v1562 = vpop.f32.mrb[0].mxu0
    %v1563 = vpop.f32.mrb[0].mxu0
    %v1564 = vpop.f32.mrb[0].mxu0
    %1565 = vdwg.mxu0
    %v1567 = vsel %vm1105, %v571, 0
    %v1570 = vsel %vm1105, %v811, 0
    %1572 = vmatprep.subr.bf16.mxu0 0
    %1573 = vmatpush1.bf16.xpose.msra.mxu0 %v1570
    %1574 = vmatprep.subr.bf16.mxu0 0
    %1575 = vmatpush1.bf16.xpose.msra.mxu0 0
    %1576 = vmatprep.subr.bf16.mxu0 0
    %1577 = vmatpush1.bf16.xpose.msra.mxu0 0
    %1578 = vmatprep.subr.bf16.mxu0 0
    %1579 = vmatpush1.bf16.xpose.msra.mxu0 0
    %1580 = vmatprep.subr.bf16.mxu0 0
    %1581 = vmatpush1.bf16.xpose.msra.mxu0 0
    %1582 = vmatprep.subr.bf16.mxu0 0
    %1583 = vmatpush1.bf16.xpose.msra.mxu0 0
    %1584 = vmatprep.subr.bf16.mxu0 0
    %1585 = vmatpush1.bf16.xpose.msra.mxu0 0
    %1586 = vmatprep.subr.bf16.mxu0 0
    %1587 = vmatpush1.bf16.xpose.msra.mxu0 0
    %1588 = vmatprep.subr.bf16.mxu0 0
    %1589 = vmatpush1.bf16.xpose.msra.mxu0 0
    %1590 = vmatprep.subr.bf16.mxu0 0
    %1591 = vmatpush1.bf16.xpose.msra.mxu0 0
    %1592 = vmatprep.subr.bf16.mxu0 0
    %1593 = vmatpush1.bf16.xpose.msra.mxu0 0
    %1594 = vmatprep.subr.bf16.mxu0 0
    %1595 = vmatpush1.bf16.xpose.msra.mxu0 0
    %1596 = vmatprep.subr.bf16.mxu0 0
    %1597 = vmatpush1.bf16.xpose.msra.mxu0 0
    %1598 = vmatprep.subr.bf16.mxu0 0
    %1599 = vmatpush1.bf16.xpose.msra.mxu0 0
    %1600 = vmatprep.subr.bf16.mxu0 0
    %1601 = vmatpush1.bf16.xpose.msra.mxu0 0
    %1602 = vmatprep.subr.bf16.mxu0 0
    %1603 = vmatpush1.bf16.xpose.msra.mxu0 0
    %1604 = vmatprep.mubr.bf16.mxu0 0
    %1605 = vmatmul.mubr.bf16.gmra.mrb[0].mxu0 %v1567
    %v1606 = vpop.f32.mrb[0].mxu0
    %v1607 = vadd.f32 0.0, %v1606
    %v1608 = vpop.f32.mrb[0].mxu0
    %v1609 = vpop.f32.mrb[0].mxu0
    %v1610 = vpop.f32.mrb[0].mxu0
    %1611 = vdwg.mxu0
    %v1613 = vsel %vm1105, %v572, 0
    %v1616 = vsel %vm1105, %v812, 0
    %1618 = vmatprep.subr.bf16.mxu0 0
    %1619 = vmatpush1.bf16.xpose.msra.mxu0 %v1616
    %1620 = vmatprep.subr.bf16.mxu0 0
    %1621 = vmatpush1.bf16.xpose.msra.mxu0 0
    %1622 = vmatprep.subr.bf16.mxu0 0
    %1623 = vmatpush1.bf16.xpose.msra.mxu0 0
    %1624 = vmatprep.subr.bf16.mxu0 0
    %1625 = vmatpush1.bf16.xpose.msra.mxu0 0
    %1626 = vmatprep.subr.bf16.mxu0 0
    %1627 = vmatpush1.bf16.xpose.msra.mxu0 0
    %1628 = vmatprep.subr.bf16.mxu0 0
    %1629 = vmatpush1.bf16.xpose.msra.mxu0 0
    %1630 = vmatprep.subr.bf16.mxu0 0
    %1631 = vmatpush1.bf16.xpose.msra.mxu0 0
    %1632 = vmatprep.subr.bf16.mxu0 0
    %1633 = vmatpush1.bf16.xpose.msra.mxu0 0
    %1634 = vmatprep.subr.bf16.mxu0 0
    %1635 = vmatpush1.bf16.xpose.msra.mxu0 0
    %1636 = vmatprep.subr.bf16.mxu0 0
    %1637 = vmatpush1.bf16.xpose.msra.mxu0 0
    %1638 = vmatprep.subr.bf16.mxu0 0
    %1639 = vmatpush1.bf16.xpose.msra.mxu0 0
    %1640 = vmatprep.subr.bf16.mxu0 0
    %1641 = vmatpush1.bf16.xpose.msra.mxu0 0
    %1642 = vmatprep.subr.bf16.mxu0 0
    %1643 = vmatpush1.bf16.xpose.msra.mxu0 0
    %1644 = vmatprep.subr.bf16.mxu0 0
    %1645 = vmatpush1.bf16.xpose.msra.mxu0 0
    %1646 = vmatprep.subr.bf16.mxu0 0
    %1647 = vmatpush1.bf16.xpose.msra.mxu0 0
    %1648 = vmatprep.subr.bf16.mxu0 0
    %1649 = vmatpush1.bf16.xpose.msra.mxu0 0
    %1650 = vmatprep.mubr.bf16.mxu0 0
    %1651 = vmatmul.mubr.bf16.gmra.mrb[0].mxu0 %v1613
    %v1652 = vpop.f32.mrb[0].mxu0
    %v1653 = vadd.f32 0.0, %v1652
    %v1654 = vpop.f32.mrb[0].mxu0
    %v1655 = vpop.f32.mrb[0].mxu0
    %v1656 = vpop.f32.mrb[0].mxu0
    %1657 = vdwg.mxu0
    %v1659 = vsel %vm1105, %v573, 0
    %v1662 = vsel %vm1105, %v813, 0
    %1664 = vmatprep.subr.bf16.mxu0 0
    %1665 = vmatpush1.bf16.xpose.msra.mxu0 %v1662
    %1666 = vmatprep.subr.bf16.mxu0 0
    %1667 = vmatpush1.bf16.xpose.msra.mxu0 0
    %1668 = vmatprep.subr.bf16.mxu0 0
    %1669 = vmatpush1.bf16.xpose.msra.mxu0 0
    %1670 = vmatprep.subr.bf16.mxu0 0
    %1671 = vmatpush1.bf16.xpose.msra.mxu0 0
    %1672 = vmatprep.subr.bf16.mxu0 0
    %1673 = vmatpush1.bf16.xpose.msra.mxu0 0
    %1674 = vmatprep.subr.bf16.mxu0 0
    %1675 = vmatpush1.bf16.xpose.msra.mxu0 0
    %1676 = vmatprep.subr.bf16.mxu0 0
    %1677 = vmatpush1.bf16.xpose.msra.mxu0 0
    %1678 = vmatprep.subr.bf16.mxu0 0
    %1679 = vmatpush1.bf16.xpose.msra.mxu0 0
    %1680 = vmatprep.subr.bf16.mxu0 0
    %1681 = vmatpush1.bf16.xpose.msra.mxu0 0
    %1682 = vmatprep.subr.bf16.mxu0 0
    %1683 = vmatpush1.bf16.xpose.msra.mxu0 0
    %1684 = vmatprep.subr.bf16.mxu0 0
    %1685 = vmatpush1.bf16.xpose.msra.mxu0 0
    %1686 = vmatprep.subr.bf16.mxu0 0
    %1687 = vmatpush1.bf16.xpose.msra.mxu0 0
    %1688 = vmatprep.subr.bf16.mxu0 0
    %1689 = vmatpush1.bf16.xpose.msra.mxu0 0
    %1690 = vmatprep.subr.bf16.mxu0 0
    %1691 = vmatpush1.bf16.xpose.msra.mxu0 0
    %1692 = vmatprep.subr.bf16.mxu0 0
    %1693 = vmatpush1.bf16.xpose.msra.mxu0 0
    %1694 = vmatprep.subr.bf16.mxu0 0
    %1695 = vmatpush1.bf16.xpose.msra.mxu0 0
    %1696 = vmatprep.mubr.bf16.mxu0 0
    %1697 = vmatmul.mubr.bf16.gmra.mrb[0].mxu0 %v1659
    %v1698 = vpop.f32.mrb[0].mxu0
    %v1699 = vadd.f32 0.0, %v1698
    %v1700 = vpop.f32.mrb[0].mxu0
    %v1701 = vpop.f32.mrb[0].mxu0
    %v1702 = vpop.f32.mrb[0].mxu0
    %1703 = vdwg.mxu0
    %v1705 = vsel %vm1105, %v574, 0
    %v1708 = vsel %vm1105, %v814, 0
    %1710 = vmatprep.subr.bf16.mxu0 0
    %1711 = vmatpush1.bf16.xpose.msra.mxu0 %v1708
    %1712 = vmatprep.subr.bf16.mxu0 0
    %1713 = vmatpush1.bf16.xpose.msra.mxu0 0
    %1714 = vmatprep.subr.bf16.mxu0 0
    %1715 = vmatpush1.bf16.xpose.msra.mxu0 0
    %1716 = vmatprep.subr.bf16.mxu0 0
    %1717 = vmatpush1.bf16.xpose.msra.mxu0 0
    %1718 = vmatprep.subr.bf16.mxu0 0
    %1719 = vmatpush1.bf16.xpose.msra.mxu0 0
    %1720 = vmatprep.subr.bf16.mxu0 0
    %1721 = vmatpush1.bf16.xpose.msra.mxu0 0
    %1722 = vmatprep.subr.bf16.mxu0 0
    %1723 = vmatpush1.bf16.xpose.msra.mxu0 0
    %1724 = vmatprep.subr.bf16.mxu0 0
    %1725 = vmatpush1.bf16.xpose.msra.mxu0 0
    %1726 = vmatprep.subr.bf16.mxu0 0
    %1727 = vmatpush1.bf16.xpose.msra.mxu0 0
    %1728 = vmatprep.subr.bf16.mxu0 0
    %1729 = vmatpush1.bf16.xpose.msra.mxu0 0
    %1730 = vmatprep.subr.bf16.mxu0 0
    %1731 = vmatpush1.bf16.xpose.msra.mxu0 0
    %1732 = vmatprep.subr.bf16.mxu0 0
    %1733 = vmatpush1.bf16.xpose.msra.mxu0 0
    %1734 = vmatprep.subr.bf16.mxu0 0
    %1735 = vmatpush1.bf16.xpose.msra.mxu0 0
    %1736 = vmatprep.subr.bf16.mxu0 0
    %1737 = vmatpush1.bf16.xpose.msra.mxu0 0
    %1738 = vmatprep.subr.bf16.mxu0 0
    %1739 = vmatpush1.bf16.xpose.msra.mxu0 0
    %1740 = vmatprep.subr.bf16.mxu0 0
    %1741 = vmatpush1.bf16.xpose.msra.mxu0 0
    %1742 = vmatprep.mubr.bf16.mxu0 0
    %1743 = vmatmul.mubr.bf16.gmra.mrb[0].mxu0 %v1705
    %v1744 = vpop.f32.mrb[0].mxu0
    %v1745 = vadd.f32 0.0, %v1744
    %v1746 = vpop.f32.mrb[0].mxu0
    %v1747 = vpop.f32.mrb[0].mxu0
    %v1748 = vpop.f32.mrb[0].mxu0
    %1749 = vdwg.mxu0
    %v1751 = vsel %vm1105, %v575, 0
    %v1754 = vsel %vm1105, %v815, 0
    %1756 = vmatprep.subr.bf16.mxu0 0
    %1757 = vmatpush1.bf16.xpose.msra.mxu0 %v1754
    %1758 = vmatprep.subr.bf16.mxu0 0
    %1759 = vmatpush1.bf16.xpose.msra.mxu0 0
    %1760 = vmatprep.subr.bf16.mxu0 0
    %1761 = vmatpush1.bf16.xpose.msra.mxu0 0
    %1762 = vmatprep.subr.bf16.mxu0 0
    %1763 = vmatpush1.bf16.xpose.msra.mxu0 0
    %1764 = vmatprep.subr.bf16.mxu0 0
    %1765 = vmatpush1.bf16.xpose.msra.mxu0 0
    %1766 = vmatprep.subr.bf16.mxu0 0
    %1767 = vmatpush1.bf16.xpose.msra.mxu0 0
    %1768 = vmatprep.subr.bf16.mxu0 0
    %1769 = vmatpush1.bf16.xpose.msra.mxu0 0
    %1770 = vmatprep.subr.bf16.mxu0 0
    %1771 = vmatpush1.bf16.xpose.msra.mxu0 0
    %1772 = vmatprep.subr.bf16.mxu0 0
    %1773 = vmatpush1.bf16.xpose.msra.mxu0 0
    %1774 = vmatprep.subr.bf16.mxu0 0
    %1775 = vmatpush1.bf16.xpose.msra.mxu0 0
    %1776 = vmatprep.subr.bf16.mxu0 0
    %1777 = vmatpush1.bf16.xpose.msra.mxu0 0
    %1778 = vmatprep.subr.bf16.mxu0 0
    %1779 = vmatpush1.bf16.xpose.msra.mxu0 0
    %1780 = vmatprep.subr.bf16.mxu0 0
    %1781 = vmatpush1.bf16.xpose.msra.mxu0 0
    %1782 = vmatprep.subr.bf16.mxu0 0
    %1783 = vmatpush1.bf16.xpose.msra.mxu0 0
    %1784 = vmatprep.subr.bf16.mxu0 0
    %1785 = vmatpush1.bf16.xpose.msra.mxu0 0
    %1786 = vmatprep.subr.bf16.mxu0 0
    %1787 = vmatpush1.bf16.xpose.msra.mxu0 0
    %1788 = vmatprep.mubr.bf16.mxu0 0
    %1789 = vmatmul.mubr.bf16.gmra.mrb[0].mxu0 %v1751
    %v1790 = vpop.f32.mrb[0].mxu0
    %v1791 = vadd.f32 0.0, %v1790
    %v1792 = vpop.f32.mrb[0].mxu0
    %v1793 = vpop.f32.mrb[0].mxu0
    %v1794 = vpop.f32.mrb[0].mxu0
    %1795 = vdwg.mxu0
    %v1797 = vsel %vm1105, %v576, 0
    %v1800 = vsel %vm1105, %v816, 0
    %1802 = vmatprep.subr.bf16.mxu0 0
    %1803 = vmatpush1.bf16.xpose.msra.mxu0 %v1800
    %1804 = vmatprep.subr.bf16.mxu0 0
    %1805 = vmatpush1.bf16.xpose.msra.mxu0 0
    %1806 = vmatprep.subr.bf16.mxu0 0
    %1807 = vmatpush1.bf16.xpose.msra.mxu0 0
    %1808 = vmatprep.subr.bf16.mxu0 0
    %1809 = vmatpush1.bf16.xpose.msra.mxu0 0
    %1810 = vmatprep.subr.bf16.mxu0 0
    %1811 = vmatpush1.bf16.xpose.msra.mxu0 0
    %1812 = vmatprep.subr.bf16.mxu0 0
    %1813 = vmatpush1.bf16.xpose.msra.mxu0 0
    %1814 = vmatprep.subr.bf16.mxu0 0
    %1815 = vmatpush1.bf16.xpose.msra.mxu0 0
    %1816 = vmatprep.subr.bf16.mxu0 0
    %1817 = vmatpush1.bf16.xpose.msra.mxu0 0
    %1818 = vmatprep.subr.bf16.mxu0 0
    %1819 = vmatpush1.bf16.xpose.msra.mxu0 0
    %1820 = vmatprep.subr.bf16.mxu0 0
    %1821 = vmatpush1.bf16.xpose.msra.mxu0 0
    %1822 = vmatprep.subr.bf16.mxu0 0
    %1823 = vmatpush1.bf16.xpose.msra.mxu0 0
    %1824 = vmatprep.subr.bf16.mxu0 0
    %1825 = vmatpush1.bf16.xpose.msra.mxu0 0
    %1826 = vmatprep.subr.bf16.mxu0 0
    %1827 = vmatpush1.bf16.xpose.msra.mxu0 0
    %1828 = vmatprep.subr.bf16.mxu0 0
    %1829 = vmatpush1.bf16.xpose.msra.mxu0 0
    %1830 = vmatprep.subr.bf16.mxu0 0
    %1831 = vmatpush1.bf16.xpose.msra.mxu0 0
    %1832 = vmatprep.subr.bf16.mxu0 0
    %1833 = vmatpush1.bf16.xpose.msra.mxu0 0
    %1834 = vmatprep.mubr.bf16.mxu0 0
    %1835 = vmatmul.mubr.bf16.gmra.mrb[0].mxu0 %v1797
    %v1836 = vpop.f32.mrb[0].mxu0
    %v1837 = vadd.f32 0.0, %v1836
    %v1838 = vpop.f32.mrb[0].mxu0
    %v1839 = vpop.f32.mrb[0].mxu0
    %v1840 = vpop.f32.mrb[0].mxu0
    %1841 = vdwg.mxu0
    %v1843 = vsel %vm1105, %v577, 0
    %v1846 = vsel %vm1105, %v817, 0
    %1848 = vmatprep.subr.bf16.mxu0 0
    %1849 = vmatpush1.bf16.xpose.msra.mxu0 %v1846
    %1850 = vmatprep.subr.bf16.mxu0 0
    %1851 = vmatpush1.bf16.xpose.msra.mxu0 0
    %1852 = vmatprep.subr.bf16.mxu0 0
    %1853 = vmatpush1.bf16.xpose.msra.mxu0 0
    %1854 = vmatprep.subr.bf16.mxu0 0
    %1855 = vmatpush1.bf16.xpose.msra.mxu0 0
    %1856 = vmatprep.subr.bf16.mxu0 0
    %1857 = vmatpush1.bf16.xpose.msra.mxu0 0
    %1858 = vmatprep.subr.bf16.mxu0 0
    %1859 = vmatpush1.bf16.xpose.msra.mxu0 0
    %1860 = vmatprep.subr.bf16.mxu0 0
    %1861 = vmatpush1.bf16.xpose.msra.mxu0 0
    %1862 = vmatprep.subr.bf16.mxu0 0
    %1863 = vmatpush1.bf16.xpose.msra.mxu0 0
    %1864 = vmatprep.subr.bf16.mxu0 0
    %1865 = vmatpush1.bf16.xpose.msra.mxu0 0
    %1866 = vmatprep.subr.bf16.mxu0 0
    %1867 = vmatpush1.bf16.xpose.msra.mxu0 0
    %1868 = vmatprep.subr.bf16.mxu0 0
    %1869 = vmatpush1.bf16.xpose.msra.mxu0 0
    %1870 = vmatprep.subr.bf16.mxu0 0
    %1871 = vmatpush1.bf16.xpose.msra.mxu0 0
    %1872 = vmatprep.subr.bf16.mxu0 0
    %1873 = vmatpush1.bf16.xpose.msra.mxu0 0
    %1874 = vmatprep.subr.bf16.mxu0 0
    %1875 = vmatpush1.bf16.xpose.msra.mxu0 0
    %1876 = vmatprep.subr.bf16.mxu0 0
    %1877 = vmatpush1.bf16.xpose.msra.mxu0 0
    %1878 = vmatprep.subr.bf16.mxu0 0
    %1879 = vmatpush1.bf16.xpose.msra.mxu0 0
    %1880 = vmatprep.mubr.bf16.mxu0 0
    %1881 = vmatmul.mubr.bf16.gmra.mrb[0].mxu0 %v1843
    %v1882 = vpop.f32.mrb[0].mxu0
    %v1883 = vadd.f32 0.0, %v1882
    %v1884 = vpop.f32.mrb[0].mxu0
    %v1885 = vpop.f32.mrb[0].mxu0
    %v1886 = vpop.f32.mrb[0].mxu0
    %1887 = vdwg.mxu0
    %v1889 = vsel %vm1105, %v578, 0
    %v1892 = vsel %vm1105, %v818, 0
    %1894 = vmatprep.subr.bf16.mxu0 0
    %1895 = vmatpush1.bf16.xpose.msra.mxu0 %v1892
    %1896 = vmatprep.subr.bf16.mxu0 0
    %1897 = vmatpush1.bf16.xpose.msra.mxu0 0
    %1898 = vmatprep.subr.bf16.mxu0 0
    %1899 = vmatpush1.bf16.xpose.msra.mxu0 0
    %1900 = vmatprep.subr.bf16.mxu0 0
    %1901 = vmatpush1.bf16.xpose.msra.mxu0 0
    %1902 = vmatprep.subr.bf16.mxu0 0
    %1903 = vmatpush1.bf16.xpose.msra.mxu0 0
    %1904 = vmatprep.subr.bf16.mxu0 0
    %1905 = vmatpush1.bf16.xpose.msra.mxu0 0
    %1906 = vmatprep.subr.bf16.mxu0 0
    %1907 = vmatpush1.bf16.xpose.msra.mxu0 0
    %1908 = vmatprep.subr.bf16.mxu0 0
    %1909 = vmatpush1.bf16.xpose.msra.mxu0 0
    %1910 = vmatprep.subr.bf16.mxu0 0
    %1911 = vmatpush1.bf16.xpose.msra.mxu0 0
    %1912 = vmatprep.subr.bf16.mxu0 0
    %1913 = vmatpush1.bf16.xpose.msra.mxu0 0
    %1914 = vmatprep.subr.bf16.mxu0 0
    %1915 = vmatpush1.bf16.xpose.msra.mxu0 0
    %1916 = vmatprep.subr.bf16.mxu0 0
    %1917 = vmatpush1.bf16.xpose.msra.mxu0 0
    %1918 = vmatprep.subr.bf16.mxu0 0
    %1919 = vmatpush1.bf16.xpose.msra.mxu0 0
    %1920 = vmatprep.subr.bf16.mxu0 0
    %1921 = vmatpush1.bf16.xpose.msra.mxu0 0
    %1922 = vmatprep.subr.bf16.mxu0 0
    %1923 = vmatpush1.bf16.xpose.msra.mxu0 0
    %1924 = vmatprep.subr.bf16.mxu0 0
    %1925 = vmatpush1.bf16.xpose.msra.mxu0 0
    %1926 = vmatprep.mubr.bf16.mxu0 0
    %1927 = vmatmul.mubr.bf16.gmra.mrb[0].mxu0 %v1889
    %v1928 = vpop.f32.mrb[0].mxu0
    %v1929 = vadd.f32 0.0, %v1928
    %v1930 = vpop.f32.mrb[0].mxu0
    %v1931 = vpop.f32.mrb[0].mxu0
    %v1932 = vpop.f32.mrb[0].mxu0
    %1933 = vdwg.mxu0
    %v1935 = vsel %vm1105, %v579, 0
    %v1938 = vsel %vm1105, %v819, 0
    %1940 = vmatprep.subr.bf16.mxu0 0
    %1941 = vmatpush1.bf16.xpose.msra.mxu0 %v1938
    %1942 = vmatprep.subr.bf16.mxu0 0
    %1943 = vmatpush1.bf16.xpose.msra.mxu0 0
    %1944 = vmatprep.subr.bf16.mxu0 0
    %1945 = vmatpush1.bf16.xpose.msra.mxu0 0
    %1946 = vmatprep.subr.bf16.mxu0 0
    %1947 = vmatpush1.bf16.xpose.msra.mxu0 0
    %1948 = vmatprep.subr.bf16.mxu0 0
    %1949 = vmatpush1.bf16.xpose.msra.mxu0 0
    %1950 = vmatprep.subr.bf16.mxu0 0
    %1951 = vmatpush1.bf16.xpose.msra.mxu0 0
    %1952 = vmatprep.subr.bf16.mxu0 0
    %1953 = vmatpush1.bf16.xpose.msra.mxu0 0
    %1954 = vmatprep.subr.bf16.mxu0 0
    %1955 = vmatpush1.bf16.xpose.msra.mxu0 0
    %1956 = vmatprep.subr.bf16.mxu0 0
    %1957 = vmatpush1.bf16.xpose.msra.mxu0 0
    %1958 = vmatprep.subr.bf16.mxu0 0
    %1959 = vmatpush1.bf16.xpose.msra.mxu0 0
    %1960 = vmatprep.subr.bf16.mxu0 0
    %1961 = vmatpush1.bf16.xpose.msra.mxu0 0
    %1962 = vmatprep.subr.bf16.mxu0 0
    %1963 = vmatpush1.bf16.xpose.msra.mxu0 0
    %1964 = vmatprep.subr.bf16.mxu0 0
    %1965 = vmatpush1.bf16.xpose.msra.mxu0 0
    %1966 = vmatprep.subr.bf16.mxu0 0
    %1967 = vmatpush1.bf16.xpose.msra.mxu0 0
    %1968 = vmatprep.subr.bf16.mxu0 0
    %1969 = vmatpush1.bf16.xpose.msra.mxu0 0
    %1970 = vmatprep.subr.bf16.mxu0 0
    %1971 = vmatpush1.bf16.xpose.msra.mxu0 0
    %1972 = vmatprep.mubr.bf16.mxu0 0
    %1973 = vmatmul.mubr.bf16.gmra.mrb[0].mxu0 %v1935
    %v1974 = vpop.f32.mrb[0].mxu0
    %v1975 = vadd.f32 0.0, %v1974
    %v1976 = vpop.f32.mrb[0].mxu0
    %v1977 = vpop.f32.mrb[0].mxu0
    %v1978 = vpop.f32.mrb[0].mxu0
    %1979 = vdwg.mxu0
    %v1981 = vsel %vm1105, %v580, 0
    %v1984 = vsel %vm1105, %v820, 0
    %1986 = vmatprep.subr.bf16.mxu0 0
    %1987 = vmatpush1.bf16.xpose.msra.mxu0 %v1984
    %1988 = vmatprep.subr.bf16.mxu0 0
    %1989 = vmatpush1.bf16.xpose.msra.mxu0 0
    %1990 = vmatprep.subr.bf16.mxu0 0
    %1991 = vmatpush1.bf16.xpose.msra.mxu0 0
    %1992 = vmatprep.subr.bf16.mxu0 0
    %1993 = vmatpush1.bf16.xpose.msra.mxu0 0
    %1994 = vmatprep.subr.bf16.mxu0 0
    %1995 = vmatpush1.bf16.xpose.msra.mxu0 0
    %1996 = vmatprep.subr.bf16.mxu0 0
    %1997 = vmatpush1.bf16.xpose.msra.mxu0 0
    %1998 = vmatprep.subr.bf16.mxu0 0
    %1999 = vmatpush1.bf16.xpose.msra.mxu0 0
    %2000 = vmatprep.subr.bf16.mxu0 0
    %2001 = vmatpush1.bf16.xpose.msra.mxu0 0
    %2002 = vmatprep.subr.bf16.mxu0 0
    %2003 = vmatpush1.bf16.xpose.msra.mxu0 0
    %2004 = vmatprep.subr.bf16.mxu0 0
    %2005 = vmatpush1.bf16.xpose.msra.mxu0 0
    %2006 = vmatprep.subr.bf16.mxu0 0
    %2007 = vmatpush1.bf16.xpose.msra.mxu0 0
    %2008 = vmatprep.subr.bf16.mxu0 0
    %2009 = vmatpush1.bf16.xpose.msra.mxu0 0
    %2010 = vmatprep.subr.bf16.mxu0 0
    %2011 = vmatpush1.bf16.xpose.msra.mxu0 0
    %2012 = vmatprep.subr.bf16.mxu0 0
    %2013 = vmatpush1.bf16.xpose.msra.mxu0 0
    %2014 = vmatprep.subr.bf16.mxu0 0
    %2015 = vmatpush1.bf16.xpose.msra.mxu0 0
    %2016 = vmatprep.subr.bf16.mxu0 0
    %2017 = vmatpush1.bf16.xpose.msra.mxu0 0
    %2018 = vmatprep.mubr.bf16.mxu0 0
    %2019 = vmatmul.mubr.bf16.gmra.mrb[0].mxu0 %v1981
    %v2020 = vpop.f32.mrb[0].mxu0
    %v2021 = vadd.f32 0.0, %v2020
    %v2022 = vpop.f32.mrb[0].mxu0
    %v2023 = vpop.f32.mrb[0].mxu0
    %v2024 = vpop.f32.mrb[0].mxu0
    %2025 = vdwg.mxu0
    %v2027 = vsel %vm1105, %v581, 0
    %v2030 = vsel %vm1105, %v821, 0
    %2032 = vmatprep.subr.bf16.mxu0 0
    %2033 = vmatpush1.bf16.xpose.msra.mxu0 %v2030
    %2034 = vmatprep.subr.bf16.mxu0 0
    %2035 = vmatpush1.bf16.xpose.msra.mxu0 0
    %2036 = vmatprep.subr.bf16.mxu0 0
    %2037 = vmatpush1.bf16.xpose.msra.mxu0 0
    %2038 = vmatprep.subr.bf16.mxu0 0
    %2039 = vmatpush1.bf16.xpose.msra.mxu0 0
    %2040 = vmatprep.subr.bf16.mxu0 0
    %2041 = vmatpush1.bf16.xpose.msra.mxu0 0
    %2042 = vmatprep.subr.bf16.mxu0 0
    %2043 = vmatpush1.bf16.xpose.msra.mxu0 0
    %2044 = vmatprep.subr.bf16.mxu0 0
    %2045 = vmatpush1.bf16.xpose.msra.mxu0 0
    %2046 = vmatprep.subr.bf16.mxu0 0
    %2047 = vmatpush1.bf16.xpose.msra.mxu0 0
    %2048 = vmatprep.subr.bf16.mxu0 0
    %2049 = vmatpush1.bf16.xpose.msra.mxu0 0
    %2050 = vmatprep.subr.bf16.mxu0 0
    %2051 = vmatpush1.bf16.xpose.msra.mxu0 0
    %2052 = vmatprep.subr.bf16.mxu0 0
    %2053 = vmatpush1.bf16.xpose.msra.mxu0 0
    %2054 = vmatprep.subr.bf16.mxu0 0
    %2055 = vmatpush1.bf16.xpose.msra.mxu0 0
    %2056 = vmatprep.subr.bf16.mxu0 0
    %2057 = vmatpush1.bf16.xpose.msra.mxu0 0
    %2058 = vmatprep.subr.bf16.mxu0 0
    %2059 = vmatpush1.bf16.xpose.msra.mxu0 0
    %2060 = vmatprep.subr.bf16.mxu0 0
    %2061 = vmatpush1.bf16.xpose.msra.mxu0 0
    %2062 = vmatprep.subr.bf16.mxu0 0
    %2063 = vmatpush1.bf16.xpose.msra.mxu0 0
    %2064 = vmatprep.mubr.bf16.mxu0 0
    %2065 = vmatmul.mubr.bf16.gmra.mrb[0].mxu0 %v2027
    %v2066 = vpop.f32.mrb[0].mxu0
    %v2067 = vadd.f32 0.0, %v2066
    %v2068 = vpop.f32.mrb[0].mxu0
    %v2069 = vpop.f32.mrb[0].mxu0
    %v2070 = vpop.f32.mrb[0].mxu0
    %2071 = vdwg.mxu0
    %v2073 = vsel %vm1105, %v582, 0
    %v2076 = vsel %vm1105, %v822, 0
    %2078 = vmatprep.subr.bf16.mxu0 0
    %2079 = vmatpush1.bf16.xpose.msra.mxu0 %v2076
    %2080 = vmatprep.subr.bf16.mxu0 0
    %2081 = vmatpush1.bf16.xpose.msra.mxu0 0
    %2082 = vmatprep.subr.bf16.mxu0 0
    %2083 = vmatpush1.bf16.xpose.msra.mxu0 0
    %2084 = vmatprep.subr.bf16.mxu0 0
    %2085 = vmatpush1.bf16.xpose.msra.mxu0 0
    %2086 = vmatprep.subr.bf16.mxu0 0
    %2087 = vmatpush1.bf16.xpose.msra.mxu0 0
    %2088 = vmatprep.subr.bf16.mxu0 0
    %2089 = vmatpush1.bf16.xpose.msra.mxu0 0
    %2090 = vmatprep.subr.bf16.mxu0 0
    %2091 = vmatpush1.bf16.xpose.msra.mxu0 0
    %2092 = vmatprep.subr.bf16.mxu0 0
    %2093 = vmatpush1.bf16.xpose.msra.mxu0 0
    %2094 = vmatprep.subr.bf16.mxu0 0
    %2095 = vmatpush1.bf16.xpose.msra.mxu0 0
    %2096 = vmatprep.subr.bf16.mxu0 0
    %2097 = vmatpush1.bf16.xpose.msra.mxu0 0
    %2098 = vmatprep.subr.bf16.mxu0 0
    %2099 = vmatpush1.bf16.xpose.msra.mxu0 0
    %2100 = vmatprep.subr.bf16.mxu0 0
    %2101 = vmatpush1.bf16.xpose.msra.mxu0 0
    %2102 = vmatprep.subr.bf16.mxu0 0
    %2103 = vmatpush1.bf16.xpose.msra.mxu0 0
    %2104 = vmatprep.subr.bf16.mxu0 0
    %2105 = vmatpush1.bf16.xpose.msra.mxu0 0
    %2106 = vmatprep.subr.bf16.mxu0 0
    %2107 = vmatpush1.bf16.xpose.msra.mxu0 0
    %2108 = vmatprep.subr.bf16.mxu0 0
    %2109 = vmatpush1.bf16.xpose.msra.mxu0 0
    %2110 = vmatprep.mubr.bf16.mxu0 0
    %2111 = vmatmul.mubr.bf16.gmra.mrb[0].mxu0 %v2073
    %v2112 = vpop.f32.mrb[0].mxu0
    %v2113 = vadd.f32 0.0, %v2112
    %v2114 = vpop.f32.mrb[0].mxu0
    %v2115 = vpop.f32.mrb[0].mxu0
    %v2116 = vpop.f32.mrb[0].mxu0
    %2117 = vdwg.mxu0
    %v2119 = vsel %vm1105, %v583, 0
    %v2122 = vsel %vm1105, %v823, 0
    %2124 = vmatprep.subr.bf16.mxu0 0
    %2125 = vmatpush1.bf16.xpose.msra.mxu0 %v2122
    %2126 = vmatprep.subr.bf16.mxu0 0
    %2127 = vmatpush1.bf16.xpose.msra.mxu0 0
    %2128 = vmatprep.subr.bf16.mxu0 0
    %2129 = vmatpush1.bf16.xpose.msra.mxu0 0
    %2130 = vmatprep.subr.bf16.mxu0 0
    %2131 = vmatpush1.bf16.xpose.msra.mxu0 0
    %2132 = vmatprep.subr.bf16.mxu0 0
    %2133 = vmatpush1.bf16.xpose.msra.mxu0 0
    %2134 = vmatprep.subr.bf16.mxu0 0
    %2135 = vmatpush1.bf16.xpose.msra.mxu0 0
    %2136 = vmatprep.subr.bf16.mxu0 0
    %2137 = vmatpush1.bf16.xpose.msra.mxu0 0
    %2138 = vmatprep.subr.bf16.mxu0 0
    %2139 = vmatpush1.bf16.xpose.msra.mxu0 0
    %2140 = vmatprep.subr.bf16.mxu0 0
    %2141 = vmatpush1.bf16.xpose.msra.mxu0 0
    %2142 = vmatprep.subr.bf16.mxu0 0
    %2143 = vmatpush1.bf16.xpose.msra.mxu0 0
    %2144 = vmatprep.subr.bf16.mxu0 0
    %2145 = vmatpush1.bf16.xpose.msra.mxu0 0
    %2146 = vmatprep.subr.bf16.mxu0 0
    %2147 = vmatpush1.bf16.xpose.msra.mxu0 0
    %2148 = vmatprep.subr.bf16.mxu0 0
    %2149 = vmatpush1.bf16.xpose.msra.mxu0 0
    %2150 = vmatprep.subr.bf16.mxu0 0
    %2151 = vmatpush1.bf16.xpose.msra.mxu0 0
    %2152 = vmatprep.subr.bf16.mxu0 0
    %2153 = vmatpush1.bf16.xpose.msra.mxu0 0
    %2154 = vmatprep.subr.bf16.mxu0 0
    %2155 = vmatpush1.bf16.xpose.msra.mxu0 0
    %2156 = vmatprep.mubr.bf16.mxu0 0
    %2157 = vmatmul.mubr.bf16.gmra.mrb[0].mxu0 %v2119
    %v2158 = vpop.f32.mrb[0].mxu0
    %v2159 = vadd.f32 0.0, %v2158
    %v2160 = vpop.f32.mrb[0].mxu0
    %v2161 = vpop.f32.mrb[0].mxu0
    %v2162 = vpop.f32.mrb[0].mxu0
    %2163 = vdwg.mxu0
    %v2165 = vsel %vm1105, %v584, 0
    %v2168 = vsel %vm1105, %v824, 0
    %2170 = vmatprep.subr.bf16.mxu0 0
    %2171 = vmatpush1.bf16.xpose.msra.mxu0 %v2168
    %2172 = vmatprep.subr.bf16.mxu0 0
    %2173 = vmatpush1.bf16.xpose.msra.mxu0 0
    %2174 = vmatprep.subr.bf16.mxu0 0
    %2175 = vmatpush1.bf16.xpose.msra.mxu0 0
    %2176 = vmatprep.subr.bf16.mxu0 0
    %2177 = vmatpush1.bf16.xpose.msra.mxu0 0
    %2178 = vmatprep.subr.bf16.mxu0 0
    %2179 = vmatpush1.bf16.xpose.msra.mxu0 0
    %2180 = vmatprep.subr.bf16.mxu0 0
    %2181 = vmatpush1.bf16.xpose.msra.mxu0 0
    %2182 = vmatprep.subr.bf16.mxu0 0
    %2183 = vmatpush1.bf16.xpose.msra.mxu0 0
    %2184 = vmatprep.subr.bf16.mxu0 0
    %2185 = vmatpush1.bf16.xpose.msra.mxu0 0
    %2186 = vmatprep.subr.bf16.mxu0 0
    %2187 = vmatpush1.bf16.xpose.msra.mxu0 0
    %2188 = vmatprep.subr.bf16.mxu0 0
    %2189 = vmatpush1.bf16.xpose.msra.mxu0 0
    %2190 = vmatprep.subr.bf16.mxu0 0
    %2191 = vmatpush1.bf16.xpose.msra.mxu0 0
    %2192 = vmatprep.subr.bf16.mxu0 0
    %2193 = vmatpush1.bf16.xpose.msra.mxu0 0
    %2194 = vmatprep.subr.bf16.mxu0 0
    %2195 = vmatpush1.bf16.xpose.msra.mxu0 0
    %2196 = vmatprep.subr.bf16.mxu0 0
    %2197 = vmatpush1.bf16.xpose.msra.mxu0 0
    %2198 = vmatprep.subr.bf16.mxu0 0
    %2199 = vmatpush1.bf16.xpose.msra.mxu0 0
    %2200 = vmatprep.subr.bf16.mxu0 0
    %2201 = vmatpush1.bf16.xpose.msra.mxu0 0
    %2202 = vmatprep.mubr.bf16.mxu0 0
    %2203 = vmatmul.mubr.bf16.gmra.mrb[0].mxu0 %v2165
    %v2204 = vpop.f32.mrb[0].mxu0
    %v2205 = vadd.f32 0.0, %v2204
    %v2206 = vpop.f32.mrb[0].mxu0
    %v2207 = vpop.f32.mrb[0].mxu0
    %v2208 = vpop.f32.mrb[0].mxu0
    %2209 = vdwg.mxu0
    %v2211 = vsel %vm1105, %v585, 0
    %v2214 = vsel %vm1105, %v825, 0
    %2216 = vmatprep.subr.bf16.mxu0 0
    %2217 = vmatpush1.bf16.xpose.msra.mxu0 %v2214
    %2218 = vmatprep.subr.bf16.mxu0 0
    %2219 = vmatpush1.bf16.xpose.msra.mxu0 0
    %2220 = vmatprep.subr.bf16.mxu0 0
    %2221 = vmatpush1.bf16.xpose.msra.mxu0 0
    %2222 = vmatprep.subr.bf16.mxu0 0
    %2223 = vmatpush1.bf16.xpose.msra.mxu0 0
    %2224 = vmatprep.subr.bf16.mxu0 0
    %2225 = vmatpush1.bf16.xpose.msra.mxu0 0
    %2226 = vmatprep.subr.bf16.mxu0 0
    %2227 = vmatpush1.bf16.xpose.msra.mxu0 0
    %2228 = vmatprep.subr.bf16.mxu0 0
    %2229 = vmatpush1.bf16.xpose.msra.mxu0 0
    %2230 = vmatprep.subr.bf16.mxu0 0
    %2231 = vmatpush1.bf16.xpose.msra.mxu0 0
    %2232 = vmatprep.subr.bf16.mxu0 0
    %2233 = vmatpush1.bf16.xpose.msra.mxu0 0
    %2234 = vmatprep.subr.bf16.mxu0 0
    %2235 = vmatpush1.bf16.xpose.msra.mxu0 0
    %2236 = vmatprep.subr.bf16.mxu0 0
    %2237 = vmatpush1.bf16.xpose.msra.mxu0 0
    %2238 = vmatprep.subr.bf16.mxu0 0
    %2239 = vmatpush1.bf16.xpose.msra.mxu0 0
    %2240 = vmatprep.subr.bf16.mxu0 0
    %2241 = vmatpush1.bf16.xpose.msra.mxu0 0
    %2242 = vmatprep.subr.bf16.mxu0 0
    %2243 = vmatpush1.bf16.xpose.msra.mxu0 0
    %2244 = vmatprep.subr.bf16.mxu0 0
    %2245 = vmatpush1.bf16.xpose.msra.mxu0 0
    %2246 = vmatprep.subr.bf16.mxu0 0
    %2247 = vmatpush1.bf16.xpose.msra.mxu0 0
    %2248 = vmatprep.mubr.bf16.mxu0 0
    %2249 = vmatmul.mubr.bf16.gmra.mrb[0].mxu0 %v2211
    %v2250 = vpop.f32.mrb[0].mxu0
    %v2251 = vadd.f32 0.0, %v2250
    %v2252 = vpop.f32.mrb[0].mxu0
    %v2253 = vpop.f32.mrb[0].mxu0
    %v2254 = vpop.f32.mrb[0].mxu0
    %2255 = vdwg.mxu0
    %v2257 = vsel %vm1105, %v586, 0
    %v2260 = vsel %vm1105, %v826, 0
    %2262 = vmatprep.subr.bf16.mxu0 0
    %2263 = vmatpush1.bf16.xpose.msra.mxu0 %v2260
    %2264 = vmatprep.subr.bf16.mxu0 0
    %2265 = vmatpush1.bf16.xpose.msra.mxu0 0
    %2266 = vmatprep.subr.bf16.mxu0 0
    %2267 = vmatpush1.bf16.xpose.msra.mxu0 0
    %2268 = vmatprep.subr.bf16.mxu0 0
    %2269 = vmatpush1.bf16.xpose.msra.mxu0 0
    %2270 = vmatprep.subr.bf16.mxu0 0
    %2271 = vmatpush1.bf16.xpose.msra.mxu0 0
    %2272 = vmatprep.subr.bf16.mxu0 0
    %2273 = vmatpush1.bf16.xpose.msra.mxu0 0
    %2274 = vmatprep.subr.bf16.mxu0 0
    %2275 = vmatpush1.bf16.xpose.msra.mxu0 0
    %2276 = vmatprep.subr.bf16.mxu0 0
    %2277 = vmatpush1.bf16.xpose.msra.mxu0 0
    %2278 = vmatprep.subr.bf16.mxu0 0
    %2279 = vmatpush1.bf16.xpose.msra.mxu0 0
    %2280 = vmatprep.subr.bf16.mxu0 0
    %2281 = vmatpush1.bf16.xpose.msra.mxu0 0
    %2282 = vmatprep.subr.bf16.mxu0 0
    %2283 = vmatpush1.bf16.xpose.msra.mxu0 0
    %2284 = vmatprep.subr.bf16.mxu0 0
    %2285 = vmatpush1.bf16.xpose.msra.mxu0 0
    %2286 = vmatprep.subr.bf16.mxu0 0
    %2287 = vmatpush1.bf16.xpose.msra.mxu0 0
    %2288 = vmatprep.subr.bf16.mxu0 0
    %2289 = vmatpush1.bf16.xpose.msra.mxu0 0
    %2290 = vmatprep.subr.bf16.mxu0 0
    %2291 = vmatpush1.bf16.xpose.msra.mxu0 0
    %2292 = vmatprep.subr.bf16.mxu0 0
    %2293 = vmatpush1.bf16.xpose.msra.mxu0 0
    %2294 = vmatprep.mubr.bf16.mxu0 0
    %2295 = vmatmul.mubr.bf16.gmra.mrb[0].mxu0 %v2257
    %v2296 = vpop.f32.mrb[0].mxu0
    %v2297 = vadd.f32 0.0, %v2296
    %v2298 = vpop.f32.mrb[0].mxu0
    %v2299 = vpop.f32.mrb[0].mxu0
    %v2300 = vpop.f32.mrb[0].mxu0
    %2301 = vdwg.mxu0
    %v2303 = vsel %vm1105, %v587, 0
    %v2306 = vsel %vm1105, %v827, 0
    %2308 = vmatprep.subr.bf16.mxu0 0
    %2309 = vmatpush1.bf16.xpose.msra.mxu0 %v2306
    %2310 = vmatprep.subr.bf16.mxu0 0
    %2311 = vmatpush1.bf16.xpose.msra.mxu0 0
    %2312 = vmatprep.subr.bf16.mxu0 0
    %2313 = vmatpush1.bf16.xpose.msra.mxu0 0
    %2314 = vmatprep.subr.bf16.mxu0 0
    %2315 = vmatpush1.bf16.xpose.msra.mxu0 0
    %2316 = vmatprep.subr.bf16.mxu0 0
    %2317 = vmatpush1.bf16.xpose.msra.mxu0 0
    %2318 = vmatprep.subr.bf16.mxu0 0
    %2319 = vmatpush1.bf16.xpose.msra.mxu0 0
    %2320 = vmatprep.subr.bf16.mxu0 0
    %2321 = vmatpush1.bf16.xpose.msra.mxu0 0
    %2322 = vmatprep.subr.bf16.mxu0 0
    %2323 = vmatpush1.bf16.xpose.msra.mxu0 0
    %2324 = vmatprep.subr.bf16.mxu0 0
    %2325 = vmatpush1.bf16.xpose.msra.mxu0 0
    %2326 = vmatprep.subr.bf16.mxu0 0
    %2327 = vmatpush1.bf16.xpose.msra.mxu0 0
    %2328 = vmatprep.subr.bf16.mxu0 0
    %2329 = vmatpush1.bf16.xpose.msra.mxu0 0
    %2330 = vmatprep.subr.bf16.mxu0 0
    %2331 = vmatpush1.bf16.xpose.msra.mxu0 0
    %2332 = vmatprep.subr.bf16.mxu0 0
    %2333 = vmatpush1.bf16.xpose.msra.mxu0 0
    %2334 = vmatprep.subr.bf16.mxu0 0
    %2335 = vmatpush1.bf16.xpose.msra.mxu0 0
    %2336 = vmatprep.subr.bf16.mxu0 0
    %2337 = vmatpush1.bf16.xpose.msra.mxu0 0
    %2338 = vmatprep.subr.bf16.mxu0 0
    %2339 = vmatpush1.bf16.xpose.msra.mxu0 0
    %2340 = vmatprep.mubr.bf16.mxu0 0
    %2341 = vmatmul.mubr.bf16.gmra.mrb[0].mxu0 %v2303
    %v2342 = vpop.f32.mrb[0].mxu0
    %v2343 = vadd.f32 0.0, %v2342
    %v2344 = vpop.f32.mrb[0].mxu0
    %v2345 = vpop.f32.mrb[0].mxu0
    %v2346 = vpop.f32.mrb[0].mxu0
    %2347 = vdwg.mxu0
    %v2349 = vsel %vm1105, %v588, 0
    %v2352 = vsel %vm1105, %v828, 0
    %2354 = vmatprep.subr.bf16.mxu0 0
    %2355 = vmatpush1.bf16.xpose.msra.mxu0 %v2352
    %2356 = vmatprep.subr.bf16.mxu0 0
    %2357 = vmatpush1.bf16.xpose.msra.mxu0 0
    %2358 = vmatprep.subr.bf16.mxu0 0
    %2359 = vmatpush1.bf16.xpose.msra.mxu0 0
    %2360 = vmatprep.subr.bf16.mxu0 0
    %2361 = vmatpush1.bf16.xpose.msra.mxu0 0
    %2362 = vmatprep.subr.bf16.mxu0 0
    %2363 = vmatpush1.bf16.xpose.msra.mxu0 0
    %2364 = vmatprep.subr.bf16.mxu0 0
    %2365 = vmatpush1.bf16.xpose.msra.mxu0 0
    %2366 = vmatprep.subr.bf16.mxu0 0
    %2367 = vmatpush1.bf16.xpose.msra.mxu0 0
    %2368 = vmatprep.subr.bf16.mxu0 0
    %2369 = vmatpush1.bf16.xpose.msra.mxu0 0
    %2370 = vmatprep.subr.bf16.mxu0 0
    %2371 = vmatpush1.bf16.xpose.msra.mxu0 0
    %2372 = vmatprep.subr.bf16.mxu0 0
    %2373 = vmatpush1.bf16.xpose.msra.mxu0 0
    %2374 = vmatprep.subr.bf16.mxu0 0
    %2375 = vmatpush1.bf16.xpose.msra.mxu0 0
    %2376 = vmatprep.subr.bf16.mxu0 0
    %2377 = vmatpush1.bf16.xpose.msra.mxu0 0
    %2378 = vmatprep.subr.bf16.mxu0 0
    %2379 = vmatpush1.bf16.xpose.msra.mxu0 0
    %2380 = vmatprep.subr.bf16.mxu0 0
    %2381 = vmatpush1.bf16.xpose.msra.mxu0 0
    %2382 = vmatprep.subr.bf16.mxu0 0
    %2383 = vmatpush1.bf16.xpose.msra.mxu0 0
    %2384 = vmatprep.subr.bf16.mxu0 0
    %2385 = vmatpush1.bf16.xpose.msra.mxu0 0
    %2386 = vmatprep.mubr.bf16.mxu0 0
    %2387 = vmatmul.mubr.bf16.gmra.mrb[0].mxu0 %v2349
    %v2388 = vpop.f32.mrb[0].mxu0
    %v2389 = vadd.f32 0.0, %v2388
    %v2390 = vpop.f32.mrb[0].mxu0
    %v2391 = vpop.f32.mrb[0].mxu0
    %v2392 = vpop.f32.mrb[0].mxu0
    %2393 = vdwg.mxu0
    %v2395 = vsel %vm1105, %v589, 0
    %v2398 = vsel %vm1105, %v829, 0
    %2400 = vmatprep.subr.bf16.mxu0 0
    %2401 = vmatpush1.bf16.xpose.msra.mxu0 %v2398
    %2402 = vmatprep.subr.bf16.mxu0 0
    %2403 = vmatpush1.bf16.xpose.msra.mxu0 0
    %2404 = vmatprep.subr.bf16.mxu0 0
    %2405 = vmatpush1.bf16.xpose.msra.mxu0 0
    %2406 = vmatprep.subr.bf16.mxu0 0
    %2407 = vmatpush1.bf16.xpose.msra.mxu0 0
    %2408 = vmatprep.subr.bf16.mxu0 0
    %2409 = vmatpush1.bf16.xpose.msra.mxu0 0
    %2410 = vmatprep.subr.bf16.mxu0 0
    %2411 = vmatpush1.bf16.xpose.msra.mxu0 0
    %2412 = vmatprep.subr.bf16.mxu0 0
    %2413 = vmatpush1.bf16.xpose.msra.mxu0 0
    %2414 = vmatprep.subr.bf16.mxu0 0
    %2415 = vmatpush1.bf16.xpose.msra.mxu0 0
    %2416 = vmatprep.subr.bf16.mxu0 0
    %2417 = vmatpush1.bf16.xpose.msra.mxu0 0
    %2418 = vmatprep.subr.bf16.mxu0 0
    %2419 = vmatpush1.bf16.xpose.msra.mxu0 0
    %2420 = vmatprep.subr.bf16.mxu0 0
    %2421 = vmatpush1.bf16.xpose.msra.mxu0 0
    %2422 = vmatprep.subr.bf16.mxu0 0
    %2423 = vmatpush1.bf16.xpose.msra.mxu0 0
    %2424 = vmatprep.subr.bf16.mxu0 0
    %2425 = vmatpush1.bf16.xpose.msra.mxu0 0
    %2426 = vmatprep.subr.bf16.mxu0 0
    %2427 = vmatpush1.bf16.xpose.msra.mxu0 0
    %2428 = vmatprep.subr.bf16.mxu0 0
    %2429 = vmatpush1.bf16.xpose.msra.mxu0 0
    %2430 = vmatprep.subr.bf16.mxu0 0
    %2431 = vmatpush1.bf16.xpose.msra.mxu0 0
    %2432 = vmatprep.mubr.bf16.mxu0 0
    %2433 = vmatmul.mubr.bf16.gmra.mrb[0].mxu0 %v2395
    %v2434 = vpop.f32.mrb[0].mxu0
    %v2435 = vadd.f32 0.0, %v2434
    %v2436 = vpop.f32.mrb[0].mxu0
    %v2437 = vpop.f32.mrb[0].mxu0
    %v2438 = vpop.f32.mrb[0].mxu0
    %2439 = vdwg.mxu0
    %v2441 = vsel %vm1105, %v590, 0
    %v2444 = vsel %vm1105, %v830, 0
    %2446 = vmatprep.subr.bf16.mxu0 0
    %2447 = vmatpush1.bf16.xpose.msra.mxu0 %v2444
    %2448 = vmatprep.subr.bf16.mxu0 0
    %2449 = vmatpush1.bf16.xpose.msra.mxu0 0
    %2450 = vmatprep.subr.bf16.mxu0 0
    %2451 = vmatpush1.bf16.xpose.msra.mxu0 0
    %2452 = vmatprep.subr.bf16.mxu0 0
    %2453 = vmatpush1.bf16.xpose.msra.mxu0 0
    %2454 = vmatprep.subr.bf16.mxu0 0
    %2455 = vmatpush1.bf16.xpose.msra.mxu0 0
    %2456 = vmatprep.subr.bf16.mxu0 0
    %2457 = vmatpush1.bf16.xpose.msra.mxu0 0
    %2458 = vmatprep.subr.bf16.mxu0 0
    %2459 = vmatpush1.bf16.xpose.msra.mxu0 0
    %2460 = vmatprep.subr.bf16.mxu0 0
    %2461 = vmatpush1.bf16.xpose.msra.mxu0 0
    %2462 = vmatprep.subr.bf16.mxu0 0
    %2463 = vmatpush1.bf16.xpose.msra.mxu0 0
    %2464 = vmatprep.subr.bf16.mxu0 0
    %2465 = vmatpush1.bf16.xpose.msra.mxu0 0
    %2466 = vmatprep.subr.bf16.mxu0 0
    %2467 = vmatpush1.bf16.xpose.msra.mxu0 0
    %2468 = vmatprep.subr.bf16.mxu0 0
    %2469 = vmatpush1.bf16.xpose.msra.mxu0 0
    %2470 = vmatprep.subr.bf16.mxu0 0
    %2471 = vmatpush1.bf16.xpose.msra.mxu0 0
    %2472 = vmatprep.subr.bf16.mxu0 0
    %2473 = vmatpush1.bf16.xpose.msra.mxu0 0
    %2474 = vmatprep.subr.bf16.mxu0 0
    %2475 = vmatpush1.bf16.xpose.msra.mxu0 0
    %2476 = vmatprep.subr.bf16.mxu0 0
    %2477 = vmatpush1.bf16.xpose.msra.mxu0 0
    %2478 = vmatprep.mubr.bf16.mxu0 0
    %2479 = vmatmul.mubr.bf16.gmra.mrb[0].mxu0 %v2441
    %v2480 = vpop.f32.mrb[0].mxu0
    %v2481 = vadd.f32 0.0, %v2480
    %v2482 = vpop.f32.mrb[0].mxu0
    %v2483 = vpop.f32.mrb[0].mxu0
    %v2484 = vpop.f32.mrb[0].mxu0
    %2485 = vdwg.mxu0
    %v2487 = vsel %vm1105, %v591, 0
    %v2490 = vsel %vm1105, %v831, 0
    %2492 = vmatprep.subr.bf16.mxu0 0
    %2493 = vmatpush1.bf16.xpose.msra.mxu0 %v2490
    %2494 = vmatprep.subr.bf16.mxu0 0
    %2495 = vmatpush1.bf16.xpose.msra.mxu0 0
    %2496 = vmatprep.subr.bf16.mxu0 0
    %2497 = vmatpush1.bf16.xpose.msra.mxu0 0
    %2498 = vmatprep.subr.bf16.mxu0 0
    %2499 = vmatpush1.bf16.xpose.msra.mxu0 0
    %2500 = vmatprep.subr.bf16.mxu0 0
    %2501 = vmatpush1.bf16.xpose.msra.mxu0 0
    %2502 = vmatprep.subr.bf16.mxu0 0
    %2503 = vmatpush1.bf16.xpose.msra.mxu0 0
    %2504 = vmatprep.subr.bf16.mxu0 0
    %2505 = vmatpush1.bf16.xpose.msra.mxu0 0
    %2506 = vmatprep.subr.bf16.mxu0 0
    %2507 = vmatpush1.bf16.xpose.msra.mxu0 0
    %2508 = vmatprep.subr.bf16.mxu0 0
    %2509 = vmatpush1.bf16.xpose.msra.mxu0 0
    %2510 = vmatprep.subr.bf16.mxu0 0
    %2511 = vmatpush1.bf16.xpose.msra.mxu0 0
    %2512 = vmatprep.subr.bf16.mxu0 0
    %2513 = vmatpush1.bf16.xpose.msra.mxu0 0
    %2514 = vmatprep.subr.bf16.mxu0 0
    %2515 = vmatpush1.bf16.xpose.msra.mxu0 0
    %2516 = vmatprep.subr.bf16.mxu0 0
    %2517 = vmatpush1.bf16.xpose.msra.mxu0 0
    %2518 = vmatprep.subr.bf16.mxu0 0
    %2519 = vmatpush1.bf16.xpose.msra.mxu0 0
    %2520 = vmatprep.subr.bf16.mxu0 0
    %2521 = vmatpush1.bf16.xpose.msra.mxu0 0
    %2522 = vmatprep.subr.bf16.mxu0 0
    %2523 = vmatpush1.bf16.xpose.msra.mxu0 0
    %2524 = vmatprep.mubr.bf16.mxu0 0
    %2525 = vmatmul.mubr.bf16.gmra.mrb[0].mxu0 %v2487
    %v2526 = vpop.f32.mrb[0].mxu0
    %v2527 = vadd.f32 0.0, %v2526
    %v2528 = vpop.f32.mrb[0].mxu0
    %v2529 = vpop.f32.mrb[0].mxu0
    %v2530 = vpop.f32.mrb[0].mxu0
    %2531 = vdwg.mxu0
    %v2533 = vsel %vm1105, %v592, 0
    %v2536 = vsel %vm1105, %v832, 0
    %2538 = vmatprep.subr.bf16.mxu0 0
    %2539 = vmatpush1.bf16.xpose.msra.mxu0 %v2536
    %2540 = vmatprep.subr.bf16.mxu0 0
    %2541 = vmatpush1.bf16.xpose.msra.mxu0 0
    %2542 = vmatprep.subr.bf16.mxu0 0
    %2543 = vmatpush1.bf16.xpose.msra.mxu0 0
    %2544 = vmatprep.subr.bf16.mxu0 0
    %2545 = vmatpush1.bf16.xpose.msra.mxu0 0
    %2546 = vmatprep.subr.bf16.mxu0 0
    %2547 = vmatpush1.bf16.xpose.msra.mxu0 0
    %2548 = vmatprep.subr.bf16.mxu0 0
    %2549 = vmatpush1.bf16.xpose.msra.mxu0 0
    %2550 = vmatprep.subr.bf16.mxu0 0
    %2551 = vmatpush1.bf16.xpose.msra.mxu0 0
    %2552 = vmatprep.subr.bf16.mxu0 0
    %2553 = vmatpush1.bf16.xpose.msra.mxu0 0
    %2554 = vmatprep.subr.bf16.mxu0 0
    %2555 = vmatpush1.bf16.xpose.msra.mxu0 0
    %2556 = vmatprep.subr.bf16.mxu0 0
    %2557 = vmatpush1.bf16.xpose.msra.mxu0 0
    %2558 = vmatprep.subr.bf16.mxu0 0
    %2559 = vmatpush1.bf16.xpose.msra.mxu0 0
    %2560 = vmatprep.subr.bf16.mxu0 0
    %2561 = vmatpush1.bf16.xpose.msra.mxu0 0
    %2562 = vmatprep.subr.bf16.mxu0 0
    %2563 = vmatpush1.bf16.xpose.msra.mxu0 0
    %2564 = vmatprep.subr.bf16.mxu0 0
    %2565 = vmatpush1.bf16.xpose.msra.mxu0 0
    %2566 = vmatprep.subr.bf16.mxu0 0
    %2567 = vmatpush1.bf16.xpose.msra.mxu0 0
    %2568 = vmatprep.subr.bf16.mxu0 0
    %2569 = vmatpush1.bf16.xpose.msra.mxu0 0
    %2570 = vmatprep.mubr.bf16.mxu0 0
    %2571 = vmatmul.mubr.bf16.gmra.mrb[0].mxu0 %v2533
    %v2572 = vpop.f32.mrb[0].mxu0
    %v2573 = vadd.f32 0.0, %v2572
    %v2574 = vpop.f32.mrb[0].mxu0
    %v2575 = vpop.f32.mrb[0].mxu0
    %v2576 = vpop.f32.mrb[0].mxu0
    %2577 = vdwg.mxu0
    %v2579 = vsel %vm1105, %v593, 0
    %v2582 = vsel %vm1105, %v833, 0
    %2584 = vmatprep.subr.bf16.mxu0 0
    %2585 = vmatpush1.bf16.xpose.msra.mxu0 %v2582
    %2586 = vmatprep.subr.bf16.mxu0 0
    %2587 = vmatpush1.bf16.xpose.msra.mxu0 0
    %2588 = vmatprep.subr.bf16.mxu0 0
    %2589 = vmatpush1.bf16.xpose.msra.mxu0 0
    %2590 = vmatprep.subr.bf16.mxu0 0
    %2591 = vmatpush1.bf16.xpose.msra.mxu0 0
    %2592 = vmatprep.subr.bf16.mxu0 0
    %2593 = vmatpush1.bf16.xpose.msra.mxu0 0
    %2594 = vmatprep.subr.bf16.mxu0 0
    %2595 = vmatpush1.bf16.xpose.msra.mxu0 0
    %2596 = vmatprep.subr.bf16.mxu0 0
    %2597 = vmatpush1.bf16.xpose.msra.mxu0 0
    %2598 = vmatprep.subr.bf16.mxu0 0
    %2599 = vmatpush1.bf16.xpose.msra.mxu0 0
    %2600 = vmatprep.subr.bf16.mxu0 0
    %2601 = vmatpush1.bf16.xpose.msra.mxu0 0
    %2602 = vmatprep.subr.bf16.mxu0 0
    %2603 = vmatpush1.bf16.xpose.msra.mxu0 0
    %2604 = vmatprep.subr.bf16.mxu0 0
    %2605 = vmatpush1.bf16.xpose.msra.mxu0 0
    %2606 = vmatprep.subr.bf16.mxu0 0
    %2607 = vmatpush1.bf16.xpose.msra.mxu0 0
    %2608 = vmatprep.subr.bf16.mxu0 0
    %2609 = vmatpush1.bf16.xpose.msra.mxu0 0
    %2610 = vmatprep.subr.bf16.mxu0 0
    %2611 = vmatpush1.bf16.xpose.msra.mxu0 0
    %2612 = vmatprep.subr.bf16.mxu0 0
    %2613 = vmatpush1.bf16.xpose.msra.mxu0 0
    %2614 = vmatprep.subr.bf16.mxu0 0
    %2615 = vmatpush1.bf16.xpose.msra.mxu0 0
    %2616 = vmatprep.mubr.bf16.mxu0 0
    %2617 = vmatmul.mubr.bf16.gmra.mrb[0].mxu0 %v2579
    %v2618 = vpop.f32.mrb[0].mxu0
    %v2619 = vadd.f32 0.0, %v2618
    %v2620 = vpop.f32.mrb[0].mxu0
    %v2621 = vpop.f32.mrb[0].mxu0
    %v2622 = vpop.f32.mrb[0].mxu0
    %2623 = vdwg.mxu0
    %v2625 = vsel %vm1105, %v594, 0
    %v2628 = vsel %vm1105, %v834, 0
    %2630 = vmatprep.subr.bf16.mxu0 0
    %2631 = vmatpush1.bf16.xpose.msra.mxu0 %v2628
    %2632 = vmatprep.subr.bf16.mxu0 0
    %2633 = vmatpush1.bf16.xpose.msra.mxu0 0
    %2634 = vmatprep.subr.bf16.mxu0 0
    %2635 = vmatpush1.bf16.xpose.msra.mxu0 0
    %2636 = vmatprep.subr.bf16.mxu0 0
    %2637 = vmatpush1.bf16.xpose.msra.mxu0 0
    %2638 = vmatprep.subr.bf16.mxu0 0
    %2639 = vmatpush1.bf16.xpose.msra.mxu0 0
    %2640 = vmatprep.subr.bf16.mxu0 0
    %2641 = vmatpush1.bf16.xpose.msra.mxu0 0
    %2642 = vmatprep.subr.bf16.mxu0 0
    %2643 = vmatpush1.bf16.xpose.msra.mxu0 0
    %2644 = vmatprep.subr.bf16.mxu0 0
    %2645 = vmatpush1.bf16.xpose.msra.mxu0 0
    %2646 = vmatprep.subr.bf16.mxu0 0
    %2647 = vmatpush1.bf16.xpose.msra.mxu0 0
    %2648 = vmatprep.subr.bf16.mxu0 0
    %2649 = vmatpush1.bf16.xpose.msra.mxu0 0
    %2650 = vmatprep.subr.bf16.mxu0 0
    %2651 = vmatpush1.bf16.xpose.msra.mxu0 0
    %2652 = vmatprep.subr.bf16.mxu0 0
    %2653 = vmatpush1.bf16.xpose.msra.mxu0 0
    %2654 = vmatprep.subr.bf16.mxu0 0
    %2655 = vmatpush1.bf16.xpose.msra.mxu0 0
    %2656 = vmatprep.subr.bf16.mxu0 0
    %2657 = vmatpush1.bf16.xpose.msra.mxu0 0
    %2658 = vmatprep.subr.bf16.mxu0 0
    %2659 = vmatpush1.bf16.xpose.msra.mxu0 0
    %2660 = vmatprep.subr.bf16.mxu0 0
    %2661 = vmatpush1.bf16.xpose.msra.mxu0 0
    %2662 = vmatprep.mubr.bf16.mxu0 0
    %2663 = vmatmul.mubr.bf16.gmra.mrb[0].mxu0 %v2625
    %v2664 = vpop.f32.mrb[0].mxu0
    %v2665 = vadd.f32 0.0, %v2664
    %v2666 = vpop.f32.mrb[0].mxu0
    %v2667 = vpop.f32.mrb[0].mxu0
    %v2668 = vpop.f32.mrb[0].mxu0
    %2669 = vdwg.mxu0
    %v2671 = vsel %vm1105, %v595, 0
    %v2674 = vsel %vm1105, %v835, 0
    %2676 = vmatprep.subr.bf16.mxu0 0
    %2677 = vmatpush1.bf16.xpose.msra.mxu0 %v2674
    %2678 = vmatprep.subr.bf16.mxu0 0
    %2679 = vmatpush1.bf16.xpose.msra.mxu0 0
    %2680 = vmatprep.subr.bf16.mxu0 0
    %2681 = vmatpush1.bf16.xpose.msra.mxu0 0
    %2682 = vmatprep.subr.bf16.mxu0 0
    %2683 = vmatpush1.bf16.xpose.msra.mxu0 0
    %2684 = vmatprep.subr.bf16.mxu0 0
    %2685 = vmatpush1.bf16.xpose.msra.mxu0 0
    %2686 = vmatprep.subr.bf16.mxu0 0
    %2687 = vmatpush1.bf16.xpose.msra.mxu0 0
    %2688 = vmatprep.subr.bf16.mxu0 0
    %2689 = vmatpush1.bf16.xpose.msra.mxu0 0
    %2690 = vmatprep.subr.bf16.mxu0 0
    %2691 = vmatpush1.bf16.xpose.msra.mxu0 0
    %2692 = vmatprep.subr.bf16.mxu0 0
    %2693 = vmatpush1.bf16.xpose.msra.mxu0 0
    %2694 = vmatprep.subr.bf16.mxu0 0
    %2695 = vmatpush1.bf16.xpose.msra.mxu0 0
    %2696 = vmatprep.subr.bf16.mxu0 0
    %2697 = vmatpush1.bf16.xpose.msra.mxu0 0
    %2698 = vmatprep.subr.bf16.mxu0 0
    %2699 = vmatpush1.bf16.xpose.msra.mxu0 0
    %2700 = vmatprep.subr.bf16.mxu0 0
    %2701 = vmatpush1.bf16.xpose.msra.mxu0 0
    %2702 = vmatprep.subr.bf16.mxu0 0
    %2703 = vmatpush1.bf16.xpose.msra.mxu0 0
    %2704 = vmatprep.subr.bf16.mxu0 0
    %2705 = vmatpush1.bf16.xpose.msra.mxu0 0
    %2706 = vmatprep.subr.bf16.mxu0 0
    %2707 = vmatpush1.bf16.xpose.msra.mxu0 0
    %2708 = vmatprep.mubr.bf16.mxu0 0
    %2709 = vmatmul.mubr.bf16.gmra.mrb[0].mxu0 %v2671
    %v2710 = vpop.f32.mrb[0].mxu0
    %v2711 = vadd.f32 0.0, %v2710
    %v2712 = vpop.f32.mrb[0].mxu0
    %v2713 = vpop.f32.mrb[0].mxu0
    %v2714 = vpop.f32.mrb[0].mxu0
    %2715 = vdwg.mxu0
    %v2717 = vsel %vm1105, %v596, 0
    %v2720 = vsel %vm1105, %v836, 0
    %2722 = vmatprep.subr.bf16.mxu0 0
    %2723 = vmatpush1.bf16.xpose.msra.mxu0 %v2720
    %2724 = vmatprep.subr.bf16.mxu0 0
    %2725 = vmatpush1.bf16.xpose.msra.mxu0 0
    %2726 = vmatprep.subr.bf16.mxu0 0
    %2727 = vmatpush1.bf16.xpose.msra.mxu0 0
    %2728 = vmatprep.subr.bf16.mxu0 0
    %2729 = vmatpush1.bf16.xpose.msra.mxu0 0
    %2730 = vmatprep.subr.bf16.mxu0 0
    %2731 = vmatpush1.bf16.xpose.msra.mxu0 0
    %2732 = vmatprep.subr.bf16.mxu0 0
    %2733 = vmatpush1.bf16.xpose.msra.mxu0 0
    %2734 = vmatprep.subr.bf16.mxu0 0
    %2735 = vmatpush1.bf16.xpose.msra.mxu0 0
    %2736 = vmatprep.subr.bf16.mxu0 0
    %2737 = vmatpush1.bf16.xpose.msra.mxu0 0
    %2738 = vmatprep.subr.bf16.mxu0 0
    %2739 = vmatpush1.bf16.xpose.msra.mxu0 0
    %2740 = vmatprep.subr.bf16.mxu0 0
    %2741 = vmatpush1.bf16.xpose.msra.mxu0 0
    %2742 = vmatprep.subr.bf16.mxu0 0
    %2743 = vmatpush1.bf16.xpose.msra.mxu0 0
    %2744 = vmatprep.subr.bf16.mxu0 0
    %2745 = vmatpush1.bf16.xpose.msra.mxu0 0
    %2746 = vmatprep.subr.bf16.mxu0 0
    %2747 = vmatpush1.bf16.xpose.msra.mxu0 0
    %2748 = vmatprep.subr.bf16.mxu0 0
    %2749 = vmatpush1.bf16.xpose.msra.mxu0 0
    %2750 = vmatprep.subr.bf16.mxu0 0
    %2751 = vmatpush1.bf16.xpose.msra.mxu0 0
    %2752 = vmatprep.subr.bf16.mxu0 0
    %2753 = vmatpush1.bf16.xpose.msra.mxu0 0
    %2754 = vmatprep.mubr.bf16.mxu0 0
    %2755 = vmatmul.mubr.bf16.gmra.mrb[0].mxu0 %v2717
    %v2756 = vpop.f32.mrb[0].mxu0
    %v2757 = vadd.f32 0.0, %v2756
    %v2758 = vpop.f32.mrb[0].mxu0
    %v2759 = vpop.f32.mrb[0].mxu0
    %v2760 = vpop.f32.mrb[0].mxu0
    %2761 = vdwg.mxu0
    %v2763 = vsel %vm1105, %v597, 0
    %v2766 = vsel %vm1105, %v837, 0
    %2768 = vmatprep.subr.bf16.mxu0 0
    %2769 = vmatpush1.bf16.xpose.msra.mxu0 %v2766
    %2770 = vmatprep.subr.bf16.mxu0 0
    %2771 = vmatpush1.bf16.xpose.msra.mxu0 0
    %2772 = vmatprep.subr.bf16.mxu0 0
    %2773 = vmatpush1.bf16.xpose.msra.mxu0 0
    %2774 = vmatprep.subr.bf16.mxu0 0
    %2775 = vmatpush1.bf16.xpose.msra.mxu0 0
    %2776 = vmatprep.subr.bf16.mxu0 0
    %2777 = vmatpush1.bf16.xpose.msra.mxu0 0
    %2778 = vmatprep.subr.bf16.mxu0 0
    %2779 = vmatpush1.bf16.xpose.msra.mxu0 0
    %2780 = vmatprep.subr.bf16.mxu0 0
    %2781 = vmatpush1.bf16.xpose.msra.mxu0 0
    %2782 = vmatprep.subr.bf16.mxu0 0
    %2783 = vmatpush1.bf16.xpose.msra.mxu0 0
    %2784 = vmatprep.subr.bf16.mxu0 0
    %2785 = vmatpush1.bf16.xpose.msra.mxu0 0
    %2786 = vmatprep.subr.bf16.mxu0 0
    %2787 = vmatpush1.bf16.xpose.msra.mxu0 0
    %2788 = vmatprep.subr.bf16.mxu0 0
    %2789 = vmatpush1.bf16.xpose.msra.mxu0 0
    %2790 = vmatprep.subr.bf16.mxu0 0
    %2791 = vmatpush1.bf16.xpose.msra.mxu0 0
    %2792 = vmatprep.subr.bf16.mxu0 0
    %2793 = vmatpush1.bf16.xpose.msra.mxu0 0
    %2794 = vmatprep.subr.bf16.mxu0 0
    %2795 = vmatpush1.bf16.xpose.msra.mxu0 0
    %2796 = vmatprep.subr.bf16.mxu0 0
    %2797 = vmatpush1.bf16.xpose.msra.mxu0 0
    %2798 = vmatprep.subr.bf16.mxu0 0
    %2799 = vmatpush1.bf16.xpose.msra.mxu0 0
    %2800 = vmatprep.mubr.bf16.mxu0 0
    %2801 = vmatmul.mubr.bf16.gmra.mrb[0].mxu0 %v2763
    %v2802 = vpop.f32.mrb[0].mxu0
    %v2803 = vadd.f32 0.0, %v2802
    %v2804 = vpop.f32.mrb[0].mxu0
    %v2805 = vpop.f32.mrb[0].mxu0
    %v2806 = vpop.f32.mrb[0].mxu0
    %2807 = vdwg.mxu0
    %v2809 = vsel %vm1105, %v598, 0
    %v2812 = vsel %vm1105, %v838, 0
    %2814 = vmatprep.subr.bf16.mxu0 0
    %2815 = vmatpush1.bf16.xpose.msra.mxu0 %v2812
    %2816 = vmatprep.subr.bf16.mxu0 0
    %2817 = vmatpush1.bf16.xpose.msra.mxu0 0
    %2818 = vmatprep.subr.bf16.mxu0 0
    %2819 = vmatpush1.bf16.xpose.msra.mxu0 0
    %2820 = vmatprep.subr.bf16.mxu0 0
    %2821 = vmatpush1.bf16.xpose.msra.mxu0 0
    %2822 = vmatprep.subr.bf16.mxu0 0
    %2823 = vmatpush1.bf16.xpose.msra.mxu0 0
    %2824 = vmatprep.subr.bf16.mxu0 0
    %2825 = vmatpush1.bf16.xpose.msra.mxu0 0
    %2826 = vmatprep.subr.bf16.mxu0 0
    %2827 = vmatpush1.bf16.xpose.msra.mxu0 0
    %2828 = vmatprep.subr.bf16.mxu0 0
    %2829 = vmatpush1.bf16.xpose.msra.mxu0 0
    %2830 = vmatprep.subr.bf16.mxu0 0
    %2831 = vmatpush1.bf16.xpose.msra.mxu0 0
    %2832 = vmatprep.subr.bf16.mxu0 0
    %2833 = vmatpush1.bf16.xpose.msra.mxu0 0
    %2834 = vmatprep.subr.bf16.mxu0 0
    %2835 = vmatpush1.bf16.xpose.msra.mxu0 0
    %2836 = vmatprep.subr.bf16.mxu0 0
    %2837 = vmatpush1.bf16.xpose.msra.mxu0 0
    %2838 = vmatprep.subr.bf16.mxu0 0
    %2839 = vmatpush1.bf16.xpose.msra.mxu0 0
    %2840 = vmatprep.subr.bf16.mxu0 0
    %2841 = vmatpush1.bf16.xpose.msra.mxu0 0
    %2842 = vmatprep.subr.bf16.mxu0 0
    %2843 = vmatpush1.bf16.xpose.msra.mxu0 0
    %2844 = vmatprep.subr.bf16.mxu0 0
    %2845 = vmatpush1.bf16.xpose.msra.mxu0 0
    %2846 = vmatprep.mubr.bf16.mxu0 0
    %2847 = vmatmul.mubr.bf16.gmra.mrb[0].mxu0 %v2809
    %v2848 = vpop.f32.mrb[0].mxu0
    %v2849 = vadd.f32 0.0, %v2848
    %v2850 = vpop.f32.mrb[0].mxu0
    %v2851 = vpop.f32.mrb[0].mxu0
    %v2852 = vpop.f32.mrb[0].mxu0
    %2853 = vdwg.mxu0
    %v2855 = vsel %vm1105, %v599, 0
    %v2858 = vsel %vm1105, %v839, 0
    %2860 = vmatprep.subr.bf16.mxu0 0
    %2861 = vmatpush1.bf16.xpose.msra.mxu0 %v2858
    %2862 = vmatprep.subr.bf16.mxu0 0
    %2863 = vmatpush1.bf16.xpose.msra.mxu0 0
    %2864 = vmatprep.subr.bf16.mxu0 0
    %2865 = vmatpush1.bf16.xpose.msra.mxu0 0
    %2866 = vmatprep.subr.bf16.mxu0 0
    %2867 = vmatpush1.bf16.xpose.msra.mxu0 0
    %2868 = vmatprep.subr.bf16.mxu0 0
    %2869 = vmatpush1.bf16.xpose.msra.mxu0 0
    %2870 = vmatprep.subr.bf16.mxu0 0
    %2871 = vmatpush1.bf16.xpose.msra.mxu0 0
    %2872 = vmatprep.subr.bf16.mxu0 0
    %2873 = vmatpush1.bf16.xpose.msra.mxu0 0
    %2874 = vmatprep.subr.bf16.mxu0 0
    %2875 = vmatpush1.bf16.xpose.msra.mxu0 0
    %2876 = vmatprep.subr.bf16.mxu0 0
    %2877 = vmatpush1.bf16.xpose.msra.mxu0 0
    %2878 = vmatprep.subr.bf16.mxu0 0
    %2879 = vmatpush1.bf16.xpose.msra.mxu0 0
    %2880 = vmatprep.subr.bf16.mxu0 0
    %2881 = vmatpush1.bf16.xpose.msra.mxu0 0
    %2882 = vmatprep.subr.bf16.mxu0 0
    %2883 = vmatpush1.bf16.xpose.msra.mxu0 0
    %2884 = vmatprep.subr.bf16.mxu0 0
    %2885 = vmatpush1.bf16.xpose.msra.mxu0 0
    %2886 = vmatprep.subr.bf16.mxu0 0
    %2887 = vmatpush1.bf16.xpose.msra.mxu0 0
    %2888 = vmatprep.subr.bf16.mxu0 0
    %2889 = vmatpush1.bf16.xpose.msra.mxu0 0
    %2890 = vmatprep.subr.bf16.mxu0 0
    %2891 = vmatpush1.bf16.xpose.msra.mxu0 0
    %2892 = vmatprep.mubr.bf16.mxu0 0
    %2893 = vmatmul.mubr.bf16.gmra.mrb[0].mxu0 %v2855
    %v2894 = vpop.f32.mrb[0].mxu0
    %v2895 = vadd.f32 0.0, %v2894
    %v2896 = vpop.f32.mrb[0].mxu0
    %v2897 = vpop.f32.mrb[0].mxu0
    %v2898 = vpop.f32.mrb[0].mxu0
    %2899 = vdwg.mxu0
    %v2901 = vsel %vm1105, %v600, 0
    %v2904 = vsel %vm1105, %v840, 0
    %2906 = vmatprep.subr.bf16.mxu0 0
    %2907 = vmatpush1.bf16.xpose.msra.mxu0 %v2904
    %2908 = vmatprep.subr.bf16.mxu0 0
    %2909 = vmatpush1.bf16.xpose.msra.mxu0 0
    %2910 = vmatprep.subr.bf16.mxu0 0
    %2911 = vmatpush1.bf16.xpose.msra.mxu0 0
    %2912 = vmatprep.subr.bf16.mxu0 0
    %2913 = vmatpush1.bf16.xpose.msra.mxu0 0
    %2914 = vmatprep.subr.bf16.mxu0 0
    %2915 = vmatpush1.bf16.xpose.msra.mxu0 0
    %2916 = vmatprep.subr.bf16.mxu0 0
    %2917 = vmatpush1.bf16.xpose.msra.mxu0 0
    %2918 = vmatprep.subr.bf16.mxu0 0
    %2919 = vmatpush1.bf16.xpose.msra.mxu0 0
    %2920 = vmatprep.subr.bf16.mxu0 0
    %2921 = vmatpush1.bf16.xpose.msra.mxu0 0
    %2922 = vmatprep.subr.bf16.mxu0 0
    %2923 = vmatpush1.bf16.xpose.msra.mxu0 0
    %2924 = vmatprep.subr.bf16.mxu0 0
    %2925 = vmatpush1.bf16.xpose.msra.mxu0 0
    %2926 = vmatprep.subr.bf16.mxu0 0
    %2927 = vmatpush1.bf16.xpose.msra.mxu0 0
    %2928 = vmatprep.subr.bf16.mxu0 0
    %2929 = vmatpush1.bf16.xpose.msra.mxu0 0
    %2930 = vmatprep.subr.bf16.mxu0 0
    %2931 = vmatpush1.bf16.xpose.msra.mxu0 0
    %2932 = vmatprep.subr.bf16.mxu0 0
    %2933 = vmatpush1.bf16.xpose.msra.mxu0 0
    %2934 = vmatprep.subr.bf16.mxu0 0
    %2935 = vmatpush1.bf16.xpose.msra.mxu0 0
    %2936 = vmatprep.subr.bf16.mxu0 0
    %2937 = vmatpush1.bf16.xpose.msra.mxu0 0
    %2938 = vmatprep.mubr.bf16.mxu0 0
    %2939 = vmatmul.mubr.bf16.gmra.mrb[0].mxu0 %v2901
    %v2940 = vpop.f32.mrb[0].mxu0
    %v2941 = vadd.f32 0.0, %v2940
    %v2942 = vpop.f32.mrb[0].mxu0
    %v2943 = vpop.f32.mrb[0].mxu0
    %v2944 = vpop.f32.mrb[0].mxu0
    %2945 = vdwg.mxu0
    %v2947 = vsel %vm1105, %v601, 0
    %v2950 = vsel %vm1105, %v841, 0
    %2952 = vmatprep.subr.bf16.mxu0 0
    %2953 = vmatpush1.bf16.xpose.msra.mxu0 %v2950
    %2954 = vmatprep.subr.bf16.mxu0 0
    %2955 = vmatpush1.bf16.xpose.msra.mxu0 0
    %2956 = vmatprep.subr.bf16.mxu0 0
    %2957 = vmatpush1.bf16.xpose.msra.mxu0 0
    %2958 = vmatprep.subr.bf16.mxu0 0
    %2959 = vmatpush1.bf16.xpose.msra.mxu0 0
    %2960 = vmatprep.subr.bf16.mxu0 0
    %2961 = vmatpush1.bf16.xpose.msra.mxu0 0
    %2962 = vmatprep.subr.bf16.mxu0 0
    %2963 = vmatpush1.bf16.xpose.msra.mxu0 0
    %2964 = vmatprep.subr.bf16.mxu0 0
    %2965 = vmatpush1.bf16.xpose.msra.mxu0 0
    %2966 = vmatprep.subr.bf16.mxu0 0
    %2967 = vmatpush1.bf16.xpose.msra.mxu0 0
    %2968 = vmatprep.subr.bf16.mxu0 0
    %2969 = vmatpush1.bf16.xpose.msra.mxu0 0
    %2970 = vmatprep.subr.bf16.mxu0 0
    %2971 = vmatpush1.bf16.xpose.msra.mxu0 0
    %2972 = vmatprep.subr.bf16.mxu0 0
    %2973 = vmatpush1.bf16.xpose.msra.mxu0 0
    %2974 = vmatprep.subr.bf16.mxu0 0
    %2975 = vmatpush1.bf16.xpose.msra.mxu0 0
    %2976 = vmatprep.subr.bf16.mxu0 0
    %2977 = vmatpush1.bf16.xpose.msra.mxu0 0
    %2978 = vmatprep.subr.bf16.mxu0 0
    %2979 = vmatpush1.bf16.xpose.msra.mxu0 0
    %2980 = vmatprep.subr.bf16.mxu0 0
    %2981 = vmatpush1.bf16.xpose.msra.mxu0 0
    %2982 = vmatprep.subr.bf16.mxu0 0
    %2983 = vmatpush1.bf16.xpose.msra.mxu0 0
    %2984 = vmatprep.mubr.bf16.mxu0 0
    %2985 = vmatmul.mubr.bf16.gmra.mrb[0].mxu0 %v2947
    %v2986 = vpop.f32.mrb[0].mxu0
    %v2987 = vadd.f32 0.0, %v2986
    %v2988 = vpop.f32.mrb[0].mxu0
    %v2989 = vpop.f32.mrb[0].mxu0
    %v2990 = vpop.f32.mrb[0].mxu0
    %2991 = vdwg.mxu0
    %v2993 = vsel %vm1105, %v602, 0
    %v2996 = vsel %vm1105, %v842, 0
    %2998 = vmatprep.subr.bf16.mxu0 0
    %2999 = vmatpush1.bf16.xpose.msra.mxu0 %v2996
    %3000 = vmatprep.subr.bf16.mxu0 0
    %3001 = vmatpush1.bf16.xpose.msra.mxu0 0
    %3002 = vmatprep.subr.bf16.mxu0 0
    %3003 = vmatpush1.bf16.xpose.msra.mxu0 0
    %3004 = vmatprep.subr.bf16.mxu0 0
    %3005 = vmatpush1.bf16.xpose.msra.mxu0 0
    %3006 = vmatprep.subr.bf16.mxu0 0
    %3007 = vmatpush1.bf16.xpose.msra.mxu0 0
    %3008 = vmatprep.subr.bf16.mxu0 0
    %3009 = vmatpush1.bf16.xpose.msra.mxu0 0
    %3010 = vmatprep.subr.bf16.mxu0 0
    %3011 = vmatpush1.bf16.xpose.msra.mxu0 0
    %3012 = vmatprep.subr.bf16.mxu0 0
    %3013 = vmatpush1.bf16.xpose.msra.mxu0 0
    %3014 = vmatprep.subr.bf16.mxu0 0
    %3015 = vmatpush1.bf16.xpose.msra.mxu0 0
    %3016 = vmatprep.subr.bf16.mxu0 0
    %3017 = vmatpush1.bf16.xpose.msra.mxu0 0
    %3018 = vmatprep.subr.bf16.mxu0 0
    %3019 = vmatpush1.bf16.xpose.msra.mxu0 0
    %3020 = vmatprep.subr.bf16.mxu0 0
    %3021 = vmatpush1.bf16.xpose.msra.mxu0 0
    %3022 = vmatprep.subr.bf16.mxu0 0
    %3023 = vmatpush1.bf16.xpose.msra.mxu0 0
    %3024 = vmatprep.subr.bf16.mxu0 0
    %3025 = vmatpush1.bf16.xpose.msra.mxu0 0
    %3026 = vmatprep.subr.bf16.mxu0 0
    %3027 = vmatpush1.bf16.xpose.msra.mxu0 0
    %3028 = vmatprep.subr.bf16.mxu0 0
    %3029 = vmatpush1.bf16.xpose.msra.mxu0 0
    %3030 = vmatprep.mubr.bf16.mxu0 0
    %3031 = vmatmul.mubr.bf16.gmra.mrb[0].mxu0 %v2993
    %v3032 = vpop.f32.mrb[0].mxu0
    %v3033 = vadd.f32 0.0, %v3032
    %v3034 = vpop.f32.mrb[0].mxu0
    %v3035 = vpop.f32.mrb[0].mxu0
    %v3036 = vpop.f32.mrb[0].mxu0
    %3037 = vdwg.mxu0
    %v3039 = vsel %vm1105, %v603, 0
    %v3042 = vsel %vm1105, %v843, 0
    %3044 = vmatprep.subr.bf16.mxu0 0
    %3045 = vmatpush1.bf16.xpose.msra.mxu0 %v3042
    %3046 = vmatprep.subr.bf16.mxu0 0
    %3047 = vmatpush1.bf16.xpose.msra.mxu0 0
    %3048 = vmatprep.subr.bf16.mxu0 0
    %3049 = vmatpush1.bf16.xpose.msra.mxu0 0
    %3050 = vmatprep.subr.bf16.mxu0 0
    %3051 = vmatpush1.bf16.xpose.msra.mxu0 0
    %3052 = vmatprep.subr.bf16.mxu0 0
    %3053 = vmatpush1.bf16.xpose.msra.mxu0 0
    %3054 = vmatprep.subr.bf16.mxu0 0
    %3055 = vmatpush1.bf16.xpose.msra.mxu0 0
    %3056 = vmatprep.subr.bf16.mxu0 0
    %3057 = vmatpush1.bf16.xpose.msra.mxu0 0
    %3058 = vmatprep.subr.bf16.mxu0 0
    %3059 = vmatpush1.bf16.xpose.msra.mxu0 0
    %3060 = vmatprep.subr.bf16.mxu0 0
    %3061 = vmatpush1.bf16.xpose.msra.mxu0 0
    %3062 = vmatprep.subr.bf16.mxu0 0
    %3063 = vmatpush1.bf16.xpose.msra.mxu0 0
    %3064 = vmatprep.subr.bf16.mxu0 0
    %3065 = vmatpush1.bf16.xpose.msra.mxu0 0
    %3066 = vmatprep.subr.bf16.mxu0 0
    %3067 = vmatpush1.bf16.xpose.msra.mxu0 0
    %3068 = vmatprep.subr.bf16.mxu0 0
    %3069 = vmatpush1.bf16.xpose.msra.mxu0 0
    %3070 = vmatprep.subr.bf16.mxu0 0
    %3071 = vmatpush1.bf16.xpose.msra.mxu0 0
    %3072 = vmatprep.subr.bf16.mxu0 0
    %3073 = vmatpush1.bf16.xpose.msra.mxu0 0
    %3074 = vmatprep.subr.bf16.mxu0 0
    %3075 = vmatpush1.bf16.xpose.msra.mxu0 0
    %3076 = vmatprep.mubr.bf16.mxu0 0
    %3077 = vmatmul.mubr.bf16.gmra.mrb[0].mxu0 %v3039
    %v3078 = vpop.f32.mrb[0].mxu0
    %v3079 = vadd.f32 0.0, %v3078
    %v3080 = vpop.f32.mrb[0].mxu0
    %v3081 = vpop.f32.mrb[0].mxu0
    %v3082 = vpop.f32.mrb[0].mxu0
    %3083 = vdwg.mxu0
    %v3085 = vsel %vm1105, %v604, 0
    %v3088 = vsel %vm1105, %v844, 0
    %3090 = vmatprep.subr.bf16.mxu0 0
    %3091 = vmatpush1.bf16.xpose.msra.mxu0 %v3088
    %3092 = vmatprep.subr.bf16.mxu0 0
    %3093 = vmatpush1.bf16.xpose.msra.mxu0 0
    %3094 = vmatprep.subr.bf16.mxu0 0
    %3095 = vmatpush1.bf16.xpose.msra.mxu0 0
    %3096 = vmatprep.subr.bf16.mxu0 0
    %3097 = vmatpush1.bf16.xpose.msra.mxu0 0
    %3098 = vmatprep.subr.bf16.mxu0 0
    %3099 = vmatpush1.bf16.xpose.msra.mxu0 0
    %3100 = vmatprep.subr.bf16.mxu0 0
    %3101 = vmatpush1.bf16.xpose.msra.mxu0 0
    %3102 = vmatprep.subr.bf16.mxu0 0
    %3103 = vmatpush1.bf16.xpose.msra.mxu0 0
    %3104 = vmatprep.subr.bf16.mxu0 0
    %3105 = vmatpush1.bf16.xpose.msra.mxu0 0
    %3106 = vmatprep.subr.bf16.mxu0 0
    %3107 = vmatpush1.bf16.xpose.msra.mxu0 0
    %3108 = vmatprep.subr.bf16.mxu0 0
    %3109 = vmatpush1.bf16.xpose.msra.mxu0 0
    %3110 = vmatprep.subr.bf16.mxu0 0
    %3111 = vmatpush1.bf16.xpose.msra.mxu0 0
    %3112 = vmatprep.subr.bf16.mxu0 0
    %3113 = vmatpush1.bf16.xpose.msra.mxu0 0
    %3114 = vmatprep.subr.bf16.mxu0 0
    %3115 = vmatpush1.bf16.xpose.msra.mxu0 0
    %3116 = vmatprep.subr.bf16.mxu0 0
    %3117 = vmatpush1.bf16.xpose.msra.mxu0 0
    %3118 = vmatprep.subr.bf16.mxu0 0
    %3119 = vmatpush1.bf16.xpose.msra.mxu0 0
    %3120 = vmatprep.subr.bf16.mxu0 0
    %3121 = vmatpush1.bf16.xpose.msra.mxu0 0
    %3122 = vmatprep.mubr.bf16.mxu0 0
    %3123 = vmatmul.mubr.bf16.gmra.mrb[0].mxu0 %v3085
    %v3124 = vpop.f32.mrb[0].mxu0
    %v3125 = vadd.f32 0.0, %v3124
    %v3126 = vpop.f32.mrb[0].mxu0
    %v3127 = vpop.f32.mrb[0].mxu0
    %v3128 = vpop.f32.mrb[0].mxu0
    %3129 = vdwg.mxu0
    %v3131 = vsel %vm1105, %v605, 0
    %v3134 = vsel %vm1105, %v845, 0
    %3136 = vmatprep.subr.bf16.mxu0 0
    %3137 = vmatpush1.bf16.xpose.msra.mxu0 %v3134
    %3138 = vmatprep.subr.bf16.mxu0 0
    %3139 = vmatpush1.bf16.xpose.msra.mxu0 0
    %3140 = vmatprep.subr.bf16.mxu0 0
    %3141 = vmatpush1.bf16.xpose.msra.mxu0 0
    %3142 = vmatprep.subr.bf16.mxu0 0
    %3143 = vmatpush1.bf16.xpose.msra.mxu0 0
    %3144 = vmatprep.subr.bf16.mxu0 0
    %3145 = vmatpush1.bf16.xpose.msra.mxu0 0
    %3146 = vmatprep.subr.bf16.mxu0 0
    %3147 = vmatpush1.bf16.xpose.msra.mxu0 0
    %3148 = vmatprep.subr.bf16.mxu0 0
    %3149 = vmatpush1.bf16.xpose.msra.mxu0 0
    %3150 = vmatprep.subr.bf16.mxu0 0
    %3151 = vmatpush1.bf16.xpose.msra.mxu0 0
    %3152 = vmatprep.subr.bf16.mxu0 0
    %3153 = vmatpush1.bf16.xpose.msra.mxu0 0
    %3154 = vmatprep.subr.bf16.mxu0 0
    %3155 = vmatpush1.bf16.xpose.msra.mxu0 0
    %3156 = vmatprep.subr.bf16.mxu0 0
    %3157 = vmatpush1.bf16.xpose.msra.mxu0 0
    %3158 = vmatprep.subr.bf16.mxu0 0
    %3159 = vmatpush1.bf16.xpose.msra.mxu0 0
    %3160 = vmatprep.subr.bf16.mxu0 0
    %3161 = vmatpush1.bf16.xpose.msra.mxu0 0
    %3162 = vmatprep.subr.bf16.mxu0 0
    %3163 = vmatpush1.bf16.xpose.msra.mxu0 0
    %3164 = vmatprep.subr.bf16.mxu0 0
    %3165 = vmatpush1.bf16.xpose.msra.mxu0 0
    %3166 = vmatprep.subr.bf16.mxu0 0
    %3167 = vmatpush1.bf16.xpose.msra.mxu0 0
    %3168 = vmatprep.mubr.bf16.mxu0 0
    %3169 = vmatmul.mubr.bf16.gmra.mrb[0].mxu0 %v3131
    %v3170 = vpop.f32.mrb[0].mxu0
    %v3171 = vadd.f32 0.0, %v3170
    %v3172 = vpop.f32.mrb[0].mxu0
    %v3173 = vpop.f32.mrb[0].mxu0
    %v3174 = vpop.f32.mrb[0].mxu0
    %3175 = vdwg.mxu0
    %v3177 = vsel %vm1105, %v606, 0
    %v3180 = vsel %vm1105, %v846, 0
    %3182 = vmatprep.subr.bf16.mxu0 0
    %3183 = vmatpush1.bf16.xpose.msra.mxu0 %v3180
    %3184 = vmatprep.subr.bf16.mxu0 0
    %3185 = vmatpush1.bf16.xpose.msra.mxu0 0
    %3186 = vmatprep.subr.bf16.mxu0 0
    %3187 = vmatpush1.bf16.xpose.msra.mxu0 0
    %3188 = vmatprep.subr.bf16.mxu0 0
    %3189 = vmatpush1.bf16.xpose.msra.mxu0 0
    %3190 = vmatprep.subr.bf16.mxu0 0
    %3191 = vmatpush1.bf16.xpose.msra.mxu0 0
    %3192 = vmatprep.subr.bf16.mxu0 0
    %3193 = vmatpush1.bf16.xpose.msra.mxu0 0
    %3194 = vmatprep.subr.bf16.mxu0 0
    %3195 = vmatpush1.bf16.xpose.msra.mxu0 0
    %3196 = vmatprep.subr.bf16.mxu0 0
    %3197 = vmatpush1.bf16.xpose.msra.mxu0 0
    %3198 = vmatprep.subr.bf16.mxu0 0
    %3199 = vmatpush1.bf16.xpose.msra.mxu0 0
    %3200 = vmatprep.subr.bf16.mxu0 0
    %3201 = vmatpush1.bf16.xpose.msra.mxu0 0
    %3202 = vmatprep.subr.bf16.mxu0 0
    %3203 = vmatpush1.bf16.xpose.msra.mxu0 0
    %3204 = vmatprep.subr.bf16.mxu0 0
    %3205 = vmatpush1.bf16.xpose.msra.mxu0 0
    %3206 = vmatprep.subr.bf16.mxu0 0
    %3207 = vmatpush1.bf16.xpose.msra.mxu0 0
    %3208 = vmatprep.subr.bf16.mxu0 0
    %3209 = vmatpush1.bf16.xpose.msra.mxu0 0
    %3210 = vmatprep.subr.bf16.mxu0 0
    %3211 = vmatpush1.bf16.xpose.msra.mxu0 0
    %3212 = vmatprep.subr.bf16.mxu0 0
    %3213 = vmatpush1.bf16.xpose.msra.mxu0 0
    %3214 = vmatprep.mubr.bf16.mxu0 0
    %3215 = vmatmul.mubr.bf16.gmra.mrb[0].mxu0 %v3177
    %v3216 = vpop.f32.mrb[0].mxu0
    %v3217 = vadd.f32 0.0, %v3216
    %v3218 = vpop.f32.mrb[0].mxu0
    %v3219 = vpop.f32.mrb[0].mxu0
    %v3220 = vpop.f32.mrb[0].mxu0
    %3221 = vdwg.mxu0
    %v3223 = vsel %vm1105, %v607, 0
    %v3226 = vsel %vm1105, %v847, 0
    %3228 = vmatprep.subr.bf16.mxu0 0
    %3229 = vmatpush1.bf16.xpose.msra.mxu0 %v3226
    %3230 = vmatprep.subr.bf16.mxu0 0
    %3231 = vmatpush1.bf16.xpose.msra.mxu0 0
    %3232 = vmatprep.subr.bf16.mxu0 0
    %3233 = vmatpush1.bf16.xpose.msra.mxu0 0
    %3234 = vmatprep.subr.bf16.mxu0 0
    %3235 = vmatpush1.bf16.xpose.msra.mxu0 0
    %3236 = vmatprep.subr.bf16.mxu0 0
    %3237 = vmatpush1.bf16.xpose.msra.mxu0 0
    %3238 = vmatprep.subr.bf16.mxu0 0
    %3239 = vmatpush1.bf16.xpose.msra.mxu0 0
    %3240 = vmatprep.subr.bf16.mxu0 0
    %3241 = vmatpush1.bf16.xpose.msra.mxu0 0
    %3242 = vmatprep.subr.bf16.mxu0 0
    %3243 = vmatpush1.bf16.xpose.msra.mxu0 0
    %3244 = vmatprep.subr.bf16.mxu0 0
    %3245 = vmatpush1.bf16.xpose.msra.mxu0 0
    %3246 = vmatprep.subr.bf16.mxu0 0
    %3247 = vmatpush1.bf16.xpose.msra.mxu0 0
    %3248 = vmatprep.subr.bf16.mxu0 0
    %3249 = vmatpush1.bf16.xpose.msra.mxu0 0
    %3250 = vmatprep.subr.bf16.mxu0 0
    %3251 = vmatpush1.bf16.xpose.msra.mxu0 0
    %3252 = vmatprep.subr.bf16.mxu0 0
    %3253 = vmatpush1.bf16.xpose.msra.mxu0 0
    %3254 = vmatprep.subr.bf16.mxu0 0
    %3255 = vmatpush1.bf16.xpose.msra.mxu0 0
    %3256 = vmatprep.subr.bf16.mxu0 0
    %3257 = vmatpush1.bf16.xpose.msra.mxu0 0
    %3258 = vmatprep.subr.bf16.mxu0 0
    %3259 = vmatpush1.bf16.xpose.msra.mxu0 0
    %3260 = vmatprep.mubr.bf16.mxu0 0
    %3261 = vmatmul.mubr.bf16.gmra.mrb[0].mxu0 %v3223
    %v3262 = vpop.f32.mrb[0].mxu0
    %v3263 = vadd.f32 0.0, %v3262
    %v3264 = vpop.f32.mrb[0].mxu0
    %v3265 = vpop.f32.mrb[0].mxu0
    %v3266 = vpop.f32.mrb[0].mxu0
    %3267 = vdwg.mxu0
    %v3269 = vsel %vm1105, %v608, 0
    %v3272 = vsel %vm1105, %v848, 0
    %3274 = vmatprep.subr.bf16.mxu0 0
    %3275 = vmatpush1.bf16.xpose.msra.mxu0 %v3272
    %3276 = vmatprep.subr.bf16.mxu0 0
    %3277 = vmatpush1.bf16.xpose.msra.mxu0 0
    %3278 = vmatprep.subr.bf16.mxu0 0
    %3279 = vmatpush1.bf16.xpose.msra.mxu0 0
    %3280 = vmatprep.subr.bf16.mxu0 0
    %3281 = vmatpush1.bf16.xpose.msra.mxu0 0
    %3282 = vmatprep.subr.bf16.mxu0 0
    %3283 = vmatpush1.bf16.xpose.msra.mxu0 0
    %3284 = vmatprep.subr.bf16.mxu0 0
    %3285 = vmatpush1.bf16.xpose.msra.mxu0 0
    %3286 = vmatprep.subr.bf16.mxu0 0
    %3287 = vmatpush1.bf16.xpose.msra.mxu0 0
    %3288 = vmatprep.subr.bf16.mxu0 0
    %3289 = vmatpush1.bf16.xpose.msra.mxu0 0
    %3290 = vmatprep.subr.bf16.mxu0 0
    %3291 = vmatpush1.bf16.xpose.msra.mxu0 0
    %3292 = vmatprep.subr.bf16.mxu0 0
    %3293 = vmatpush1.bf16.xpose.msra.mxu0 0
    %3294 = vmatprep.subr.bf16.mxu0 0
    %3295 = vmatpush1.bf16.xpose.msra.mxu0 0
    %3296 = vmatprep.subr.bf16.mxu0 0
    %3297 = vmatpush1.bf16.xpose.msra.mxu0 0
    %3298 = vmatprep.subr.bf16.mxu0 0
    %3299 = vmatpush1.bf16.xpose.msra.mxu0 0
    %3300 = vmatprep.subr.bf16.mxu0 0
    %3301 = vmatpush1.bf16.xpose.msra.mxu0 0
    %3302 = vmatprep.subr.bf16.mxu0 0
    %3303 = vmatpush1.bf16.xpose.msra.mxu0 0
    %3304 = vmatprep.subr.bf16.mxu0 0
    %3305 = vmatpush1.bf16.xpose.msra.mxu0 0
    %3306 = vmatprep.mubr.bf16.mxu0 0
    %3307 = vmatmul.mubr.bf16.gmra.mrb[0].mxu0 %v3269
    %v3308 = vpop.f32.mrb[0].mxu0
    %v3309 = vadd.f32 0.0, %v3308
    %v3310 = vpop.f32.mrb[0].mxu0
    %v3311 = vpop.f32.mrb[0].mxu0
    %v3312 = vpop.f32.mrb[0].mxu0
    %3313 = vdwg.mxu0
    %v3315 = vsel %vm1105, %v609, 0
    %v3318 = vsel %vm1105, %v849, 0
    %3320 = vmatprep.subr.bf16.mxu0 0
    %3321 = vmatpush1.bf16.xpose.msra.mxu0 %v3318
    %3322 = vmatprep.subr.bf16.mxu0 0
    %3323 = vmatpush1.bf16.xpose.msra.mxu0 0
    %3324 = vmatprep.subr.bf16.mxu0 0
    %3325 = vmatpush1.bf16.xpose.msra.mxu0 0
    %3326 = vmatprep.subr.bf16.mxu0 0
    %3327 = vmatpush1.bf16.xpose.msra.mxu0 0
    %3328 = vmatprep.subr.bf16.mxu0 0
    %3329 = vmatpush1.bf16.xpose.msra.mxu0 0
    %3330 = vmatprep.subr.bf16.mxu0 0
    %3331 = vmatpush1.bf16.xpose.msra.mxu0 0
    %3332 = vmatprep.subr.bf16.mxu0 0
    %3333 = vmatpush1.bf16.xpose.msra.mxu0 0
    %3334 = vmatprep.subr.bf16.mxu0 0
    %3335 = vmatpush1.bf16.xpose.msra.mxu0 0
    %3336 = vmatprep.subr.bf16.mxu0 0
    %3337 = vmatpush1.bf16.xpose.msra.mxu0 0
    %3338 = vmatprep.subr.bf16.mxu0 0
    %3339 = vmatpush1.bf16.xpose.msra.mxu0 0
    %3340 = vmatprep.subr.bf16.mxu0 0
    %3341 = vmatpush1.bf16.xpose.msra.mxu0 0
    %3342 = vmatprep.subr.bf16.mxu0 0
    %3343 = vmatpush1.bf16.xpose.msra.mxu0 0
    %3344 = vmatprep.subr.bf16.mxu0 0
    %3345 = vmatpush1.bf16.xpose.msra.mxu0 0
    %3346 = vmatprep.subr.bf16.mxu0 0
    %3347 = vmatpush1.bf16.xpose.msra.mxu0 0
    %3348 = vmatprep.subr.bf16.mxu0 0
    %3349 = vmatpush1.bf16.xpose.msra.mxu0 0
    %3350 = vmatprep.subr.bf16.mxu0 0
    %3351 = vmatpush1.bf16.xpose.msra.mxu0 0
    %3352 = vmatprep.mubr.bf16.mxu0 0
    %3353 = vmatmul.mubr.bf16.gmra.mrb[0].mxu0 %v3315
    %v3354 = vpop.f32.mrb[0].mxu0
    %v3355 = vadd.f32 0.0, %v3354
    %v3356 = vpop.f32.mrb[0].mxu0
    %v3357 = vpop.f32.mrb[0].mxu0
    %v3358 = vpop.f32.mrb[0].mxu0
    %3359 = vdwg.mxu0
    %v3361 = vsel %vm1105, %v610, 0
    %v3364 = vsel %vm1105, %v850, 0
    %3366 = vmatprep.subr.bf16.mxu0 0
    %3367 = vmatpush1.bf16.xpose.msra.mxu0 %v3364
    %3368 = vmatprep.subr.bf16.mxu0 0
    %3369 = vmatpush1.bf16.xpose.msra.mxu0 0
    %3370 = vmatprep.subr.bf16.mxu0 0
    %3371 = vmatpush1.bf16.xpose.msra.mxu0 0
    %3372 = vmatprep.subr.bf16.mxu0 0
    %3373 = vmatpush1.bf16.xpose.msra.mxu0 0
    %3374 = vmatprep.subr.bf16.mxu0 0
    %3375 = vmatpush1.bf16.xpose.msra.mxu0 0
    %3376 = vmatprep.subr.bf16.mxu0 0
    %3377 = vmatpush1.bf16.xpose.msra.mxu0 0
    %3378 = vmatprep.subr.bf16.mxu0 0
    %3379 = vmatpush1.bf16.xpose.msra.mxu0 0
    %3380 = vmatprep.subr.bf16.mxu0 0
    %3381 = vmatpush1.bf16.xpose.msra.mxu0 0
    %3382 = vmatprep.subr.bf16.mxu0 0
    %3383 = vmatpush1.bf16.xpose.msra.mxu0 0
    %3384 = vmatprep.subr.bf16.mxu0 0
    %3385 = vmatpush1.bf16.xpose.msra.mxu0 0
    %3386 = vmatprep.subr.bf16.mxu0 0
    %3387 = vmatpush1.bf16.xpose.msra.mxu0 0
    %3388 = vmatprep.subr.bf16.mxu0 0
    %3389 = vmatpush1.bf16.xpose.msra.mxu0 0
    %3390 = vmatprep.subr.bf16.mxu0 0
    %3391 = vmatpush1.bf16.xpose.msra.mxu0 0
    %3392 = vmatprep.subr.bf16.mxu0 0
    %3393 = vmatpush1.bf16.xpose.msra.mxu0 0
    %3394 = vmatprep.subr.bf16.mxu0 0
    %3395 = vmatpush1.bf16.xpose.msra.mxu0 0
    %3396 = vmatprep.subr.bf16.mxu0 0
    %3397 = vmatpush1.bf16.xpose.msra.mxu0 0
    %3398 = vmatprep.mubr.bf16.mxu0 0
    %3399 = vmatmul.mubr.bf16.gmra.mrb[0].mxu0 %v3361
    %v3400 = vpop.f32.mrb[0].mxu0
    %v3401 = vadd.f32 0.0, %v3400
    %v3402 = vpop.f32.mrb[0].mxu0
    %v3403 = vpop.f32.mrb[0].mxu0
    %v3404 = vpop.f32.mrb[0].mxu0
    %3405 = vdwg.mxu0
    %v3407 = vsel %vm1105, %v611, 0
    %v3410 = vsel %vm1105, %v851, 0
    %3412 = vmatprep.subr.bf16.mxu0 0
    %3413 = vmatpush1.bf16.xpose.msra.mxu0 %v3410
    %3414 = vmatprep.subr.bf16.mxu0 0
    %3415 = vmatpush1.bf16.xpose.msra.mxu0 0
    %3416 = vmatprep.subr.bf16.mxu0 0
    %3417 = vmatpush1.bf16.xpose.msra.mxu0 0
    %3418 = vmatprep.subr.bf16.mxu0 0
    %3419 = vmatpush1.bf16.xpose.msra.mxu0 0
    %3420 = vmatprep.subr.bf16.mxu0 0
    %3421 = vmatpush1.bf16.xpose.msra.mxu0 0
    %3422 = vmatprep.subr.bf16.mxu0 0
    %3423 = vmatpush1.bf16.xpose.msra.mxu0 0
    %3424 = vmatprep.subr.bf16.mxu0 0
    %3425 = vmatpush1.bf16.xpose.msra.mxu0 0
    %3426 = vmatprep.subr.bf16.mxu0 0
    %3427 = vmatpush1.bf16.xpose.msra.mxu0 0
    %3428 = vmatprep.subr.bf16.mxu0 0
    %3429 = vmatpush1.bf16.xpose.msra.mxu0 0
    %3430 = vmatprep.subr.bf16.mxu0 0
    %3431 = vmatpush1.bf16.xpose.msra.mxu0 0
    %3432 = vmatprep.subr.bf16.mxu0 0
    %3433 = vmatpush1.bf16.xpose.msra.mxu0 0
    %3434 = vmatprep.subr.bf16.mxu0 0
    %3435 = vmatpush1.bf16.xpose.msra.mxu0 0
    %3436 = vmatprep.subr.bf16.mxu0 0
    %3437 = vmatpush1.bf16.xpose.msra.mxu0 0
    %3438 = vmatprep.subr.bf16.mxu0 0
    %3439 = vmatpush1.bf16.xpose.msra.mxu0 0
    %3440 = vmatprep.subr.bf16.mxu0 0
    %3441 = vmatpush1.bf16.xpose.msra.mxu0 0
    %3442 = vmatprep.subr.bf16.mxu0 0
    %3443 = vmatpush1.bf16.xpose.msra.mxu0 0
    %3444 = vmatprep.mubr.bf16.mxu0 0
    %3445 = vmatmul.mubr.bf16.gmra.mrb[0].mxu0 %v3407
    %v3446 = vpop.f32.mrb[0].mxu0
    %v3447 = vadd.f32 0.0, %v3446
    %v3448 = vpop.f32.mrb[0].mxu0
    %v3449 = vpop.f32.mrb[0].mxu0
    %v3450 = vpop.f32.mrb[0].mxu0
    %3451 = vdwg.mxu0
    %v3453 = vsel %vm1105, %v612, 0
    %v3456 = vsel %vm1105, %v852, 0
    %3458 = vmatprep.subr.bf16.mxu0 0
    %3459 = vmatpush1.bf16.xpose.msra.mxu0 %v3456
    %3460 = vmatprep.subr.bf16.mxu0 0
    %3461 = vmatpush1.bf16.xpose.msra.mxu0 0
    %3462 = vmatprep.subr.bf16.mxu0 0
    %3463 = vmatpush1.bf16.xpose.msra.mxu0 0
    %3464 = vmatprep.subr.bf16.mxu0 0
    %3465 = vmatpush1.bf16.xpose.msra.mxu0 0
    %3466 = vmatprep.subr.bf16.mxu0 0
    %3467 = vmatpush1.bf16.xpose.msra.mxu0 0
    %3468 = vmatprep.subr.bf16.mxu0 0
    %3469 = vmatpush1.bf16.xpose.msra.mxu0 0
    %3470 = vmatprep.subr.bf16.mxu0 0
    %3471 = vmatpush1.bf16.xpose.msra.mxu0 0
    %3472 = vmatprep.subr.bf16.mxu0 0
    %3473 = vmatpush1.bf16.xpose.msra.mxu0 0
    %3474 = vmatprep.subr.bf16.mxu0 0
    %3475 = vmatpush1.bf16.xpose.msra.mxu0 0
    %3476 = vmatprep.subr.bf16.mxu0 0
    %3477 = vmatpush1.bf16.xpose.msra.mxu0 0
    %3478 = vmatprep.subr.bf16.mxu0 0
    %3479 = vmatpush1.bf16.xpose.msra.mxu0 0
    %3480 = vmatprep.subr.bf16.mxu0 0
    %3481 = vmatpush1.bf16.xpose.msra.mxu0 0
    %3482 = vmatprep.subr.bf16.mxu0 0
    %3483 = vmatpush1.bf16.xpose.msra.mxu0 0
    %3484 = vmatprep.subr.bf16.mxu0 0
    %3485 = vmatpush1.bf16.xpose.msra.mxu0 0
    %3486 = vmatprep.subr.bf16.mxu0 0
    %3487 = vmatpush1.bf16.xpose.msra.mxu0 0
    %3488 = vmatprep.subr.bf16.mxu0 0
    %3489 = vmatpush1.bf16.xpose.msra.mxu0 0
    %3490 = vmatprep.mubr.bf16.mxu0 0
    %3491 = vmatmul.mubr.bf16.gmra.mrb[0].mxu0 %v3453
    %v3492 = vpop.f32.mrb[0].mxu0
    %v3493 = vadd.f32 0.0, %v3492
    %v3494 = vpop.f32.mrb[0].mxu0
    %v3495 = vpop.f32.mrb[0].mxu0
    %v3496 = vpop.f32.mrb[0].mxu0
    %3497 = vdwg.mxu0
    %v3499 = vsel %vm1105, %v613, 0
    %v3502 = vsel %vm1105, %v853, 0
    %3504 = vmatprep.subr.bf16.mxu0 0
    %3505 = vmatpush1.bf16.xpose.msra.mxu0 %v3502
    %3506 = vmatprep.subr.bf16.mxu0 0
    %3507 = vmatpush1.bf16.xpose.msra.mxu0 0
    %3508 = vmatprep.subr.bf16.mxu0 0
    %3509 = vmatpush1.bf16.xpose.msra.mxu0 0
    %3510 = vmatprep.subr.bf16.mxu0 0
    %3511 = vmatpush1.bf16.xpose.msra.mxu0 0
    %3512 = vmatprep.subr.bf16.mxu0 0
    %3513 = vmatpush1.bf16.xpose.msra.mxu0 0
    %3514 = vmatprep.subr.bf16.mxu0 0
    %3515 = vmatpush1.bf16.xpose.msra.mxu0 0
    %3516 = vmatprep.subr.bf16.mxu0 0
    %3517 = vmatpush1.bf16.xpose.msra.mxu0 0
    %3518 = vmatprep.subr.bf16.mxu0 0
    %3519 = vmatpush1.bf16.xpose.msra.mxu0 0
    %3520 = vmatprep.subr.bf16.mxu0 0
    %3521 = vmatpush1.bf16.xpose.msra.mxu0 0
    %3522 = vmatprep.subr.bf16.mxu0 0
    %3523 = vmatpush1.bf16.xpose.msra.mxu0 0
    %3524 = vmatprep.subr.bf16.mxu0 0
    %3525 = vmatpush1.bf16.xpose.msra.mxu0 0
    %3526 = vmatprep.subr.bf16.mxu0 0
    %3527 = vmatpush1.bf16.xpose.msra.mxu0 0
    %3528 = vmatprep.subr.bf16.mxu0 0
    %3529 = vmatpush1.bf16.xpose.msra.mxu0 0
    %3530 = vmatprep.subr.bf16.mxu0 0
    %3531 = vmatpush1.bf16.xpose.msra.mxu0 0
    %3532 = vmatprep.subr.bf16.mxu0 0
    %3533 = vmatpush1.bf16.xpose.msra.mxu0 0
    %3534 = vmatprep.subr.bf16.mxu0 0
    %3535 = vmatpush1.bf16.xpose.msra.mxu0 0
    %3536 = vmatprep.mubr.bf16.mxu0 0
    %3537 = vmatmul.mubr.bf16.gmra.mrb[0].mxu0 %v3499
    %v3538 = vpop.f32.mrb[0].mxu0
    %v3539 = vadd.f32 0.0, %v3538
    %v3540 = vpop.f32.mrb[0].mxu0
    %v3541 = vpop.f32.mrb[0].mxu0
    %v3542 = vpop.f32.mrb[0].mxu0
    %3543 = vdwg.mxu0
    %v3545 = vsel %vm1105, %v614, 0
    %v3548 = vsel %vm1105, %v854, 0
    %3550 = vmatprep.subr.bf16.mxu0 0
    %3551 = vmatpush1.bf16.xpose.msra.mxu0 %v3548
    %3552 = vmatprep.subr.bf16.mxu0 0
    %3553 = vmatpush1.bf16.xpose.msra.mxu0 0
    %3554 = vmatprep.subr.bf16.mxu0 0
    %3555 = vmatpush1.bf16.xpose.msra.mxu0 0
    %3556 = vmatprep.subr.bf16.mxu0 0
    %3557 = vmatpush1.bf16.xpose.msra.mxu0 0
    %3558 = vmatprep.subr.bf16.mxu0 0
    %3559 = vmatpush1.bf16.xpose.msra.mxu0 0
    %3560 = vmatprep.subr.bf16.mxu0 0
    %3561 = vmatpush1.bf16.xpose.msra.mxu0 0
    %3562 = vmatprep.subr.bf16.mxu0 0
    %3563 = vmatpush1.bf16.xpose.msra.mxu0 0
    %3564 = vmatprep.subr.bf16.mxu0 0
    %3565 = vmatpush1.bf16.xpose.msra.mxu0 0
    %3566 = vmatprep.subr.bf16.mxu0 0
    %3567 = vmatpush1.bf16.xpose.msra.mxu0 0
    %3568 = vmatprep.subr.bf16.mxu0 0
    %3569 = vmatpush1.bf16.xpose.msra.mxu0 0
    %3570 = vmatprep.subr.bf16.mxu0 0
    %3571 = vmatpush1.bf16.xpose.msra.mxu0 0
    %3572 = vmatprep.subr.bf16.mxu0 0
    %3573 = vmatpush1.bf16.xpose.msra.mxu0 0
    %3574 = vmatprep.subr.bf16.mxu0 0
    %3575 = vmatpush1.bf16.xpose.msra.mxu0 0
    %3576 = vmatprep.subr.bf16.mxu0 0
    %3577 = vmatpush1.bf16.xpose.msra.mxu0 0
    %3578 = vmatprep.subr.bf16.mxu0 0
    %3579 = vmatpush1.bf16.xpose.msra.mxu0 0
    %3580 = vmatprep.subr.bf16.mxu0 0
    %3581 = vmatpush1.bf16.xpose.msra.mxu0 0
    %3582 = vmatprep.mubr.bf16.mxu0 0
    %3583 = vmatmul.mubr.bf16.gmra.mrb[0].mxu0 %v3545
    %v3584 = vpop.f32.mrb[0].mxu0
    %v3585 = vadd.f32 0.0, %v3584
    %v3586 = vpop.f32.mrb[0].mxu0
    %v3587 = vpop.f32.mrb[0].mxu0
    %v3588 = vpop.f32.mrb[0].mxu0
    %3589 = vdwg.mxu0
    %v3591 = vsel %vm1105, %v615, 0
    %v3594 = vsel %vm1105, %v855, 0
    %3596 = vmatprep.subr.bf16.mxu0 0
    %3597 = vmatpush1.bf16.xpose.msra.mxu0 %v3594
    %3598 = vmatprep.subr.bf16.mxu0 0
    %3599 = vmatpush1.bf16.xpose.msra.mxu0 0
    %3600 = vmatprep.subr.bf16.mxu0 0
    %3601 = vmatpush1.bf16.xpose.msra.mxu0 0
    %3602 = vmatprep.subr.bf16.mxu0 0
    %3603 = vmatpush1.bf16.xpose.msra.mxu0 0
    %3604 = vmatprep.subr.bf16.mxu0 0
    %3605 = vmatpush1.bf16.xpose.msra.mxu0 0
    %3606 = vmatprep.subr.bf16.mxu0 0
    %3607 = vmatpush1.bf16.xpose.msra.mxu0 0
    %3608 = vmatprep.subr.bf16.mxu0 0
    %3609 = vmatpush1.bf16.xpose.msra.mxu0 0
    %3610 = vmatprep.subr.bf16.mxu0 0
    %3611 = vmatpush1.bf16.xpose.msra.mxu0 0
    %3612 = vmatprep.subr.bf16.mxu0 0
    %3613 = vmatpush1.bf16.xpose.msra.mxu0 0
    %3614 = vmatprep.subr.bf16.mxu0 0
    %3615 = vmatpush1.bf16.xpose.msra.mxu0 0
    %3616 = vmatprep.subr.bf16.mxu0 0
    %3617 = vmatpush1.bf16.xpose.msra.mxu0 0
    %3618 = vmatprep.subr.bf16.mxu0 0
    %3619 = vmatpush1.bf16.xpose.msra.mxu0 0
    %3620 = vmatprep.subr.bf16.mxu0 0
    %3621 = vmatpush1.bf16.xpose.msra.mxu0 0
    %3622 = vmatprep.subr.bf16.mxu0 0
    %3623 = vmatpush1.bf16.xpose.msra.mxu0 0
    %3624 = vmatprep.subr.bf16.mxu0 0
    %3625 = vmatpush1.bf16.xpose.msra.mxu0 0
    %3626 = vmatprep.subr.bf16.mxu0 0
    %3627 = vmatpush1.bf16.xpose.msra.mxu0 0
    %3628 = vmatprep.mubr.bf16.mxu0 0
    %3629 = vmatmul.mubr.bf16.gmra.mrb[0].mxu0 %v3591
    %v3630 = vpop.f32.mrb[0].mxu0
    %v3631 = vadd.f32 0.0, %v3630
    %v3632 = vpop.f32.mrb[0].mxu0
    %v3633 = vpop.f32.mrb[0].mxu0
    %v3634 = vpop.f32.mrb[0].mxu0
    %3635 = vdwg.mxu0
    %v3637 = vsel %vm1105, %v616, 0
    %v3640 = vsel %vm1105, %v856, 0
    %3642 = vmatprep.subr.bf16.mxu0 0
    %3643 = vmatpush1.bf16.xpose.msra.mxu0 %v3640
    %3644 = vmatprep.subr.bf16.mxu0 0
    %3645 = vmatpush1.bf16.xpose.msra.mxu0 0
    %3646 = vmatprep.subr.bf16.mxu0 0
    %3647 = vmatpush1.bf16.xpose.msra.mxu0 0
    %3648 = vmatprep.subr.bf16.mxu0 0
    %3649 = vmatpush1.bf16.xpose.msra.mxu0 0
    %3650 = vmatprep.subr.bf16.mxu0 0
    %3651 = vmatpush1.bf16.xpose.msra.mxu0 0
    %3652 = vmatprep.subr.bf16.mxu0 0
    %3653 = vmatpush1.bf16.xpose.msra.mxu0 0
    %3654 = vmatprep.subr.bf16.mxu0 0
    %3655 = vmatpush1.bf16.xpose.msra.mxu0 0
    %3656 = vmatprep.subr.bf16.mxu0 0
    %3657 = vmatpush1.bf16.xpose.msra.mxu0 0
    %3658 = vmatprep.subr.bf16.mxu0 0
    %3659 = vmatpush1.bf16.xpose.msra.mxu0 0
    %3660 = vmatprep.subr.bf16.mxu0 0
    %3661 = vmatpush1.bf16.xpose.msra.mxu0 0
    %3662 = vmatprep.subr.bf16.mxu0 0
    %3663 = vmatpush1.bf16.xpose.msra.mxu0 0
    %3664 = vmatprep.subr.bf16.mxu0 0
    %3665 = vmatpush1.bf16.xpose.msra.mxu0 0
    %3666 = vmatprep.subr.bf16.mxu0 0
    %3667 = vmatpush1.bf16.xpose.msra.mxu0 0
    %3668 = vmatprep.subr.bf16.mxu0 0
    %3669 = vmatpush1.bf16.xpose.msra.mxu0 0
    %3670 = vmatprep.subr.bf16.mxu0 0
    %3671 = vmatpush1.bf16.xpose.msra.mxu0 0
    %3672 = vmatprep.subr.bf16.mxu0 0
    %3673 = vmatpush1.bf16.xpose.msra.mxu0 0
    %3674 = vmatprep.mubr.bf16.mxu0 0
    %3675 = vmatmul.mubr.bf16.gmra.mrb[0].mxu0 %v3637
    %v3676 = vpop.f32.mrb[0].mxu0
    %v3677 = vadd.f32 0.0, %v3676
    %v3678 = vpop.f32.mrb[0].mxu0
    %v3679 = vpop.f32.mrb[0].mxu0
    %v3680 = vpop.f32.mrb[0].mxu0
    %3681 = vdwg.mxu0
    %v3683 = vsel %vm1105, %v617, 0
    %v3686 = vsel %vm1105, %v857, 0
    %3688 = vmatprep.subr.bf16.mxu0 0
    %3689 = vmatpush1.bf16.xpose.msra.mxu0 %v3686
    %3690 = vmatprep.subr.bf16.mxu0 0
    %3691 = vmatpush1.bf16.xpose.msra.mxu0 0
    %3692 = vmatprep.subr.bf16.mxu0 0
    %3693 = vmatpush1.bf16.xpose.msra.mxu0 0
    %3694 = vmatprep.subr.bf16.mxu0 0
    %3695 = vmatpush1.bf16.xpose.msra.mxu0 0
    %3696 = vmatprep.subr.bf16.mxu0 0
    %3697 = vmatpush1.bf16.xpose.msra.mxu0 0
    %3698 = vmatprep.subr.bf16.mxu0 0
    %3699 = vmatpush1.bf16.xpose.msra.mxu0 0
    %3700 = vmatprep.subr.bf16.mxu0 0
    %3701 = vmatpush1.bf16.xpose.msra.mxu0 0
    %3702 = vmatprep.subr.bf16.mxu0 0
    %3703 = vmatpush1.bf16.xpose.msra.mxu0 0
    %3704 = vmatprep.subr.bf16.mxu0 0
    %3705 = vmatpush1.bf16.xpose.msra.mxu0 0
    %3706 = vmatprep.subr.bf16.mxu0 0
    %3707 = vmatpush1.bf16.xpose.msra.mxu0 0
    %3708 = vmatprep.subr.bf16.mxu0 0
    %3709 = vmatpush1.bf16.xpose.msra.mxu0 0
    %3710 = vmatprep.subr.bf16.mxu0 0
    %3711 = vmatpush1.bf16.xpose.msra.mxu0 0
    %3712 = vmatprep.subr.bf16.mxu0 0
    %3713 = vmatpush1.bf16.xpose.msra.mxu0 0
    %3714 = vmatprep.subr.bf16.mxu0 0
    %3715 = vmatpush1.bf16.xpose.msra.mxu0 0
    %3716 = vmatprep.subr.bf16.mxu0 0
    %3717 = vmatpush1.bf16.xpose.msra.mxu0 0
    %3718 = vmatprep.subr.bf16.mxu0 0
    %3719 = vmatpush1.bf16.xpose.msra.mxu0 0
    %3720 = vmatprep.mubr.bf16.mxu0 0
    %3721 = vmatmul.mubr.bf16.gmra.mrb[0].mxu0 %v3683
    %v3722 = vpop.f32.mrb[0].mxu0
    %v3723 = vadd.f32 0.0, %v3722
    %v3724 = vpop.f32.mrb[0].mxu0
    %v3725 = vpop.f32.mrb[0].mxu0
    %v3726 = vpop.f32.mrb[0].mxu0
    %3727 = vdwg.mxu0
    %v3729 = vsel %vm1105, %v618, 0
    %v3732 = vsel %vm1105, %v858, 0
    %3734 = vmatprep.subr.bf16.mxu0 0
    %3735 = vmatpush1.bf16.xpose.msra.mxu0 %v3732
    %3736 = vmatprep.subr.bf16.mxu0 0
    %3737 = vmatpush1.bf16.xpose.msra.mxu0 0
    %3738 = vmatprep.subr.bf16.mxu0 0
    %3739 = vmatpush1.bf16.xpose.msra.mxu0 0
    %3740 = vmatprep.subr.bf16.mxu0 0
    %3741 = vmatpush1.bf16.xpose.msra.mxu0 0
    %3742 = vmatprep.subr.bf16.mxu0 0
    %3743 = vmatpush1.bf16.xpose.msra.mxu0 0
    %3744 = vmatprep.subr.bf16.mxu0 0
    %3745 = vmatpush1.bf16.xpose.msra.mxu0 0
    %3746 = vmatprep.subr.bf16.mxu0 0
    %3747 = vmatpush1.bf16.xpose.msra.mxu0 0
    %3748 = vmatprep.subr.bf16.mxu0 0
    %3749 = vmatpush1.bf16.xpose.msra.mxu0 0
    %3750 = vmatprep.subr.bf16.mxu0 0
    %3751 = vmatpush1.bf16.xpose.msra.mxu0 0
    %3752 = vmatprep.subr.bf16.mxu0 0
    %3753 = vmatpush1.bf16.xpose.msra.mxu0 0
    %3754 = vmatprep.subr.bf16.mxu0 0
    %3755 = vmatpush1.bf16.xpose.msra.mxu0 0
    %3756 = vmatprep.subr.bf16.mxu0 0
    %3757 = vmatpush1.bf16.xpose.msra.mxu0 0
    %3758 = vmatprep.subr.bf16.mxu0 0
    %3759 = vmatpush1.bf16.xpose.msra.mxu0 0
    %3760 = vmatprep.subr.bf16.mxu0 0
    %3761 = vmatpush1.bf16.xpose.msra.mxu0 0
    %3762 = vmatprep.subr.bf16.mxu0 0
    %3763 = vmatpush1.bf16.xpose.msra.mxu0 0
    %3764 = vmatprep.subr.bf16.mxu0 0
    %3765 = vmatpush1.bf16.xpose.msra.mxu0 0
    %3766 = vmatprep.mubr.bf16.mxu0 0
    %3767 = vmatmul.mubr.bf16.gmra.mrb[0].mxu0 %v3729
    %v3768 = vpop.f32.mrb[0].mxu0
    %v3769 = vadd.f32 0.0, %v3768
    %v3770 = vpop.f32.mrb[0].mxu0
    %v3771 = vpop.f32.mrb[0].mxu0
    %v3772 = vpop.f32.mrb[0].mxu0
    %3773 = vdwg.mxu0
    %v3775 = vsel %vm1105, %v619, 0
    %v3778 = vsel %vm1105, %v859, 0
    %3780 = vmatprep.subr.bf16.mxu0 0
    %3781 = vmatpush1.bf16.xpose.msra.mxu0 %v3778
    %3782 = vmatprep.subr.bf16.mxu0 0
    %3783 = vmatpush1.bf16.xpose.msra.mxu0 0
    %3784 = vmatprep.subr.bf16.mxu0 0
    %3785 = vmatpush1.bf16.xpose.msra.mxu0 0
    %3786 = vmatprep.subr.bf16.mxu0 0
    %3787 = vmatpush1.bf16.xpose.msra.mxu0 0
    %3788 = vmatprep.subr.bf16.mxu0 0
    %3789 = vmatpush1.bf16.xpose.msra.mxu0 0
    %3790 = vmatprep.subr.bf16.mxu0 0
    %3791 = vmatpush1.bf16.xpose.msra.mxu0 0
    %3792 = vmatprep.subr.bf16.mxu0 0
    %3793 = vmatpush1.bf16.xpose.msra.mxu0 0
    %3794 = vmatprep.subr.bf16.mxu0 0
    %3795 = vmatpush1.bf16.xpose.msra.mxu0 0
    %3796 = vmatprep.subr.bf16.mxu0 0
    %3797 = vmatpush1.bf16.xpose.msra.mxu0 0
    %3798 = vmatprep.subr.bf16.mxu0 0
    %3799 = vmatpush1.bf16.xpose.msra.mxu0 0
    %3800 = vmatprep.subr.bf16.mxu0 0
    %3801 = vmatpush1.bf16.xpose.msra.mxu0 0
    %3802 = vmatprep.subr.bf16.mxu0 0
    %3803 = vmatpush1.bf16.xpose.msra.mxu0 0
    %3804 = vmatprep.subr.bf16.mxu0 0
    %3805 = vmatpush1.bf16.xpose.msra.mxu0 0
    %3806 = vmatprep.subr.bf16.mxu0 0
    %3807 = vmatpush1.bf16.xpose.msra.mxu0 0
    %3808 = vmatprep.subr.bf16.mxu0 0
    %3809 = vmatpush1.bf16.xpose.msra.mxu0 0
    %3810 = vmatprep.subr.bf16.mxu0 0
    %3811 = vmatpush1.bf16.xpose.msra.mxu0 0
    %3812 = vmatprep.mubr.bf16.mxu0 0
    %3813 = vmatmul.mubr.bf16.gmra.mrb[0].mxu0 %v3775
    %v3814 = vpop.f32.mrb[0].mxu0
    %v3815 = vadd.f32 0.0, %v3814
    %v3816 = vpop.f32.mrb[0].mxu0
    %v3817 = vpop.f32.mrb[0].mxu0
    %v3818 = vpop.f32.mrb[0].mxu0
    %3819 = vdwg.mxu0
    %v3821 = vsel %vm1105, %v620, 0
    %v3824 = vsel %vm1105, %v860, 0
    %3826 = vmatprep.subr.bf16.mxu0 0
    %3827 = vmatpush1.bf16.xpose.msra.mxu0 %v3824
    %3828 = vmatprep.subr.bf16.mxu0 0
    %3829 = vmatpush1.bf16.xpose.msra.mxu0 0
    %3830 = vmatprep.subr.bf16.mxu0 0
    %3831 = vmatpush1.bf16.xpose.msra.mxu0 0
    %3832 = vmatprep.subr.bf16.mxu0 0
    %3833 = vmatpush1.bf16.xpose.msra.mxu0 0
    %3834 = vmatprep.subr.bf16.mxu0 0
    %3835 = vmatpush1.bf16.xpose.msra.mxu0 0
    %3836 = vmatprep.subr.bf16.mxu0 0
    %3837 = vmatpush1.bf16.xpose.msra.mxu0 0
    %3838 = vmatprep.subr.bf16.mxu0 0
    %3839 = vmatpush1.bf16.xpose.msra.mxu0 0
    %3840 = vmatprep.subr.bf16.mxu0 0
    %3841 = vmatpush1.bf16.xpose.msra.mxu0 0
    %3842 = vmatprep.subr.bf16.mxu0 0
    %3843 = vmatpush1.bf16.xpose.msra.mxu0 0
    %3844 = vmatprep.subr.bf16.mxu0 0
    %3845 = vmatpush1.bf16.xpose.msra.mxu0 0
    %3846 = vmatprep.subr.bf16.mxu0 0
    %3847 = vmatpush1.bf16.xpose.msra.mxu0 0
    %3848 = vmatprep.subr.bf16.mxu0 0
    %3849 = vmatpush1.bf16.xpose.msra.mxu0 0
    %3850 = vmatprep.subr.bf16.mxu0 0
    %3851 = vmatpush1.bf16.xpose.msra.mxu0 0
    %3852 = vmatprep.subr.bf16.mxu0 0
    %3853 = vmatpush1.bf16.xpose.msra.mxu0 0
    %3854 = vmatprep.subr.bf16.mxu0 0
    %3855 = vmatpush1.bf16.xpose.msra.mxu0 0
    %3856 = vmatprep.subr.bf16.mxu0 0
    %3857 = vmatpush1.bf16.xpose.msra.mxu0 0
    %3858 = vmatprep.mubr.bf16.mxu0 0
    %3859 = vmatmul.mubr.bf16.gmra.mrb[0].mxu0 %v3821
    %v3860 = vpop.f32.mrb[0].mxu0
    %v3861 = vadd.f32 0.0, %v3860
    %v3862 = vpop.f32.mrb[0].mxu0
    %v3863 = vpop.f32.mrb[0].mxu0
    %v3864 = vpop.f32.mrb[0].mxu0
    %3865 = vdwg.mxu0
    %v3867 = vsel %vm1105, %v621, 0
    %v3870 = vsel %vm1105, %v861, 0
    %3872 = vmatprep.subr.bf16.mxu0 0
    %3873 = vmatpush1.bf16.xpose.msra.mxu0 %v3870
    %3874 = vmatprep.subr.bf16.mxu0 0
    %3875 = vmatpush1.bf16.xpose.msra.mxu0 0
    %3876 = vmatprep.subr.bf16.mxu0 0
    %3877 = vmatpush1.bf16.xpose.msra.mxu0 0
    %3878 = vmatprep.subr.bf16.mxu0 0
    %3879 = vmatpush1.bf16.xpose.msra.mxu0 0
    %3880 = vmatprep.subr.bf16.mxu0 0
    %3881 = vmatpush1.bf16.xpose.msra.mxu0 0
    %3882 = vmatprep.subr.bf16.mxu0 0
    %3883 = vmatpush1.bf16.xpose.msra.mxu0 0
    %3884 = vmatprep.subr.bf16.mxu0 0
    %3885 = vmatpush1.bf16.xpose.msra.mxu0 0
    %3886 = vmatprep.subr.bf16.mxu0 0
    %3887 = vmatpush1.bf16.xpose.msra.mxu0 0
    %3888 = vmatprep.subr.bf16.mxu0 0
    %3889 = vmatpush1.bf16.xpose.msra.mxu0 0
    %3890 = vmatprep.subr.bf16.mxu0 0
    %3891 = vmatpush1.bf16.xpose.msra.mxu0 0
    %3892 = vmatprep.subr.bf16.mxu0 0
    %3893 = vmatpush1.bf16.xpose.msra.mxu0 0
    %3894 = vmatprep.subr.bf16.mxu0 0
    %3895 = vmatpush1.bf16.xpose.msra.mxu0 0
    %3896 = vmatprep.subr.bf16.mxu0 0
    %3897 = vmatpush1.bf16.xpose.msra.mxu0 0
    %3898 = vmatprep.subr.bf16.mxu0 0
    %3899 = vmatpush1.bf16.xpose.msra.mxu0 0
    %3900 = vmatprep.subr.bf16.mxu0 0
    %3901 = vmatpush1.bf16.xpose.msra.mxu0 0
    %3902 = vmatprep.subr.bf16.mxu0 0
    %3903 = vmatpush1.bf16.xpose.msra.mxu0 0
    %3904 = vmatprep.mubr.bf16.mxu0 0
    %3905 = vmatmul.mubr.bf16.gmra.mrb[0].mxu0 %v3867
    %v3906 = vpop.f32.mrb[0].mxu0
    %v3907 = vadd.f32 0.0, %v3906
    %v3908 = vpop.f32.mrb[0].mxu0
    %v3909 = vpop.f32.mrb[0].mxu0
    %v3910 = vpop.f32.mrb[0].mxu0
    %3911 = vdwg.mxu0
    %v3913 = vsel %vm1105, %v622, 0
    %v3916 = vsel %vm1105, %v862, 0
    %3918 = vmatprep.subr.bf16.mxu0 0
    %3919 = vmatpush1.bf16.xpose.msra.mxu0 %v3916
    %3920 = vmatprep.subr.bf16.mxu0 0
    %3921 = vmatpush1.bf16.xpose.msra.mxu0 0
    %3922 = vmatprep.subr.bf16.mxu0 0
    %3923 = vmatpush1.bf16.xpose.msra.mxu0 0
    %3924 = vmatprep.subr.bf16.mxu0 0
    %3925 = vmatpush1.bf16.xpose.msra.mxu0 0
    %3926 = vmatprep.subr.bf16.mxu0 0
    %3927 = vmatpush1.bf16.xpose.msra.mxu0 0
    %3928 = vmatprep.subr.bf16.mxu0 0
    %3929 = vmatpush1.bf16.xpose.msra.mxu0 0
    %3930 = vmatprep.subr.bf16.mxu0 0
    %3931 = vmatpush1.bf16.xpose.msra.mxu0 0
    %3932 = vmatprep.subr.bf16.mxu0 0
    %3933 = vmatpush1.bf16.xpose.msra.mxu0 0
    %3934 = vmatprep.subr.bf16.mxu0 0
    %3935 = vmatpush1.bf16.xpose.msra.mxu0 0
    %3936 = vmatprep.subr.bf16.mxu0 0
    %3937 = vmatpush1.bf16.xpose.msra.mxu0 0
    %3938 = vmatprep.subr.bf16.mxu0 0
    %3939 = vmatpush1.bf16.xpose.msra.mxu0 0
    %3940 = vmatprep.subr.bf16.mxu0 0
    %3941 = vmatpush1.bf16.xpose.msra.mxu0 0
    %3942 = vmatprep.subr.bf16.mxu0 0
    %3943 = vmatpush1.bf16.xpose.msra.mxu0 0
    %3944 = vmatprep.subr.bf16.mxu0 0
    %3945 = vmatpush1.bf16.xpose.msra.mxu0 0
    %3946 = vmatprep.subr.bf16.mxu0 0
    %3947 = vmatpush1.bf16.xpose.msra.mxu0 0
    %3948 = vmatprep.subr.bf16.mxu0 0
    %3949 = vmatpush1.bf16.xpose.msra.mxu0 0
    %3950 = vmatprep.mubr.bf16.mxu0 0
    %3951 = vmatmul.mubr.bf16.gmra.mrb[0].mxu0 %v3913
    %v3952 = vpop.f32.mrb[0].mxu0
    %v3953 = vadd.f32 0.0, %v3952
    %v3954 = vpop.f32.mrb[0].mxu0
    %v3955 = vpop.f32.mrb[0].mxu0
    %v3956 = vpop.f32.mrb[0].mxu0
    %3957 = vdwg.mxu0
    %v3959 = vsel %vm1105, %v623, 0
    %v3962 = vsel %vm1105, %v863, 0
    %3964 = vmatprep.subr.bf16.mxu0 0
    %3965 = vmatpush1.bf16.xpose.msra.mxu0 %v3962
    %3966 = vmatprep.subr.bf16.mxu0 0
    %3967 = vmatpush1.bf16.xpose.msra.mxu0 0
    %3968 = vmatprep.subr.bf16.mxu0 0
    %3969 = vmatpush1.bf16.xpose.msra.mxu0 0
    %3970 = vmatprep.subr.bf16.mxu0 0
    %3971 = vmatpush1.bf16.xpose.msra.mxu0 0
    %3972 = vmatprep.subr.bf16.mxu0 0
    %3973 = vmatpush1.bf16.xpose.msra.mxu0 0
    %3974 = vmatprep.subr.bf16.mxu0 0
    %3975 = vmatpush1.bf16.xpose.msra.mxu0 0
    %3976 = vmatprep.subr.bf16.mxu0 0
    %3977 = vmatpush1.bf16.xpose.msra.mxu0 0
    %3978 = vmatprep.subr.bf16.mxu0 0
    %3979 = vmatpush1.bf16.xpose.msra.mxu0 0
    %3980 = vmatprep.subr.bf16.mxu0 0
    %3981 = vmatpush1.bf16.xpose.msra.mxu0 0
    %3982 = vmatprep.subr.bf16.mxu0 0
    %3983 = vmatpush1.bf16.xpose.msra.mxu0 0
    %3984 = vmatprep.subr.bf16.mxu0 0
    %3985 = vmatpush1.bf16.xpose.msra.mxu0 0
    %3986 = vmatprep.subr.bf16.mxu0 0
    %3987 = vmatpush1.bf16.xpose.msra.mxu0 0
    %3988 = vmatprep.subr.bf16.mxu0 0
    %3989 = vmatpush1.bf16.xpose.msra.mxu0 0
    %3990 = vmatprep.subr.bf16.mxu0 0
    %3991 = vmatpush1.bf16.xpose.msra.mxu0 0
    %3992 = vmatprep.subr.bf16.mxu0 0
    %3993 = vmatpush1.bf16.xpose.msra.mxu0 0
    %3994 = vmatprep.subr.bf16.mxu0 0
    %3995 = vmatpush1.bf16.xpose.msra.mxu0 0
    %3996 = vmatprep.mubr.bf16.mxu0 0
    %3997 = vmatmul.mubr.bf16.gmra.mrb[0].mxu0 %v3959
    %v3998 = vpop.f32.mrb[0].mxu0
    %v3999 = vadd.f32 0.0, %v3998
    %v4000 = vpop.f32.mrb[0].mxu0
    %v4001 = vpop.f32.mrb[0].mxu0
    %v4002 = vpop.f32.mrb[0].mxu0
    %4003 = vdwg.mxu0
    %v4005 = vsel %vm1105, %v624, 0
    %v4008 = vsel %vm1105, %v864, 0
    %4010 = vmatprep.subr.bf16.mxu0 0
    %4011 = vmatpush1.bf16.xpose.msra.mxu0 %v4008
    %4012 = vmatprep.subr.bf16.mxu0 0
    %4013 = vmatpush1.bf16.xpose.msra.mxu0 0
    %4014 = vmatprep.subr.bf16.mxu0 0
    %4015 = vmatpush1.bf16.xpose.msra.mxu0 0
    %4016 = vmatprep.subr.bf16.mxu0 0
    %4017 = vmatpush1.bf16.xpose.msra.mxu0 0
    %4018 = vmatprep.subr.bf16.mxu0 0
    %4019 = vmatpush1.bf16.xpose.msra.mxu0 0
    %4020 = vmatprep.subr.bf16.mxu0 0
    %4021 = vmatpush1.bf16.xpose.msra.mxu0 0
    %4022 = vmatprep.subr.bf16.mxu0 0
    %4023 = vmatpush1.bf16.xpose.msra.mxu0 0
    %4024 = vmatprep.subr.bf16.mxu0 0
    %4025 = vmatpush1.bf16.xpose.msra.mxu0 0
    %4026 = vmatprep.subr.bf16.mxu0 0
    %4027 = vmatpush1.bf16.xpose.msra.mxu0 0
    %4028 = vmatprep.subr.bf16.mxu0 0
    %4029 = vmatpush1.bf16.xpose.msra.mxu0 0
    %4030 = vmatprep.subr.bf16.mxu0 0
    %4031 = vmatpush1.bf16.xpose.msra.mxu0 0
    %4032 = vmatprep.subr.bf16.mxu0 0
    %4033 = vmatpush1.bf16.xpose.msra.mxu0 0
    %4034 = vmatprep.subr.bf16.mxu0 0
    %4035 = vmatpush1.bf16.xpose.msra.mxu0 0
    %4036 = vmatprep.subr.bf16.mxu0 0
    %4037 = vmatpush1.bf16.xpose.msra.mxu0 0
    %4038 = vmatprep.subr.bf16.mxu0 0
    %4039 = vmatpush1.bf16.xpose.msra.mxu0 0
    %4040 = vmatprep.subr.bf16.mxu0 0
    %4041 = vmatpush1.bf16.xpose.msra.mxu0 0
    %4042 = vmatprep.mubr.bf16.mxu0 0
    %4043 = vmatmul.mubr.bf16.gmra.mrb[0].mxu0 %v4005
    %v4044 = vpop.f32.mrb[0].mxu0
    %v4045 = vadd.f32 0.0, %v4044
    %v4046 = vpop.f32.mrb[0].mxu0
    %v4047 = vpop.f32.mrb[0].mxu0
    %v4048 = vpop.f32.mrb[0].mxu0
    %4049 = vdwg.mxu0
    %vm4050 = vcmask 64512
    %v4051 = vsel %vm4050, %v1147, -inf
    %v4052 = vsel %vm4050, %v1193, -inf
    %v4053 = vmax.f32 %v4051, %v4052
    %v4054 = vsel %vm4050, %v1239, -inf
    %v4055 = vmax.f32 %v4053, %v4054
    %v4056 = vsel %vm4050, %v1285, -inf
    %v4057 = vmax.f32 %v4055, %v4056
    %v4058 = vsel %vm4050, %v1331, -inf
    %v4059 = vmax.f32 %v4057, %v4058
    %v4060 = vsel %vm4050, %v1377, -inf
    %v4061 = vmax.f32 %v4059, %v4060
    %v4062 = vsel %vm4050, %v1423, -inf
    %v4063 = vmax.f32 %v4061, %v4062
    %v4064 = vsel %vm4050, %v1469, -inf
    %v4065 = vmax.f32 %v4063, %v4064
    %v4066 = vsel %vm4050, %v1515, -inf
    %v4067 = vsel %vm4050, %v1561, -inf
    %v4068 = vmax.f32 %v4066, %v4067
    %v4069 = vsel %vm4050, %v1607, -inf
    %v4070 = vmax.f32 %v4068, %v4069
    %v4071 = vsel %vm4050, %v1653, -inf
    %v4072 = vmax.f32 %v4070, %v4071
    %v4073 = vsel %vm4050, %v1699, -inf
    %v4074 = vmax.f32 %v4072, %v4073
    %v4075 = vsel %vm4050, %v1745, -inf
    %v4076 = vmax.f32 %v4074, %v4075
    %v4077 = vsel %vm4050, %v1791, -inf
    %v4078 = vmax.f32 %v4076, %v4077
    %v4079 = vsel %vm4050, %v1837, -inf
    %v4080 = vmax.f32 %v4078, %v4079
    %v4081 = vsel %vm4050, %v1883, -inf
    %v4082 = vsel %vm4050, %v1929, -inf
    %v4083 = vmax.f32 %v4081, %v4082
    %v4084 = vsel %vm4050, %v1975, -inf
    %v4085 = vmax.f32 %v4083, %v4084
    %v4086 = vsel %vm4050, %v2021, -inf
    %v4087 = vmax.f32 %v4085, %v4086
    %v4088 = vsel %vm4050, %v2067, -inf
    %v4089 = vmax.f32 %v4087, %v4088
    %v4090 = vsel %vm4050, %v2113, -inf
    %v4091 = vmax.f32 %v4089, %v4090
    %v4092 = vsel %vm4050, %v2159, -inf
    %v4093 = vmax.f32 %v4091, %v4092
    %v4094 = vsel %vm4050, %v2205, -inf
    %v4095 = vmax.f32 %v4093, %v4094
    %v4096 = vsel %vm4050, %v2251, -inf
    %v4097 = vsel %vm4050, %v2297, -inf
    %v4098 = vmax.f32 %v4096, %v4097
    %v4099 = vsel %vm4050, %v2343, -inf
    %v4100 = vmax.f32 %v4098, %v4099
    %v4101 = vsel %vm4050, %v2389, -inf
    %v4102 = vmax.f32 %v4100, %v4101
    %v4103 = vsel %vm4050, %v2435, -inf
    %v4104 = vmax.f32 %v4102, %v4103
    %v4105 = vsel %vm4050, %v2481, -inf
    %v4106 = vmax.f32 %v4104, %v4105
    %v4107 = vsel %vm4050, %v2527, -inf
    %v4108 = vmax.f32 %v4106, %v4107
    %v4109 = vsel %vm4050, %v2573, -inf
    %v4110 = vmax.f32 %v4108, %v4109
    %v4111 = vsel %vm4050, %v2619, -inf
    %v4112 = vsel %vm4050, %v2665, -inf
    %v4113 = vmax.f32 %v4111, %v4112
    %v4114 = vsel %vm4050, %v2711, -inf
    %v4115 = vmax.f32 %v4113, %v4114
    %v4116 = vsel %vm4050, %v2757, -inf
    %v4117 = vmax.f32 %v4115, %v4116
    %v4118 = vsel %vm4050, %v2803, -inf
    %v4119 = vmax.f32 %v4117, %v4118
    %v4120 = vsel %vm4050, %v2849, -inf
    %v4121 = vmax.f32 %v4119, %v4120
    %v4122 = vsel %vm4050, %v2895, -inf
    %v4123 = vmax.f32 %v4121, %v4122
    %v4124 = vsel %vm4050, %v2941, -inf
    %v4125 = vmax.f32 %v4123, %v4124
    %v4126 = vsel %vm4050, %v2987, -inf
    %v4127 = vsel %vm4050, %v3033, -inf
    %v4128 = vmax.f32 %v4126, %v4127
    %v4129 = vsel %vm4050, %v3079, -inf
    %v4130 = vmax.f32 %v4128, %v4129
    %v4131 = vsel %vm4050, %v3125, -inf
    %v4132 = vmax.f32 %v4130, %v4131
    %v4133 = vsel %vm4050, %v3171, -inf
    %v4134 = vmax.f32 %v4132, %v4133
    %v4135 = vsel %vm4050, %v3217, -inf
    %v4136 = vmax.f32 %v4134, %v4135
    %v4137 = vsel %vm4050, %v3263, -inf
    %v4138 = vmax.f32 %v4136, %v4137
    %v4139 = vsel %vm4050, %v3309, -inf
    %v4140 = vmax.f32 %v4138, %v4139
    %v4141 = vsel %vm4050, %v3355, -inf
    %v4142 = vsel %vm4050, %v3401, -inf
    %v4143 = vmax.f32 %v4141, %v4142
    %v4144 = vsel %vm4050, %v3447, -inf
    %v4145 = vmax.f32 %v4143, %v4144
    %v4146 = vsel %vm4050, %v3493, -inf
    %v4147 = vmax.f32 %v4145, %v4146
    %v4148 = vsel %vm4050, %v3539, -inf
    %v4149 = vmax.f32 %v4147, %v4148
    %v4150 = vsel %vm4050, %v3585, -inf
    %v4151 = vmax.f32 %v4149, %v4150
    %v4152 = vsel %vm4050, %v3631, -inf
    %v4153 = vmax.f32 %v4151, %v4152
    %v4154 = vsel %vm4050, %v3677, -inf
    %v4155 = vmax.f32 %v4153, %v4154
    %v4156 = vsel %vm4050, %v3723, -inf
    %v4157 = vsel %vm4050, %v3769, -inf
    %v4158 = vmax.f32 %v4156, %v4157
    %v4159 = vsel %vm4050, %v3815, -inf
    %v4160 = vmax.f32 %v4158, %v4159
    %v4161 = vsel %vm4050, %v3861, -inf
    %v4162 = vmax.f32 %v4160, %v4161
    %v4163 = vsel %vm4050, %v3907, -inf
    %v4164 = vmax.f32 %v4162, %v4163
    %v4165 = vsel %vm4050, %v3953, -inf
    %v4166 = vmax.f32 %v4164, %v4165
    %v4167 = vsel %vm4050, %v3999, -inf
    %v4168 = vmax.f32 %v4166, %v4167
    %v4169 = vsel %vm4050, %v4045, -inf
    %v4170 = vmax.f32 %v4168, %v4169
    %v4171 = vsub.f32 %v1147, %v4065
    %v4172 = vsub.f32 %v1193, %v4065
    %v4173 = vsub.f32 %v1239, %v4065
    %v4174 = vsub.f32 %v1285, %v4065
    %v4175 = vsub.f32 %v1331, %v4065
    %v4176 = vsub.f32 %v1377, %v4065
    %v4177 = vsub.f32 %v1423, %v4065
    %v4178 = vsub.f32 %v1469, %v4065
    %v4179 = vsub.f32 %v1515, %v4080
    %v4180 = vsub.f32 %v1561, %v4080
    %v4181 = vsub.f32 %v1607, %v4080
    %v4182 = vsub.f32 %v1653, %v4080
    %v4183 = vsub.f32 %v1699, %v4080
    %v4184 = vsub.f32 %v1745, %v4080
    %v4185 = vsub.f32 %v1791, %v4080
    %v4186 = vsub.f32 %v1837, %v4080
    %v4187 = vsub.f32 %v1883, %v4095
    %v4188 = vsub.f32 %v1929, %v4095
    %v4189 = vsub.f32 %v1975, %v4095
    %v4190 = vsub.f32 %v2021, %v4095
    %v4191 = vsub.f32 %v2067, %v4095
    %v4192 = vsub.f32 %v2113, %v4095
    %v4193 = vsub.f32 %v2159, %v4095
    %v4194 = vsub.f32 %v2205, %v4095
    %v4195 = vsub.f32 %v2251, %v4110
    %v4196 = vsub.f32 %v2297, %v4110
    %v4197 = vsub.f32 %v2343, %v4110
    %v4198 = vsub.f32 %v2389, %v4110
    %v4199 = vsub.f32 %v2435, %v4110
    %v4200 = vsub.f32 %v2481, %v4110
    %v4201 = vsub.f32 %v2527, %v4110
    %v4202 = vsub.f32 %v2573, %v4110
    %v4203 = vsub.f32 %v2619, %v4125
    %v4204 = vsub.f32 %v2665, %v4125
    %v4205 = vsub.f32 %v2711, %v4125
    %v4206 = vsub.f32 %v2757, %v4125
    %v4207 = vsub.f32 %v2803, %v4125
    %v4208 = vsub.f32 %v2849, %v4125
    %v4209 = vsub.f32 %v2895, %v4125
    %v4210 = vsub.f32 %v2941, %v4125
    %v4211 = vsub.f32 %v2987, %v4140
    %v4212 = vsub.f32 %v3033, %v4140
    %v4213 = vsub.f32 %v3079, %v4140
    %v4214 = vsub.f32 %v3125, %v4140
    %v4215 = vsub.f32 %v3171, %v4140
    %v4216 = vsub.f32 %v3217, %v4140
    %v4217 = vsub.f32 %v3263, %v4140
    %v4218 = vsub.f32 %v3309, %v4140
    %v4219 = vsub.f32 %v3355, %v4155
    %v4220 = vsub.f32 %v3401, %v4155
    %v4221 = vsub.f32 %v3447, %v4155
    %v4222 = vsub.f32 %v3493, %v4155
    %v4223 = vsub.f32 %v3539, %v4155
    %v4224 = vsub.f32 %v3585, %v4155
    %v4225 = vsub.f32 %v3631, %v4155
    %v4226 = vsub.f32 %v3677, %v4155
    %v4227 = vsub.f32 %v3723, %v4170
    %v4228 = vsub.f32 %v3769, %v4170
    %v4229 = vsub.f32 %v3815, %v4170
    %v4230 = vsub.f32 %v3861, %v4170
    %v4231 = vsub.f32 %v3907, %v4170
    %v4232 = vsub.f32 %v3953, %v4170
    %v4233 = vsub.f32 %v3999, %v4170
    %v4234 = vsub.f32 %v4045, %v4170
    %v4235 = vmul.f32 %v4171, 1.442695
    %v4236 = vpow.pop %v4235
    %v4237 = vmul.f32 %v4172, 1.442695
    %v4238 = vpow.pop %v4237
    %v4239 = vmul.f32 %v4173, 1.442695
    %v4240 = vpow.pop %v4239
    %v4241 = vmul.f32 %v4174, 1.442695
    %v4242 = vpow.pop %v4241
    %v4243 = vmul.f32 %v4175, 1.442695
    %v4244 = vpow.pop %v4243
    %v4245 = vmul.f32 %v4176, 1.442695
    %v4246 = vpow.pop %v4245
    %v4247 = vmul.f32 %v4177, 1.442695
    %v4248 = vpow.pop %v4247
    %v4249 = vmul.f32 %v4178, 1.442695
    %v4250 = vpow.pop %v4249
    %v4251 = vmul.f32 %v4179, 1.442695
    %v4252 = vpow.pop %v4251
    %v4253 = vmul.f32 %v4180, 1.442695
    %v4254 = vpow.pop %v4253
    %v4255 = vmul.f32 %v4181, 1.442695
    %v4256 = vpow.pop %v4255
    %v4257 = vmul.f32 %v4182, 1.442695
    %v4258 = vpow.pop %v4257
    %v4259 = vmul.f32 %v4183, 1.442695
    %v4260 = vpow.pop %v4259
    %v4261 = vmul.f32 %v4184, 1.442695
    %v4262 = vpow.pop %v4261
    %v4263 = vmul.f32 %v4185, 1.442695
    %v4264 = vpow.pop %v4263
    %v4265 = vmul.f32 %v4186, 1.442695
    %v4266 = vpow.pop %v4265
    %v4267 = vmul.f32 %v4187, 1.442695
    %v4268 = vpow.pop %v4267
    %v4269 = vmul.f32 %v4188, 1.442695
    %v4270 = vpow.pop %v4269
    %v4271 = vmul.f32 %v4189, 1.442695
    %v4272 = vpow.pop %v4271
    %v4273 = vmul.f32 %v4190, 1.442695
    %v4274 = vpow.pop %v4273
    %v4275 = vmul.f32 %v4191, 1.442695
    %v4276 = vpow.pop %v4275
    %v4277 = vmul.f32 %v4192, 1.442695
    %v4278 = vpow.pop %v4277
    %v4279 = vmul.f32 %v4193, 1.442695
    %v4280 = vpow.pop %v4279
    %v4281 = vmul.f32 %v4194, 1.442695
    %v4282 = vpow.pop %v4281
    %v4283 = vmul.f32 %v4195, 1.442695
    %v4284 = vpow.pop %v4283
    %v4285 = vmul.f32 %v4196, 1.442695
    %v4286 = vpow.pop %v4285
    %v4287 = vmul.f32 %v4197, 1.442695
    %v4288 = vpow.pop %v4287
    %v4289 = vmul.f32 %v4198, 1.442695
    %v4290 = vpow.pop %v4289
    %v4291 = vmul.f32 %v4199, 1.442695
    %v4292 = vpow.pop %v4291
    %v4293 = vmul.f32 %v4200, 1.442695
    %v4294 = vpow.pop %v4293
    %v4295 = vmul.f32 %v4201, 1.442695
    %v4296 = vpow.pop %v4295
    %v4297 = vmul.f32 %v4202, 1.442695
    %v4298 = vpow.pop %v4297
    %v4299 = vmul.f32 %v4203, 1.442695
    %v4300 = vpow.pop %v4299
    %v4301 = vmul.f32 %v4204, 1.442695
    %v4302 = vpow.pop %v4301
    %v4303 = vmul.f32 %v4205, 1.442695
    %v4304 = vpow.pop %v4303
    %v4305 = vmul.f32 %v4206, 1.442695
    %v4306 = vpow.pop %v4305
    %v4307 = vmul.f32 %v4207, 1.442695
    %v4308 = vpow.pop %v4307
    %v4309 = vmul.f32 %v4208, 1.442695
    %v4310 = vpow.pop %v4309
    %v4311 = vmul.f32 %v4209, 1.442695
    %v4312 = vpow.pop %v4311
    %v4313 = vmul.f32 %v4210, 1.442695
    %v4314 = vpow.pop %v4313
    %v4315 = vmul.f32 %v4211, 1.442695
    %v4316 = vpow.pop %v4315
    %v4317 = vmul.f32 %v4212, 1.442695
    %v4318 = vpow.pop %v4317
    %v4319 = vmul.f32 %v4213, 1.442695
    %v4320 = vpow.pop %v4319
    %v4321 = vmul.f32 %v4214, 1.442695
    %v4322 = vpow.pop %v4321
    %v4323 = vmul.f32 %v4215, 1.442695
    %v4324 = vpow.pop %v4323
    %v4325 = vmul.f32 %v4216, 1.442695
    %v4326 = vpow.pop %v4325
    %v4327 = vmul.f32 %v4217, 1.442695
    %v4328 = vpow.pop %v4327
    %v4329 = vmul.f32 %v4218, 1.442695
    %v4330 = vpow.pop %v4329
    %v4331 = vmul.f32 %v4219, 1.442695
    %v4332 = vpow.pop %v4331
    %v4333 = vmul.f32 %v4220, 1.442695
    %v4334 = vpow.pop %v4333
    %v4335 = vmul.f32 %v4221, 1.442695
    %v4336 = vpow.pop %v4335
    %v4337 = vmul.f32 %v4222, 1.442695
    %v4338 = vpow.pop %v4337
    %v4339 = vmul.f32 %v4223, 1.442695
    %v4340 = vpow.pop %v4339
    %v4341 = vmul.f32 %v4224, 1.442695
    %v4342 = vpow.pop %v4341
    %v4343 = vmul.f32 %v4225, 1.442695
    %v4344 = vpow.pop %v4343
    %v4345 = vmul.f32 %v4226, 1.442695
    %v4346 = vpow.pop %v4345
    %v4347 = vmul.f32 %v4227, 1.442695
    %v4348 = vpow.pop %v4347
    %v4349 = vmul.f32 %v4228, 1.442695
    %v4350 = vpow.pop %v4349
    %v4351 = vmul.f32 %v4229, 1.442695
    %v4352 = vpow.pop %v4351
    %v4353 = vmul.f32 %v4230, 1.442695
    %v4354 = vpow.pop %v4353
    %v4355 = vmul.f32 %v4231, 1.442695
    %v4356 = vpow.pop %v4355
    %v4357 = vmul.f32 %v4232, 1.442695
    %v4358 = vpow.pop %v4357
    %v4359 = vmul.f32 %v4233, 1.442695
    %v4360 = vpow.pop %v4359
    %v4361 = vmul.f32 %v4234, 1.442695
    %v4362 = vpow.pop %v4361
    %v4363 = vsel %vm4050, %v4236, 0.0
    %v4364 = vsel %vm4050, %v4238, 0.0
    %v4365 = vadd.f32 %v4363, %v4364
    %v4366 = vsel %vm4050, %v4240, 0.0
    %v4367 = vadd.f32 %v4365, %v4366
    %v4368 = vsel %vm4050, %v4242, 0.0
    %v4369 = vadd.f32 %v4367, %v4368
    %v4370 = vsel %vm4050, %v4244, 0.0
    %v4371 = vadd.f32 %v4369, %v4370
    %v4372 = vsel %vm4050, %v4246, 0.0
    %v4373 = vadd.f32 %v4371, %v4372
    %v4374 = vsel %vm4050, %v4248, 0.0
    %v4375 = vadd.f32 %v4373, %v4374
    %v4376 = vsel %vm4050, %v4250, 0.0
    %v4377 = vadd.f32 %v4375, %v4376
    %v4378 = vsel %vm4050, %v4252, 0.0
    %v4379 = vsel %vm4050, %v4254, 0.0
    %v4380 = vadd.f32 %v4378, %v4379
    %v4381 = vsel %vm4050, %v4256, 0.0
    %v4382 = vadd.f32 %v4380, %v4381
    %v4383 = vsel %vm4050, %v4258, 0.0
    %v4384 = vadd.f32 %v4382, %v4383
    %v4385 = vsel %vm4050, %v4260, 0.0
    %v4386 = vadd.f32 %v4384, %v4385
    %v4387 = vsel %vm4050, %v4262, 0.0
    %v4388 = vadd.f32 %v4386, %v4387
    %v4389 = vsel %vm4050, %v4264, 0.0
    %v4390 = vadd.f32 %v4388, %v4389
    %v4391 = vsel %vm4050, %v4266, 0.0
    %v4392 = vadd.f32 %v4390, %v4391
    %v4393 = vsel %vm4050, %v4268, 0.0
    %v4394 = vsel %vm4050, %v4270, 0.0
    %v4395 = vadd.f32 %v4393, %v4394
    %v4396 = vsel %vm4050, %v4272, 0.0
    %v4397 = vadd.f32 %v4395, %v4396
    %v4398 = vsel %vm4050, %v4274, 0.0
    %v4399 = vadd.f32 %v4397, %v4398
    %v4400 = vsel %vm4050, %v4276, 0.0
    %v4401 = vadd.f32 %v4399, %v4400
    %v4402 = vsel %vm4050, %v4278, 0.0
    %v4403 = vadd.f32 %v4401, %v4402
    %v4404 = vsel %vm4050, %v4280, 0.0
    %v4405 = vadd.f32 %v4403, %v4404
    %v4406 = vsel %vm4050, %v4282, 0.0
    %v4407 = vadd.f32 %v4405, %v4406
    %v4408 = vsel %vm4050, %v4284, 0.0
    %v4409 = vsel %vm4050, %v4286, 0.0
    %v4410 = vadd.f32 %v4408, %v4409
    %v4411 = vsel %vm4050, %v4288, 0.0
    %v4412 = vadd.f32 %v4410, %v4411
    %v4413 = vsel %vm4050, %v4290, 0.0
    %v4414 = vadd.f32 %v4412, %v4413
    %v4415 = vsel %vm4050, %v4292, 0.0
    %v4416 = vadd.f32 %v4414, %v4415
    %v4417 = vsel %vm4050, %v4294, 0.0
    %v4418 = vadd.f32 %v4416, %v4417
    %v4419 = vsel %vm4050, %v4296, 0.0
    %v4420 = vadd.f32 %v4418, %v4419
    %v4421 = vsel %vm4050, %v4298, 0.0
    %v4422 = vadd.f32 %v4420, %v4421
    %v4423 = vsel %vm4050, %v4300, 0.0
    %v4424 = vsel %vm4050, %v4302, 0.0
    %v4425 = vadd.f32 %v4423, %v4424
    %v4426 = vsel %vm4050, %v4304, 0.0
    %v4427 = vadd.f32 %v4425, %v4426
    %v4428 = vsel %vm4050, %v4306, 0.0
    %v4429 = vadd.f32 %v4427, %v4428
    %v4430 = vsel %vm4050, %v4308, 0.0
    %v4431 = vadd.f32 %v4429, %v4430
    %v4432 = vsel %vm4050, %v4310, 0.0
    %v4433 = vadd.f32 %v4431, %v4432
    %v4434 = vsel %vm4050, %v4312, 0.0
    %v4435 = vadd.f32 %v4433, %v4434
    %v4436 = vsel %vm4050, %v4314, 0.0
    %v4437 = vadd.f32 %v4435, %v4436
    %v4438 = vsel %vm4050, %v4316, 0.0
    %v4439 = vsel %vm4050, %v4318, 0.0
    %v4440 = vadd.f32 %v4438, %v4439
    %v4441 = vsel %vm4050, %v4320, 0.0
    %v4442 = vadd.f32 %v4440, %v4441
    %v4443 = vsel %vm4050, %v4322, 0.0
    %v4444 = vadd.f32 %v4442, %v4443
    %v4445 = vsel %vm4050, %v4324, 0.0
    %v4446 = vadd.f32 %v4444, %v4445
    %v4447 = vsel %vm4050, %v4326, 0.0
    %v4448 = vadd.f32 %v4446, %v4447
    %v4449 = vsel %vm4050, %v4328, 0.0
    %v4450 = vadd.f32 %v4448, %v4449
    %v4451 = vsel %vm4050, %v4330, 0.0
    %v4452 = vadd.f32 %v4450, %v4451
    %v4453 = vsel %vm4050, %v4332, 0.0
    %v4454 = vsel %vm4050, %v4334, 0.0
    %v4455 = vadd.f32 %v4453, %v4454
    %v4456 = vsel %vm4050, %v4336, 0.0
    %v4457 = vadd.f32 %v4455, %v4456
    %v4458 = vsel %vm4050, %v4338, 0.0
    %v4459 = vadd.f32 %v4457, %v4458
    %v4460 = vsel %vm4050, %v4340, 0.0
    %v4461 = vadd.f32 %v4459, %v4460
    %v4462 = vsel %vm4050, %v4342, 0.0
    %v4463 = vadd.f32 %v4461, %v4462
    %v4464 = vsel %vm4050, %v4344, 0.0
    %v4465 = vadd.f32 %v4463, %v4464
    %v4466 = vsel %vm4050, %v4346, 0.0
    %v4467 = vadd.f32 %v4465, %v4466
    %v4468 = vsel %vm4050, %v4348, 0.0
    %v4469 = vsel %vm4050, %v4350, 0.0
    %v4470 = vadd.f32 %v4468, %v4469
    %v4471 = vsel %vm4050, %v4352, 0.0
    %v4472 = vadd.f32 %v4470, %v4471
    %v4473 = vsel %vm4050, %v4354, 0.0
    %v4474 = vadd.f32 %v4472, %v4473
    %v4475 = vsel %vm4050, %v4356, 0.0
    %v4476 = vadd.f32 %v4474, %v4475
    %v4477 = vsel %vm4050, %v4358, 0.0
    %v4478 = vadd.f32 %v4476, %v4477
    %v4479 = vsel %vm4050, %v4360, 0.0
    %v4480 = vadd.f32 %v4478, %v4479
    %v4481 = vsel %vm4050, %v4362, 0.0
    %v4482 = vadd.f32 %v4480, %v4481
    %v4483 = vrcp.pop %v4377
    %v4484 = vmul.f32 %v4236, %v4483
    %v4485 = vmul.f32 %v4238, %v4483
    %v4486 = vmul.f32 %v4240, %v4483
    %v4487 = vmul.f32 %v4242, %v4483
    %v4488 = vmul.f32 %v4244, %v4483
    %v4489 = vmul.f32 %v4246, %v4483
    %v4490 = vmul.f32 %v4248, %v4483
    %v4491 = vmul.f32 %v4250, %v4483
    %v4492 = vrcp.pop %v4392
    %v4493 = vmul.f32 %v4252, %v4492
    %v4494 = vmul.f32 %v4254, %v4492
    %v4495 = vmul.f32 %v4256, %v4492
    %v4496 = vmul.f32 %v4258, %v4492
    %v4497 = vmul.f32 %v4260, %v4492
    %v4498 = vmul.f32 %v4262, %v4492
    %v4499 = vmul.f32 %v4264, %v4492
    %v4500 = vmul.f32 %v4266, %v4492
    %v4501 = vrcp.pop %v4407
    %v4502 = vmul.f32 %v4268, %v4501
    %v4503 = vmul.f32 %v4270, %v4501
    %v4504 = vmul.f32 %v4272, %v4501
    %v4505 = vmul.f32 %v4274, %v4501
    %v4506 = vmul.f32 %v4276, %v4501
    %v4507 = vmul.f32 %v4278, %v4501
    %v4508 = vmul.f32 %v4280, %v4501
    %v4509 = vmul.f32 %v4282, %v4501
    %v4510 = vrcp.pop %v4422
    %v4511 = vmul.f32 %v4284, %v4510
    %v4512 = vmul.f32 %v4286, %v4510
    %v4513 = vmul.f32 %v4288, %v4510
    %v4514 = vmul.f32 %v4290, %v4510
    %v4515 = vmul.f32 %v4292, %v4510
    %v4516 = vmul.f32 %v4294, %v4510
    %v4517 = vmul.f32 %v4296, %v4510
    %v4518 = vmul.f32 %v4298, %v4510
    %v4519 = vrcp.pop %v4437
    %v4520 = vmul.f32 %v4300, %v4519
    %v4521 = vmul.f32 %v4302, %v4519
    %v4522 = vmul.f32 %v4304, %v4519
    %v4523 = vmul.f32 %v4306, %v4519
    %v4524 = vmul.f32 %v4308, %v4519
    %v4525 = vmul.f32 %v4310, %v4519
    %v4526 = vmul.f32 %v4312, %v4519
    %v4527 = vmul.f32 %v4314, %v4519
    %v4528 = vrcp.pop %v4452
    %v4529 = vmul.f32 %v4316, %v4528
    %v4530 = vmul.f32 %v4318, %v4528
    %v4531 = vmul.f32 %v4320, %v4528
    %v4532 = vmul.f32 %v4322, %v4528
    %v4533 = vmul.f32 %v4324, %v4528
    %v4534 = vmul.f32 %v4326, %v4528
    %v4535 = vmul.f32 %v4328, %v4528
    %v4536 = vmul.f32 %v4330, %v4528
    %v4537 = vrcp.pop %v4467
    %v4538 = vmul.f32 %v4332, %v4537
    %v4539 = vmul.f32 %v4334, %v4537
    %v4540 = vmul.f32 %v4336, %v4537
    %v4541 = vmul.f32 %v4338, %v4537
    %v4542 = vmul.f32 %v4340, %v4537
    %v4543 = vmul.f32 %v4342, %v4537
    %v4544 = vmul.f32 %v4344, %v4537
    %v4545 = vmul.f32 %v4346, %v4537
    %v4546 = vrcp.pop %v4482
    %v4547 = vmul.f32 %v4348, %v4546
    %v4548 = vmul.f32 %v4350, %v4546
    %v4549 = vmul.f32 %v4352, %v4546
    %v4550 = vmul.f32 %v4354, %v4546
    %v4551 = vmul.f32 %v4356, %v4546
    %v4552 = vmul.f32 %v4358, %v4546
    %v4553 = vmul.f32 %v4360, %v4546
    %v4554 = vmul.f32 %v4362, %v4546
    %v4555 = vpack.c.bf16 %v4484, %v4484
    %v4556 = vpack.c.bf16 %v4485, %v4485
    %v4557 = vpack.c.bf16 %v4486, %v4486
    %v4558 = vpack.c.bf16 %v4487, %v4487
    %v4559 = vpack.c.bf16 %v4488, %v4488
    %v4560 = vpack.c.bf16 %v4489, %v4489
    %v4561 = vpack.c.bf16 %v4490, %v4490
    %v4562 = vpack.c.bf16 %v4491, %v4491
    %v4563 = vpack.c.bf16 %v4493, %v4493
    %v4564 = vpack.c.bf16 %v4494, %v4494
    %v4565 = vpack.c.bf16 %v4495, %v4495
    %v4566 = vpack.c.bf16 %v4496, %v4496
    %v4567 = vpack.c.bf16 %v4497, %v4497
    %v4568 = vpack.c.bf16 %v4498, %v4498
    %v4569 = vpack.c.bf16 %v4499, %v4499
    %v4570 = vpack.c.bf16 %v4500, %v4500
    %v4571 = vpack.c.bf16 %v4502, %v4502
    %v4572 = vpack.c.bf16 %v4503, %v4503
    %v4573 = vpack.c.bf16 %v4504, %v4504
    %v4574 = vpack.c.bf16 %v4505, %v4505
    %v4575 = vpack.c.bf16 %v4506, %v4506
    %v4576 = vpack.c.bf16 %v4507, %v4507
    %v4577 = vpack.c.bf16 %v4508, %v4508
    %v4578 = vpack.c.bf16 %v4509, %v4509
    %v4579 = vpack.c.bf16 %v4511, %v4511
    %v4580 = vpack.c.bf16 %v4512, %v4512
    %v4581 = vpack.c.bf16 %v4513, %v4513
    %v4582 = vpack.c.bf16 %v4514, %v4514
    %v4583 = vpack.c.bf16 %v4515, %v4515
    %v4584 = vpack.c.bf16 %v4516, %v4516
    %v4585 = vpack.c.bf16 %v4517, %v4517
    %v4586 = vpack.c.bf16 %v4518, %v4518
    %v4587 = vpack.c.bf16 %v4520, %v4520
    %v4588 = vpack.c.bf16 %v4521, %v4521
    %v4589 = vpack.c.bf16 %v4522, %v4522
    %v4590 = vpack.c.bf16 %v4523, %v4523
    %v4591 = vpack.c.bf16 %v4524, %v4524
    %v4592 = vpack.c.bf16 %v4525, %v4525
    %v4593 = vpack.c.bf16 %v4526, %v4526
    %v4594 = vpack.c.bf16 %v4527, %v4527
    %v4595 = vpack.c.bf16 %v4529, %v4529
    %v4596 = vpack.c.bf16 %v4530, %v4530
    %v4597 = vpack.c.bf16 %v4531, %v4531
    %v4598 = vpack.c.bf16 %v4532, %v4532
    %v4599 = vpack.c.bf16 %v4533, %v4533
    %v4600 = vpack.c.bf16 %v4534, %v4534
    %v4601 = vpack.c.bf16 %v4535, %v4535
    %v4602 = vpack.c.bf16 %v4536, %v4536
    %v4603 = vpack.c.bf16 %v4538, %v4538
    %v4604 = vpack.c.bf16 %v4539, %v4539
    %v4605 = vpack.c.bf16 %v4540, %v4540
    %v4606 = vpack.c.bf16 %v4541, %v4541
    %v4607 = vpack.c.bf16 %v4542, %v4542
    %v4608 = vpack.c.bf16 %v4543, %v4543
    %v4609 = vpack.c.bf16 %v4544, %v4544
    %v4610 = vpack.c.bf16 %v4545, %v4545
    %v4611 = vpack.c.bf16 %v4547, %v4547
    %v4612 = vpack.c.bf16 %v4548, %v4548
    %v4613 = vpack.c.bf16 %v4549, %v4549
    %v4614 = vpack.c.bf16 %v4550, %v4550
    %v4615 = vpack.c.bf16 %v4551, %v4551
    %v4616 = vpack.c.bf16 %v4552, %v4552
    %v4617 = vpack.c.bf16 %v4553, %v4553
    %v4618 = vpack.c.bf16 %v4554, %v4554
    %v4620 = vsel %vm4050, %v4555, 0
    %vm4622 = vcmask 1043456
    %v4624 = vsel %vm4622, %v1041, 0
    %4626 = vmatprep.subr.bf16.mxu0 0
    %4627 = vmatpush1.bf16.msra.mxu0 %v4624
    %4628 = vmatprep.subr.bf16.mxu0 0
    %4629 = vmatpush1.bf16.msra.mxu0 0
    %4630 = vmatprep.subr.bf16.mxu0 0
    %4631 = vmatpush1.bf16.msra.mxu0 0
    %4632 = vmatprep.subr.bf16.mxu0 0
    %4633 = vmatpush1.bf16.msra.mxu0 0
    %4634 = vmatprep.subr.bf16.mxu0 0
    %4635 = vmatpush1.bf16.msra.mxu0 0
    %4636 = vmatprep.subr.bf16.mxu0 0
    %4637 = vmatpush1.bf16.msra.mxu0 0
    %4638 = vmatprep.subr.bf16.mxu0 0
    %4639 = vmatpush1.bf16.msra.mxu0 0
    %4640 = vmatprep.subr.bf16.mxu0 0
    %4641 = vmatpush1.bf16.msra.mxu0 0
    %4642 = vmatprep.subr.bf16.mxu0 0
    %4643 = vmatpush1.bf16.msra.mxu0 0
    %4644 = vmatprep.subr.bf16.mxu0 0
    %4645 = vmatpush1.bf16.msra.mxu0 0
    %4646 = vmatprep.subr.bf16.mxu0 0
    %4647 = vmatpush1.bf16.msra.mxu0 0
    %4648 = vmatprep.subr.bf16.mxu0 0
    %4649 = vmatpush1.bf16.msra.mxu0 0
    %4650 = vmatprep.subr.bf16.mxu0 0
    %4651 = vmatpush1.bf16.msra.mxu0 0
    %4652 = vmatprep.subr.bf16.mxu0 0
    %4653 = vmatpush1.bf16.msra.mxu0 0
    %4654 = vmatprep.subr.bf16.mxu0 0
    %4655 = vmatpush1.bf16.msra.mxu0 0
    %4656 = vmatprep.subr.bf16.mxu0 0
    %4657 = vmatpush1.bf16.msra.mxu0 0
    %4658 = vmatprep.mubr.bf16.mxu0 0
    %4659 = vmatmul.mubr.bf16.gmra.mrb[0].mxu0 %v4620
    %v4660 = vpop.f32.mrb[0].mxu0
    %v4661 = vadd.f32 0.0, %v4660
    %v4662 = vpop.f32.mrb[0].mxu0
    %v4663 = vpop.f32.mrb[0].mxu0
    %v4664 = vpop.f32.mrb[0].mxu0
    %4665 = vdwg.mxu0
    %v4667 = vsel %vm4050, %v4556, 0
    %v4670 = vsel %vm4622, %v1042, 0
    %4672 = vmatprep.subr.bf16.mxu0 0
    %4673 = vmatpush1.bf16.msra.mxu0 %v4670
    %4674 = vmatprep.subr.bf16.mxu0 0
    %4675 = vmatpush1.bf16.msra.mxu0 0
    %4676 = vmatprep.subr.bf16.mxu0 0
    %4677 = vmatpush1.bf16.msra.mxu0 0
    %4678 = vmatprep.subr.bf16.mxu0 0
    %4679 = vmatpush1.bf16.msra.mxu0 0
    %4680 = vmatprep.subr.bf16.mxu0 0
    %4681 = vmatpush1.bf16.msra.mxu0 0
    %4682 = vmatprep.subr.bf16.mxu0 0
    %4683 = vmatpush1.bf16.msra.mxu0 0
    %4684 = vmatprep.subr.bf16.mxu0 0
    %4685 = vmatpush1.bf16.msra.mxu0 0
    %4686 = vmatprep.subr.bf16.mxu0 0
    %4687 = vmatpush1.bf16.msra.mxu0 0
    %4688 = vmatprep.subr.bf16.mxu0 0
    %4689 = vmatpush1.bf16.msra.mxu0 0
    %4690 = vmatprep.subr.bf16.mxu0 0
    %4691 = vmatpush1.bf16.msra.mxu0 0
    %4692 = vmatprep.subr.bf16.mxu0 0
    %4693 = vmatpush1.bf16.msra.mxu0 0
    %4694 = vmatprep.subr.bf16.mxu0 0
    %4695 = vmatpush1.bf16.msra.mxu0 0
    %4696 = vmatprep.subr.bf16.mxu0 0
    %4697 = vmatpush1.bf16.msra.mxu0 0
    %4698 = vmatprep.subr.bf16.mxu0 0
    %4699 = vmatpush1.bf16.msra.mxu0 0
    %4700 = vmatprep.subr.bf16.mxu0 0
    %4701 = vmatpush1.bf16.msra.mxu0 0
    %4702 = vmatprep.subr.bf16.mxu0 0
    %4703 = vmatpush1.bf16.msra.mxu0 0
    %4704 = vmatprep.mubr.bf16.mxu0 0
    %4705 = vmatmul.mubr.bf16.gmra.mrb[0].mxu0 %v4667
    %v4706 = vpop.f32.mrb[0].mxu0
    %v4707 = vadd.f32 0.0, %v4706
    %v4708 = vpop.f32.mrb[0].mxu0
    %v4709 = vpop.f32.mrb[0].mxu0
    %v4710 = vpop.f32.mrb[0].mxu0
    %4711 = vdwg.mxu0
    %v4713 = vsel %vm4050, %v4557, 0
    %v4716 = vsel %vm4622, %v1043, 0
    %4718 = vmatprep.subr.bf16.mxu0 0
    %4719 = vmatpush1.bf16.msra.mxu0 %v4716
    %4720 = vmatprep.subr.bf16.mxu0 0
    %4721 = vmatpush1.bf16.msra.mxu0 0
    %4722 = vmatprep.subr.bf16.mxu0 0
    %4723 = vmatpush1.bf16.msra.mxu0 0
    %4724 = vmatprep.subr.bf16.mxu0 0
    %4725 = vmatpush1.bf16.msra.mxu0 0
    %4726 = vmatprep.subr.bf16.mxu0 0
    %4727 = vmatpush1.bf16.msra.mxu0 0
    %4728 = vmatprep.subr.bf16.mxu0 0
    %4729 = vmatpush1.bf16.msra.mxu0 0
    %4730 = vmatprep.subr.bf16.mxu0 0
    %4731 = vmatpush1.bf16.msra.mxu0 0
    %4732 = vmatprep.subr.bf16.mxu0 0
    %4733 = vmatpush1.bf16.msra.mxu0 0
    %4734 = vmatprep.subr.bf16.mxu0 0
    %4735 = vmatpush1.bf16.msra.mxu0 0
    %4736 = vmatprep.subr.bf16.mxu0 0
    %4737 = vmatpush1.bf16.msra.mxu0 0
    %4738 = vmatprep.subr.bf16.mxu0 0
    %4739 = vmatpush1.bf16.msra.mxu0 0
    %4740 = vmatprep.subr.bf16.mxu0 0
    %4741 = vmatpush1.bf16.msra.mxu0 0
    %4742 = vmatprep.subr.bf16.mxu0 0
    %4743 = vmatpush1.bf16.msra.mxu0 0
    %4744 = vmatprep.subr.bf16.mxu0 0
    %4745 = vmatpush1.bf16.msra.mxu0 0
    %4746 = vmatprep.subr.bf16.mxu0 0
    %4747 = vmatpush1.bf16.msra.mxu0 0
    %4748 = vmatprep.subr.bf16.mxu0 0
    %4749 = vmatpush1.bf16.msra.mxu0 0
    %4750 = vmatprep.mubr.bf16.mxu0 0
    %4751 = vmatmul.mubr.bf16.gmra.mrb[0].mxu0 %v4713
    %v4752 = vpop.f32.mrb[0].mxu0
    %v4753 = vadd.f32 0.0, %v4752
    %v4754 = vpop.f32.mrb[0].mxu0
    %v4755 = vpop.f32.mrb[0].mxu0
    %v4756 = vpop.f32.mrb[0].mxu0
    %4757 = vdwg.mxu0
    %v4759 = vsel %vm4050, %v4558, 0
    %v4762 = vsel %vm4622, %v1044, 0
    %4764 = vmatprep.subr.bf16.mxu0 0
    %4765 = vmatpush1.bf16.msra.mxu0 %v4762
    %4766 = vmatprep.subr.bf16.mxu0 0
    %4767 = vmatpush1.bf16.msra.mxu0 0
    %4768 = vmatprep.subr.bf16.mxu0 0
    %4769 = vmatpush1.bf16.msra.mxu0 0
    %4770 = vmatprep.subr.bf16.mxu0 0
    %4771 = vmatpush1.bf16.msra.mxu0 0
    %4772 = vmatprep.subr.bf16.mxu0 0
    %4773 = vmatpush1.bf16.msra.mxu0 0
    %4774 = vmatprep.subr.bf16.mxu0 0
    %4775 = vmatpush1.bf16.msra.mxu0 0
    %4776 = vmatprep.subr.bf16.mxu0 0
    %4777 = vmatpush1.bf16.msra.mxu0 0
    %4778 = vmatprep.subr.bf16.mxu0 0
    %4779 = vmatpush1.bf16.msra.mxu0 0
    %4780 = vmatprep.subr.bf16.mxu0 0
    %4781 = vmatpush1.bf16.msra.mxu0 0
    %4782 = vmatprep.subr.bf16.mxu0 0
    %4783 = vmatpush1.bf16.msra.mxu0 0
    %4784 = vmatprep.subr.bf16.mxu0 0
    %4785 = vmatpush1.bf16.msra.mxu0 0
    %4786 = vmatprep.subr.bf16.mxu0 0
    %4787 = vmatpush1.bf16.msra.mxu0 0
    %4788 = vmatprep.subr.bf16.mxu0 0
    %4789 = vmatpush1.bf16.msra.mxu0 0
    %4790 = vmatprep.subr.bf16.mxu0 0
    %4791 = vmatpush1.bf16.msra.mxu0 0
    %4792 = vmatprep.subr.bf16.mxu0 0
    %4793 = vmatpush1.bf16.msra.mxu0 0
    %4794 = vmatprep.subr.bf16.mxu0 0
    %4795 = vmatpush1.bf16.msra.mxu0 0
    %4796 = vmatprep.mubr.bf16.mxu0 0
    %4797 = vmatmul.mubr.bf16.gmra.mrb[0].mxu0 %v4759
    %v4798 = vpop.f32.mrb[0].mxu0
    %v4799 = vadd.f32 0.0, %v4798
    %v4800 = vpop.f32.mrb[0].mxu0
    %v4801 = vpop.f32.mrb[0].mxu0
    %v4802 = vpop.f32.mrb[0].mxu0
    %4803 = vdwg.mxu0
    %v4805 = vsel %vm4050, %v4559, 0
    %v4808 = vsel %vm4622, %v1045, 0
    %4810 = vmatprep.subr.bf16.mxu0 0
    %4811 = vmatpush1.bf16.msra.mxu0 %v4808
    %4812 = vmatprep.subr.bf16.mxu0 0
    %4813 = vmatpush1.bf16.msra.mxu0 0
    %4814 = vmatprep.subr.bf16.mxu0 0
    %4815 = vmatpush1.bf16.msra.mxu0 0
    %4816 = vmatprep.subr.bf16.mxu0 0
    %4817 = vmatpush1.bf16.msra.mxu0 0
    %4818 = vmatprep.subr.bf16.mxu0 0
    %4819 = vmatpush1.bf16.msra.mxu0 0
    %4820 = vmatprep.subr.bf16.mxu0 0
    %4821 = vmatpush1.bf16.msra.mxu0 0
    %4822 = vmatprep.subr.bf16.mxu0 0
    %4823 = vmatpush1.bf16.msra.mxu0 0
    %4824 = vmatprep.subr.bf16.mxu0 0
    %4825 = vmatpush1.bf16.msra.mxu0 0
    %4826 = vmatprep.subr.bf16.mxu0 0
    %4827 = vmatpush1.bf16.msra.mxu0 0
    %4828 = vmatprep.subr.bf16.mxu0 0
    %4829 = vmatpush1.bf16.msra.mxu0 0
    %4830 = vmatprep.subr.bf16.mxu0 0
    %4831 = vmatpush1.bf16.msra.mxu0 0
    %4832 = vmatprep.subr.bf16.mxu0 0
    %4833 = vmatpush1.bf16.msra.mxu0 0
    %4834 = vmatprep.subr.bf16.mxu0 0
    %4835 = vmatpush1.bf16.msra.mxu0 0
    %4836 = vmatprep.subr.bf16.mxu0 0
    %4837 = vmatpush1.bf16.msra.mxu0 0
    %4838 = vmatprep.subr.bf16.mxu0 0
    %4839 = vmatpush1.bf16.msra.mxu0 0
    %4840 = vmatprep.subr.bf16.mxu0 0
    %4841 = vmatpush1.bf16.msra.mxu0 0
    %4842 = vmatprep.mubr.bf16.mxu0 0
    %4843 = vmatmul.mubr.bf16.gmra.mrb[0].mxu0 %v4805
    %v4844 = vpop.f32.mrb[0].mxu0
    %v4845 = vadd.f32 0.0, %v4844
    %v4846 = vpop.f32.mrb[0].mxu0
    %v4847 = vpop.f32.mrb[0].mxu0
    %v4848 = vpop.f32.mrb[0].mxu0
    %4849 = vdwg.mxu0
    %v4851 = vsel %vm4050, %v4560, 0
    %v4854 = vsel %vm4622, %v1046, 0
    %4856 = vmatprep.subr.bf16.mxu0 0
    %4857 = vmatpush1.bf16.msra.mxu0 %v4854
    %4858 = vmatprep.subr.bf16.mxu0 0
    %4859 = vmatpush1.bf16.msra.mxu0 0
    %4860 = vmatprep.subr.bf16.mxu0 0
    %4861 = vmatpush1.bf16.msra.mxu0 0
    %4862 = vmatprep.subr.bf16.mxu0 0
    %4863 = vmatpush1.bf16.msra.mxu0 0
    %4864 = vmatprep.subr.bf16.mxu0 0
    %4865 = vmatpush1.bf16.msra.mxu0 0
    %4866 = vmatprep.subr.bf16.mxu0 0
    %4867 = vmatpush1.bf16.msra.mxu0 0
    %4868 = vmatprep.subr.bf16.mxu0 0
    %4869 = vmatpush1.bf16.msra.mxu0 0
    %4870 = vmatprep.subr.bf16.mxu0 0
    %4871 = vmatpush1.bf16.msra.mxu0 0
    %4872 = vmatprep.subr.bf16.mxu0 0
    %4873 = vmatpush1.bf16.msra.mxu0 0
    %4874 = vmatprep.subr.bf16.mxu0 0
    %4875 = vmatpush1.bf16.msra.mxu0 0
    %4876 = vmatprep.subr.bf16.mxu0 0
    %4877 = vmatpush1.bf16.msra.mxu0 0
    %4878 = vmatprep.subr.bf16.mxu0 0
    %4879 = vmatpush1.bf16.msra.mxu0 0
    %4880 = vmatprep.subr.bf16.mxu0 0
    %4881 = vmatpush1.bf16.msra.mxu0 0
    %4882 = vmatprep.subr.bf16.mxu0 0
    %4883 = vmatpush1.bf16.msra.mxu0 0
    %4884 = vmatprep.subr.bf16.mxu0 0
    %4885 = vmatpush1.bf16.msra.mxu0 0
    %4886 = vmatprep.subr.bf16.mxu0 0
    %4887 = vmatpush1.bf16.msra.mxu0 0
    %4888 = vmatprep.mubr.bf16.mxu0 0
    %4889 = vmatmul.mubr.bf16.gmra.mrb[0].mxu0 %v4851
    %v4890 = vpop.f32.mrb[0].mxu0
    %v4891 = vadd.f32 0.0, %v4890
    %v4892 = vpop.f32.mrb[0].mxu0
    %v4893 = vpop.f32.mrb[0].mxu0
    %v4894 = vpop.f32.mrb[0].mxu0
    %4895 = vdwg.mxu0
    %v4897 = vsel %vm4050, %v4561, 0
    %v4900 = vsel %vm4622, %v1047, 0
    %4902 = vmatprep.subr.bf16.mxu0 0
    %4903 = vmatpush1.bf16.msra.mxu0 %v4900
    %4904 = vmatprep.subr.bf16.mxu0 0
    %4905 = vmatpush1.bf16.msra.mxu0 0
    %4906 = vmatprep.subr.bf16.mxu0 0
    %4907 = vmatpush1.bf16.msra.mxu0 0
    %4908 = vmatprep.subr.bf16.mxu0 0
    %4909 = vmatpush1.bf16.msra.mxu0 0
    %4910 = vmatprep.subr.bf16.mxu0 0
    %4911 = vmatpush1.bf16.msra.mxu0 0
    %4912 = vmatprep.subr.bf16.mxu0 0
    %4913 = vmatpush1.bf16.msra.mxu0 0
    %4914 = vmatprep.subr.bf16.mxu0 0
    %4915 = vmatpush1.bf16.msra.mxu0 0
    %4916 = vmatprep.subr.bf16.mxu0 0
    %4917 = vmatpush1.bf16.msra.mxu0 0
    %4918 = vmatprep.subr.bf16.mxu0 0
    %4919 = vmatpush1.bf16.msra.mxu0 0
    %4920 = vmatprep.subr.bf16.mxu0 0
    %4921 = vmatpush1.bf16.msra.mxu0 0
    %4922 = vmatprep.subr.bf16.mxu0 0
    %4923 = vmatpush1.bf16.msra.mxu0 0
    %4924 = vmatprep.subr.bf16.mxu0 0
    %4925 = vmatpush1.bf16.msra.mxu0 0
    %4926 = vmatprep.subr.bf16.mxu0 0
    %4927 = vmatpush1.bf16.msra.mxu0 0
    %4928 = vmatprep.subr.bf16.mxu0 0
    %4929 = vmatpush1.bf16.msra.mxu0 0
    %4930 = vmatprep.subr.bf16.mxu0 0
    %4931 = vmatpush1.bf16.msra.mxu0 0
    %4932 = vmatprep.subr.bf16.mxu0 0
    %4933 = vmatpush1.bf16.msra.mxu0 0
    %4934 = vmatprep.mubr.bf16.mxu0 0
    %4935 = vmatmul.mubr.bf16.gmra.mrb[0].mxu0 %v4897
    %v4936 = vpop.f32.mrb[0].mxu0
    %v4937 = vadd.f32 0.0, %v4936
    %v4938 = vpop.f32.mrb[0].mxu0
    %v4939 = vpop.f32.mrb[0].mxu0
    %v4940 = vpop.f32.mrb[0].mxu0
    %4941 = vdwg.mxu0
    %v4943 = vsel %vm4050, %v4562, 0
    %v4946 = vsel %vm4622, %v1048, 0
    %4948 = vmatprep.subr.bf16.mxu0 0
    %4949 = vmatpush1.bf16.msra.mxu0 %v4946
    %4950 = vmatprep.subr.bf16.mxu0 0
    %4951 = vmatpush1.bf16.msra.mxu0 0
    %4952 = vmatprep.subr.bf16.mxu0 0
    %4953 = vmatpush1.bf16.msra.mxu0 0
    %4954 = vmatprep.subr.bf16.mxu0 0
    %4955 = vmatpush1.bf16.msra.mxu0 0
    %4956 = vmatprep.subr.bf16.mxu0 0
    %4957 = vmatpush1.bf16.msra.mxu0 0
    %4958 = vmatprep.subr.bf16.mxu0 0
    %4959 = vmatpush1.bf16.msra.mxu0 0
    %4960 = vmatprep.subr.bf16.mxu0 0
    %4961 = vmatpush1.bf16.msra.mxu0 0
    %4962 = vmatprep.subr.bf16.mxu0 0
    %4963 = vmatpush1.bf16.msra.mxu0 0
    %4964 = vmatprep.subr.bf16.mxu0 0
    %4965 = vmatpush1.bf16.msra.mxu0 0
    %4966 = vmatprep.subr.bf16.mxu0 0
    %4967 = vmatpush1.bf16.msra.mxu0 0
    %4968 = vmatprep.subr.bf16.mxu0 0
    %4969 = vmatpush1.bf16.msra.mxu0 0
    %4970 = vmatprep.subr.bf16.mxu0 0
    %4971 = vmatpush1.bf16.msra.mxu0 0
    %4972 = vmatprep.subr.bf16.mxu0 0
    %4973 = vmatpush1.bf16.msra.mxu0 0
    %4974 = vmatprep.subr.bf16.mxu0 0
    %4975 = vmatpush1.bf16.msra.mxu0 0
    %4976 = vmatprep.subr.bf16.mxu0 0
    %4977 = vmatpush1.bf16.msra.mxu0 0
    %4978 = vmatprep.subr.bf16.mxu0 0
    %4979 = vmatpush1.bf16.msra.mxu0 0
    %4980 = vmatprep.mubr.bf16.mxu0 0
    %4981 = vmatmul.mubr.bf16.gmra.mrb[0].mxu0 %v4943
    %v4982 = vpop.f32.mrb[0].mxu0
    %v4983 = vadd.f32 0.0, %v4982
    %v4984 = vpop.f32.mrb[0].mxu0
    %v4985 = vpop.f32.mrb[0].mxu0
    %v4986 = vpop.f32.mrb[0].mxu0
    %4987 = vdwg.mxu0
    %v4989 = vsel %vm4050, %v4563, 0
    %v4992 = vsel %vm4622, %v1049, 0
    %4994 = vmatprep.subr.bf16.mxu0 0
    %4995 = vmatpush1.bf16.msra.mxu0 %v4992
    %4996 = vmatprep.subr.bf16.mxu0 0
    %4997 = vmatpush1.bf16.msra.mxu0 0
    %4998 = vmatprep.subr.bf16.mxu0 0
    %4999 = vmatpush1.bf16.msra.mxu0 0
    %5000 = vmatprep.subr.bf16.mxu0 0
    %5001 = vmatpush1.bf16.msra.mxu0 0
    %5002 = vmatprep.subr.bf16.mxu0 0
    %5003 = vmatpush1.bf16.msra.mxu0 0
    %5004 = vmatprep.subr.bf16.mxu0 0
    %5005 = vmatpush1.bf16.msra.mxu0 0
    %5006 = vmatprep.subr.bf16.mxu0 0
    %5007 = vmatpush1.bf16.msra.mxu0 0
    %5008 = vmatprep.subr.bf16.mxu0 0
    %5009 = vmatpush1.bf16.msra.mxu0 0
    %5010 = vmatprep.subr.bf16.mxu0 0
    %5011 = vmatpush1.bf16.msra.mxu0 0
    %5012 = vmatprep.subr.bf16.mxu0 0
    %5013 = vmatpush1.bf16.msra.mxu0 0
    %5014 = vmatprep.subr.bf16.mxu0 0
    %5015 = vmatpush1.bf16.msra.mxu0 0
    %5016 = vmatprep.subr.bf16.mxu0 0
    %5017 = vmatpush1.bf16.msra.mxu0 0
    %5018 = vmatprep.subr.bf16.mxu0 0
    %5019 = vmatpush1.bf16.msra.mxu0 0
    %5020 = vmatprep.subr.bf16.mxu0 0
    %5021 = vmatpush1.bf16.msra.mxu0 0
    %5022 = vmatprep.subr.bf16.mxu0 0
    %5023 = vmatpush1.bf16.msra.mxu0 0
    %5024 = vmatprep.subr.bf16.mxu0 0
    %5025 = vmatpush1.bf16.msra.mxu0 0
    %5026 = vmatprep.mubr.bf16.mxu0 0
    %5027 = vmatmul.mubr.bf16.gmra.mrb[0].mxu0 %v4989
    %v5028 = vpop.f32.mrb[0].mxu0
    %v5029 = vadd.f32 0.0, %v5028
    %v5030 = vpop.f32.mrb[0].mxu0
    %v5031 = vpop.f32.mrb[0].mxu0
    %v5032 = vpop.f32.mrb[0].mxu0
    %5033 = vdwg.mxu0
    %v5035 = vsel %vm4050, %v4564, 0
    %v5038 = vsel %vm4622, %v1050, 0
    %5040 = vmatprep.subr.bf16.mxu0 0
    %5041 = vmatpush1.bf16.msra.mxu0 %v5038
    %5042 = vmatprep.subr.bf16.mxu0 0
    %5043 = vmatpush1.bf16.msra.mxu0 0
    %5044 = vmatprep.subr.bf16.mxu0 0
    %5045 = vmatpush1.bf16.msra.mxu0 0
    %5046 = vmatprep.subr.bf16.mxu0 0
    %5047 = vmatpush1.bf16.msra.mxu0 0
    %5048 = vmatprep.subr.bf16.mxu0 0
    %5049 = vmatpush1.bf16.msra.mxu0 0
    %5050 = vmatprep.subr.bf16.mxu0 0
    %5051 = vmatpush1.bf16.msra.mxu0 0
    %5052 = vmatprep.subr.bf16.mxu0 0
    %5053 = vmatpush1.bf16.msra.mxu0 0
    %5054 = vmatprep.subr.bf16.mxu0 0
    %5055 = vmatpush1.bf16.msra.mxu0 0
    %5056 = vmatprep.subr.bf16.mxu0 0
    %5057 = vmatpush1.bf16.msra.mxu0 0
    %5058 = vmatprep.subr.bf16.mxu0 0
    %5059 = vmatpush1.bf16.msra.mxu0 0
    %5060 = vmatprep.subr.bf16.mxu0 0
    %5061 = vmatpush1.bf16.msra.mxu0 0
    %5062 = vmatprep.subr.bf16.mxu0 0
    %5063 = vmatpush1.bf16.msra.mxu0 0
    %5064 = vmatprep.subr.bf16.mxu0 0
    %5065 = vmatpush1.bf16.msra.mxu0 0
    %5066 = vmatprep.subr.bf16.mxu0 0
    %5067 = vmatpush1.bf16.msra.mxu0 0
    %5068 = vmatprep.subr.bf16.mxu0 0
    %5069 = vmatpush1.bf16.msra.mxu0 0
    %5070 = vmatprep.subr.bf16.mxu0 0
    %5071 = vmatpush1.bf16.msra.mxu0 0
    %5072 = vmatprep.mubr.bf16.mxu0 0
    %5073 = vmatmul.mubr.bf16.gmra.mrb[0].mxu0 %v5035
    %v5074 = vpop.f32.mrb[0].mxu0
    %v5075 = vadd.f32 0.0, %v5074
    %v5076 = vpop.f32.mrb[0].mxu0
    %v5077 = vpop.f32.mrb[0].mxu0
    %v5078 = vpop.f32.mrb[0].mxu0
    %5079 = vdwg.mxu0
    %v5081 = vsel %vm4050, %v4565, 0
    %v5084 = vsel %vm4622, %v1051, 0
    %5086 = vmatprep.subr.bf16.mxu0 0
    %5087 = vmatpush1.bf16.msra.mxu0 %v5084
    %5088 = vmatprep.subr.bf16.mxu0 0
    %5089 = vmatpush1.bf16.msra.mxu0 0
    %5090 = vmatprep.subr.bf16.mxu0 0
    %5091 = vmatpush1.bf16.msra.mxu0 0
    %5092 = vmatprep.subr.bf16.mxu0 0
    %5093 = vmatpush1.bf16.msra.mxu0 0
    %5094 = vmatprep.subr.bf16.mxu0 0
    %5095 = vmatpush1.bf16.msra.mxu0 0
    %5096 = vmatprep.subr.bf16.mxu0 0
    %5097 = vmatpush1.bf16.msra.mxu0 0
    %5098 = vmatprep.subr.bf16.mxu0 0
    %5099 = vmatpush1.bf16.msra.mxu0 0
    %5100 = vmatprep.subr.bf16.mxu0 0
    %5101 = vmatpush1.bf16.msra.mxu0 0
    %5102 = vmatprep.subr.bf16.mxu0 0
    %5103 = vmatpush1.bf16.msra.mxu0 0
    %5104 = vmatprep.subr.bf16.mxu0 0
    %5105 = vmatpush1.bf16.msra.mxu0 0
    %5106 = vmatprep.subr.bf16.mxu0 0
    %5107 = vmatpush1.bf16.msra.mxu0 0
    %5108 = vmatprep.subr.bf16.mxu0 0
    %5109 = vmatpush1.bf16.msra.mxu0 0
    %5110 = vmatprep.subr.bf16.mxu0 0
    %5111 = vmatpush1.bf16.msra.mxu0 0
    %5112 = vmatprep.subr.bf16.mxu0 0
    %5113 = vmatpush1.bf16.msra.mxu0 0
    %5114 = vmatprep.subr.bf16.mxu0 0
    %5115 = vmatpush1.bf16.msra.mxu0 0
    %5116 = vmatprep.subr.bf16.mxu0 0
    %5117 = vmatpush1.bf16.msra.mxu0 0
    %5118 = vmatprep.mubr.bf16.mxu0 0
    %5119 = vmatmul.mubr.bf16.gmra.mrb[0].mxu0 %v5081
    %v5120 = vpop.f32.mrb[0].mxu0
    %v5121 = vadd.f32 0.0, %v5120
    %v5122 = vpop.f32.mrb[0].mxu0
    %v5123 = vpop.f32.mrb[0].mxu0
    %v5124 = vpop.f32.mrb[0].mxu0
    %5125 = vdwg.mxu0
    %v5127 = vsel %vm4050, %v4566, 0
    %v5130 = vsel %vm4622, %v1052, 0
    %5132 = vmatprep.subr.bf16.mxu0 0
    %5133 = vmatpush1.bf16.msra.mxu0 %v5130
    %5134 = vmatprep.subr.bf16.mxu0 0
    %5135 = vmatpush1.bf16.msra.mxu0 0
    %5136 = vmatprep.subr.bf16.mxu0 0
    %5137 = vmatpush1.bf16.msra.mxu0 0
    %5138 = vmatprep.subr.bf16.mxu0 0
    %5139 = vmatpush1.bf16.msra.mxu0 0
    %5140 = vmatprep.subr.bf16.mxu0 0
    %5141 = vmatpush1.bf16.msra.mxu0 0
    %5142 = vmatprep.subr.bf16.mxu0 0
    %5143 = vmatpush1.bf16.msra.mxu0 0
    %5144 = vmatprep.subr.bf16.mxu0 0
    %5145 = vmatpush1.bf16.msra.mxu0 0
    %5146 = vmatprep.subr.bf16.mxu0 0
    %5147 = vmatpush1.bf16.msra.mxu0 0
    %5148 = vmatprep.subr.bf16.mxu0 0
    %5149 = vmatpush1.bf16.msra.mxu0 0
    %5150 = vmatprep.subr.bf16.mxu0 0
    %5151 = vmatpush1.bf16.msra.mxu0 0
    %5152 = vmatprep.subr.bf16.mxu0 0
    %5153 = vmatpush1.bf16.msra.mxu0 0
    %5154 = vmatprep.subr.bf16.mxu0 0
    %5155 = vmatpush1.bf16.msra.mxu0 0
    %5156 = vmatprep.subr.bf16.mxu0 0
    %5157 = vmatpush1.bf16.msra.mxu0 0
    %5158 = vmatprep.subr.bf16.mxu0 0
    %5159 = vmatpush1.bf16.msra.mxu0 0
    %5160 = vmatprep.subr.bf16.mxu0 0
    %5161 = vmatpush1.bf16.msra.mxu0 0
    %5162 = vmatprep.subr.bf16.mxu0 0
    %5163 = vmatpush1.bf16.msra.mxu0 0
    %5164 = vmatprep.mubr.bf16.mxu0 0
    %5165 = vmatmul.mubr.bf16.gmra.mrb[0].mxu0 %v5127
    %v5166 = vpop.f32.mrb[0].mxu0
    %v5167 = vadd.f32 0.0, %v5166
    %v5168 = vpop.f32.mrb[0].mxu0
    %v5169 = vpop.f32.mrb[0].mxu0
    %v5170 = vpop.f32.mrb[0].mxu0
    %5171 = vdwg.mxu0
    %v5173 = vsel %vm4050, %v4567, 0
    %v5176 = vsel %vm4622, %v1053, 0
    %5178 = vmatprep.subr.bf16.mxu0 0
    %5179 = vmatpush1.bf16.msra.mxu0 %v5176
    %5180 = vmatprep.subr.bf16.mxu0 0
    %5181 = vmatpush1.bf16.msra.mxu0 0
    %5182 = vmatprep.subr.bf16.mxu0 0
    %5183 = vmatpush1.bf16.msra.mxu0 0
    %5184 = vmatprep.subr.bf16.mxu0 0
    %5185 = vmatpush1.bf16.msra.mxu0 0
    %5186 = vmatprep.subr.bf16.mxu0 0
    %5187 = vmatpush1.bf16.msra.mxu0 0
    %5188 = vmatprep.subr.bf16.mxu0 0
    %5189 = vmatpush1.bf16.msra.mxu0 0
    %5190 = vmatprep.subr.bf16.mxu0 0
    %5191 = vmatpush1.bf16.msra.mxu0 0
    %5192 = vmatprep.subr.bf16.mxu0 0
    %5193 = vmatpush1.bf16.msra.mxu0 0
    %5194 = vmatprep.subr.bf16.mxu0 0
    %5195 = vmatpush1.bf16.msra.mxu0 0
    %5196 = vmatprep.subr.bf16.mxu0 0
    %5197 = vmatpush1.bf16.msra.mxu0 0
    %5198 = vmatprep.subr.bf16.mxu0 0
    %5199 = vmatpush1.bf16.msra.mxu0 0
    %5200 = vmatprep.subr.bf16.mxu0 0
    %5201 = vmatpush1.bf16.msra.mxu0 0
    %5202 = vmatprep.subr.bf16.mxu0 0
    %5203 = vmatpush1.bf16.msra.mxu0 0
    %5204 = vmatprep.subr.bf16.mxu0 0
    %5205 = vmatpush1.bf16.msra.mxu0 0
    %5206 = vmatprep.subr.bf16.mxu0 0
    %5207 = vmatpush1.bf16.msra.mxu0 0
    %5208 = vmatprep.subr.bf16.mxu0 0
    %5209 = vmatpush1.bf16.msra.mxu0 0
    %5210 = vmatprep.mubr.bf16.mxu0 0
    %5211 = vmatmul.mubr.bf16.gmra.mrb[0].mxu0 %v5173
    %v5212 = vpop.f32.mrb[0].mxu0
    %v5213 = vadd.f32 0.0, %v5212
    %v5214 = vpop.f32.mrb[0].mxu0
    %v5215 = vpop.f32.mrb[0].mxu0
    %v5216 = vpop.f32.mrb[0].mxu0
    %5217 = vdwg.mxu0
    %v5219 = vsel %vm4050, %v4568, 0
    %v5222 = vsel %vm4622, %v1054, 0
    %5224 = vmatprep.subr.bf16.mxu0 0
    %5225 = vmatpush1.bf16.msra.mxu0 %v5222
    %5226 = vmatprep.subr.bf16.mxu0 0
    %5227 = vmatpush1.bf16.msra.mxu0 0
    %5228 = vmatprep.subr.bf16.mxu0 0
    %5229 = vmatpush1.bf16.msra.mxu0 0
    %5230 = vmatprep.subr.bf16.mxu0 0
    %5231 = vmatpush1.bf16.msra.mxu0 0
    %5232 = vmatprep.subr.bf16.mxu0 0
    %5233 = vmatpush1.bf16.msra.mxu0 0
    %5234 = vmatprep.subr.bf16.mxu0 0
    %5235 = vmatpush1.bf16.msra.mxu0 0
    %5236 = vmatprep.subr.bf16.mxu0 0
    %5237 = vmatpush1.bf16.msra.mxu0 0
    %5238 = vmatprep.subr.bf16.mxu0 0
    %5239 = vmatpush1.bf16.msra.mxu0 0
    %5240 = vmatprep.subr.bf16.mxu0 0
    %5241 = vmatpush1.bf16.msra.mxu0 0
    %5242 = vmatprep.subr.bf16.mxu0 0
    %5243 = vmatpush1.bf16.msra.mxu0 0
    %5244 = vmatprep.subr.bf16.mxu0 0
    %5245 = vmatpush1.bf16.msra.mxu0 0
    %5246 = vmatprep.subr.bf16.mxu0 0
    %5247 = vmatpush1.bf16.msra.mxu0 0
    %5248 = vmatprep.subr.bf16.mxu0 0
    %5249 = vmatpush1.bf16.msra.mxu0 0
    %5250 = vmatprep.subr.bf16.mxu0 0
    %5251 = vmatpush1.bf16.msra.mxu0 0
    %5252 = vmatprep.subr.bf16.mxu0 0
    %5253 = vmatpush1.bf16.msra.mxu0 0
    %5254 = vmatprep.subr.bf16.mxu0 0
    %5255 = vmatpush1.bf16.msra.mxu0 0
    %5256 = vmatprep.mubr.bf16.mxu0 0
    %5257 = vmatmul.mubr.bf16.gmra.mrb[0].mxu0 %v5219
    %v5258 = vpop.f32.mrb[0].mxu0
    %v5259 = vadd.f32 0.0, %v5258
    %v5260 = vpop.f32.mrb[0].mxu0
    %v5261 = vpop.f32.mrb[0].mxu0
    %v5262 = vpop.f32.mrb[0].mxu0
    %5263 = vdwg.mxu0
    %v5265 = vsel %vm4050, %v4569, 0
    %v5268 = vsel %vm4622, %v1055, 0
    %5270 = vmatprep.subr.bf16.mxu0 0
    %5271 = vmatpush1.bf16.msra.mxu0 %v5268
    %5272 = vmatprep.subr.bf16.mxu0 0
    %5273 = vmatpush1.bf16.msra.mxu0 0
    %5274 = vmatprep.subr.bf16.mxu0 0
    %5275 = vmatpush1.bf16.msra.mxu0 0
    %5276 = vmatprep.subr.bf16.mxu0 0
    %5277 = vmatpush1.bf16.msra.mxu0 0
    %5278 = vmatprep.subr.bf16.mxu0 0
    %5279 = vmatpush1.bf16.msra.mxu0 0
    %5280 = vmatprep.subr.bf16.mxu0 0
    %5281 = vmatpush1.bf16.msra.mxu0 0
    %5282 = vmatprep.subr.bf16.mxu0 0
    %5283 = vmatpush1.bf16.msra.mxu0 0
    %5284 = vmatprep.subr.bf16.mxu0 0
    %5285 = vmatpush1.bf16.msra.mxu0 0
    %5286 = vmatprep.subr.bf16.mxu0 0
    %5287 = vmatpush1.bf16.msra.mxu0 0
    %5288 = vmatprep.subr.bf16.mxu0 0
    %5289 = vmatpush1.bf16.msra.mxu0 0
    %5290 = vmatprep.subr.bf16.mxu0 0
    %5291 = vmatpush1.bf16.msra.mxu0 0
    %5292 = vmatprep.subr.bf16.mxu0 0
    %5293 = vmatpush1.bf16.msra.mxu0 0
    %5294 = vmatprep.subr.bf16.mxu0 0
    %5295 = vmatpush1.bf16.msra.mxu0 0
    %5296 = vmatprep.subr.bf16.mxu0 0
    %5297 = vmatpush1.bf16.msra.mxu0 0
    %5298 = vmatprep.subr.bf16.mxu0 0
    %5299 = vmatpush1.bf16.msra.mxu0 0
    %5300 = vmatprep.subr.bf16.mxu0 0
    %5301 = vmatpush1.bf16.msra.mxu0 0
    %5302 = vmatprep.mubr.bf16.mxu0 0
    %5303 = vmatmul.mubr.bf16.gmra.mrb[0].mxu0 %v5265
    %v5304 = vpop.f32.mrb[0].mxu0
    %v5305 = vadd.f32 0.0, %v5304
    %v5306 = vpop.f32.mrb[0].mxu0
    %v5307 = vpop.f32.mrb[0].mxu0
    %v5308 = vpop.f32.mrb[0].mxu0
    %5309 = vdwg.mxu0
    %v5311 = vsel %vm4050, %v4570, 0
    %v5314 = vsel %vm4622, %v1056, 0
    %5316 = vmatprep.subr.bf16.mxu0 0
    %5317 = vmatpush1.bf16.msra.mxu0 %v5314
    %5318 = vmatprep.subr.bf16.mxu0 0
    %5319 = vmatpush1.bf16.msra.mxu0 0
    %5320 = vmatprep.subr.bf16.mxu0 0
    %5321 = vmatpush1.bf16.msra.mxu0 0
    %5322 = vmatprep.subr.bf16.mxu0 0
    %5323 = vmatpush1.bf16.msra.mxu0 0
    %5324 = vmatprep.subr.bf16.mxu0 0
    %5325 = vmatpush1.bf16.msra.mxu0 0
    %5326 = vmatprep.subr.bf16.mxu0 0
    %5327 = vmatpush1.bf16.msra.mxu0 0
    %5328 = vmatprep.subr.bf16.mxu0 0
    %5329 = vmatpush1.bf16.msra.mxu0 0
    %5330 = vmatprep.subr.bf16.mxu0 0
    %5331 = vmatpush1.bf16.msra.mxu0 0
    %5332 = vmatprep.subr.bf16.mxu0 0
    %5333 = vmatpush1.bf16.msra.mxu0 0
    %5334 = vmatprep.subr.bf16.mxu0 0
    %5335 = vmatpush1.bf16.msra.mxu0 0
    %5336 = vmatprep.subr.bf16.mxu0 0
    %5337 = vmatpush1.bf16.msra.mxu0 0
    %5338 = vmatprep.subr.bf16.mxu0 0
    %5339 = vmatpush1.bf16.msra.mxu0 0
    %5340 = vmatprep.subr.bf16.mxu0 0
    %5341 = vmatpush1.bf16.msra.mxu0 0
    %5342 = vmatprep.subr.bf16.mxu0 0
    %5343 = vmatpush1.bf16.msra.mxu0 0
    %5344 = vmatprep.subr.bf16.mxu0 0
    %5345 = vmatpush1.bf16.msra.mxu0 0
    %5346 = vmatprep.subr.bf16.mxu0 0
    %5347 = vmatpush1.bf16.msra.mxu0 0
    %5348 = vmatprep.mubr.bf16.mxu0 0
    %5349 = vmatmul.mubr.bf16.gmra.mrb[0].mxu0 %v5311
    %v5350 = vpop.f32.mrb[0].mxu0
    %v5351 = vadd.f32 0.0, %v5350
    %v5352 = vpop.f32.mrb[0].mxu0
    %v5353 = vpop.f32.mrb[0].mxu0
    %v5354 = vpop.f32.mrb[0].mxu0
    %5355 = vdwg.mxu0
    %v5357 = vsel %vm4050, %v4571, 0
    %v5360 = vsel %vm4622, %v1057, 0
    %5362 = vmatprep.subr.bf16.mxu0 0
    %5363 = vmatpush1.bf16.msra.mxu0 %v5360
    %5364 = vmatprep.subr.bf16.mxu0 0
    %5365 = vmatpush1.bf16.msra.mxu0 0
    %5366 = vmatprep.subr.bf16.mxu0 0
    %5367 = vmatpush1.bf16.msra.mxu0 0
    %5368 = vmatprep.subr.bf16.mxu0 0
    %5369 = vmatpush1.bf16.msra.mxu0 0
    %5370 = vmatprep.subr.bf16.mxu0 0
    %5371 = vmatpush1.bf16.msra.mxu0 0
    %5372 = vmatprep.subr.bf16.mxu0 0
    %5373 = vmatpush1.bf16.msra.mxu0 0
    %5374 = vmatprep.subr.bf16.mxu0 0
    %5375 = vmatpush1.bf16.msra.mxu0 0
    %5376 = vmatprep.subr.bf16.mxu0 0
    %5377 = vmatpush1.bf16.msra.mxu0 0
    %5378 = vmatprep.subr.bf16.mxu0 0
    %5379 = vmatpush1.bf16.msra.mxu0 0
    %5380 = vmatprep.subr.bf16.mxu0 0
    %5381 = vmatpush1.bf16.msra.mxu0 0
    %5382 = vmatprep.subr.bf16.mxu0 0
    %5383 = vmatpush1.bf16.msra.mxu0 0
    %5384 = vmatprep.subr.bf16.mxu0 0
    %5385 = vmatpush1.bf16.msra.mxu0 0
    %5386 = vmatprep.subr.bf16.mxu0 0
    %5387 = vmatpush1.bf16.msra.mxu0 0
    %5388 = vmatprep.subr.bf16.mxu0 0
    %5389 = vmatpush1.bf16.msra.mxu0 0
    %5390 = vmatprep.subr.bf16.mxu0 0
    %5391 = vmatpush1.bf16.msra.mxu0 0
    %5392 = vmatprep.subr.bf16.mxu0 0
    %5393 = vmatpush1.bf16.msra.mxu0 0
    %5394 = vmatprep.mubr.bf16.mxu0 0
    %5395 = vmatmul.mubr.bf16.gmra.mrb[0].mxu0 %v5357
    %v5396 = vpop.f32.mrb[0].mxu0
    %v5397 = vadd.f32 0.0, %v5396
    %v5398 = vpop.f32.mrb[0].mxu0
    %v5399 = vpop.f32.mrb[0].mxu0
    %v5400 = vpop.f32.mrb[0].mxu0
    %5401 = vdwg.mxu0
    %v5403 = vsel %vm4050, %v4572, 0
    %v5406 = vsel %vm4622, %v1058, 0
    %5408 = vmatprep.subr.bf16.mxu0 0
    %5409 = vmatpush1.bf16.msra.mxu0 %v5406
    %5410 = vmatprep.subr.bf16.mxu0 0
    %5411 = vmatpush1.bf16.msra.mxu0 0
    %5412 = vmatprep.subr.bf16.mxu0 0
    %5413 = vmatpush1.bf16.msra.mxu0 0
    %5414 = vmatprep.subr.bf16.mxu0 0
    %5415 = vmatpush1.bf16.msra.mxu0 0
    %5416 = vmatprep.subr.bf16.mxu0 0
    %5417 = vmatpush1.bf16.msra.mxu0 0
    %5418 = vmatprep.subr.bf16.mxu0 0
    %5419 = vmatpush1.bf16.msra.mxu0 0
    %5420 = vmatprep.subr.bf16.mxu0 0
    %5421 = vmatpush1.bf16.msra.mxu0 0
    %5422 = vmatprep.subr.bf16.mxu0 0
    %5423 = vmatpush1.bf16.msra.mxu0 0
    %5424 = vmatprep.subr.bf16.mxu0 0
    %5425 = vmatpush1.bf16.msra.mxu0 0
    %5426 = vmatprep.subr.bf16.mxu0 0
    %5427 = vmatpush1.bf16.msra.mxu0 0
    %5428 = vmatprep.subr.bf16.mxu0 0
    %5429 = vmatpush1.bf16.msra.mxu0 0
    %5430 = vmatprep.subr.bf16.mxu0 0
    %5431 = vmatpush1.bf16.msra.mxu0 0
    %5432 = vmatprep.subr.bf16.mxu0 0
    %5433 = vmatpush1.bf16.msra.mxu0 0
    %5434 = vmatprep.subr.bf16.mxu0 0
    %5435 = vmatpush1.bf16.msra.mxu0 0
    %5436 = vmatprep.subr.bf16.mxu0 0
    %5437 = vmatpush1.bf16.msra.mxu0 0
    %5438 = vmatprep.subr.bf16.mxu0 0
    %5439 = vmatpush1.bf16.msra.mxu0 0
    %5440 = vmatprep.mubr.bf16.mxu0 0
    %5441 = vmatmul.mubr.bf16.gmra.mrb[0].mxu0 %v5403
    %v5442 = vpop.f32.mrb[0].mxu0
    %v5443 = vadd.f32 0.0, %v5442
    %v5444 = vpop.f32.mrb[0].mxu0
    %v5445 = vpop.f32.mrb[0].mxu0
    %v5446 = vpop.f32.mrb[0].mxu0
    %5447 = vdwg.mxu0
    %v5449 = vsel %vm4050, %v4573, 0
    %v5452 = vsel %vm4622, %v1059, 0
    %5454 = vmatprep.subr.bf16.mxu0 0
    %5455 = vmatpush1.bf16.msra.mxu0 %v5452
    %5456 = vmatprep.subr.bf16.mxu0 0
    %5457 = vmatpush1.bf16.msra.mxu0 0
    %5458 = vmatprep.subr.bf16.mxu0 0
    %5459 = vmatpush1.bf16.msra.mxu0 0
    %5460 = vmatprep.subr.bf16.mxu0 0
    %5461 = vmatpush1.bf16.msra.mxu0 0
    %5462 = vmatprep.subr.bf16.mxu0 0
    %5463 = vmatpush1.bf16.msra.mxu0 0
    %5464 = vmatprep.subr.bf16.mxu0 0
    %5465 = vmatpush1.bf16.msra.mxu0 0
    %5466 = vmatprep.subr.bf16.mxu0 0
    %5467 = vmatpush1.bf16.msra.mxu0 0
    %5468 = vmatprep.subr.bf16.mxu0 0
    %5469 = vmatpush1.bf16.msra.mxu0 0
    %5470 = vmatprep.subr.bf16.mxu0 0
    %5471 = vmatpush1.bf16.msra.mxu0 0
    %5472 = vmatprep.subr.bf16.mxu0 0
    %5473 = vmatpush1.bf16.msra.mxu0 0
    %5474 = vmatprep.subr.bf16.mxu0 0
    %5475 = vmatpush1.bf16.msra.mxu0 0
    %5476 = vmatprep.subr.bf16.mxu0 0
    %5477 = vmatpush1.bf16.msra.mxu0 0
    %5478 = vmatprep.subr.bf16.mxu0 0
    %5479 = vmatpush1.bf16.msra.mxu0 0
    %5480 = vmatprep.subr.bf16.mxu0 0
    %5481 = vmatpush1.bf16.msra.mxu0 0
    %5482 = vmatprep.subr.bf16.mxu0 0
    %5483 = vmatpush1.bf16.msra.mxu0 0
    %5484 = vmatprep.subr.bf16.mxu0 0
    %5485 = vmatpush1.bf16.msra.mxu0 0
    %5486 = vmatprep.mubr.bf16.mxu0 0
    %5487 = vmatmul.mubr.bf16.gmra.mrb[0].mxu0 %v5449
    %v5488 = vpop.f32.mrb[0].mxu0
    %v5489 = vadd.f32 0.0, %v5488
    %v5490 = vpop.f32.mrb[0].mxu0
    %v5491 = vpop.f32.mrb[0].mxu0
    %v5492 = vpop.f32.mrb[0].mxu0
    %5493 = vdwg.mxu0
    %v5495 = vsel %vm4050, %v4574, 0
    %v5498 = vsel %vm4622, %v1060, 0
    %5500 = vmatprep.subr.bf16.mxu0 0
    %5501 = vmatpush1.bf16.msra.mxu0 %v5498
    %5502 = vmatprep.subr.bf16.mxu0 0
    %5503 = vmatpush1.bf16.msra.mxu0 0
    %5504 = vmatprep.subr.bf16.mxu0 0
    %5505 = vmatpush1.bf16.msra.mxu0 0
    %5506 = vmatprep.subr.bf16.mxu0 0
    %5507 = vmatpush1.bf16.msra.mxu0 0
    %5508 = vmatprep.subr.bf16.mxu0 0
    %5509 = vmatpush1.bf16.msra.mxu0 0
    %5510 = vmatprep.subr.bf16.mxu0 0
    %5511 = vmatpush1.bf16.msra.mxu0 0
    %5512 = vmatprep.subr.bf16.mxu0 0
    %5513 = vmatpush1.bf16.msra.mxu0 0
    %5514 = vmatprep.subr.bf16.mxu0 0
    %5515 = vmatpush1.bf16.msra.mxu0 0
    %5516 = vmatprep.subr.bf16.mxu0 0
    %5517 = vmatpush1.bf16.msra.mxu0 0
    %5518 = vmatprep.subr.bf16.mxu0 0
    %5519 = vmatpush1.bf16.msra.mxu0 0
    %5520 = vmatprep.subr.bf16.mxu0 0
    %5521 = vmatpush1.bf16.msra.mxu0 0
    %5522 = vmatprep.subr.bf16.mxu0 0
    %5523 = vmatpush1.bf16.msra.mxu0 0
    %5524 = vmatprep.subr.bf16.mxu0 0
    %5525 = vmatpush1.bf16.msra.mxu0 0
    %5526 = vmatprep.subr.bf16.mxu0 0
    %5527 = vmatpush1.bf16.msra.mxu0 0
    %5528 = vmatprep.subr.bf16.mxu0 0
    %5529 = vmatpush1.bf16.msra.mxu0 0
    %5530 = vmatprep.subr.bf16.mxu0 0
    %5531 = vmatpush1.bf16.msra.mxu0 0
    %5532 = vmatprep.mubr.bf16.mxu0 0
    %5533 = vmatmul.mubr.bf16.gmra.mrb[0].mxu0 %v5495
    %v5534 = vpop.f32.mrb[0].mxu0
    %v5535 = vadd.f32 0.0, %v5534
    %v5536 = vpop.f32.mrb[0].mxu0
    %v5537 = vpop.f32.mrb[0].mxu0
    %v5538 = vpop.f32.mrb[0].mxu0
    %5539 = vdwg.mxu0
    %v5541 = vsel %vm4050, %v4575, 0
    %v5544 = vsel %vm4622, %v1061, 0
    %5546 = vmatprep.subr.bf16.mxu0 0
    %5547 = vmatpush1.bf16.msra.mxu0 %v5544
    %5548 = vmatprep.subr.bf16.mxu0 0
    %5549 = vmatpush1.bf16.msra.mxu0 0
    %5550 = vmatprep.subr.bf16.mxu0 0
    %5551 = vmatpush1.bf16.msra.mxu0 0
    %5552 = vmatprep.subr.bf16.mxu0 0
    %5553 = vmatpush1.bf16.msra.mxu0 0
    %5554 = vmatprep.subr.bf16.mxu0 0
    %5555 = vmatpush1.bf16.msra.mxu0 0
    %5556 = vmatprep.subr.bf16.mxu0 0
    %5557 = vmatpush1.bf16.msra.mxu0 0
    %5558 = vmatprep.subr.bf16.mxu0 0
    %5559 = vmatpush1.bf16.msra.mxu0 0
    %5560 = vmatprep.subr.bf16.mxu0 0
    %5561 = vmatpush1.bf16.msra.mxu0 0
    %5562 = vmatprep.subr.bf16.mxu0 0
    %5563 = vmatpush1.bf16.msra.mxu0 0
    %5564 = vmatprep.subr.bf16.mxu0 0
    %5565 = vmatpush1.bf16.msra.mxu0 0
    %5566 = vmatprep.subr.bf16.mxu0 0
    %5567 = vmatpush1.bf16.msra.mxu0 0
    %5568 = vmatprep.subr.bf16.mxu0 0
    %5569 = vmatpush1.bf16.msra.mxu0 0
    %5570 = vmatprep.subr.bf16.mxu0 0
    %5571 = vmatpush1.bf16.msra.mxu0 0
    %5572 = vmatprep.subr.bf16.mxu0 0
    %5573 = vmatpush1.bf16.msra.mxu0 0
    %5574 = vmatprep.subr.bf16.mxu0 0
    %5575 = vmatpush1.bf16.msra.mxu0 0
    %5576 = vmatprep.subr.bf16.mxu0 0
    %5577 = vmatpush1.bf16.msra.mxu0 0
    %5578 = vmatprep.mubr.bf16.mxu0 0
    %5579 = vmatmul.mubr.bf16.gmra.mrb[0].mxu0 %v5541
    %v5580 = vpop.f32.mrb[0].mxu0
    %v5581 = vadd.f32 0.0, %v5580
    %v5582 = vpop.f32.mrb[0].mxu0
    %v5583 = vpop.f32.mrb[0].mxu0
    %v5584 = vpop.f32.mrb[0].mxu0
    %5585 = vdwg.mxu0
    %v5587 = vsel %vm4050, %v4576, 0
    %v5590 = vsel %vm4622, %v1062, 0
    %5592 = vmatprep.subr.bf16.mxu0 0
    %5593 = vmatpush1.bf16.msra.mxu0 %v5590
    %5594 = vmatprep.subr.bf16.mxu0 0
    %5595 = vmatpush1.bf16.msra.mxu0 0
    %5596 = vmatprep.subr.bf16.mxu0 0
    %5597 = vmatpush1.bf16.msra.mxu0 0
    %5598 = vmatprep.subr.bf16.mxu0 0
    %5599 = vmatpush1.bf16.msra.mxu0 0
    %5600 = vmatprep.subr.bf16.mxu0 0
    %5601 = vmatpush1.bf16.msra.mxu0 0
    %5602 = vmatprep.subr.bf16.mxu0 0
    %5603 = vmatpush1.bf16.msra.mxu0 0
    %5604 = vmatprep.subr.bf16.mxu0 0
    %5605 = vmatpush1.bf16.msra.mxu0 0
    %5606 = vmatprep.subr.bf16.mxu0 0
    %5607 = vmatpush1.bf16.msra.mxu0 0
    %5608 = vmatprep.subr.bf16.mxu0 0
    %5609 = vmatpush1.bf16.msra.mxu0 0
    %5610 = vmatprep.subr.bf16.mxu0 0
    %5611 = vmatpush1.bf16.msra.mxu0 0
    %5612 = vmatprep.subr.bf16.mxu0 0
    %5613 = vmatpush1.bf16.msra.mxu0 0
    %5614 = vmatprep.subr.bf16.mxu0 0
    %5615 = vmatpush1.bf16.msra.mxu0 0
    %5616 = vmatprep.subr.bf16.mxu0 0
    %5617 = vmatpush1.bf16.msra.mxu0 0
    %5618 = vmatprep.subr.bf16.mxu0 0
    %5619 = vmatpush1.bf16.msra.mxu0 0
    %5620 = vmatprep.subr.bf16.mxu0 0
    %5621 = vmatpush1.bf16.msra.mxu0 0
    %5622 = vmatprep.subr.bf16.mxu0 0
    %5623 = vmatpush1.bf16.msra.mxu0 0
    %5624 = vmatprep.mubr.bf16.mxu0 0
    %5625 = vmatmul.mubr.bf16.gmra.mrb[0].mxu0 %v5587
    %v5626 = vpop.f32.mrb[0].mxu0
    %v5627 = vadd.f32 0.0, %v5626
    %v5628 = vpop.f32.mrb[0].mxu0
    %v5629 = vpop.f32.mrb[0].mxu0
    %v5630 = vpop.f32.mrb[0].mxu0
    %5631 = vdwg.mxu0
    %v5633 = vsel %vm4050, %v4577, 0
    %v5636 = vsel %vm4622, %v1063, 0
    %5638 = vmatprep.subr.bf16.mxu0 0
    %5639 = vmatpush1.bf16.msra.mxu0 %v5636
    %5640 = vmatprep.subr.bf16.mxu0 0
    %5641 = vmatpush1.bf16.msra.mxu0 0
    %5642 = vmatprep.subr.bf16.mxu0 0
    %5643 = vmatpush1.bf16.msra.mxu0 0
    %5644 = vmatprep.subr.bf16.mxu0 0
    %5645 = vmatpush1.bf16.msra.mxu0 0
    %5646 = vmatprep.subr.bf16.mxu0 0
    %5647 = vmatpush1.bf16.msra.mxu0 0
    %5648 = vmatprep.subr.bf16.mxu0 0
    %5649 = vmatpush1.bf16.msra.mxu0 0
    %5650 = vmatprep.subr.bf16.mxu0 0
    %5651 = vmatpush1.bf16.msra.mxu0 0
    %5652 = vmatprep.subr.bf16.mxu0 0
    %5653 = vmatpush1.bf16.msra.mxu0 0
    %5654 = vmatprep.subr.bf16.mxu0 0
    %5655 = vmatpush1.bf16.msra.mxu0 0
    %5656 = vmatprep.subr.bf16.mxu0 0
    %5657 = vmatpush1.bf16.msra.mxu0 0
    %5658 = vmatprep.subr.bf16.mxu0 0
    %5659 = vmatpush1.bf16.msra.mxu0 0
    %5660 = vmatprep.subr.bf16.mxu0 0
    %5661 = vmatpush1.bf16.msra.mxu0 0
    %5662 = vmatprep.subr.bf16.mxu0 0
    %5663 = vmatpush1.bf16.msra.mxu0 0
    %5664 = vmatprep.subr.bf16.mxu0 0
    %5665 = vmatpush1.bf16.msra.mxu0 0
    %5666 = vmatprep.subr.bf16.mxu0 0
    %5667 = vmatpush1.bf16.msra.mxu0 0
    %5668 = vmatprep.subr.bf16.mxu0 0
    %5669 = vmatpush1.bf16.msra.mxu0 0
    %5670 = vmatprep.mubr.bf16.mxu0 0
    %5671 = vmatmul.mubr.bf16.gmra.mrb[0].mxu0 %v5633
    %v5672 = vpop.f32.mrb[0].mxu0
    %v5673 = vadd.f32 0.0, %v5672
    %v5674 = vpop.f32.mrb[0].mxu0
    %v5675 = vpop.f32.mrb[0].mxu0
    %v5676 = vpop.f32.mrb[0].mxu0
    %5677 = vdwg.mxu0
    %v5679 = vsel %vm4050, %v4578, 0
    %v5682 = vsel %vm4622, %v1064, 0
    %5684 = vmatprep.subr.bf16.mxu0 0
    %5685 = vmatpush1.bf16.msra.mxu0 %v5682
    %5686 = vmatprep.subr.bf16.mxu0 0
    %5687 = vmatpush1.bf16.msra.mxu0 0
    %5688 = vmatprep.subr.bf16.mxu0 0
    %5689 = vmatpush1.bf16.msra.mxu0 0
    %5690 = vmatprep.subr.bf16.mxu0 0
    %5691 = vmatpush1.bf16.msra.mxu0 0
    %5692 = vmatprep.subr.bf16.mxu0 0
    %5693 = vmatpush1.bf16.msra.mxu0 0
    %5694 = vmatprep.subr.bf16.mxu0 0
    %5695 = vmatpush1.bf16.msra.mxu0 0
    %5696 = vmatprep.subr.bf16.mxu0 0
    %5697 = vmatpush1.bf16.msra.mxu0 0
    %5698 = vmatprep.subr.bf16.mxu0 0
    %5699 = vmatpush1.bf16.msra.mxu0 0
    %5700 = vmatprep.subr.bf16.mxu0 0
    %5701 = vmatpush1.bf16.msra.mxu0 0
    %5702 = vmatprep.subr.bf16.mxu0 0
    %5703 = vmatpush1.bf16.msra.mxu0 0
    %5704 = vmatprep.subr.bf16.mxu0 0
    %5705 = vmatpush1.bf16.msra.mxu0 0
    %5706 = vmatprep.subr.bf16.mxu0 0
    %5707 = vmatpush1.bf16.msra.mxu0 0
    %5708 = vmatprep.subr.bf16.mxu0 0
    %5709 = vmatpush1.bf16.msra.mxu0 0
    %5710 = vmatprep.subr.bf16.mxu0 0
    %5711 = vmatpush1.bf16.msra.mxu0 0
    %5712 = vmatprep.subr.bf16.mxu0 0
    %5713 = vmatpush1.bf16.msra.mxu0 0
    %5714 = vmatprep.subr.bf16.mxu0 0
    %5715 = vmatpush1.bf16.msra.mxu0 0
    %5716 = vmatprep.mubr.bf16.mxu0 0
    %5717 = vmatmul.mubr.bf16.gmra.mrb[0].mxu0 %v5679
    %v5718 = vpop.f32.mrb[0].mxu0
    %v5719 = vadd.f32 0.0, %v5718
    %v5720 = vpop.f32.mrb[0].mxu0
    %v5721 = vpop.f32.mrb[0].mxu0
    %v5722 = vpop.f32.mrb[0].mxu0
    %5723 = vdwg.mxu0
    %v5725 = vsel %vm4050, %v4579, 0
    %v5728 = vsel %vm4622, %v1065, 0
    %5730 = vmatprep.subr.bf16.mxu0 0
    %5731 = vmatpush1.bf16.msra.mxu0 %v5728
    %5732 = vmatprep.subr.bf16.mxu0 0
    %5733 = vmatpush1.bf16.msra.mxu0 0
    %5734 = vmatprep.subr.bf16.mxu0 0
    %5735 = vmatpush1.bf16.msra.mxu0 0
    %5736 = vmatprep.subr.bf16.mxu0 0
    %5737 = vmatpush1.bf16.msra.mxu0 0
    %5738 = vmatprep.subr.bf16.mxu0 0
    %5739 = vmatpush1.bf16.msra.mxu0 0
    %5740 = vmatprep.subr.bf16.mxu0 0
    %5741 = vmatpush1.bf16.msra.mxu0 0
    %5742 = vmatprep.subr.bf16.mxu0 0
    %5743 = vmatpush1.bf16.msra.mxu0 0
    %5744 = vmatprep.subr.bf16.mxu0 0
    %5745 = vmatpush1.bf16.msra.mxu0 0
    %5746 = vmatprep.subr.bf16.mxu0 0
    %5747 = vmatpush1.bf16.msra.mxu0 0
    %5748 = vmatprep.subr.bf16.mxu0 0
    %5749 = vmatpush1.bf16.msra.mxu0 0
    %5750 = vmatprep.subr.bf16.mxu0 0
    %5751 = vmatpush1.bf16.msra.mxu0 0
    %5752 = vmatprep.subr.bf16.mxu0 0
    %5753 = vmatpush1.bf16.msra.mxu0 0
    %5754 = vmatprep.subr.bf16.mxu0 0
    %5755 = vmatpush1.bf16.msra.mxu0 0
    %5756 = vmatprep.subr.bf16.mxu0 0
    %5757 = vmatpush1.bf16.msra.mxu0 0
    %5758 = vmatprep.subr.bf16.mxu0 0
    %5759 = vmatpush1.bf16.msra.mxu0 0
    %5760 = vmatprep.subr.bf16.mxu0 0
    %5761 = vmatpush1.bf16.msra.mxu0 0
    %5762 = vmatprep.mubr.bf16.mxu0 0
    %5763 = vmatmul.mubr.bf16.gmra.mrb[0].mxu0 %v5725
    %v5764 = vpop.f32.mrb[0].mxu0
    %v5765 = vadd.f32 0.0, %v5764
    %v5766 = vpop.f32.mrb[0].mxu0
    %v5767 = vpop.f32.mrb[0].mxu0
    %v5768 = vpop.f32.mrb[0].mxu0
    %5769 = vdwg.mxu0
    %v5771 = vsel %vm4050, %v4580, 0
    %v5774 = vsel %vm4622, %v1066, 0
    %5776 = vmatprep.subr.bf16.mxu0 0
    %5777 = vmatpush1.bf16.msra.mxu0 %v5774
    %5778 = vmatprep.subr.bf16.mxu0 0
    %5779 = vmatpush1.bf16.msra.mxu0 0
    %5780 = vmatprep.subr.bf16.mxu0 0
    %5781 = vmatpush1.bf16.msra.mxu0 0
    %5782 = vmatprep.subr.bf16.mxu0 0
    %5783 = vmatpush1.bf16.msra.mxu0 0
    %5784 = vmatprep.subr.bf16.mxu0 0
    %5785 = vmatpush1.bf16.msra.mxu0 0
    %5786 = vmatprep.subr.bf16.mxu0 0
    %5787 = vmatpush1.bf16.msra.mxu0 0
    %5788 = vmatprep.subr.bf16.mxu0 0
    %5789 = vmatpush1.bf16.msra.mxu0 0
    %5790 = vmatprep.subr.bf16.mxu0 0
    %5791 = vmatpush1.bf16.msra.mxu0 0
    %5792 = vmatprep.subr.bf16.mxu0 0
    %5793 = vmatpush1.bf16.msra.mxu0 0
    %5794 = vmatprep.subr.bf16.mxu0 0
    %5795 = vmatpush1.bf16.msra.mxu0 0
    %5796 = vmatprep.subr.bf16.mxu0 0
    %5797 = vmatpush1.bf16.msra.mxu0 0
    %5798 = vmatprep.subr.bf16.mxu0 0
    %5799 = vmatpush1.bf16.msra.mxu0 0
    %5800 = vmatprep.subr.bf16.mxu0 0
    %5801 = vmatpush1.bf16.msra.mxu0 0
    %5802 = vmatprep.subr.bf16.mxu0 0
    %5803 = vmatpush1.bf16.msra.mxu0 0
    %5804 = vmatprep.subr.bf16.mxu0 0
    %5805 = vmatpush1.bf16.msra.mxu0 0
    %5806 = vmatprep.subr.bf16.mxu0 0
    %5807 = vmatpush1.bf16.msra.mxu0 0
    %5808 = vmatprep.mubr.bf16.mxu0 0
    %5809 = vmatmul.mubr.bf16.gmra.mrb[0].mxu0 %v5771
    %v5810 = vpop.f32.mrb[0].mxu0
    %v5811 = vadd.f32 0.0, %v5810
    %v5812 = vpop.f32.mrb[0].mxu0
    %v5813 = vpop.f32.mrb[0].mxu0
    %v5814 = vpop.f32.mrb[0].mxu0
    %5815 = vdwg.mxu0
    %v5817 = vsel %vm4050, %v4581, 0
    %v5820 = vsel %vm4622, %v1067, 0
    %5822 = vmatprep.subr.bf16.mxu0 0
    %5823 = vmatpush1.bf16.msra.mxu0 %v5820
    %5824 = vmatprep.subr.bf16.mxu0 0
    %5825 = vmatpush1.bf16.msra.mxu0 0
    %5826 = vmatprep.subr.bf16.mxu0 0
    %5827 = vmatpush1.bf16.msra.mxu0 0
    %5828 = vmatprep.subr.bf16.mxu0 0
    %5829 = vmatpush1.bf16.msra.mxu0 0
    %5830 = vmatprep.subr.bf16.mxu0 0
    %5831 = vmatpush1.bf16.msra.mxu0 0
    %5832 = vmatprep.subr.bf16.mxu0 0
    %5833 = vmatpush1.bf16.msra.mxu0 0
    %5834 = vmatprep.subr.bf16.mxu0 0
    %5835 = vmatpush1.bf16.msra.mxu0 0
    %5836 = vmatprep.subr.bf16.mxu0 0
    %5837 = vmatpush1.bf16.msra.mxu0 0
    %5838 = vmatprep.subr.bf16.mxu0 0
    %5839 = vmatpush1.bf16.msra.mxu0 0
    %5840 = vmatprep.subr.bf16.mxu0 0
    %5841 = vmatpush1.bf16.msra.mxu0 0
    %5842 = vmatprep.subr.bf16.mxu0 0
    %5843 = vmatpush1.bf16.msra.mxu0 0
    %5844 = vmatprep.subr.bf16.mxu0 0
    %5845 = vmatpush1.bf16.msra.mxu0 0
    %5846 = vmatprep.subr.bf16.mxu0 0
    %5847 = vmatpush1.bf16.msra.mxu0 0
    %5848 = vmatprep.subr.bf16.mxu0 0
    %5849 = vmatpush1.bf16.msra.mxu0 0
    %5850 = vmatprep.subr.bf16.mxu0 0
    %5851 = vmatpush1.bf16.msra.mxu0 0
    %5852 = vmatprep.subr.bf16.mxu0 0
    %5853 = vmatpush1.bf16.msra.mxu0 0
    %5854 = vmatprep.mubr.bf16.mxu0 0
    %5855 = vmatmul.mubr.bf16.gmra.mrb[0].mxu0 %v5817
    %v5856 = vpop.f32.mrb[0].mxu0
    %v5857 = vadd.f32 0.0, %v5856
    %v5858 = vpop.f32.mrb[0].mxu0
    %v5859 = vpop.f32.mrb[0].mxu0
    %v5860 = vpop.f32.mrb[0].mxu0
    %5861 = vdwg.mxu0
    %v5863 = vsel %vm4050, %v4582, 0
    %v5866 = vsel %vm4622, %v1068, 0
    %5868 = vmatprep.subr.bf16.mxu0 0
    %5869 = vmatpush1.bf16.msra.mxu0 %v5866
    %5870 = vmatprep.subr.bf16.mxu0 0
    %5871 = vmatpush1.bf16.msra.mxu0 0
    %5872 = vmatprep.subr.bf16.mxu0 0
    %5873 = vmatpush1.bf16.msra.mxu0 0
    %5874 = vmatprep.subr.bf16.mxu0 0
    %5875 = vmatpush1.bf16.msra.mxu0 0
    %5876 = vmatprep.subr.bf16.mxu0 0
    %5877 = vmatpush1.bf16.msra.mxu0 0
    %5878 = vmatprep.subr.bf16.mxu0 0
    %5879 = vmatpush1.bf16.msra.mxu0 0
    %5880 = vmatprep.subr.bf16.mxu0 0
    %5881 = vmatpush1.bf16.msra.mxu0 0
    %5882 = vmatprep.subr.bf16.mxu0 0
    %5883 = vmatpush1.bf16.msra.mxu0 0
    %5884 = vmatprep.subr.bf16.mxu0 0
    %5885 = vmatpush1.bf16.msra.mxu0 0
    %5886 = vmatprep.subr.bf16.mxu0 0
    %5887 = vmatpush1.bf16.msra.mxu0 0
    %5888 = vmatprep.subr.bf16.mxu0 0
    %5889 = vmatpush1.bf16.msra.mxu0 0
    %5890 = vmatprep.subr.bf16.mxu0 0
    %5891 = vmatpush1.bf16.msra.mxu0 0
    %5892 = vmatprep.subr.bf16.mxu0 0
    %5893 = vmatpush1.bf16.msra.mxu0 0
    %5894 = vmatprep.subr.bf16.mxu0 0
    %5895 = vmatpush1.bf16.msra.mxu0 0
    %5896 = vmatprep.subr.bf16.mxu0 0
    %5897 = vmatpush1.bf16.msra.mxu0 0
    %5898 = vmatprep.subr.bf16.mxu0 0
    %5899 = vmatpush1.bf16.msra.mxu0 0
    %5900 = vmatprep.mubr.bf16.mxu0 0
    %5901 = vmatmul.mubr.bf16.gmra.mrb[0].mxu0 %v5863
    %v5902 = vpop.f32.mrb[0].mxu0
    %v5903 = vadd.f32 0.0, %v5902
    %v5904 = vpop.f32.mrb[0].mxu0
    %v5905 = vpop.f32.mrb[0].mxu0
    %v5906 = vpop.f32.mrb[0].mxu0
    %5907 = vdwg.mxu0
    %v5909 = vsel %vm4050, %v4583, 0
    %v5912 = vsel %vm4622, %v1069, 0
    %5914 = vmatprep.subr.bf16.mxu0 0
    %5915 = vmatpush1.bf16.msra.mxu0 %v5912
    %5916 = vmatprep.subr.bf16.mxu0 0
    %5917 = vmatpush1.bf16.msra.mxu0 0
    %5918 = vmatprep.subr.bf16.mxu0 0
    %5919 = vmatpush1.bf16.msra.mxu0 0
    %5920 = vmatprep.subr.bf16.mxu0 0
    %5921 = vmatpush1.bf16.msra.mxu0 0
    %5922 = vmatprep.subr.bf16.mxu0 0
    %5923 = vmatpush1.bf16.msra.mxu0 0
    %5924 = vmatprep.subr.bf16.mxu0 0
    %5925 = vmatpush1.bf16.msra.mxu0 0
    %5926 = vmatprep.subr.bf16.mxu0 0
    %5927 = vmatpush1.bf16.msra.mxu0 0
    %5928 = vmatprep.subr.bf16.mxu0 0
    %5929 = vmatpush1.bf16.msra.mxu0 0
    %5930 = vmatprep.subr.bf16.mxu0 0
    %5931 = vmatpush1.bf16.msra.mxu0 0
    %5932 = vmatprep.subr.bf16.mxu0 0
    %5933 = vmatpush1.bf16.msra.mxu0 0
    %5934 = vmatprep.subr.bf16.mxu0 0
    %5935 = vmatpush1.bf16.msra.mxu0 0
    %5936 = vmatprep.subr.bf16.mxu0 0
    %5937 = vmatpush1.bf16.msra.mxu0 0
    %5938 = vmatprep.subr.bf16.mxu0 0
    %5939 = vmatpush1.bf16.msra.mxu0 0
    %5940 = vmatprep.subr.bf16.mxu0 0
    %5941 = vmatpush1.bf16.msra.mxu0 0
    %5942 = vmatprep.subr.bf16.mxu0 0
    %5943 = vmatpush1.bf16.msra.mxu0 0
    %5944 = vmatprep.subr.bf16.mxu0 0
    %5945 = vmatpush1.bf16.msra.mxu0 0
    %5946 = vmatprep.mubr.bf16.mxu0 0
    %5947 = vmatmul.mubr.bf16.gmra.mrb[0].mxu0 %v5909
    %v5948 = vpop.f32.mrb[0].mxu0
    %v5949 = vadd.f32 0.0, %v5948
    %v5950 = vpop.f32.mrb[0].mxu0
    %v5951 = vpop.f32.mrb[0].mxu0
    %v5952 = vpop.f32.mrb[0].mxu0
    %5953 = vdwg.mxu0
    %v5955 = vsel %vm4050, %v4584, 0
    %v5958 = vsel %vm4622, %v1070, 0
    %5960 = vmatprep.subr.bf16.mxu0 0
    %5961 = vmatpush1.bf16.msra.mxu0 %v5958
    %5962 = vmatprep.subr.bf16.mxu0 0
    %5963 = vmatpush1.bf16.msra.mxu0 0
    %5964 = vmatprep.subr.bf16.mxu0 0
    %5965 = vmatpush1.bf16.msra.mxu0 0
    %5966 = vmatprep.subr.bf16.mxu0 0
    %5967 = vmatpush1.bf16.msra.mxu0 0
    %5968 = vmatprep.subr.bf16.mxu0 0
    %5969 = vmatpush1.bf16.msra.mxu0 0
    %5970 = vmatprep.subr.bf16.mxu0 0
    %5971 = vmatpush1.bf16.msra.mxu0 0
    %5972 = vmatprep.subr.bf16.mxu0 0
    %5973 = vmatpush1.bf16.msra.mxu0 0
    %5974 = vmatprep.subr.bf16.mxu0 0
    %5975 = vmatpush1.bf16.msra.mxu0 0
    %5976 = vmatprep.subr.bf16.mxu0 0
    %5977 = vmatpush1.bf16.msra.mxu0 0
    %5978 = vmatprep.subr.bf16.mxu0 0
    %5979 = vmatpush1.bf16.msra.mxu0 0
    %5980 = vmatprep.subr.bf16.mxu0 0
    %5981 = vmatpush1.bf16.msra.mxu0 0
    %5982 = vmatprep.subr.bf16.mxu0 0
    %5983 = vmatpush1.bf16.msra.mxu0 0
    %5984 = vmatprep.subr.bf16.mxu0 0
    %5985 = vmatpush1.bf16.msra.mxu0 0
    %5986 = vmatprep.subr.bf16.mxu0 0
    %5987 = vmatpush1.bf16.msra.mxu0 0
    %5988 = vmatprep.subr.bf16.mxu0 0
    %5989 = vmatpush1.bf16.msra.mxu0 0
    %5990 = vmatprep.subr.bf16.mxu0 0
    %5991 = vmatpush1.bf16.msra.mxu0 0
    %5992 = vmatprep.mubr.bf16.mxu0 0
    %5993 = vmatmul.mubr.bf16.gmra.mrb[0].mxu0 %v5955
    %v5994 = vpop.f32.mrb[0].mxu0
    %v5995 = vadd.f32 0.0, %v5994
    %v5996 = vpop.f32.mrb[0].mxu0
    %v5997 = vpop.f32.mrb[0].mxu0
    %v5998 = vpop.f32.mrb[0].mxu0
    %5999 = vdwg.mxu0
    %v6001 = vsel %vm4050, %v4585, 0
    %v6004 = vsel %vm4622, %v1071, 0
    %6006 = vmatprep.subr.bf16.mxu0 0
    %6007 = vmatpush1.bf16.msra.mxu0 %v6004
    %6008 = vmatprep.subr.bf16.mxu0 0
    %6009 = vmatpush1.bf16.msra.mxu0 0
    %6010 = vmatprep.subr.bf16.mxu0 0
    %6011 = vmatpush1.bf16.msra.mxu0 0
    %6012 = vmatprep.subr.bf16.mxu0 0
    %6013 = vmatpush1.bf16.msra.mxu0 0
    %6014 = vmatprep.subr.bf16.mxu0 0
    %6015 = vmatpush1.bf16.msra.mxu0 0
    %6016 = vmatprep.subr.bf16.mxu0 0
    %6017 = vmatpush1.bf16.msra.mxu0 0
    %6018 = vmatprep.subr.bf16.mxu0 0
    %6019 = vmatpush1.bf16.msra.mxu0 0
    %6020 = vmatprep.subr.bf16.mxu0 0
    %6021 = vmatpush1.bf16.msra.mxu0 0
    %6022 = vmatprep.subr.bf16.mxu0 0
    %6023 = vmatpush1.bf16.msra.mxu0 0
    %6024 = vmatprep.subr.bf16.mxu0 0
    %6025 = vmatpush1.bf16.msra.mxu0 0
    %6026 = vmatprep.subr.bf16.mxu0 0
    %6027 = vmatpush1.bf16.msra.mxu0 0
    %6028 = vmatprep.subr.bf16.mxu0 0
    %6029 = vmatpush1.bf16.msra.mxu0 0
    %6030 = vmatprep.subr.bf16.mxu0 0
    %6031 = vmatpush1.bf16.msra.mxu0 0
    %6032 = vmatprep.subr.bf16.mxu0 0
    %6033 = vmatpush1.bf16.msra.mxu0 0
    %6034 = vmatprep.subr.bf16.mxu0 0
    %6035 = vmatpush1.bf16.msra.mxu0 0
    %6036 = vmatprep.subr.bf16.mxu0 0
    %6037 = vmatpush1.bf16.msra.mxu0 0
    %6038 = vmatprep.mubr.bf16.mxu0 0
    %6039 = vmatmul.mubr.bf16.gmra.mrb[0].mxu0 %v6001
    %v6040 = vpop.f32.mrb[0].mxu0
    %v6041 = vadd.f32 0.0, %v6040
    %v6042 = vpop.f32.mrb[0].mxu0
    %v6043 = vpop.f32.mrb[0].mxu0
    %v6044 = vpop.f32.mrb[0].mxu0
    %6045 = vdwg.mxu0
    %v6047 = vsel %vm4050, %v4586, 0
    %v6050 = vsel %vm4622, %v1072, 0
    %6052 = vmatprep.subr.bf16.mxu0 0
    %6053 = vmatpush1.bf16.msra.mxu0 %v6050
    %6054 = vmatprep.subr.bf16.mxu0 0
    %6055 = vmatpush1.bf16.msra.mxu0 0
    %6056 = vmatprep.subr.bf16.mxu0 0
    %6057 = vmatpush1.bf16.msra.mxu0 0
    %6058 = vmatprep.subr.bf16.mxu0 0
    %6059 = vmatpush1.bf16.msra.mxu0 0
    %6060 = vmatprep.subr.bf16.mxu0 0
    %6061 = vmatpush1.bf16.msra.mxu0 0
    %6062 = vmatprep.subr.bf16.mxu0 0
    %6063 = vmatpush1.bf16.msra.mxu0 0
    %6064 = vmatprep.subr.bf16.mxu0 0
    %6065 = vmatpush1.bf16.msra.mxu0 0
    %6066 = vmatprep.subr.bf16.mxu0 0
    %6067 = vmatpush1.bf16.msra.mxu0 0
    %6068 = vmatprep.subr.bf16.mxu0 0
    %6069 = vmatpush1.bf16.msra.mxu0 0
    %6070 = vmatprep.subr.bf16.mxu0 0
    %6071 = vmatpush1.bf16.msra.mxu0 0
    %6072 = vmatprep.subr.bf16.mxu0 0
    %6073 = vmatpush1.bf16.msra.mxu0 0
    %6074 = vmatprep.subr.bf16.mxu0 0
    %6075 = vmatpush1.bf16.msra.mxu0 0
    %6076 = vmatprep.subr.bf16.mxu0 0
    %6077 = vmatpush1.bf16.msra.mxu0 0
    %6078 = vmatprep.subr.bf16.mxu0 0
    %6079 = vmatpush1.bf16.msra.mxu0 0
    %6080 = vmatprep.subr.bf16.mxu0 0
    %6081 = vmatpush1.bf16.msra.mxu0 0
    %6082 = vmatprep.subr.bf16.mxu0 0
    %6083 = vmatpush1.bf16.msra.mxu0 0
    %6084 = vmatprep.mubr.bf16.mxu0 0
    %6085 = vmatmul.mubr.bf16.gmra.mrb[0].mxu0 %v6047
    %v6086 = vpop.f32.mrb[0].mxu0
    %v6087 = vadd.f32 0.0, %v6086
    %v6088 = vpop.f32.mrb[0].mxu0
    %v6089 = vpop.f32.mrb[0].mxu0
    %v6090 = vpop.f32.mrb[0].mxu0
    %6091 = vdwg.mxu0
    %v6093 = vsel %vm4050, %v4587, 0
    %v6096 = vsel %vm4622, %v1073, 0
    %6098 = vmatprep.subr.bf16.mxu0 0
    %6099 = vmatpush1.bf16.msra.mxu0 %v6096
    %6100 = vmatprep.subr.bf16.mxu0 0
    %6101 = vmatpush1.bf16.msra.mxu0 0
    %6102 = vmatprep.subr.bf16.mxu0 0
    %6103 = vmatpush1.bf16.msra.mxu0 0
    %6104 = vmatprep.subr.bf16.mxu0 0
    %6105 = vmatpush1.bf16.msra.mxu0 0
    %6106 = vmatprep.subr.bf16.mxu0 0
    %6107 = vmatpush1.bf16.msra.mxu0 0
    %6108 = vmatprep.subr.bf16.mxu0 0
    %6109 = vmatpush1.bf16.msra.mxu0 0
    %6110 = vmatprep.subr.bf16.mxu0 0
    %6111 = vmatpush1.bf16.msra.mxu0 0
    %6112 = vmatprep.subr.bf16.mxu0 0
    %6113 = vmatpush1.bf16.msra.mxu0 0
    %6114 = vmatprep.subr.bf16.mxu0 0
    %6115 = vmatpush1.bf16.msra.mxu0 0
    %6116 = vmatprep.subr.bf16.mxu0 0
    %6117 = vmatpush1.bf16.msra.mxu0 0
    %6118 = vmatprep.subr.bf16.mxu0 0
    %6119 = vmatpush1.bf16.msra.mxu0 0
    %6120 = vmatprep.subr.bf16.mxu0 0
    %6121 = vmatpush1.bf16.msra.mxu0 0
    %6122 = vmatprep.subr.bf16.mxu0 0
    %6123 = vmatpush1.bf16.msra.mxu0 0
    %6124 = vmatprep.subr.bf16.mxu0 0
    %6125 = vmatpush1.bf16.msra.mxu0 0
    %6126 = vmatprep.subr.bf16.mxu0 0
    %6127 = vmatpush1.bf16.msra.mxu0 0
    %6128 = vmatprep.subr.bf16.mxu0 0
    %6129 = vmatpush1.bf16.msra.mxu0 0
    %6130 = vmatprep.mubr.bf16.mxu0 0
    %6131 = vmatmul.mubr.bf16.gmra.mrb[0].mxu0 %v6093
    %v6132 = vpop.f32.mrb[0].mxu0
    %v6133 = vadd.f32 0.0, %v6132
    %v6134 = vpop.f32.mrb[0].mxu0
    %v6135 = vpop.f32.mrb[0].mxu0
    %v6136 = vpop.f32.mrb[0].mxu0
    %6137 = vdwg.mxu0
    %v6139 = vsel %vm4050, %v4588, 0
    %v6142 = vsel %vm4622, %v1074, 0
    %6144 = vmatprep.subr.bf16.mxu0 0
    %6145 = vmatpush1.bf16.msra.mxu0 %v6142
    %6146 = vmatprep.subr.bf16.mxu0 0
    %6147 = vmatpush1.bf16.msra.mxu0 0
    %6148 = vmatprep.subr.bf16.mxu0 0
    %6149 = vmatpush1.bf16.msra.mxu0 0
    %6150 = vmatprep.subr.bf16.mxu0 0
    %6151 = vmatpush1.bf16.msra.mxu0 0
    %6152 = vmatprep.subr.bf16.mxu0 0
    %6153 = vmatpush1.bf16.msra.mxu0 0
    %6154 = vmatprep.subr.bf16.mxu0 0
    %6155 = vmatpush1.bf16.msra.mxu0 0
    %6156 = vmatprep.subr.bf16.mxu0 0
    %6157 = vmatpush1.bf16.msra.mxu0 0
    %6158 = vmatprep.subr.bf16.mxu0 0
    %6159 = vmatpush1.bf16.msra.mxu0 0
    %6160 = vmatprep.subr.bf16.mxu0 0
    %6161 = vmatpush1.bf16.msra.mxu0 0
    %6162 = vmatprep.subr.bf16.mxu0 0
    %6163 = vmatpush1.bf16.msra.mxu0 0
    %6164 = vmatprep.subr.bf16.mxu0 0
    %6165 = vmatpush1.bf16.msra.mxu0 0
    %6166 = vmatprep.subr.bf16.mxu0 0
    %6167 = vmatpush1.bf16.msra.mxu0 0
    %6168 = vmatprep.subr.bf16.mxu0 0
    %6169 = vmatpush1.bf16.msra.mxu0 0
    %6170 = vmatprep.subr.bf16.mxu0 0
    %6171 = vmatpush1.bf16.msra.mxu0 0
    %6172 = vmatprep.subr.bf16.mxu0 0
    %6173 = vmatpush1.bf16.msra.mxu0 0
    %6174 = vmatprep.subr.bf16.mxu0 0
    %6175 = vmatpush1.bf16.msra.mxu0 0
    %6176 = vmatprep.mubr.bf16.mxu0 0
    %6177 = vmatmul.mubr.bf16.gmra.mrb[0].mxu0 %v6139
    %v6178 = vpop.f32.mrb[0].mxu0
    %v6179 = vadd.f32 0.0, %v6178
    %v6180 = vpop.f32.mrb[0].mxu0
    %v6181 = vpop.f32.mrb[0].mxu0
    %v6182 = vpop.f32.mrb[0].mxu0
    %6183 = vdwg.mxu0
    %v6185 = vsel %vm4050, %v4589, 0
    %v6188 = vsel %vm4622, %v1075, 0
    %6190 = vmatprep.subr.bf16.mxu0 0
    %6191 = vmatpush1.bf16.msra.mxu0 %v6188
    %6192 = vmatprep.subr.bf16.mxu0 0
    %6193 = vmatpush1.bf16.msra.mxu0 0
    %6194 = vmatprep.subr.bf16.mxu0 0
    %6195 = vmatpush1.bf16.msra.mxu0 0
    %6196 = vmatprep.subr.bf16.mxu0 0
    %6197 = vmatpush1.bf16.msra.mxu0 0
    %6198 = vmatprep.subr.bf16.mxu0 0
    %6199 = vmatpush1.bf16.msra.mxu0 0
    %6200 = vmatprep.subr.bf16.mxu0 0
    %6201 = vmatpush1.bf16.msra.mxu0 0
    %6202 = vmatprep.subr.bf16.mxu0 0
    %6203 = vmatpush1.bf16.msra.mxu0 0
    %6204 = vmatprep.subr.bf16.mxu0 0
    %6205 = vmatpush1.bf16.msra.mxu0 0
    %6206 = vmatprep.subr.bf16.mxu0 0
    %6207 = vmatpush1.bf16.msra.mxu0 0
    %6208 = vmatprep.subr.bf16.mxu0 0
    %6209 = vmatpush1.bf16.msra.mxu0 0
    %6210 = vmatprep.subr.bf16.mxu0 0
    %6211 = vmatpush1.bf16.msra.mxu0 0
    %6212 = vmatprep.subr.bf16.mxu0 0
    %6213 = vmatpush1.bf16.msra.mxu0 0
    %6214 = vmatprep.subr.bf16.mxu0 0
    %6215 = vmatpush1.bf16.msra.mxu0 0
    %6216 = vmatprep.subr.bf16.mxu0 0
    %6217 = vmatpush1.bf16.msra.mxu0 0
    %6218 = vmatprep.subr.bf16.mxu0 0
    %6219 = vmatpush1.bf16.msra.mxu0 0
    %6220 = vmatprep.subr.bf16.mxu0 0
    %6221 = vmatpush1.bf16.msra.mxu0 0
    %6222 = vmatprep.mubr.bf16.mxu0 0
    %6223 = vmatmul.mubr.bf16.gmra.mrb[0].mxu0 %v6185
    %v6224 = vpop.f32.mrb[0].mxu0
    %v6225 = vadd.f32 0.0, %v6224
    %v6226 = vpop.f32.mrb[0].mxu0
    %v6227 = vpop.f32.mrb[0].mxu0
    %v6228 = vpop.f32.mrb[0].mxu0
    %6229 = vdwg.mxu0
    %v6231 = vsel %vm4050, %v4590, 0
    %v6234 = vsel %vm4622, %v1076, 0
    %6236 = vmatprep.subr.bf16.mxu0 0
    %6237 = vmatpush1.bf16.msra.mxu0 %v6234
    %6238 = vmatprep.subr.bf16.mxu0 0
    %6239 = vmatpush1.bf16.msra.mxu0 0
    %6240 = vmatprep.subr.bf16.mxu0 0
    %6241 = vmatpush1.bf16.msra.mxu0 0
    %6242 = vmatprep.subr.bf16.mxu0 0
    %6243 = vmatpush1.bf16.msra.mxu0 0
    %6244 = vmatprep.subr.bf16.mxu0 0
    %6245 = vmatpush1.bf16.msra.mxu0 0
    %6246 = vmatprep.subr.bf16.mxu0 0
    %6247 = vmatpush1.bf16.msra.mxu0 0
    %6248 = vmatprep.subr.bf16.mxu0 0
    %6249 = vmatpush1.bf16.msra.mxu0 0
    %6250 = vmatprep.subr.bf16.mxu0 0
    %6251 = vmatpush1.bf16.msra.mxu0 0
    %6252 = vmatprep.subr.bf16.mxu0 0
    %6253 = vmatpush1.bf16.msra.mxu0 0
    %6254 = vmatprep.subr.bf16.mxu0 0
    %6255 = vmatpush1.bf16.msra.mxu0 0
    %6256 = vmatprep.subr.bf16.mxu0 0
    %6257 = vmatpush1.bf16.msra.mxu0 0
    %6258 = vmatprep.subr.bf16.mxu0 0
    %6259 = vmatpush1.bf16.msra.mxu0 0
    %6260 = vmatprep.subr.bf16.mxu0 0
    %6261 = vmatpush1.bf16.msra.mxu0 0
    %6262 = vmatprep.subr.bf16.mxu0 0
    %6263 = vmatpush1.bf16.msra.mxu0 0
    %6264 = vmatprep.subr.bf16.mxu0 0
    %6265 = vmatpush1.bf16.msra.mxu0 0
    %6266 = vmatprep.subr.bf16.mxu0 0
    %6267 = vmatpush1.bf16.msra.mxu0 0
    %6268 = vmatprep.mubr.bf16.mxu0 0
    %6269 = vmatmul.mubr.bf16.gmra.mrb[0].mxu0 %v6231
    %v6270 = vpop.f32.mrb[0].mxu0
    %v6271 = vadd.f32 0.0, %v6270
    %v6272 = vpop.f32.mrb[0].mxu0
    %v6273 = vpop.f32.mrb[0].mxu0
    %v6274 = vpop.f32.mrb[0].mxu0
    %6275 = vdwg.mxu0
    %v6277 = vsel %vm4050, %v4591, 0
    %v6280 = vsel %vm4622, %v1077, 0
    %6282 = vmatprep.subr.bf16.mxu0 0
    %6283 = vmatpush1.bf16.msra.mxu0 %v6280
    %6284 = vmatprep.subr.bf16.mxu0 0
    %6285 = vmatpush1.bf16.msra.mxu0 0
    %6286 = vmatprep.subr.bf16.mxu0 0
    %6287 = vmatpush1.bf16.msra.mxu0 0
    %6288 = vmatprep.subr.bf16.mxu0 0
    %6289 = vmatpush1.bf16.msra.mxu0 0
    %6290 = vmatprep.subr.bf16.mxu0 0
    %6291 = vmatpush1.bf16.msra.mxu0 0
    %6292 = vmatprep.subr.bf16.mxu0 0
    %6293 = vmatpush1.bf16.msra.mxu0 0
    %6294 = vmatprep.subr.bf16.mxu0 0
    %6295 = vmatpush1.bf16.msra.mxu0 0
    %6296 = vmatprep.subr.bf16.mxu0 0
    %6297 = vmatpush1.bf16.msra.mxu0 0
    %6298 = vmatprep.subr.bf16.mxu0 0
    %6299 = vmatpush1.bf16.msra.mxu0 0
    %6300 = vmatprep.subr.bf16.mxu0 0
    %6301 = vmatpush1.bf16.msra.mxu0 0
    %6302 = vmatprep.subr.bf16.mxu0 0
    %6303 = vmatpush1.bf16.msra.mxu0 0
    %6304 = vmatprep.subr.bf16.mxu0 0
    %6305 = vmatpush1.bf16.msra.mxu0 0
    %6306 = vmatprep.subr.bf16.mxu0 0
    %6307 = vmatpush1.bf16.msra.mxu0 0
    %6308 = vmatprep.subr.bf16.mxu0 0
    %6309 = vmatpush1.bf16.msra.mxu0 0
    %6310 = vmatprep.subr.bf16.mxu0 0
    %6311 = vmatpush1.bf16.msra.mxu0 0
    %6312 = vmatprep.subr.bf16.mxu0 0
    %6313 = vmatpush1.bf16.msra.mxu0 0
    %6314 = vmatprep.mubr.bf16.mxu0 0
    %6315 = vmatmul.mubr.bf16.gmra.mrb[0].mxu0 %v6277
    %v6316 = vpop.f32.mrb[0].mxu0
    %v6317 = vadd.f32 0.0, %v6316
    %v6318 = vpop.f32.mrb[0].mxu0
    %v6319 = vpop.f32.mrb[0].mxu0
    %v6320 = vpop.f32.mrb[0].mxu0
    %6321 = vdwg.mxu0
    %v6323 = vsel %vm4050, %v4592, 0
    %v6326 = vsel %vm4622, %v1078, 0
    %6328 = vmatprep.subr.bf16.mxu0 0
    %6329 = vmatpush1.bf16.msra.mxu0 %v6326
    %6330 = vmatprep.subr.bf16.mxu0 0
    %6331 = vmatpush1.bf16.msra.mxu0 0
    %6332 = vmatprep.subr.bf16.mxu0 0
    %6333 = vmatpush1.bf16.msra.mxu0 0
    %6334 = vmatprep.subr.bf16.mxu0 0
    %6335 = vmatpush1.bf16.msra.mxu0 0
    %6336 = vmatprep.subr.bf16.mxu0 0
    %6337 = vmatpush1.bf16.msra.mxu0 0
    %6338 = vmatprep.subr.bf16.mxu0 0
    %6339 = vmatpush1.bf16.msra.mxu0 0
    %6340 = vmatprep.subr.bf16.mxu0 0
    %6341 = vmatpush1.bf16.msra.mxu0 0
    %6342 = vmatprep.subr.bf16.mxu0 0
    %6343 = vmatpush1.bf16.msra.mxu0 0
    %6344 = vmatprep.subr.bf16.mxu0 0
    %6345 = vmatpush1.bf16.msra.mxu0 0
    %6346 = vmatprep.subr.bf16.mxu0 0
    %6347 = vmatpush1.bf16.msra.mxu0 0
    %6348 = vmatprep.subr.bf16.mxu0 0
    %6349 = vmatpush1.bf16.msra.mxu0 0
    %6350 = vmatprep.subr.bf16.mxu0 0
    %6351 = vmatpush1.bf16.msra.mxu0 0
    %6352 = vmatprep.subr.bf16.mxu0 0
    %6353 = vmatpush1.bf16.msra.mxu0 0
    %6354 = vmatprep.subr.bf16.mxu0 0
    %6355 = vmatpush1.bf16.msra.mxu0 0
    %6356 = vmatprep.subr.bf16.mxu0 0
    %6357 = vmatpush1.bf16.msra.mxu0 0
    %6358 = vmatprep.subr.bf16.mxu0 0
    %6359 = vmatpush1.bf16.msra.mxu0 0
    %6360 = vmatprep.mubr.bf16.mxu0 0
    %6361 = vmatmul.mubr.bf16.gmra.mrb[0].mxu0 %v6323
    %v6362 = vpop.f32.mrb[0].mxu0
    %v6363 = vadd.f32 0.0, %v6362
    %v6364 = vpop.f32.mrb[0].mxu0
    %v6365 = vpop.f32.mrb[0].mxu0
    %v6366 = vpop.f32.mrb[0].mxu0
    %6367 = vdwg.mxu0
    %v6369 = vsel %vm4050, %v4593, 0
    %v6372 = vsel %vm4622, %v1079, 0
    %6374 = vmatprep.subr.bf16.mxu0 0
    %6375 = vmatpush1.bf16.msra.mxu0 %v6372
    %6376 = vmatprep.subr.bf16.mxu0 0
    %6377 = vmatpush1.bf16.msra.mxu0 0
    %6378 = vmatprep.subr.bf16.mxu0 0
    %6379 = vmatpush1.bf16.msra.mxu0 0
    %6380 = vmatprep.subr.bf16.mxu0 0
    %6381 = vmatpush1.bf16.msra.mxu0 0
    %6382 = vmatprep.subr.bf16.mxu0 0
    %6383 = vmatpush1.bf16.msra.mxu0 0
    %6384 = vmatprep.subr.bf16.mxu0 0
    %6385 = vmatpush1.bf16.msra.mxu0 0
    %6386 = vmatprep.subr.bf16.mxu0 0
    %6387 = vmatpush1.bf16.msra.mxu0 0
    %6388 = vmatprep.subr.bf16.mxu0 0
    %6389 = vmatpush1.bf16.msra.mxu0 0
    %6390 = vmatprep.subr.bf16.mxu0 0
    %6391 = vmatpush1.bf16.msra.mxu0 0
    %6392 = vmatprep.subr.bf16.mxu0 0
    %6393 = vmatpush1.bf16.msra.mxu0 0
    %6394 = vmatprep.subr.bf16.mxu0 0
    %6395 = vmatpush1.bf16.msra.mxu0 0
    %6396 = vmatprep.subr.bf16.mxu0 0
    %6397 = vmatpush1.bf16.msra.mxu0 0
    %6398 = vmatprep.subr.bf16.mxu0 0
    %6399 = vmatpush1.bf16.msra.mxu0 0
    %6400 = vmatprep.subr.bf16.mxu0 0
    %6401 = vmatpush1.bf16.msra.mxu0 0
    %6402 = vmatprep.subr.bf16.mxu0 0
    %6403 = vmatpush1.bf16.msra.mxu0 0
    %6404 = vmatprep.subr.bf16.mxu0 0
    %6405 = vmatpush1.bf16.msra.mxu0 0
    %6406 = vmatprep.mubr.bf16.mxu0 0
    %6407 = vmatmul.mubr.bf16.gmra.mrb[0].mxu0 %v6369
    %v6408 = vpop.f32.mrb[0].mxu0
    %v6409 = vadd.f32 0.0, %v6408
    %v6410 = vpop.f32.mrb[0].mxu0
    %v6411 = vpop.f32.mrb[0].mxu0
    %v6412 = vpop.f32.mrb[0].mxu0
    %6413 = vdwg.mxu0
    %v6415 = vsel %vm4050, %v4594, 0
    %v6418 = vsel %vm4622, %v1080, 0
    %6420 = vmatprep.subr.bf16.mxu0 0
    %6421 = vmatpush1.bf16.msra.mxu0 %v6418
    %6422 = vmatprep.subr.bf16.mxu0 0
    %6423 = vmatpush1.bf16.msra.mxu0 0
    %6424 = vmatprep.subr.bf16.mxu0 0
    %6425 = vmatpush1.bf16.msra.mxu0 0
    %6426 = vmatprep.subr.bf16.mxu0 0
    %6427 = vmatpush1.bf16.msra.mxu0 0
    %6428 = vmatprep.subr.bf16.mxu0 0
    %6429 = vmatpush1.bf16.msra.mxu0 0
    %6430 = vmatprep.subr.bf16.mxu0 0
    %6431 = vmatpush1.bf16.msra.mxu0 0
    %6432 = vmatprep.subr.bf16.mxu0 0
    %6433 = vmatpush1.bf16.msra.mxu0 0
    %6434 = vmatprep.subr.bf16.mxu0 0
    %6435 = vmatpush1.bf16.msra.mxu0 0
    %6436 = vmatprep.subr.bf16.mxu0 0
    %6437 = vmatpush1.bf16.msra.mxu0 0
    %6438 = vmatprep.subr.bf16.mxu0 0
    %6439 = vmatpush1.bf16.msra.mxu0 0
    %6440 = vmatprep.subr.bf16.mxu0 0
    %6441 = vmatpush1.bf16.msra.mxu0 0
    %6442 = vmatprep.subr.bf16.mxu0 0
    %6443 = vmatpush1.bf16.msra.mxu0 0
    %6444 = vmatprep.subr.bf16.mxu0 0
    %6445 = vmatpush1.bf16.msra.mxu0 0
    %6446 = vmatprep.subr.bf16.mxu0 0
    %6447 = vmatpush1.bf16.msra.mxu0 0
    %6448 = vmatprep.subr.bf16.mxu0 0
    %6449 = vmatpush1.bf16.msra.mxu0 0
    %6450 = vmatprep.subr.bf16.mxu0 0
    %6451 = vmatpush1.bf16.msra.mxu0 0
    %6452 = vmatprep.mubr.bf16.mxu0 0
    %6453 = vmatmul.mubr.bf16.gmra.mrb[0].mxu0 %v6415
    %v6454 = vpop.f32.mrb[0].mxu0
    %v6455 = vadd.f32 0.0, %v6454
    %v6456 = vpop.f32.mrb[0].mxu0
    %v6457 = vpop.f32.mrb[0].mxu0
    %v6458 = vpop.f32.mrb[0].mxu0
    %6459 = vdwg.mxu0
    %v6461 = vsel %vm4050, %v4595, 0
    %v6464 = vsel %vm4622, %v1081, 0
    %6466 = vmatprep.subr.bf16.mxu0 0
    %6467 = vmatpush1.bf16.msra.mxu0 %v6464
    %6468 = vmatprep.subr.bf16.mxu0 0
    %6469 = vmatpush1.bf16.msra.mxu0 0
    %6470 = vmatprep.subr.bf16.mxu0 0
    %6471 = vmatpush1.bf16.msra.mxu0 0
    %6472 = vmatprep.subr.bf16.mxu0 0
    %6473 = vmatpush1.bf16.msra.mxu0 0
    %6474 = vmatprep.subr.bf16.mxu0 0
    %6475 = vmatpush1.bf16.msra.mxu0 0
    %6476 = vmatprep.subr.bf16.mxu0 0
    %6477 = vmatpush1.bf16.msra.mxu0 0
    %6478 = vmatprep.subr.bf16.mxu0 0
    %6479 = vmatpush1.bf16.msra.mxu0 0
    %6480 = vmatprep.subr.bf16.mxu0 0
    %6481 = vmatpush1.bf16.msra.mxu0 0
    %6482 = vmatprep.subr.bf16.mxu0 0
    %6483 = vmatpush1.bf16.msra.mxu0 0
    %6484 = vmatprep.subr.bf16.mxu0 0
    %6485 = vmatpush1.bf16.msra.mxu0 0
    %6486 = vmatprep.subr.bf16.mxu0 0
    %6487 = vmatpush1.bf16.msra.mxu0 0
    %6488 = vmatprep.subr.bf16.mxu0 0
    %6489 = vmatpush1.bf16.msra.mxu0 0
    %6490 = vmatprep.subr.bf16.mxu0 0
    %6491 = vmatpush1.bf16.msra.mxu0 0
    %6492 = vmatprep.subr.bf16.mxu0 0
    %6493 = vmatpush1.bf16.msra.mxu0 0
    %6494 = vmatprep.subr.bf16.mxu0 0
    %6495 = vmatpush1.bf16.msra.mxu0 0
    %6496 = vmatprep.subr.bf16.mxu0 0
    %6497 = vmatpush1.bf16.msra.mxu0 0
    %6498 = vmatprep.mubr.bf16.mxu0 0
    %6499 = vmatmul.mubr.bf16.gmra.mrb[0].mxu0 %v6461
    %v6500 = vpop.f32.mrb[0].mxu0
    %v6501 = vadd.f32 0.0, %v6500
    %v6502 = vpop.f32.mrb[0].mxu0
    %v6503 = vpop.f32.mrb[0].mxu0
    %v6504 = vpop.f32.mrb[0].mxu0
    %6505 = vdwg.mxu0
    %v6507 = vsel %vm4050, %v4596, 0
    %v6510 = vsel %vm4622, %v1082, 0
    %6512 = vmatprep.subr.bf16.mxu0 0
    %6513 = vmatpush1.bf16.msra.mxu0 %v6510
    %6514 = vmatprep.subr.bf16.mxu0 0
    %6515 = vmatpush1.bf16.msra.mxu0 0
    %6516 = vmatprep.subr.bf16.mxu0 0
    %6517 = vmatpush1.bf16.msra.mxu0 0
    %6518 = vmatprep.subr.bf16.mxu0 0
    %6519 = vmatpush1.bf16.msra.mxu0 0
    %6520 = vmatprep.subr.bf16.mxu0 0
    %6521 = vmatpush1.bf16.msra.mxu0 0
    %6522 = vmatprep.subr.bf16.mxu0 0
    %6523 = vmatpush1.bf16.msra.mxu0 0
    %6524 = vmatprep.subr.bf16.mxu0 0
    %6525 = vmatpush1.bf16.msra.mxu0 0
    %6526 = vmatprep.subr.bf16.mxu0 0
    %6527 = vmatpush1.bf16.msra.mxu0 0
    %6528 = vmatprep.subr.bf16.mxu0 0
    %6529 = vmatpush1.bf16.msra.mxu0 0
    %6530 = vmatprep.subr.bf16.mxu0 0
    %6531 = vmatpush1.bf16.msra.mxu0 0
    %6532 = vmatprep.subr.bf16.mxu0 0
    %6533 = vmatpush1.bf16.msra.mxu0 0
    %6534 = vmatprep.subr.bf16.mxu0 0
    %6535 = vmatpush1.bf16.msra.mxu0 0
    %6536 = vmatprep.subr.bf16.mxu0 0
    %6537 = vmatpush1.bf16.msra.mxu0 0
    %6538 = vmatprep.subr.bf16.mxu0 0
    %6539 = vmatpush1.bf16.msra.mxu0 0
    %6540 = vmatprep.subr.bf16.mxu0 0
    %6541 = vmatpush1.bf16.msra.mxu0 0
    %6542 = vmatprep.subr.bf16.mxu0 0
    %6543 = vmatpush1.bf16.msra.mxu0 0
    %6544 = vmatprep.mubr.bf16.mxu0 0
    %6545 = vmatmul.mubr.bf16.gmra.mrb[0].mxu0 %v6507
    %v6546 = vpop.f32.mrb[0].mxu0
    %v6547 = vadd.f32 0.0, %v6546
    %v6548 = vpop.f32.mrb[0].mxu0
    %v6549 = vpop.f32.mrb[0].mxu0
    %v6550 = vpop.f32.mrb[0].mxu0
    %6551 = vdwg.mxu0
    %v6553 = vsel %vm4050, %v4597, 0
    %v6556 = vsel %vm4622, %v1083, 0
    %6558 = vmatprep.subr.bf16.mxu0 0
    %6559 = vmatpush1.bf16.msra.mxu0 %v6556
    %6560 = vmatprep.subr.bf16.mxu0 0
    %6561 = vmatpush1.bf16.msra.mxu0 0
    %6562 = vmatprep.subr.bf16.mxu0 0
    %6563 = vmatpush1.bf16.msra.mxu0 0
    %6564 = vmatprep.subr.bf16.mxu0 0
    %6565 = vmatpush1.bf16.msra.mxu0 0
    %6566 = vmatprep.subr.bf16.mxu0 0
    %6567 = vmatpush1.bf16.msra.mxu0 0
    %6568 = vmatprep.subr.bf16.mxu0 0
    %6569 = vmatpush1.bf16.msra.mxu0 0
    %6570 = vmatprep.subr.bf16.mxu0 0
    %6571 = vmatpush1.bf16.msra.mxu0 0
    %6572 = vmatprep.subr.bf16.mxu0 0
    %6573 = vmatpush1.bf16.msra.mxu0 0
    %6574 = vmatprep.subr.bf16.mxu0 0
    %6575 = vmatpush1.bf16.msra.mxu0 0
    %6576 = vmatprep.subr.bf16.mxu0 0
    %6577 = vmatpush1.bf16.msra.mxu0 0
    %6578 = vmatprep.subr.bf16.mxu0 0
    %6579 = vmatpush1.bf16.msra.mxu0 0
    %6580 = vmatprep.subr.bf16.mxu0 0
    %6581 = vmatpush1.bf16.msra.mxu0 0
    %6582 = vmatprep.subr.bf16.mxu0 0
    %6583 = vmatpush1.bf16.msra.mxu0 0
    %6584 = vmatprep.subr.bf16.mxu0 0
    %6585 = vmatpush1.bf16.msra.mxu0 0
    %6586 = vmatprep.subr.bf16.mxu0 0
    %6587 = vmatpush1.bf16.msra.mxu0 0
    %6588 = vmatprep.subr.bf16.mxu0 0
    %6589 = vmatpush1.bf16.msra.mxu0 0
    %6590 = vmatprep.mubr.bf16.mxu0 0
    %6591 = vmatmul.mubr.bf16.gmra.mrb[0].mxu0 %v6553
    %v6592 = vpop.f32.mrb[0].mxu0
    %v6593 = vadd.f32 0.0, %v6592
    %v6594 = vpop.f32.mrb[0].mxu0
    %v6595 = vpop.f32.mrb[0].mxu0
    %v6596 = vpop.f32.mrb[0].mxu0
    %6597 = vdwg.mxu0
    %v6599 = vsel %vm4050, %v4598, 0
    %v6602 = vsel %vm4622, %v1084, 0
    %6604 = vmatprep.subr.bf16.mxu0 0
    %6605 = vmatpush1.bf16.msra.mxu0 %v6602
    %6606 = vmatprep.subr.bf16.mxu0 0
    %6607 = vmatpush1.bf16.msra.mxu0 0
    %6608 = vmatprep.subr.bf16.mxu0 0
    %6609 = vmatpush1.bf16.msra.mxu0 0
    %6610 = vmatprep.subr.bf16.mxu0 0
    %6611 = vmatpush1.bf16.msra.mxu0 0
    %6612 = vmatprep.subr.bf16.mxu0 0
    %6613 = vmatpush1.bf16.msra.mxu0 0
    %6614 = vmatprep.subr.bf16.mxu0 0
    %6615 = vmatpush1.bf16.msra.mxu0 0
    %6616 = vmatprep.subr.bf16.mxu0 0
    %6617 = vmatpush1.bf16.msra.mxu0 0
    %6618 = vmatprep.subr.bf16.mxu0 0
    %6619 = vmatpush1.bf16.msra.mxu0 0
    %6620 = vmatprep.subr.bf16.mxu0 0
    %6621 = vmatpush1.bf16.msra.mxu0 0
    %6622 = vmatprep.subr.bf16.mxu0 0
    %6623 = vmatpush1.bf16.msra.mxu0 0
    %6624 = vmatprep.subr.bf16.mxu0 0
    %6625 = vmatpush1.bf16.msra.mxu0 0
    %6626 = vmatprep.subr.bf16.mxu0 0
    %6627 = vmatpush1.bf16.msra.mxu0 0
    %6628 = vmatprep.subr.bf16.mxu0 0
    %6629 = vmatpush1.bf16.msra.mxu0 0
    %6630 = vmatprep.subr.bf16.mxu0 0
    %6631 = vmatpush1.bf16.msra.mxu0 0
    %6632 = vmatprep.subr.bf16.mxu0 0
    %6633 = vmatpush1.bf16.msra.mxu0 0
    %6634 = vmatprep.subr.bf16.mxu0 0
    %6635 = vmatpush1.bf16.msra.mxu0 0
    %6636 = vmatprep.mubr.bf16.mxu0 0
    %6637 = vmatmul.mubr.bf16.gmra.mrb[0].mxu0 %v6599
    %v6638 = vpop.f32.mrb[0].mxu0
    %v6639 = vadd.f32 0.0, %v6638
    %v6640 = vpop.f32.mrb[0].mxu0
    %v6641 = vpop.f32.mrb[0].mxu0
    %v6642 = vpop.f32.mrb[0].mxu0
    %6643 = vdwg.mxu0
    %v6645 = vsel %vm4050, %v4599, 0
    %v6648 = vsel %vm4622, %v1085, 0
    %6650 = vmatprep.subr.bf16.mxu0 0
    %6651 = vmatpush1.bf16.msra.mxu0 %v6648
    %6652 = vmatprep.subr.bf16.mxu0 0
    %6653 = vmatpush1.bf16.msra.mxu0 0
    %6654 = vmatprep.subr.bf16.mxu0 0
    %6655 = vmatpush1.bf16.msra.mxu0 0
    %6656 = vmatprep.subr.bf16.mxu0 0
    %6657 = vmatpush1.bf16.msra.mxu0 0
    %6658 = vmatprep.subr.bf16.mxu0 0
    %6659 = vmatpush1.bf16.msra.mxu0 0
    %6660 = vmatprep.subr.bf16.mxu0 0
    %6661 = vmatpush1.bf16.msra.mxu0 0
    %6662 = vmatprep.subr.bf16.mxu0 0
    %6663 = vmatpush1.bf16.msra.mxu0 0
    %6664 = vmatprep.subr.bf16.mxu0 0
    %6665 = vmatpush1.bf16.msra.mxu0 0
    %6666 = vmatprep.subr.bf16.mxu0 0
    %6667 = vmatpush1.bf16.msra.mxu0 0
    %6668 = vmatprep.subr.bf16.mxu0 0
    %6669 = vmatpush1.bf16.msra.mxu0 0
    %6670 = vmatprep.subr.bf16.mxu0 0
    %6671 = vmatpush1.bf16.msra.mxu0 0
    %6672 = vmatprep.subr.bf16.mxu0 0
    %6673 = vmatpush1.bf16.msra.mxu0 0
    %6674 = vmatprep.subr.bf16.mxu0 0
    %6675 = vmatpush1.bf16.msra.mxu0 0
    %6676 = vmatprep.subr.bf16.mxu0 0
    %6677 = vmatpush1.bf16.msra.mxu0 0
    %6678 = vmatprep.subr.bf16.mxu0 0
    %6679 = vmatpush1.bf16.msra.mxu0 0
    %6680 = vmatprep.subr.bf16.mxu0 0
    %6681 = vmatpush1.bf16.msra.mxu0 0
    %6682 = vmatprep.mubr.bf16.mxu0 0
    %6683 = vmatmul.mubr.bf16.gmra.mrb[0].mxu0 %v6645
    %v6684 = vpop.f32.mrb[0].mxu0
    %v6685 = vadd.f32 0.0, %v6684
    %v6686 = vpop.f32.mrb[0].mxu0
    %v6687 = vpop.f32.mrb[0].mxu0
    %v6688 = vpop.f32.mrb[0].mxu0
    %6689 = vdwg.mxu0
    %v6691 = vsel %vm4050, %v4600, 0
    %v6694 = vsel %vm4622, %v1086, 0
    %6696 = vmatprep.subr.bf16.mxu0 0
    %6697 = vmatpush1.bf16.msra.mxu0 %v6694
    %6698 = vmatprep.subr.bf16.mxu0 0
    %6699 = vmatpush1.bf16.msra.mxu0 0
    %6700 = vmatprep.subr.bf16.mxu0 0
    %6701 = vmatpush1.bf16.msra.mxu0 0
    %6702 = vmatprep.subr.bf16.mxu0 0
    %6703 = vmatpush1.bf16.msra.mxu0 0
    %6704 = vmatprep.subr.bf16.mxu0 0
    %6705 = vmatpush1.bf16.msra.mxu0 0
    %6706 = vmatprep.subr.bf16.mxu0 0
    %6707 = vmatpush1.bf16.msra.mxu0 0
    %6708 = vmatprep.subr.bf16.mxu0 0
    %6709 = vmatpush1.bf16.msra.mxu0 0
    %6710 = vmatprep.subr.bf16.mxu0 0
    %6711 = vmatpush1.bf16.msra.mxu0 0
    %6712 = vmatprep.subr.bf16.mxu0 0
    %6713 = vmatpush1.bf16.msra.mxu0 0
    %6714 = vmatprep.subr.bf16.mxu0 0
    %6715 = vmatpush1.bf16.msra.mxu0 0
    %6716 = vmatprep.subr.bf16.mxu0 0
    %6717 = vmatpush1.bf16.msra.mxu0 0
    %6718 = vmatprep.subr.bf16.mxu0 0
    %6719 = vmatpush1.bf16.msra.mxu0 0
    %6720 = vmatprep.subr.bf16.mxu0 0
    %6721 = vmatpush1.bf16.msra.mxu0 0
    %6722 = vmatprep.subr.bf16.mxu0 0
    %6723 = vmatpush1.bf16.msra.mxu0 0
    %6724 = vmatprep.subr.bf16.mxu0 0
    %6725 = vmatpush1.bf16.msra.mxu0 0
    %6726 = vmatprep.subr.bf16.mxu0 0
    %6727 = vmatpush1.bf16.msra.mxu0 0
    %6728 = vmatprep.mubr.bf16.mxu0 0
    %6729 = vmatmul.mubr.bf16.gmra.mrb[0].mxu0 %v6691
    %v6730 = vpop.f32.mrb[0].mxu0
    %v6731 = vadd.f32 0.0, %v6730
    %v6732 = vpop.f32.mrb[0].mxu0
    %v6733 = vpop.f32.mrb[0].mxu0
    %v6734 = vpop.f32.mrb[0].mxu0
    %6735 = vdwg.mxu0
    %v6737 = vsel %vm4050, %v4601, 0
    %v6740 = vsel %vm4622, %v1087, 0
    %6742 = vmatprep.subr.bf16.mxu0 0
    %6743 = vmatpush1.bf16.msra.mxu0 %v6740
    %6744 = vmatprep.subr.bf16.mxu0 0
    %6745 = vmatpush1.bf16.msra.mxu0 0
    %6746 = vmatprep.subr.bf16.mxu0 0
    %6747 = vmatpush1.bf16.msra.mxu0 0
    %6748 = vmatprep.subr.bf16.mxu0 0
    %6749 = vmatpush1.bf16.msra.mxu0 0
    %6750 = vmatprep.subr.bf16.mxu0 0
    %6751 = vmatpush1.bf16.msra.mxu0 0
    %6752 = vmatprep.subr.bf16.mxu0 0
    %6753 = vmatpush1.bf16.msra.mxu0 0
    %6754 = vmatprep.subr.bf16.mxu0 0
    %6755 = vmatpush1.bf16.msra.mxu0 0
    %6756 = vmatprep.subr.bf16.mxu0 0
    %6757 = vmatpush1.bf16.msra.mxu0 0
    %6758 = vmatprep.subr.bf16.mxu0 0
    %6759 = vmatpush1.bf16.msra.mxu0 0
    %6760 = vmatprep.subr.bf16.mxu0 0
    %6761 = vmatpush1.bf16.msra.mxu0 0
    %6762 = vmatprep.subr.bf16.mxu0 0
    %6763 = vmatpush1.bf16.msra.mxu0 0
    %6764 = vmatprep.subr.bf16.mxu0 0
    %6765 = vmatpush1.bf16.msra.mxu0 0
    %6766 = vmatprep.subr.bf16.mxu0 0
    %6767 = vmatpush1.bf16.msra.mxu0 0
    %6768 = vmatprep.subr.bf16.mxu0 0
    %6769 = vmatpush1.bf16.msra.mxu0 0
    %6770 = vmatprep.subr.bf16.mxu0 0
    %6771 = vmatpush1.bf16.msra.mxu0 0
    %6772 = vmatprep.subr.bf16.mxu0 0
    %6773 = vmatpush1.bf16.msra.mxu0 0
    %6774 = vmatprep.mubr.bf16.mxu0 0
    %6775 = vmatmul.mubr.bf16.gmra.mrb[0].mxu0 %v6737
    %v6776 = vpop.f32.mrb[0].mxu0
    %v6777 = vadd.f32 0.0, %v6776
    %v6778 = vpop.f32.mrb[0].mxu0
    %v6779 = vpop.f32.mrb[0].mxu0
    %v6780 = vpop.f32.mrb[0].mxu0
    %6781 = vdwg.mxu0
    %v6783 = vsel %vm4050, %v4602, 0
    %v6786 = vsel %vm4622, %v1088, 0
    %6788 = vmatprep.subr.bf16.mxu0 0
    %6789 = vmatpush1.bf16.msra.mxu0 %v6786
    %6790 = vmatprep.subr.bf16.mxu0 0
    %6791 = vmatpush1.bf16.msra.mxu0 0
    %6792 = vmatprep.subr.bf16.mxu0 0
    %6793 = vmatpush1.bf16.msra.mxu0 0
    %6794 = vmatprep.subr.bf16.mxu0 0
    %6795 = vmatpush1.bf16.msra.mxu0 0
    %6796 = vmatprep.subr.bf16.mxu0 0
    %6797 = vmatpush1.bf16.msra.mxu0 0
    %6798 = vmatprep.subr.bf16.mxu0 0
    %6799 = vmatpush1.bf16.msra.mxu0 0
    %6800 = vmatprep.subr.bf16.mxu0 0
    %6801 = vmatpush1.bf16.msra.mxu0 0
    %6802 = vmatprep.subr.bf16.mxu0 0
    %6803 = vmatpush1.bf16.msra.mxu0 0
    %6804 = vmatprep.subr.bf16.mxu0 0
    %6805 = vmatpush1.bf16.msra.mxu0 0
    %6806 = vmatprep.subr.bf16.mxu0 0
    %6807 = vmatpush1.bf16.msra.mxu0 0
    %6808 = vmatprep.subr.bf16.mxu0 0
    %6809 = vmatpush1.bf16.msra.mxu0 0
    %6810 = vmatprep.subr.bf16.mxu0 0
    %6811 = vmatpush1.bf16.msra.mxu0 0
    %6812 = vmatprep.subr.bf16.mxu0 0
    %6813 = vmatpush1.bf16.msra.mxu0 0
    %6814 = vmatprep.subr.bf16.mxu0 0
    %6815 = vmatpush1.bf16.msra.mxu0 0
    %6816 = vmatprep.subr.bf16.mxu0 0
    %6817 = vmatpush1.bf16.msra.mxu0 0
    %6818 = vmatprep.subr.bf16.mxu0 0
    %6819 = vmatpush1.bf16.msra.mxu0 0
    %6820 = vmatprep.mubr.bf16.mxu0 0
    %6821 = vmatmul.mubr.bf16.gmra.mrb[0].mxu0 %v6783
    %v6822 = vpop.f32.mrb[0].mxu0
    %v6823 = vadd.f32 0.0, %v6822
    %v6824 = vpop.f32.mrb[0].mxu0
    %v6825 = vpop.f32.mrb[0].mxu0
    %v6826 = vpop.f32.mrb[0].mxu0
    %6827 = vdwg.mxu0
    %v6829 = vsel %vm4050, %v4603, 0
    %v6832 = vsel %vm4622, %v1089, 0
    %6834 = vmatprep.subr.bf16.mxu0 0
    %6835 = vmatpush1.bf16.msra.mxu0 %v6832
    %6836 = vmatprep.subr.bf16.mxu0 0
    %6837 = vmatpush1.bf16.msra.mxu0 0
    %6838 = vmatprep.subr.bf16.mxu0 0
    %6839 = vmatpush1.bf16.msra.mxu0 0
    %6840 = vmatprep.subr.bf16.mxu0 0
    %6841 = vmatpush1.bf16.msra.mxu0 0
    %6842 = vmatprep.subr.bf16.mxu0 0
    %6843 = vmatpush1.bf16.msra.mxu0 0
    %6844 = vmatprep.subr.bf16.mxu0 0
    %6845 = vmatpush1.bf16.msra.mxu0 0
    %6846 = vmatprep.subr.bf16.mxu0 0
    %6847 = vmatpush1.bf16.msra.mxu0 0
    %6848 = vmatprep.subr.bf16.mxu0 0
    %6849 = vmatpush1.bf16.msra.mxu0 0
    %6850 = vmatprep.subr.bf16.mxu0 0
    %6851 = vmatpush1.bf16.msra.mxu0 0
    %6852 = vmatprep.subr.bf16.mxu0 0
    %6853 = vmatpush1.bf16.msra.mxu0 0
    %6854 = vmatprep.subr.bf16.mxu0 0
    %6855 = vmatpush1.bf16.msra.mxu0 0
    %6856 = vmatprep.subr.bf16.mxu0 0
    %6857 = vmatpush1.bf16.msra.mxu0 0
    %6858 = vmatprep.subr.bf16.mxu0 0
    %6859 = vmatpush1.bf16.msra.mxu0 0
    %6860 = vmatprep.subr.bf16.mxu0 0
    %6861 = vmatpush1.bf16.msra.mxu0 0
    %6862 = vmatprep.subr.bf16.mxu0 0
    %6863 = vmatpush1.bf16.msra.mxu0 0
    %6864 = vmatprep.subr.bf16.mxu0 0
    %6865 = vmatpush1.bf16.msra.mxu0 0
    %6866 = vmatprep.mubr.bf16.mxu0 0
    %6867 = vmatmul.mubr.bf16.gmra.mrb[0].mxu0 %v6829
    %v6868 = vpop.f32.mrb[0].mxu0
    %v6869 = vadd.f32 0.0, %v6868
    %v6870 = vpop.f32.mrb[0].mxu0
    %v6871 = vpop.f32.mrb[0].mxu0
    %v6872 = vpop.f32.mrb[0].mxu0
    %6873 = vdwg.mxu0
    %v6875 = vsel %vm4050, %v4604, 0
    %v6878 = vsel %vm4622, %v1090, 0
    %6880 = vmatprep.subr.bf16.mxu0 0
    %6881 = vmatpush1.bf16.msra.mxu0 %v6878
    %6882 = vmatprep.subr.bf16.mxu0 0
    %6883 = vmatpush1.bf16.msra.mxu0 0
    %6884 = vmatprep.subr.bf16.mxu0 0
    %6885 = vmatpush1.bf16.msra.mxu0 0
    %6886 = vmatprep.subr.bf16.mxu0 0
    %6887 = vmatpush1.bf16.msra.mxu0 0
    %6888 = vmatprep.subr.bf16.mxu0 0
    %6889 = vmatpush1.bf16.msra.mxu0 0
    %6890 = vmatprep.subr.bf16.mxu0 0
    %6891 = vmatpush1.bf16.msra.mxu0 0
    %6892 = vmatprep.subr.bf16.mxu0 0
    %6893 = vmatpush1.bf16.msra.mxu0 0
    %6894 = vmatprep.subr.bf16.mxu0 0
    %6895 = vmatpush1.bf16.msra.mxu0 0
    %6896 = vmatprep.subr.bf16.mxu0 0
    %6897 = vmatpush1.bf16.msra.mxu0 0
    %6898 = vmatprep.subr.bf16.mxu0 0
    %6899 = vmatpush1.bf16.msra.mxu0 0
    %6900 = vmatprep.subr.bf16.mxu0 0
    %6901 = vmatpush1.bf16.msra.mxu0 0
    %6902 = vmatprep.subr.bf16.mxu0 0
    %6903 = vmatpush1.bf16.msra.mxu0 0
    %6904 = vmatprep.subr.bf16.mxu0 0
    %6905 = vmatpush1.bf16.msra.mxu0 0
    %6906 = vmatprep.subr.bf16.mxu0 0
    %6907 = vmatpush1.bf16.msra.mxu0 0
    %6908 = vmatprep.subr.bf16.mxu0 0
    %6909 = vmatpush1.bf16.msra.mxu0 0
    %6910 = vmatprep.subr.bf16.mxu0 0
    %6911 = vmatpush1.bf16.msra.mxu0 0
    %6912 = vmatprep.mubr.bf16.mxu0 0
    %6913 = vmatmul.mubr.bf16.gmra.mrb[0].mxu0 %v6875
    %v6914 = vpop.f32.mrb[0].mxu0
    %v6915 = vadd.f32 0.0, %v6914
    %v6916 = vpop.f32.mrb[0].mxu0
    %v6917 = vpop.f32.mrb[0].mxu0
    %v6918 = vpop.f32.mrb[0].mxu0
    %6919 = vdwg.mxu0
    %v6921 = vsel %vm4050, %v4605, 0
    %v6924 = vsel %vm4622, %v1091, 0
    %6926 = vmatprep.subr.bf16.mxu0 0
    %6927 = vmatpush1.bf16.msra.mxu0 %v6924
    %6928 = vmatprep.subr.bf16.mxu0 0
    %6929 = vmatpush1.bf16.msra.mxu0 0
    %6930 = vmatprep.subr.bf16.mxu0 0
    %6931 = vmatpush1.bf16.msra.mxu0 0
    %6932 = vmatprep.subr.bf16.mxu0 0
    %6933 = vmatpush1.bf16.msra.mxu0 0
    %6934 = vmatprep.subr.bf16.mxu0 0
    %6935 = vmatpush1.bf16.msra.mxu0 0
    %6936 = vmatprep.subr.bf16.mxu0 0
    %6937 = vmatpush1.bf16.msra.mxu0 0
    %6938 = vmatprep.subr.bf16.mxu0 0
    %6939 = vmatpush1.bf16.msra.mxu0 0
    %6940 = vmatprep.subr.bf16.mxu0 0
    %6941 = vmatpush1.bf16.msra.mxu0 0
    %6942 = vmatprep.subr.bf16.mxu0 0
    %6943 = vmatpush1.bf16.msra.mxu0 0
    %6944 = vmatprep.subr.bf16.mxu0 0
    %6945 = vmatpush1.bf16.msra.mxu0 0
    %6946 = vmatprep.subr.bf16.mxu0 0
    %6947 = vmatpush1.bf16.msra.mxu0 0
    %6948 = vmatprep.subr.bf16.mxu0 0
    %6949 = vmatpush1.bf16.msra.mxu0 0
    %6950 = vmatprep.subr.bf16.mxu0 0
    %6951 = vmatpush1.bf16.msra.mxu0 0
    %6952 = vmatprep.subr.bf16.mxu0 0
    %6953 = vmatpush1.bf16.msra.mxu0 0
    %6954 = vmatprep.subr.bf16.mxu0 0
    %6955 = vmatpush1.bf16.msra.mxu0 0
    %6956 = vmatprep.subr.bf16.mxu0 0
    %6957 = vmatpush1.bf16.msra.mxu0 0
    %6958 = vmatprep.mubr.bf16.mxu0 0
    %6959 = vmatmul.mubr.bf16.gmra.mrb[0].mxu0 %v6921
    %v6960 = vpop.f32.mrb[0].mxu0
    %v6961 = vadd.f32 0.0, %v6960
    %v6962 = vpop.f32.mrb[0].mxu0
    %v6963 = vpop.f32.mrb[0].mxu0
    %v6964 = vpop.f32.mrb[0].mxu0
    %6965 = vdwg.mxu0
    %v6967 = vsel %vm4050, %v4606, 0
    %v6970 = vsel %vm4622, %v1092, 0
    %6972 = vmatprep.subr.bf16.mxu0 0
    %6973 = vmatpush1.bf16.msra.mxu0 %v6970
    %6974 = vmatprep.subr.bf16.mxu0 0
    %6975 = vmatpush1.bf16.msra.mxu0 0
    %6976 = vmatprep.subr.bf16.mxu0 0
    %6977 = vmatpush1.bf16.msra.mxu0 0
    %6978 = vmatprep.subr.bf16.mxu0 0
    %6979 = vmatpush1.bf16.msra.mxu0 0
    %6980 = vmatprep.subr.bf16.mxu0 0
    %6981 = vmatpush1.bf16.msra.mxu0 0
    %6982 = vmatprep.subr.bf16.mxu0 0
    %6983 = vmatpush1.bf16.msra.mxu0 0
    %6984 = vmatprep.subr.bf16.mxu0 0
    %6985 = vmatpush1.bf16.msra.mxu0 0
    %6986 = vmatprep.subr.bf16.mxu0 0
    %6987 = vmatpush1.bf16.msra.mxu0 0
    %6988 = vmatprep.subr.bf16.mxu0 0
    %6989 = vmatpush1.bf16.msra.mxu0 0
    %6990 = vmatprep.subr.bf16.mxu0 0
    %6991 = vmatpush1.bf16.msra.mxu0 0
    %6992 = vmatprep.subr.bf16.mxu0 0
    %6993 = vmatpush1.bf16.msra.mxu0 0
    %6994 = vmatprep.subr.bf16.mxu0 0
    %6995 = vmatpush1.bf16.msra.mxu0 0
    %6996 = vmatprep.subr.bf16.mxu0 0
    %6997 = vmatpush1.bf16.msra.mxu0 0
    %6998 = vmatprep.subr.bf16.mxu0 0
    %6999 = vmatpush1.bf16.msra.mxu0 0
    %7000 = vmatprep.subr.bf16.mxu0 0
    %7001 = vmatpush1.bf16.msra.mxu0 0
    %7002 = vmatprep.subr.bf16.mxu0 0
    %7003 = vmatpush1.bf16.msra.mxu0 0
    %7004 = vmatprep.mubr.bf16.mxu0 0
    %7005 = vmatmul.mubr.bf16.gmra.mrb[0].mxu0 %v6967
    %v7006 = vpop.f32.mrb[0].mxu0
    %v7007 = vadd.f32 0.0, %v7006
    %v7008 = vpop.f32.mrb[0].mxu0
    %v7009 = vpop.f32.mrb[0].mxu0
    %v7010 = vpop.f32.mrb[0].mxu0
    %7011 = vdwg.mxu0
    %v7013 = vsel %vm4050, %v4607, 0
    %v7016 = vsel %vm4622, %v1093, 0
    %7018 = vmatprep.subr.bf16.mxu0 0
    %7019 = vmatpush1.bf16.msra.mxu0 %v7016
    %7020 = vmatprep.subr.bf16.mxu0 0
    %7021 = vmatpush1.bf16.msra.mxu0 0
    %7022 = vmatprep.subr.bf16.mxu0 0
    %7023 = vmatpush1.bf16.msra.mxu0 0
    %7024 = vmatprep.subr.bf16.mxu0 0
    %7025 = vmatpush1.bf16.msra.mxu0 0
    %7026 = vmatprep.subr.bf16.mxu0 0
    %7027 = vmatpush1.bf16.msra.mxu0 0
    %7028 = vmatprep.subr.bf16.mxu0 0
    %7029 = vmatpush1.bf16.msra.mxu0 0
    %7030 = vmatprep.subr.bf16.mxu0 0
    %7031 = vmatpush1.bf16.msra.mxu0 0
    %7032 = vmatprep.subr.bf16.mxu0 0
    %7033 = vmatpush1.bf16.msra.mxu0 0
    %7034 = vmatprep.subr.bf16.mxu0 0
    %7035 = vmatpush1.bf16.msra.mxu0 0
    %7036 = vmatprep.subr.bf16.mxu0 0
    %7037 = vmatpush1.bf16.msra.mxu0 0
    %7038 = vmatprep.subr.bf16.mxu0 0
    %7039 = vmatpush1.bf16.msra.mxu0 0
    %7040 = vmatprep.subr.bf16.mxu0 0
    %7041 = vmatpush1.bf16.msra.mxu0 0
    %7042 = vmatprep.subr.bf16.mxu0 0
    %7043 = vmatpush1.bf16.msra.mxu0 0
    %7044 = vmatprep.subr.bf16.mxu0 0
    %7045 = vmatpush1.bf16.msra.mxu0 0
    %7046 = vmatprep.subr.bf16.mxu0 0
    %7047 = vmatpush1.bf16.msra.mxu0 0
    %7048 = vmatprep.subr.bf16.mxu0 0
    %7049 = vmatpush1.bf16.msra.mxu0 0
    %7050 = vmatprep.mubr.bf16.mxu0 0
    %7051 = vmatmul.mubr.bf16.gmra.mrb[0].mxu0 %v7013
    %v7052 = vpop.f32.mrb[0].mxu0
    %v7053 = vadd.f32 0.0, %v7052
    %v7054 = vpop.f32.mrb[0].mxu0
    %v7055 = vpop.f32.mrb[0].mxu0
    %v7056 = vpop.f32.mrb[0].mxu0
    %7057 = vdwg.mxu0
    %v7059 = vsel %vm4050, %v4608, 0
    %v7062 = vsel %vm4622, %v1094, 0
    %7064 = vmatprep.subr.bf16.mxu0 0
    %7065 = vmatpush1.bf16.msra.mxu0 %v7062
    %7066 = vmatprep.subr.bf16.mxu0 0
    %7067 = vmatpush1.bf16.msra.mxu0 0
    %7068 = vmatprep.subr.bf16.mxu0 0
    %7069 = vmatpush1.bf16.msra.mxu0 0
    %7070 = vmatprep.subr.bf16.mxu0 0
    %7071 = vmatpush1.bf16.msra.mxu0 0
    %7072 = vmatprep.subr.bf16.mxu0 0
    %7073 = vmatpush1.bf16.msra.mxu0 0
    %7074 = vmatprep.subr.bf16.mxu0 0
    %7075 = vmatpush1.bf16.msra.mxu0 0
    %7076 = vmatprep.subr.bf16.mxu0 0
    %7077 = vmatpush1.bf16.msra.mxu0 0
    %7078 = vmatprep.subr.bf16.mxu0 0
    %7079 = vmatpush1.bf16.msra.mxu0 0
    %7080 = vmatprep.subr.bf16.mxu0 0
    %7081 = vmatpush1.bf16.msra.mxu0 0
    %7082 = vmatprep.subr.bf16.mxu0 0
    %7083 = vmatpush1.bf16.msra.mxu0 0
    %7084 = vmatprep.subr.bf16.mxu0 0
    %7085 = vmatpush1.bf16.msra.mxu0 0
    %7086 = vmatprep.subr.bf16.mxu0 0
    %7087 = vmatpush1.bf16.msra.mxu0 0
    %7088 = vmatprep.subr.bf16.mxu0 0
    %7089 = vmatpush1.bf16.msra.mxu0 0
    %7090 = vmatprep.subr.bf16.mxu0 0
    %7091 = vmatpush1.bf16.msra.mxu0 0
    %7092 = vmatprep.subr.bf16.mxu0 0
    %7093 = vmatpush1.bf16.msra.mxu0 0
    %7094 = vmatprep.subr.bf16.mxu0 0
    %7095 = vmatpush1.bf16.msra.mxu0 0
    %7096 = vmatprep.mubr.bf16.mxu0 0
    %7097 = vmatmul.mubr.bf16.gmra.mrb[0].mxu0 %v7059
    %v7098 = vpop.f32.mrb[0].mxu0
    %v7099 = vadd.f32 0.0, %v7098
    %v7100 = vpop.f32.mrb[0].mxu0
    %v7101 = vpop.f32.mrb[0].mxu0
    %v7102 = vpop.f32.mrb[0].mxu0
    %7103 = vdwg.mxu0
    %v7105 = vsel %vm4050, %v4609, 0
    %v7108 = vsel %vm4622, %v1095, 0
    %7110 = vmatprep.subr.bf16.mxu0 0
    %7111 = vmatpush1.bf16.msra.mxu0 %v7108
    %7112 = vmatprep.subr.bf16.mxu0 0
    %7113 = vmatpush1.bf16.msra.mxu0 0
    %7114 = vmatprep.subr.bf16.mxu0 0
    %7115 = vmatpush1.bf16.msra.mxu0 0
    %7116 = vmatprep.subr.bf16.mxu0 0
    %7117 = vmatpush1.bf16.msra.mxu0 0
    %7118 = vmatprep.subr.bf16.mxu0 0
    %7119 = vmatpush1.bf16.msra.mxu0 0
    %7120 = vmatprep.subr.bf16.mxu0 0
    %7121 = vmatpush1.bf16.msra.mxu0 0
    %7122 = vmatprep.subr.bf16.mxu0 0
    %7123 = vmatpush1.bf16.msra.mxu0 0
    %7124 = vmatprep.subr.bf16.mxu0 0
    %7125 = vmatpush1.bf16.msra.mxu0 0
    %7126 = vmatprep.subr.bf16.mxu0 0
    %7127 = vmatpush1.bf16.msra.mxu0 0
    %7128 = vmatprep.subr.bf16.mxu0 0
    %7129 = vmatpush1.bf16.msra.mxu0 0
    %7130 = vmatprep.subr.bf16.mxu0 0
    %7131 = vmatpush1.bf16.msra.mxu0 0
    %7132 = vmatprep.subr.bf16.mxu0 0
    %7133 = vmatpush1.bf16.msra.mxu0 0
    %7134 = vmatprep.subr.bf16.mxu0 0
    %7135 = vmatpush1.bf16.msra.mxu0 0
    %7136 = vmatprep.subr.bf16.mxu0 0
    %7137 = vmatpush1.bf16.msra.mxu0 0
    %7138 = vmatprep.subr.bf16.mxu0 0
    %7139 = vmatpush1.bf16.msra.mxu0 0
    %7140 = vmatprep.subr.bf16.mxu0 0
    %7141 = vmatpush1.bf16.msra.mxu0 0
    %7142 = vmatprep.mubr.bf16.mxu0 0
    %7143 = vmatmul.mubr.bf16.gmra.mrb[0].mxu0 %v7105
    %v7144 = vpop.f32.mrb[0].mxu0
    %v7145 = vadd.f32 0.0, %v7144
    %v7146 = vpop.f32.mrb[0].mxu0
    %v7147 = vpop.f32.mrb[0].mxu0
    %v7148 = vpop.f32.mrb[0].mxu0
    %7149 = vdwg.mxu0
    %v7151 = vsel %vm4050, %v4610, 0
    %v7154 = vsel %vm4622, %v1096, 0
    %7156 = vmatprep.subr.bf16.mxu0 0
    %7157 = vmatpush1.bf16.msra.mxu0 %v7154
    %7158 = vmatprep.subr.bf16.mxu0 0
    %7159 = vmatpush1.bf16.msra.mxu0 0
    %7160 = vmatprep.subr.bf16.mxu0 0
    %7161 = vmatpush1.bf16.msra.mxu0 0
    %7162 = vmatprep.subr.bf16.mxu0 0
    %7163 = vmatpush1.bf16.msra.mxu0 0
    %7164 = vmatprep.subr.bf16.mxu0 0
    %7165 = vmatpush1.bf16.msra.mxu0 0
    %7166 = vmatprep.subr.bf16.mxu0 0
    %7167 = vmatpush1.bf16.msra.mxu0 0
    %7168 = vmatprep.subr.bf16.mxu0 0
    %7169 = vmatpush1.bf16.msra.mxu0 0
    %7170 = vmatprep.subr.bf16.mxu0 0
    %7171 = vmatpush1.bf16.msra.mxu0 0
    %7172 = vmatprep.subr.bf16.mxu0 0
    %7173 = vmatpush1.bf16.msra.mxu0 0
    %7174 = vmatprep.subr.bf16.mxu0 0
    %7175 = vmatpush1.bf16.msra.mxu0 0
    %7176 = vmatprep.subr.bf16.mxu0 0
    %7177 = vmatpush1.bf16.msra.mxu0 0
    %7178 = vmatprep.subr.bf16.mxu0 0
    %7179 = vmatpush1.bf16.msra.mxu0 0
    %7180 = vmatprep.subr.bf16.mxu0 0
    %7181 = vmatpush1.bf16.msra.mxu0 0
    %7182 = vmatprep.subr.bf16.mxu0 0
    %7183 = vmatpush1.bf16.msra.mxu0 0
    %7184 = vmatprep.subr.bf16.mxu0 0
    %7185 = vmatpush1.bf16.msra.mxu0 0
    %7186 = vmatprep.subr.bf16.mxu0 0
    %7187 = vmatpush1.bf16.msra.mxu0 0
    %7188 = vmatprep.mubr.bf16.mxu0 0
    %7189 = vmatmul.mubr.bf16.gmra.mrb[0].mxu0 %v7151
    %v7190 = vpop.f32.mrb[0].mxu0
    %v7191 = vadd.f32 0.0, %v7190
    %v7192 = vpop.f32.mrb[0].mxu0
    %v7193 = vpop.f32.mrb[0].mxu0
    %v7194 = vpop.f32.mrb[0].mxu0
    %7195 = vdwg.mxu0
    %v7197 = vsel %vm4050, %v4611, 0
    %v7200 = vsel %vm4622, %v1097, 0
    %7202 = vmatprep.subr.bf16.mxu0 0
    %7203 = vmatpush1.bf16.msra.mxu0 %v7200
    %7204 = vmatprep.subr.bf16.mxu0 0
    %7205 = vmatpush1.bf16.msra.mxu0 0
    %7206 = vmatprep.subr.bf16.mxu0 0
    %7207 = vmatpush1.bf16.msra.mxu0 0
    %7208 = vmatprep.subr.bf16.mxu0 0
    %7209 = vmatpush1.bf16.msra.mxu0 0
    %7210 = vmatprep.subr.bf16.mxu0 0
    %7211 = vmatpush1.bf16.msra.mxu0 0
    %7212 = vmatprep.subr.bf16.mxu0 0
    %7213 = vmatpush1.bf16.msra.mxu0 0
    %7214 = vmatprep.subr.bf16.mxu0 0
    %7215 = vmatpush1.bf16.msra.mxu0 0
    %7216 = vmatprep.subr.bf16.mxu0 0
    %7217 = vmatpush1.bf16.msra.mxu0 0
    %7218 = vmatprep.subr.bf16.mxu0 0
    %7219 = vmatpush1.bf16.msra.mxu0 0
    %7220 = vmatprep.subr.bf16.mxu0 0
    %7221 = vmatpush1.bf16.msra.mxu0 0
    %7222 = vmatprep.subr.bf16.mxu0 0
    %7223 = vmatpush1.bf16.msra.mxu0 0
    %7224 = vmatprep.subr.bf16.mxu0 0
    %7225 = vmatpush1.bf16.msra.mxu0 0
    %7226 = vmatprep.subr.bf16.mxu0 0
    %7227 = vmatpush1.bf16.msra.mxu0 0
    %7228 = vmatprep.subr.bf16.mxu0 0
    %7229 = vmatpush1.bf16.msra.mxu0 0
    %7230 = vmatprep.subr.bf16.mxu0 0
    %7231 = vmatpush1.bf16.msra.mxu0 0
    %7232 = vmatprep.subr.bf16.mxu0 0
    %7233 = vmatpush1.bf16.msra.mxu0 0
    %7234 = vmatprep.mubr.bf16.mxu0 0
    %7235 = vmatmul.mubr.bf16.gmra.mrb[0].mxu0 %v7197
    %v7236 = vpop.f32.mrb[0].mxu0
    %v7237 = vadd.f32 0.0, %v7236
    %v7238 = vpop.f32.mrb[0].mxu0
    %v7239 = vpop.f32.mrb[0].mxu0
    %v7240 = vpop.f32.mrb[0].mxu0
    %7241 = vdwg.mxu0
    %v7243 = vsel %vm4050, %v4612, 0
    %v7246 = vsel %vm4622, %v1098, 0
    %7248 = vmatprep.subr.bf16.mxu0 0
    %7249 = vmatpush1.bf16.msra.mxu0 %v7246
    %7250 = vmatprep.subr.bf16.mxu0 0
    %7251 = vmatpush1.bf16.msra.mxu0 0
    %7252 = vmatprep.subr.bf16.mxu0 0
    %7253 = vmatpush1.bf16.msra.mxu0 0
    %7254 = vmatprep.subr.bf16.mxu0 0
    %7255 = vmatpush1.bf16.msra.mxu0 0
    %7256 = vmatprep.subr.bf16.mxu0 0
    %7257 = vmatpush1.bf16.msra.mxu0 0
    %7258 = vmatprep.subr.bf16.mxu0 0
    %7259 = vmatpush1.bf16.msra.mxu0 0
    %7260 = vmatprep.subr.bf16.mxu0 0
    %7261 = vmatpush1.bf16.msra.mxu0 0
    %7262 = vmatprep.subr.bf16.mxu0 0
    %7263 = vmatpush1.bf16.msra.mxu0 0
    %7264 = vmatprep.subr.bf16.mxu0 0
    %7265 = vmatpush1.bf16.msra.mxu0 0
    %7266 = vmatprep.subr.bf16.mxu0 0
    %7267 = vmatpush1.bf16.msra.mxu0 0
    %7268 = vmatprep.subr.bf16.mxu0 0
    %7269 = vmatpush1.bf16.msra.mxu0 0
    %7270 = vmatprep.subr.bf16.mxu0 0
    %7271 = vmatpush1.bf16.msra.mxu0 0
    %7272 = vmatprep.subr.bf16.mxu0 0
    %7273 = vmatpush1.bf16.msra.mxu0 0
    %7274 = vmatprep.subr.bf16.mxu0 0
    %7275 = vmatpush1.bf16.msra.mxu0 0
    %7276 = vmatprep.subr.bf16.mxu0 0
    %7277 = vmatpush1.bf16.msra.mxu0 0
    %7278 = vmatprep.subr.bf16.mxu0 0
    %7279 = vmatpush1.bf16.msra.mxu0 0
    %7280 = vmatprep.mubr.bf16.mxu0 0
    %7281 = vmatmul.mubr.bf16.gmra.mrb[0].mxu0 %v7243
    %v7282 = vpop.f32.mrb[0].mxu0
    %v7283 = vadd.f32 0.0, %v7282
    %v7284 = vpop.f32.mrb[0].mxu0
    %v7285 = vpop.f32.mrb[0].mxu0
    %v7286 = vpop.f32.mrb[0].mxu0
    %7287 = vdwg.mxu0
    %v7289 = vsel %vm4050, %v4613, 0
    %v7292 = vsel %vm4622, %v1099, 0
    %7294 = vmatprep.subr.bf16.mxu0 0
    %7295 = vmatpush1.bf16.msra.mxu0 %v7292
    %7296 = vmatprep.subr.bf16.mxu0 0
    %7297 = vmatpush1.bf16.msra.mxu0 0
    %7298 = vmatprep.subr.bf16.mxu0 0
    %7299 = vmatpush1.bf16.msra.mxu0 0
    %7300 = vmatprep.subr.bf16.mxu0 0
    %7301 = vmatpush1.bf16.msra.mxu0 0
    %7302 = vmatprep.subr.bf16.mxu0 0
    %7303 = vmatpush1.bf16.msra.mxu0 0
    %7304 = vmatprep.subr.bf16.mxu0 0
    %7305 = vmatpush1.bf16.msra.mxu0 0
    %7306 = vmatprep.subr.bf16.mxu0 0
    %7307 = vmatpush1.bf16.msra.mxu0 0
    %7308 = vmatprep.subr.bf16.mxu0 0
    %7309 = vmatpush1.bf16.msra.mxu0 0
    %7310 = vmatprep.subr.bf16.mxu0 0
    %7311 = vmatpush1.bf16.msra.mxu0 0
    %7312 = vmatprep.subr.bf16.mxu0 0
    %7313 = vmatpush1.bf16.msra.mxu0 0
    %7314 = vmatprep.subr.bf16.mxu0 0
    %7315 = vmatpush1.bf16.msra.mxu0 0
    %7316 = vmatprep.subr.bf16.mxu0 0
    %7317 = vmatpush1.bf16.msra.mxu0 0
    %7318 = vmatprep.subr.bf16.mxu0 0
    %7319 = vmatpush1.bf16.msra.mxu0 0
    %7320 = vmatprep.subr.bf16.mxu0 0
    %7321 = vmatpush1.bf16.msra.mxu0 0
    %7322 = vmatprep.subr.bf16.mxu0 0
    %7323 = vmatpush1.bf16.msra.mxu0 0
    %7324 = vmatprep.subr.bf16.mxu0 0
    %7325 = vmatpush1.bf16.msra.mxu0 0
    %7326 = vmatprep.mubr.bf16.mxu0 0
    %7327 = vmatmul.mubr.bf16.gmra.mrb[0].mxu0 %v7289
    %v7328 = vpop.f32.mrb[0].mxu0
    %v7329 = vadd.f32 0.0, %v7328
    %v7330 = vpop.f32.mrb[0].mxu0
    %v7331 = vpop.f32.mrb[0].mxu0
    %v7332 = vpop.f32.mrb[0].mxu0
    %7333 = vdwg.mxu0
    %v7335 = vsel %vm4050, %v4614, 0
    %v7338 = vsel %vm4622, %v1100, 0
    %7340 = vmatprep.subr.bf16.mxu0 0
    %7341 = vmatpush1.bf16.msra.mxu0 %v7338
    %7342 = vmatprep.subr.bf16.mxu0 0
    %7343 = vmatpush1.bf16.msra.mxu0 0
    %7344 = vmatprep.subr.bf16.mxu0 0
    %7345 = vmatpush1.bf16.msra.mxu0 0
    %7346 = vmatprep.subr.bf16.mxu0 0
    %7347 = vmatpush1.bf16.msra.mxu0 0
    %7348 = vmatprep.subr.bf16.mxu0 0
    %7349 = vmatpush1.bf16.msra.mxu0 0
    %7350 = vmatprep.subr.bf16.mxu0 0
    %7351 = vmatpush1.bf16.msra.mxu0 0
    %7352 = vmatprep.subr.bf16.mxu0 0
    %7353 = vmatpush1.bf16.msra.mxu0 0
    %7354 = vmatprep.subr.bf16.mxu0 0
    %7355 = vmatpush1.bf16.msra.mxu0 0
    %7356 = vmatprep.subr.bf16.mxu0 0
    %7357 = vmatpush1.bf16.msra.mxu0 0
    %7358 = vmatprep.subr.bf16.mxu0 0
    %7359 = vmatpush1.bf16.msra.mxu0 0
    %7360 = vmatprep.subr.bf16.mxu0 0
    %7361 = vmatpush1.bf16.msra.mxu0 0
    %7362 = vmatprep.subr.bf16.mxu0 0
    %7363 = vmatpush1.bf16.msra.mxu0 0
    %7364 = vmatprep.subr.bf16.mxu0 0
    %7365 = vmatpush1.bf16.msra.mxu0 0
    %7366 = vmatprep.subr.bf16.mxu0 0
    %7367 = vmatpush1.bf16.msra.mxu0 0
    %7368 = vmatprep.subr.bf16.mxu0 0
    %7369 = vmatpush1.bf16.msra.mxu0 0
    %7370 = vmatprep.subr.bf16.mxu0 0
    %7371 = vmatpush1.bf16.msra.mxu0 0
    %7372 = vmatprep.mubr.bf16.mxu0 0
    %7373 = vmatmul.mubr.bf16.gmra.mrb[0].mxu0 %v7335
    %v7374 = vpop.f32.mrb[0].mxu0
    %v7375 = vadd.f32 0.0, %v7374
    %v7376 = vpop.f32.mrb[0].mxu0
    %v7377 = vpop.f32.mrb[0].mxu0
    %v7378 = vpop.f32.mrb[0].mxu0
    %7379 = vdwg.mxu0
    %v7381 = vsel %vm4050, %v4615, 0
    %v7384 = vsel %vm4622, %v1101, 0
    %7386 = vmatprep.subr.bf16.mxu0 0
    %7387 = vmatpush1.bf16.msra.mxu0 %v7384
    %7388 = vmatprep.subr.bf16.mxu0 0
    %7389 = vmatpush1.bf16.msra.mxu0 0
    %7390 = vmatprep.subr.bf16.mxu0 0
    %7391 = vmatpush1.bf16.msra.mxu0 0
    %7392 = vmatprep.subr.bf16.mxu0 0
    %7393 = vmatpush1.bf16.msra.mxu0 0
    %7394 = vmatprep.subr.bf16.mxu0 0
    %7395 = vmatpush1.bf16.msra.mxu0 0
    %7396 = vmatprep.subr.bf16.mxu0 0
    %7397 = vmatpush1.bf16.msra.mxu0 0
    %7398 = vmatprep.subr.bf16.mxu0 0
    %7399 = vmatpush1.bf16.msra.mxu0 0
    %7400 = vmatprep.subr.bf16.mxu0 0
    %7401 = vmatpush1.bf16.msra.mxu0 0
    %7402 = vmatprep.subr.bf16.mxu0 0
    %7403 = vmatpush1.bf16.msra.mxu0 0
    %7404 = vmatprep.subr.bf16.mxu0 0
    %7405 = vmatpush1.bf16.msra.mxu0 0
    %7406 = vmatprep.subr.bf16.mxu0 0
    %7407 = vmatpush1.bf16.msra.mxu0 0
    %7408 = vmatprep.subr.bf16.mxu0 0
    %7409 = vmatpush1.bf16.msra.mxu0 0
    %7410 = vmatprep.subr.bf16.mxu0 0
    %7411 = vmatpush1.bf16.msra.mxu0 0
    %7412 = vmatprep.subr.bf16.mxu0 0
    %7413 = vmatpush1.bf16.msra.mxu0 0
    %7414 = vmatprep.subr.bf16.mxu0 0
    %7415 = vmatpush1.bf16.msra.mxu0 0
    %7416 = vmatprep.subr.bf16.mxu0 0
    %7417 = vmatpush1.bf16.msra.mxu0 0
    %7418 = vmatprep.mubr.bf16.mxu0 0
    %7419 = vmatmul.mubr.bf16.gmra.mrb[0].mxu0 %v7381
    %v7420 = vpop.f32.mrb[0].mxu0
    %v7421 = vadd.f32 0.0, %v7420
    %v7422 = vpop.f32.mrb[0].mxu0
    %v7423 = vpop.f32.mrb[0].mxu0
    %v7424 = vpop.f32.mrb[0].mxu0
    %7425 = vdwg.mxu0
    %v7427 = vsel %vm4050, %v4616, 0
    %v7430 = vsel %vm4622, %v1102, 0
    %7432 = vmatprep.subr.bf16.mxu0 0
    %7433 = vmatpush1.bf16.msra.mxu0 %v7430
    %7434 = vmatprep.subr.bf16.mxu0 0
    %7435 = vmatpush1.bf16.msra.mxu0 0
    %7436 = vmatprep.subr.bf16.mxu0 0
    %7437 = vmatpush1.bf16.msra.mxu0 0
    %7438 = vmatprep.subr.bf16.mxu0 0
    %7439 = vmatpush1.bf16.msra.mxu0 0
    %7440 = vmatprep.subr.bf16.mxu0 0
    %7441 = vmatpush1.bf16.msra.mxu0 0
    %7442 = vmatprep.subr.bf16.mxu0 0
    %7443 = vmatpush1.bf16.msra.mxu0 0
    %7444 = vmatprep.subr.bf16.mxu0 0
    %7445 = vmatpush1.bf16.msra.mxu0 0
    %7446 = vmatprep.subr.bf16.mxu0 0
    %7447 = vmatpush1.bf16.msra.mxu0 0
    %7448 = vmatprep.subr.bf16.mxu0 0
    %7449 = vmatpush1.bf16.msra.mxu0 0
    %7450 = vmatprep.subr.bf16.mxu0 0
    %7451 = vmatpush1.bf16.msra.mxu0 0
    %7452 = vmatprep.subr.bf16.mxu0 0
    %7453 = vmatpush1.bf16.msra.mxu0 0
    %7454 = vmatprep.subr.bf16.mxu0 0
    %7455 = vmatpush1.bf16.msra.mxu0 0
    %7456 = vmatprep.subr.bf16.mxu0 0
    %7457 = vmatpush1.bf16.msra.mxu0 0
    %7458 = vmatprep.subr.bf16.mxu0 0
    %7459 = vmatpush1.bf16.msra.mxu0 0
    %7460 = vmatprep.subr.bf16.mxu0 0
    %7461 = vmatpush1.bf16.msra.mxu0 0
    %7462 = vmatprep.subr.bf16.mxu0 0
    %7463 = vmatpush1.bf16.msra.mxu0 0
    %7464 = vmatprep.mubr.bf16.mxu0 0
    %7465 = vmatmul.mubr.bf16.gmra.mrb[0].mxu0 %v7427
    %v7466 = vpop.f32.mrb[0].mxu0
    %v7467 = vadd.f32 0.0, %v7466
    %v7468 = vpop.f32.mrb[0].mxu0
    %v7469 = vpop.f32.mrb[0].mxu0
    %v7470 = vpop.f32.mrb[0].mxu0
    %7471 = vdwg.mxu0
    %v7473 = vsel %vm4050, %v4617, 0
    %v7476 = vsel %vm4622, %v1103, 0
    %7478 = vmatprep.subr.bf16.mxu0 0
    %7479 = vmatpush1.bf16.msra.mxu0 %v7476
    %7480 = vmatprep.subr.bf16.mxu0 0
    %7481 = vmatpush1.bf16.msra.mxu0 0
    %7482 = vmatprep.subr.bf16.mxu0 0
    %7483 = vmatpush1.bf16.msra.mxu0 0
    %7484 = vmatprep.subr.bf16.mxu0 0
    %7485 = vmatpush1.bf16.msra.mxu0 0
    %7486 = vmatprep.subr.bf16.mxu0 0
    %7487 = vmatpush1.bf16.msra.mxu0 0
    %7488 = vmatprep.subr.bf16.mxu0 0
    %7489 = vmatpush1.bf16.msra.mxu0 0
    %7490 = vmatprep.subr.bf16.mxu0 0
    %7491 = vmatpush1.bf16.msra.mxu0 0
    %7492 = vmatprep.subr.bf16.mxu0 0
    %7493 = vmatpush1.bf16.msra.mxu0 0
    %7494 = vmatprep.subr.bf16.mxu0 0
    %7495 = vmatpush1.bf16.msra.mxu0 0
    %7496 = vmatprep.subr.bf16.mxu0 0
    %7497 = vmatpush1.bf16.msra.mxu0 0
    %7498 = vmatprep.subr.bf16.mxu0 0
    %7499 = vmatpush1.bf16.msra.mxu0 0
    %7500 = vmatprep.subr.bf16.mxu0 0
    %7501 = vmatpush1.bf16.msra.mxu0 0
    %7502 = vmatprep.subr.bf16.mxu0 0
    %7503 = vmatpush1.bf16.msra.mxu0 0
    %7504 = vmatprep.subr.bf16.mxu0 0
    %7505 = vmatpush1.bf16.msra.mxu0 0
    %7506 = vmatprep.subr.bf16.mxu0 0
    %7507 = vmatpush1.bf16.msra.mxu0 0
    %7508 = vmatprep.subr.bf16.mxu0 0
    %7509 = vmatpush1.bf16.msra.mxu0 0
    %7510 = vmatprep.mubr.bf16.mxu0 0
    %7511 = vmatmul.mubr.bf16.gmra.mrb[0].mxu0 %v7473
    %v7512 = vpop.f32.mrb[0].mxu0
    %v7513 = vadd.f32 0.0, %v7512
    %v7514 = vpop.f32.mrb[0].mxu0
    %v7515 = vpop.f32.mrb[0].mxu0
    %v7516 = vpop.f32.mrb[0].mxu0
    %7517 = vdwg.mxu0
    %v7519 = vsel %vm4050, %v4618, 0
    %v7522 = vsel %vm4622, %v1104, 0
    %7524 = vmatprep.subr.bf16.mxu0 0
    %7525 = vmatpush1.bf16.msra.mxu0 %v7522
    %7526 = vmatprep.subr.bf16.mxu0 0
    %7527 = vmatpush1.bf16.msra.mxu0 0
    %7528 = vmatprep.subr.bf16.mxu0 0
    %7529 = vmatpush1.bf16.msra.mxu0 0
    %7530 = vmatprep.subr.bf16.mxu0 0
    %7531 = vmatpush1.bf16.msra.mxu0 0
    %7532 = vmatprep.subr.bf16.mxu0 0
    %7533 = vmatpush1.bf16.msra.mxu0 0
    %7534 = vmatprep.subr.bf16.mxu0 0
    %7535 = vmatpush1.bf16.msra.mxu0 0
    %7536 = vmatprep.subr.bf16.mxu0 0
    %7537 = vmatpush1.bf16.msra.mxu0 0
    %7538 = vmatprep.subr.bf16.mxu0 0
    %7539 = vmatpush1.bf16.msra.mxu0 0
    %7540 = vmatprep.subr.bf16.mxu0 0
    %7541 = vmatpush1.bf16.msra.mxu0 0
    %7542 = vmatprep.subr.bf16.mxu0 0
    %7543 = vmatpush1.bf16.msra.mxu0 0
    %7544 = vmatprep.subr.bf16.mxu0 0
    %7545 = vmatpush1.bf16.msra.mxu0 0
    %7546 = vmatprep.subr.bf16.mxu0 0
    %7547 = vmatpush1.bf16.msra.mxu0 0
    %7548 = vmatprep.subr.bf16.mxu0 0
    %7549 = vmatpush1.bf16.msra.mxu0 0
    %7550 = vmatprep.subr.bf16.mxu0 0
    %7551 = vmatpush1.bf16.msra.mxu0 0
    %7552 = vmatprep.subr.bf16.mxu0 0
    %7553 = vmatpush1.bf16.msra.mxu0 0
    %7554 = vmatprep.subr.bf16.mxu0 0
    %7555 = vmatpush1.bf16.msra.mxu0 0
    %7556 = vmatprep.mubr.bf16.mxu0 0
    %7557 = vmatmul.mubr.bf16.gmra.mrb[0].mxu0 %v7519
    %v7558 = vpop.f32.mrb[0].mxu0
    %v7559 = vadd.f32 0.0, %v7558
    %v7560 = vpop.f32.mrb[0].mxu0
    %v7561 = vpop.f32.mrb[0].mxu0
    %v7562 = vpop.f32.mrb[0].mxu0
    %7563 = vdwg.mxu0
    %7572 = vrot.lane.b32.xlu0 %v5029, 16
    %v7573 = vpop.permute.xlu0 %7572
    %7574 = vrot.lane.b32.xlu0 %v5075, 16
    %v7575 = vpop.permute.xlu0 %7574
    %7576 = vrot.lane.b32.xlu0 %v5121, 16
    %v7577 = vpop.permute.xlu0 %7576
    %7578 = vrot.lane.b32.xlu0 %v5167, 16
    %v7579 = vpop.permute.xlu0 %7578
    %7580 = vrot.lane.b32.xlu0 %v5213, 16
    %v7581 = vpop.permute.xlu0 %7580
    %7582 = vrot.lane.b32.xlu0 %v5259, 16
    %v7583 = vpop.permute.xlu0 %7582
    %7584 = vrot.lane.b32.xlu0 %v5305, 16
    %v7585 = vpop.permute.xlu0 %7584
    %7586 = vrot.lane.b32.xlu0 %v5351, 16
    %v7587 = vpop.permute.xlu0 %7586
    %7604 = vrot.lane.b32.xlu0 %v5397, 32
    %v7605 = vpop.permute.xlu0 %7604
    %7606 = vrot.lane.b32.xlu0 %v5443, 32
    %v7607 = vpop.permute.xlu0 %7606
    %7608 = vrot.lane.b32.xlu0 %v5489, 32
    %v7609 = vpop.permute.xlu0 %7608
    %7610 = vrot.lane.b32.xlu0 %v5535, 32
    %v7611 = vpop.permute.xlu0 %7610
    %7612 = vrot.lane.b32.xlu0 %v5581, 32
    %v7613 = vpop.permute.xlu0 %7612
    %7614 = vrot.lane.b32.xlu0 %v5627, 32
    %v7615 = vpop.permute.xlu0 %7614
    %7616 = vrot.lane.b32.xlu0 %v5673, 32
    %v7617 = vpop.permute.xlu0 %7616
    %7618 = vrot.lane.b32.xlu0 %v5719, 32
    %v7619 = vpop.permute.xlu0 %7618
    %7636 = vrot.lane.b32.xlu0 %v5765, 48
    %v7637 = vpop.permute.xlu0 %7636
    %7638 = vrot.lane.b32.xlu0 %v5811, 48
    %v7639 = vpop.permute.xlu0 %7638
    %7640 = vrot.lane.b32.xlu0 %v5857, 48
    %v7641 = vpop.permute.xlu0 %7640
    %7642 = vrot.lane.b32.xlu0 %v5903, 48
    %v7643 = vpop.permute.xlu0 %7642
    %7644 = vrot.lane.b32.xlu0 %v5949, 48
    %v7645 = vpop.permute.xlu0 %7644
    %7646 = vrot.lane.b32.xlu0 %v5995, 48
    %v7647 = vpop.permute.xlu0 %7646
    %7648 = vrot.lane.b32.xlu0 %v6041, 48
    %v7649 = vpop.permute.xlu0 %7648
    %7650 = vrot.lane.b32.xlu0 %v6087, 48
    %v7651 = vpop.permute.xlu0 %7650
    %7668 = vrot.lane.b32.xlu0 %v6133, 64
    %v7669 = vpop.permute.xlu0 %7668
    %7670 = vrot.lane.b32.xlu0 %v6179, 64
    %v7671 = vpop.permute.xlu0 %7670
    %7672 = vrot.lane.b32.xlu0 %v6225, 64
    %v7673 = vpop.permute.xlu0 %7672
    %7674 = vrot.lane.b32.xlu0 %v6271, 64
    %v7675 = vpop.permute.xlu0 %7674
    %7676 = vrot.lane.b32.xlu0 %v6317, 64
    %v7677 = vpop.permute.xlu0 %7676
    %7678 = vrot.lane.b32.xlu0 %v6363, 64
    %v7679 = vpop.permute.xlu0 %7678
    %7680 = vrot.lane.b32.xlu0 %v6409, 64
    %v7681 = vpop.permute.xlu0 %7680
    %7682 = vrot.lane.b32.xlu0 %v6455, 64
    %v7683 = vpop.permute.xlu0 %7682
    %7700 = vrot.lane.b32.xlu0 %v6501, 80
    %v7701 = vpop.permute.xlu0 %7700
    %7702 = vrot.lane.b32.xlu0 %v6547, 80
    %v7703 = vpop.permute.xlu0 %7702
    %7704 = vrot.lane.b32.xlu0 %v6593, 80
    %v7705 = vpop.permute.xlu0 %7704
    %7706 = vrot.lane.b32.xlu0 %v6639, 80
    %v7707 = vpop.permute.xlu0 %7706
    %7708 = vrot.lane.b32.xlu0 %v6685, 80
    %v7709 = vpop.permute.xlu0 %7708
    %7710 = vrot.lane.b32.xlu0 %v6731, 80
    %v7711 = vpop.permute.xlu0 %7710
    %7712 = vrot.lane.b32.xlu0 %v6777, 80
    %v7713 = vpop.permute.xlu0 %7712
    %7714 = vrot.lane.b32.xlu0 %v6823, 80
    %v7715 = vpop.permute.xlu0 %7714
    %7732 = vrot.lane.b32.xlu0 %v6869, 96
    %v7733 = vpop.permute.xlu0 %7732
    %7734 = vrot.lane.b32.xlu0 %v6915, 96
    %v7735 = vpop.permute.xlu0 %7734
    %7736 = vrot.lane.b32.xlu0 %v6961, 96
    %v7737 = vpop.permute.xlu0 %7736
    %7738 = vrot.lane.b32.xlu0 %v7007, 96
    %v7739 = vpop.permute.xlu0 %7738
    %7740 = vrot.lane.b32.xlu0 %v7053, 96
    %v7741 = vpop.permute.xlu0 %7740
    %7742 = vrot.lane.b32.xlu0 %v7099, 96
    %v7743 = vpop.permute.xlu0 %7742
    %7744 = vrot.lane.b32.xlu0 %v7145, 96
    %v7745 = vpop.permute.xlu0 %7744
    %7746 = vrot.lane.b32.xlu0 %v7191, 96
    %v7747 = vpop.permute.xlu0 %7746
    %7764 = vrot.lane.b32.xlu0 %v7237, 112
    %v7765 = vpop.permute.xlu0 %7764
    %7766 = vrot.lane.b32.xlu0 %v7283, 112
    %v7767 = vpop.permute.xlu0 %7766
    %7768 = vrot.lane.b32.xlu0 %v7329, 112
    %v7769 = vpop.permute.xlu0 %7768
    %7770 = vrot.lane.b32.xlu0 %v7375, 112
    %v7771 = vpop.permute.xlu0 %7770
    %7772 = vrot.lane.b32.xlu0 %v7421, 112
    %v7773 = vpop.permute.xlu0 %7772
    %7774 = vrot.lane.b32.xlu0 %v7467, 112
    %v7775 = vpop.permute.xlu0 %7774
    %7776 = vrot.lane.b32.xlu0 %v7513, 112
    %v7777 = vpop.permute.xlu0 %7776
    %7778 = vrot.lane.b32.xlu0 %v7559, 112
    %v7779 = vpop.permute.xlu0 %7778
    %v7788 = vsel %vm1105, %v4661, %v7573
    %v7789 = vsel %vm1105, %v4707, %v7575
    %v7790 = vsel %vm1105, %v4753, %v7577
    %v7791 = vsel %vm1105, %v4799, %v7579
    %v7792 = vsel %vm1105, %v4845, %v7581
    %v7793 = vsel %vm1105, %v4891, %v7583
    %v7794 = vsel %vm1105, %v4937, %v7585
    %v7795 = vsel %vm1105, %v4983, %v7587
    %vm7796 = vcmask 261120
    %v7797 = vsel %vm7796, %v7788, %v7605
    %v7798 = vsel %vm7796, %v7789, %v7607
    %v7799 = vsel %vm7796, %v7790, %v7609
    %v7800 = vsel %vm7796, %v7791, %v7611
    %v7801 = vsel %vm7796, %v7792, %v7613
    %v7802 = vsel %vm7796, %v7793, %v7615
    %v7803 = vsel %vm7796, %v7794, %v7617
    %v7804 = vsel %vm7796, %v7795, %v7619
    %vm7805 = vcmask 392192
    %v7806 = vsel %vm7805, %v7797, %v7637
    %v7807 = vsel %vm7805, %v7798, %v7639
    %v7808 = vsel %vm7805, %v7799, %v7641
    %v7809 = vsel %vm7805, %v7800, %v7643
    %v7810 = vsel %vm7805, %v7801, %v7645
    %v7811 = vsel %vm7805, %v7802, %v7647
    %v7812 = vsel %vm7805, %v7803, %v7649
    %v7813 = vsel %vm7805, %v7804, %v7651
    %vm7814 = vcmask 523264
    %v7815 = vsel %vm7814, %v7806, %v7669
    %v7816 = vsel %vm7814, %v7807, %v7671
    %v7817 = vsel %vm7814, %v7808, %v7673
    %v7818 = vsel %vm7814, %v7809, %v7675
    %v7819 = vsel %vm7814, %v7810, %v7677
    %v7820 = vsel %vm7814, %v7811, %v7679
    %v7821 = vsel %vm7814, %v7812, %v7681
    %v7822 = vsel %vm7814, %v7813, %v7683
    %vm7823 = vcmask 654336
    %v7824 = vsel %vm7823, %v7815, %v7701
    %v7825 = vsel %vm7823, %v7816, %v7703
    %v7826 = vsel %vm7823, %v7817, %v7705
    %v7827 = vsel %vm7823, %v7818, %v7707
    %v7828 = vsel %vm7823, %v7819, %v7709
    %v7829 = vsel %vm7823, %v7820, %v7711
    %v7830 = vsel %vm7823, %v7821, %v7713
    %v7831 = vsel %vm7823, %v7822, %v7715
    %vm7832 = vcmask 785408
    %v7833 = vsel %vm7832, %v7824, %v7733
    %v7834 = vsel %vm7832, %v7825, %v7735
    %v7835 = vsel %vm7832, %v7826, %v7737
    %v7836 = vsel %vm7832, %v7827, %v7739
    %v7837 = vsel %vm7832, %v7828, %v7741
    %v7838 = vsel %vm7832, %v7829, %v7743
    %v7839 = vsel %vm7832, %v7830, %v7745
    %v7840 = vsel %vm7832, %v7831, %v7747
    %vm7841 = vcmask 916480
    %v7842 = vsel %vm7841, %v7833, %v7765
    %v7843 = vsel %vm7841, %v7834, %v7767
    %v7844 = vsel %vm7841, %v7835, %v7769
    %v7845 = vsel %vm7841, %v7836, %v7771
    %v7846 = vsel %vm7841, %v7837, %v7773
    %v7847 = vsel %vm7841, %v7838, %v7775
    %v7848 = vsel %vm7841, %v7839, %v7777
    %v7849 = vsel %vm7841, %v7840, %v7779
    %7850 = vst [vmem:[#allocation5] sm:$0xff] %v7842
    %7851 = vst [vmem:[#allocation5 + $0x8] sm:$0xff] %v7843
    %7852 = vst [vmem:[#allocation5 + $0x10] sm:$0xff] %v7844
    %7853 = vst [vmem:[#allocation5 + $0x18] sm:$0xff] %v7845
    %7854 = vst [vmem:[#allocation5 + $0x20] sm:$0xff] %v7846
    %7855 = vst [vmem:[#allocation5 + $0x28] sm:$0xff] %v7847
    %7856 = vst [vmem:[#allocation5 + $0x30] sm:$0xff] %v7848
    %7857 = vst [vmem:[#allocation5 + $0x38] sm:$0xff] %v7849
    // Predicated region
    $region18: #{multihead_attention.1} parent=1 // pred_check
      _
    $region19: #{multihead_attention.1} parent=1 // pred_check_branch
      %7859 = sbr.rel (0) target = $region21
    $region20: #{multihead_attention.1} parent=1 // pred_region
      %s7861 = ssub.s32 1024, 1024
      %7862 = vsyncadd [#allocation4], %s7861
      %s7863 = sshll.u32 [#allocation5], 4
      %s7864 = int_to_ptr.vmem [resolvable:$true] %s7863
      %7869 = dma.vmem_to_hbm [thread:$0]  %s7864, 1024, %s3, [#allocation4], 128, 128, 8
    $region21: #{multihead_attention.1} parent=1 // pred_fallthru
      _
    // Predicated region
    $region22: #{multihead_attention.1} parent=1 // pred_check
      _
    $region23: #{multihead_attention.1} parent=1 // pred_check_branch
      %7871 = sbr.rel (0) target = $region25
    $region24: #{multihead_attention.1} parent=1 // pred_region
      %7872 = dma.done [#allocation4], 1024
    $region25: #{multihead_attention.1} parent=1 // pred_fallthru
      _
    %7873 = vsyncpa [#allocation3], 1
    %7874 = vsyncpa [#allocation4], 1

</llo_original>
